<compile_context>
chip_gen: v5e
topology: v5e:2x2
jax: 0.10.0
libtpu: 0.0.40
codegen_flags: <defaults>
</compile_context>

<pallas_src>
import numpy as np
import jax
import jax.numpy as jnp
from jax.experimental import pallas as pl
from jax.experimental.pallas import tpu as pltpu

NUM_HEADS = 8
SEQ_LEN = 11  # LGFI1dc.seq_len; the positional-encoding table forces L == 11.


# ----------------------------------------------------------------------------- glue
def sinusoid_pos_table(dim, d_hid=SEQ_LEN):
    """PositionalEncodingFourier1d table, shape (1, dim, d_hid) — exact torch replay."""
    pos = np.arange(dim)[:, None].astype(np.float64)
    hid = np.arange(d_hid)[None, :]
    table = pos / np.power(10000.0, 2.0 * (hid // 2) / d_hid)
    table[:, 0::2] = np.sin(table[:, 0::2])
    table[:, 1::2] = np.cos(table[:, 1::2])
    return jnp.asarray(table, jnp.float32)[None]


def build_relative_position_bias(table, num_heads, head_dim):
    """Faithful replay of the gather -> expand -> F.interpolate(1/11, nearest)
    -> F.pixel_shuffle(d) -> permute chain. Returns (H, d, d)."""
    T, H, d = SEQ_LEN, num_heads, head_dim
    coords = jnp.arange(T)
    rel = coords[:, None] - coords[None, :] + (T - 1)                 # (T, T)
    rpb = table[rel.reshape(-1)].reshape(T, T, H)                     # (T, T, H)
    rpb = jnp.transpose(rpb[None], (3, 0, 1, 2))                      # (H, 1, T, T)
    rpb = jnp.broadcast_to(rpb, (H, d * d, T, T))                     # expand
    rpb = rpb[:, :, :1, :1]                                           # nearest 1/11 -> idx 0
    rpb = rpb.reshape(H, 1, d, d, 1, 1)
    rpb = jnp.transpose(rpb, (0, 1, 4, 2, 5, 3)).reshape(H, 1, d, d)  # pixel_shuffle(d)
    rpb = jnp.transpose(rpb, (1, 0, 2, 3))                            # (1, H, d, d)
    return rpb[0]                                                     # (H, d, d)


# ----------------------------------------------------------------------------- kernel
def lgfi_kernel(x_ref, pos_ref, vec_ref, wqp_ref, bqkv_ref, convw_ref,
                abias_ref, rows_ref, cols_ref, rowt_ref, out_ref):
    f32 = jnp.float32
    x_in = x_ref[...]                                   # (R, C) f32, R = Bb * L
    R, C = x_in.shape
    C3 = 3 * C
    BbC = cols_ref.shape[1]
    Bb = BbC // C

    # coalesced per-channel vectors (one (8, C) operand)
    ln_w  = vec_ref[0:1, :]
    ln_b  = vec_ref[1:2, :]
    gxca  = vec_ref[2:3, :]
    temp  = vec_ref[3:4, :]        # per-channel (per-head) XCA temperature
    bproj = vec_ref[4:5, :]
    bn_sc = vec_ref[5:6, :]
    bn_sh = vec_ref[6:7, :]
    gamma = vec_ref[7:8, :]

    # [P2] batch/sequence structure rebuilt in-kernel from tiny int32 id vectors
    row_bid   = rows_ref[:, 0:1]                        # (R, 1)  batch id of each row
    not_first = rows_ref[:, 1:2].astype(f32)            # (R, 1)  0.0 at sequence pos 0
    not_last  = rows_ref[:, 2:3].astype(f32)            # (R, 1)  0.0 at sequence pos L-1
    col_bid   = cols_ref[0:1, :]                        # (1, Bb*C) batch id of each lane
    col_cid   = cols_ref[1:2, :]                        # (1, Bb*C) channel id of each lane
    rowt_bid  = rowt_ref[...]                           # (1, R)  row batch ids (row layout)
    mmask = (row_bid == col_bid).astype(f32)                                     # (R, Bb*C)
    texp  = (jax.lax.broadcasted_iota(jnp.int32, (C, BbC), 0) == col_cid).astype(f32)
    g     = (jax.lax.broadcasted_iota(jnp.int32, (Bb, R), 0) == rowt_bid).astype(f32)

    # positional encoding + LayerNorm over channels (eps = 1e-6), rsqrt on the EUP
    x = x_in + pos_ref[...].astype(f32)                 # [P4] pos travels as bf16
    mu = jnp.mean(x, axis=-1, keepdims=True)
    xc = x - mu
    var = jnp.mean(xc * xc, axis=-1, keepdims=True)
    xhat = xc * jax.lax.rsqrt(var + 1e-6) * ln_w + ln_b

    # QKV + proj weights as one (C, 4C) operand (bf16 in HBM, f32 accumulate)
    wqp = wqp_ref[...].astype(f32)
    qkv = jnp.dot(xhat, wqp[:, :C3], preferred_element_type=f32) + bqkv_ref[...]
    q = qkv[:, 0 * C:1 * C]
    k = qkv[:, 1 * C:2 * C]
    v = qkv[:, 2 * C:3 * C]

    # [P5] fused q/k L2-norms: one (Bb,R)@(R,2C) reduction + one expansion back to rows.
    # g @ (q*q | k*k) gives per-(batch, channel) sums over the L rows of each batch.
    qk_sq = jnp.concatenate([q * q, k * k], axis=1)                              # (R, 2C)
    sums = jnp.dot(g, qk_sq, preferred_element_type=f32)                         # (Bb, 2C)
    inv = jnp.minimum(jax.lax.rsqrt(sums), 1e12)
    inv_rows = jax.lax.dot_general(g, inv, (((0,), (0,)), ((), ())),
                                   preferred_element_type=f32)                   # (R, 2C)
    qn = q * inv_rows[:, :C] * temp        # fold per-head temperature into q (post-norm)
    kn = k * inv_rows[:, C:]

    # Per-batch channel attention, batch-block-stacked along lanes:
    #   texp  (C, Bb*C)  lane expansion (Bb copies of I_C side by side)
    #   mmask (R, Bb*C)  1 where the row's batch matches the lane block
    q_exp = jnp.dot(qn, texp, preferred_element_type=f32) * mmask                # (R, Bb*C)
    logits = jax.lax.dot_general(q_exp, kn, (((0,), (0,)), ((), ())),
                                 preferred_element_type=f32)                     # (Bb*C, C)
    # [P2] abias (per-head rpb on dxd diagonal blocks, -1e30 elsewhere) arrives un-tiled
    # as (C, C) and is tiled over the batch blocks at add time.
    logits = logits + jnp.concatenate([abias_ref[...]] * Bb, axis=0)

    # softmax over the C key-channel lanes — exact reciprocal ([P6] review concern)
    logits = logits - jnp.max(logits, axis=-1, keepdims=True)
    e = jnp.exp(logits)
    attn = e * pl.reciprocal(jnp.sum(e, axis=-1, keepdims=True), approx=False)

    # apply attention to v and collapse the batch-block lanes back to (R, C)
    p_all = jax.lax.dot_general(v, attn, (((1,), (1,)), ((), ())),
                                preferred_element_type=f32)                      # (R, Bb*C)
    xca = jax.lax.dot_general(p_all * mmask, texp, (((1,), (1,)), ((), ())),
                              preferred_element_type=f32)                        # (R, C)
    xca = jnp.dot(xca, wqp[:, C3:], preferred_element_type=f32) + bproj
    x2 = x + gxca * xca

    # [P1] Conv1d(C, C, k=3, pad=1): one fused (R,C)@(C,3C) MXU push for all three taps,
    # then the ±1 sequence shifts via pltpu.roll on the sublane axis (XLU) with per-batch
    # boundary masks implementing the zero padding.
    z = jnp.dot(x2, convw_ref[...].astype(f32), preferred_element_type=f32)      # (R, 3C)
    y = (pltpu.roll(z[:, 0 * C:1 * C], shift=1, axis=0) * not_first       # tap 0: x[l-1]
         + z[:, 1 * C:2 * C]                                              # tap 1: x[l]
         + pltpu.roll(z[:, 2 * C:3 * C], shift=R - 1, axis=0) * not_last) # tap 2: x[l+1]
    y = y * bn_sc + bn_sh              # BatchNorm1d (eval, folded)
    y = y * jax.nn.sigmoid(y)          # SiLU

    out_ref[...] = (x_in + (x2 + y) * gamma).astype(out_ref.dtype)        # residual


# ----------------------------------------------------------------------------- wrapper
def lgfi1dc_pallas(x, p, *, block_batch=None):
    B, C, L = x.shape
    H = NUM_HEADS
    d = C // H
    assert L == SEQ_LEN and C % H == 0
    f32 = jnp.float32

    # [P3] grid sizing: default = whole batch in one grid step (single-TC v5e/v6e).
    # Dual-TC v7x: pass block_batch ~= ceil(B/2) so nblk is a multiple of 2 and the
    # "parallel" grid axis hands one block to each TensorCore.
    if block_batch is None:
        Bb = B
    else:
        Bb = min(max(1, int(block_batch)), B)
    if Bb < B:
        Bb = min(-(-Bb // 8) * 8, B)       # multi-block: keep R = Bb*L a multiple of 8
    B_pad = -(-B // Bb) * Bb
    R = Bb * L
    nblk = B_pad // Bb

    x_t = jnp.transpose(x, (0, 2, 1)).astype(f32)                      # (B, L, C)
    if B_pad != B:
        x_t = jnp.pad(x_t, ((0, B_pad - B), (0, 0), (0, 0)))
    x2d = x_t.reshape(B_pad * L, C)                                    # (B_pad*L, C)

    # positional-encoding tile for one block (same table for every batch)   [P4] bf16
    pos_t = jnp.transpose(p['pos_table'][0], (1, 0))                   # (L, C)
    pos_blk = jnp.tile(pos_t, (Bb, 1)).astype(jnp.bfloat16)            # (R, C)

    # stacked per-channel vectors (8, C), f32
    bn_scale = p['bn_w'] / jnp.sqrt(p['bn_rv'] + 1e-5)
    bn_shift = p['bn_b'] - p['bn_rm'] * bn_scale
    temp_row = jnp.repeat(p['temperature'], d)                         # (C,)
    vecs = jnp.stack([p['ln_w'], p['ln_b'], p['gamma_xca'], temp_row,
                      p['bproj'], bn_scale, bn_shift, p['gamma']], axis=0).astype(f32)

    # qkv + proj weights as one (C, 4C) operand; conv taps as one (C, 3C) operand   [P4]
    wqp = jnp.concatenate([jnp.transpose(p['wqkv']),
                           jnp.transpose(p['wproj'])], axis=1).astype(jnp.bfloat16)
    bqkv = p['bqkv'].reshape(1, 3 * C).astype(f32)
    convw_t = jnp.transpose(p['conv_w'], (2, 1, 0))                    # (3, Cin, Cout)
    convw_lanes = (jnp.transpose(convw_t, (1, 0, 2))
                   .reshape(C, 3 * C).astype(jnp.bfloat16))            # (C, 3C)

    # [P2] un-tiled (C, C) attention bias: per-head rpb on dxd diagonal blocks,
    # -1e30 elsewhere (keeps the softmax within each head). Tiled in-kernel.
    rpb = build_relative_position_bias(p['rpb_table'], H, d)           # (H, d, d)
    abias = jnp.full((C, C), -1e30, f32)
    for h in range(H):
        abias = abias.at[h * d:(h + 1) * d, h * d:(h + 1) * d].set(rpb[h])

    # [P2] tiny batch-structure id vectors (replace the big mask/shift operands of v2)
    rr = jnp.arange(R, dtype=jnp.int32)
    pos_idx = rr % L
    row_struct = jnp.stack([rr // L,                                   # batch id of row
                            (pos_idx != 0).astype(jnp.int32),          # not first in seq
                            (pos_idx != L - 1).astype(jnp.int32)],     # not last in seq
                           axis=1)                                     # (R, 3)
    jj = jnp.arange(Bb * C, dtype=jnp.int32)
    col_struct = jnp.stack([jj // C, jj % C], axis=0)                  # (2, Bb*C)
    rowt_struct = (rr // L)[None, :]                                   # (1, R)

    def _rep(a):  # replicated (grid-constant) operand
        return pl.BlockSpec(a.shape, lambda i: (0, 0))

    out2d = pl.pallas_call(
        lgfi_kernel,
        out_shape=jax.ShapeDtypeStruct((B_pad * L, C), f32),
        grid=(nblk,),
        in_specs=[
            pl.BlockSpec((R, C), lambda i: (i, 0)),     # x rows for this block
            _rep(pos_blk), _rep(vecs), _rep(wqp), _rep(bqkv), _rep(convw_lanes),
            _rep(abias), _rep(row_struct), _rep(col_struct), _rep(rowt_struct),
        ],
        out_specs=pl.BlockSpec((R, C), lambda i: (i, 0)),
        compiler_params=pltpu.CompilerParams(dimension_semantics=("parallel",)),
    )(x2d, pos_blk, vecs, wqp, bqkv, convw_lanes, abias,
      row_struct, col_struct, rowt_struct)

    out = out2d.reshape(B_pad, L, C)[:B]                               # drop padding
    return jnp.transpose(out, (0, 2, 1))                               # back to (B, C, L)


# ----------------------------------------------------------------------------- pure-JAX reference
def lgfi1dc_reference(x, p):
    B, C, L = x.shape
    H = NUM_HEADS
    d = C // H
    hp = jax.lax.Precision.HIGHEST
    input_ = x

    x = x + p['pos_table'][:, :C]                                  # (B,C,L) + (1,C,11)
    x = jnp.transpose(x, (0, 2, 1))                                # (B, L, C)

    rpb = build_relative_position_bias(p['rpb_table'], H, d)       # (H, d, d)

    mu = x.mean(-1, keepdims=True)
    var = ((x - mu) ** 2).mean(-1, keepdims=True)
    xn = (x - mu) / jnp.sqrt(var + 1e-6) * p['ln_w'] + p['ln_b']

    qkv = jnp.einsum('blc,oc->blo', xn, p['wqkv'], precision=hp) + p['bqkv']
    qkv = qkv.reshape(B, L, 3, H, d).transpose(2, 0, 3, 4, 1)      # (3, B, H, d, L)
    q, k, v = qkv[0], qkv[1], qkv[2]
    q = q / jnp.maximum(jnp.sqrt((q * q).sum(-1, keepdims=True)), 1e-12)
    k = k / jnp.maximum(jnp.sqrt((k * k).sum(-1, keepdims=True)), 1e-12)
    attn = jnp.einsum('bhil,bhjl->bhij', q, k, precision=hp)
    attn = attn * p['temperature'][None, :, None, None] + rpb[None]
    attn = jax.nn.softmax(attn, axis=-1)
    o = jnp.einsum('bhij,bhjl->bhil', attn, v, precision=hp)
    o = o.transpose(0, 3, 1, 2).reshape(B, L, C)
    o = jnp.einsum('blc,oc->blo', o, p['wproj'], precision=hp) + p['bproj']
    x = x + p['gamma_xca'] * o

    x = jnp.transpose(x, (0, 2, 1))                                # (B, C, L)
    xpad = jnp.pad(x, ((0, 0), (0, 0), (1, 1)))
    cols = jnp.stack([xpad[:, :, kk:kk + L] for kk in range(3)], axis=2)   # (B, C, 3, L)
    y = jnp.einsum('oik,bikl->bol', p['conv_w'], cols, precision=hp)
    bn_scale = p['bn_w'] / jnp.sqrt(p['bn_rv'] + 1e-5)
    y = (y - p['bn_rm'][None, :, None]) * bn_scale[None, :, None] + p['bn_b'][None, :, None]
    y = y * jax.nn.sigmoid(y)
    x = x + y

    x = jnp.transpose(x, (0, 2, 1))
    x = p['gamma'] * x
    x = jnp.transpose(x, (0, 2, 1))
    return input_ + x


# ----------------------------------------------------------------------------- main
if __name__ == "__main__":
    B, C, L, H = 24, 32, SEQ_LEN, NUM_HEADS

    key = jax.random.PRNGKey(0)
    ks = jax.random.split(key, 16)

    params = dict(
        pos_table=sinusoid_pos_table(C, SEQ_LEN),                           # buffer
        ln_w=1.0 + 0.1 * jax.random.normal(ks[0], (C,), jnp.float32),
        ln_b=0.1 * jax.random.normal(ks[1], (C,), jnp.float32),
        gamma_xca=1e-6 * jnp.ones((C,), jnp.float32),                       # torch init
        wqkv=0.05 * jax.random.normal(ks[2], (3 * C, C), jnp.float32),
        bqkv=0.05 * jax.random.normal(ks[3], (3 * C,), jnp.float32),
        temperature=1.0 + 0.1 * jax.random.normal(ks[4], (H,), jnp.float32),
        # torch init is zeros; use small deterministic values for a meaningful test
        rpb_table=0.02 * jax.random.normal(ks[5], (2 * SEQ_LEN - 1, H), jnp.float32),
        wproj=0.05 * jax.random.normal(ks[6], (C, C), jnp.float32),
        bproj=0.05 * jax.random.normal(ks[7], (C,), jnp.float32),
        conv_w=0.05 * jax.random.normal(ks[8], (C, C, 3), jnp.float32),     # no conv bias (pre-BN)
        bn_w=1.0 + 0.1 * jax.random.normal(ks[9], (C,), jnp.float32),
        bn_b=0.1 * jax.random.normal(ks[10], (C,), jnp.float32),
        bn_rm=0.1 * jax.random.normal(ks[11], (C,), jnp.float32),
        bn_rv=1.0 + 0.5 * jax.random.uniform(ks[12], (C,), jnp.float32),
        gamma=1e-6 * jnp.ones((C,), jnp.float32),                           # torch init
    )

    x = jax.random.normal(ks[13], (B, C, L), jnp.float32)
    ref = lgfi1dc_reference(x, params)

    # 1) single-TC config (v5e/v6e): whole batch in one grid step
    out = jax.block_until_ready(lgfi1dc_pallas(x, params))
    assert out.shape == (B, C, L) and out.dtype == jnp.float32
    np.testing.assert_allclose(np.asarray(out), np.asarray(ref), rtol=1e-4, atol=1e-4)
    np.testing.assert_allclose(np.asarray(out) - np.asarray(x),
                               np.asarray(ref) - np.asarray(x),
                               rtol=5e-2, atol=1e-6)

    # 2) dual-TC style config (v7x): two blocks of 16 batches (also exercises padding)
    out2 = jax.block_until_ready(lgfi1dc_pallas(x, params, block_batch=16))
    np.testing.assert_allclose(np.asarray(out2), np.asarray(ref), rtol=1e-4, atol=1e-4)
    np.testing.assert_allclose(np.asarray(out2) - np.asarray(x),
                               np.asarray(ref) - np.asarray(x),
                               rtol=5e-2, atol=1e-6)

    print("KERNEL_OK")
</pallas_src>

<mosaic_0001>
module attributes {stable_mosaic.version = 11 : i64} {
  func.func @lgfi_kernel(%arg0: i32, %arg1: memref<264x32xf32, #tpu.memory_space<vmem>>, %arg2: memref<264x32xbf16, #tpu.memory_space<vmem>>, %arg3: memref<8x32xf32, #tpu.memory_space<vmem>>, %arg4: memref<32x128xbf16, #tpu.memory_space<vmem>>, %arg5: memref<1x96xf32, #tpu.memory_space<vmem>>, %arg6: memref<32x96xbf16, #tpu.memory_space<vmem>>, %arg7: memref<32x32xf32, #tpu.memory_space<vmem>>, %arg8: memref<264x3xi32, #tpu.memory_space<vmem>>, %arg9: memref<2x768xi32, #tpu.memory_space<vmem>>, %arg10: memref<1x264xi32, #tpu.memory_space<vmem>>, %arg11: memref<264x32xf32, #tpu.memory_space<vmem>>) attributes {dimension_semantics = [#tpu.dimension_semantics<parallel>], iteration_bounds = array<i64: 1>, scalar_prefetch = 0 : i64, scratch_operands = 0 : i64, tpu.core_type = #tpu.core_type<tc>, window_params = [{transform_indices = @transform_0, window_bounds = array<i64: 264, 32>}, {pipeline_mode = #tpu.pipeline_mode<synchronous>, transform_indices = @transform_1, window_bounds = array<i64: 264, 32>}, {pipeline_mode = #tpu.pipeline_mode<synchronous>, transform_indices = @transform_2, window_bounds = array<i64: 8, 32>}, {pipeline_mode = #tpu.pipeline_mode<synchronous>, transform_indices = @transform_3, window_bounds = array<i64: 32, 128>}, {pipeline_mode = #tpu.pipeline_mode<synchronous>, transform_indices = @transform_4, window_bounds = array<i64: 1, 96>}, {pipeline_mode = #tpu.pipeline_mode<synchronous>, transform_indices = @transform_5, window_bounds = array<i64: 32, 96>}, {pipeline_mode = #tpu.pipeline_mode<synchronous>, transform_indices = @transform_6, window_bounds = array<i64: 32, 32>}, {pipeline_mode = #tpu.pipeline_mode<synchronous>, transform_indices = @transform_7, window_bounds = array<i64: 264, 3>}, {pipeline_mode = #tpu.pipeline_mode<synchronous>, transform_indices = @transform_8, window_bounds = array<i64: 2, 768>}, {pipeline_mode = #tpu.pipeline_mode<synchronous>, transform_indices = @transform_9, window_bounds = array<i64: 1, 264>}, {transform_indices = @transform_10, window_bounds = array<i64: 264, 32>}]} {
    %c0 = arith.constant 0 : index
    %c0_0 = arith.constant 0 : index
    %0 = vector.load %arg1[%c0, %c0_0] : memref<264x32xf32, #tpu.memory_space<vmem>>, vector<264x32xf32>
    %c0_1 = arith.constant 0 : index
    %c0_2 = arith.constant 0 : index
    %1 = vector.load %arg3[%c0_1, %c0_2] : memref<8x32xf32, #tpu.memory_space<vmem>>, vector<1x32xf32>
    %c1 = arith.constant 1 : index
    %c0_3 = arith.constant 0 : index
    %2 = vector.load %arg3[%c1, %c0_3] : memref<8x32xf32, #tpu.memory_space<vmem>>, vector<1x32xf32>
    %c2 = arith.constant 2 : index
    %c0_4 = arith.constant 0 : index
    %3 = vector.load %arg3[%c2, %c0_4] : memref<8x32xf32, #tpu.memory_space<vmem>>, vector<1x32xf32>
    %c3 = arith.constant 3 : index
    %c0_5 = arith.constant 0 : index
    %4 = vector.load %arg3[%c3, %c0_5] : memref<8x32xf32, #tpu.memory_space<vmem>>, vector<1x32xf32>
    %c4 = arith.constant 4 : index
    %c0_6 = arith.constant 0 : index
    %5 = vector.load %arg3[%c4, %c0_6] : memref<8x32xf32, #tpu.memory_space<vmem>>, vector<1x32xf32>
    %c5 = arith.constant 5 : index
    %c0_7 = arith.constant 0 : index
    %6 = vector.load %arg3[%c5, %c0_7] : memref<8x32xf32, #tpu.memory_space<vmem>>, vector<1x32xf32>
    %c6 = arith.constant 6 : index
    %c0_8 = arith.constant 0 : index
    %7 = vector.load %arg3[%c6, %c0_8] : memref<8x32xf32, #tpu.memory_space<vmem>>, vector<1x32xf32>
    %c7 = arith.constant 7 : index
    %c0_9 = arith.constant 0 : index
    %8 = vector.load %arg3[%c7, %c0_9] : memref<8x32xf32, #tpu.memory_space<vmem>>, vector<1x32xf32>
    %c0_10 = arith.constant 0 : index
    %c0_11 = arith.constant 0 : index
    %9 = vector.load %arg8[%c0_10, %c0_11] : memref<264x3xi32, #tpu.memory_space<vmem>>, vector<264x1xi32>
    %c0_12 = arith.constant 0 : index
    %c1_13 = arith.constant 1 : index
    %10 = vector.load %arg8[%c0_12, %c1_13] : memref<264x3xi32, #tpu.memory_space<vmem>>, vector<264x1xi32>
    %11 = arith.sitofp %10 : vector<264x1xi32> to vector<264x1xf32>
    %c0_14 = arith.constant 0 : index
    %c2_15 = arith.constant 2 : index
    %12 = vector.load %arg8[%c0_14, %c2_15] : memref<264x3xi32, #tpu.memory_space<vmem>>, vector<264x1xi32>
    %13 = arith.sitofp %12 : vector<264x1xi32> to vector<264x1xf32>
    %c0_16 = arith.constant 0 : index
    %c0_17 = arith.constant 0 : index
    %14 = vector.load %arg9[%c0_16, %c0_17] : memref<2x768xi32, #tpu.memory_space<vmem>>, vector<1x768xi32>
    %c1_18 = arith.constant 1 : index
    %c0_19 = arith.constant 0 : index
    %15 = vector.load %arg9[%c1_18, %c0_19] : memref<2x768xi32, #tpu.memory_space<vmem>>, vector<1x768xi32>
    %c0_20 = arith.constant 0 : index
    %c0_21 = arith.constant 0 : index
    %16 = vector.load %arg10[%c0_20, %c0_21] : memref<1x264xi32, #tpu.memory_space<vmem>>, vector<1x264xi32>
    %17 = vector.broadcast %9 : vector<264x1xi32> to vector<264x768xi32>
    %18 = vector.broadcast %14 : vector<1x768xi32> to vector<264x768xi32>
    %19 = arith.cmpi eq, %17, %18 : vector<264x768xi32>
    %20 = arith.extui %19 : vector<264x768xi1> to vector<264x768xi32>
    %21 = arith.sitofp %20 : vector<264x768xi32> to vector<264x768xf32>
    %22 = tpu.iota {dimensions = array<i32: 0>} : vector<32x768xi32>
    %23 = vector.broadcast %15 : vector<1x768xi32> to vector<32x768xi32>
    %24 = arith.cmpi eq, %22, %23 : vector<32x768xi32>
    %25 = arith.extui %24 : vector<32x768xi1> to vector<32x768xi32>
    %26 = arith.sitofp %25 : vector<32x768xi32> to vector<32x768xf32>
    %27 = tpu.iota {dimensions = array<i32: 0>} : vector<24x264xi32>
    %28 = vector.broadcast %16 : vector<1x264xi32> to vector<24x264xi32>
    %29 = arith.cmpi eq, %27, %28 : vector<24x264xi32>
    %30 = arith.extui %29 : vector<24x264xi1> to vector<24x264xi32>
    %31 = arith.sitofp %30 : vector<24x264xi32> to vector<24x264xf32>
    %c0_22 = arith.constant 0 : index
    %c0_23 = arith.constant 0 : index
    %32 = vector.load %arg2[%c0_22, %c0_23] : memref<264x32xbf16, #tpu.memory_space<vmem>>, vector<264x32xbf16>
    %33 = arith.extf %32 : vector<264x32xbf16> to vector<264x32xf32>
    %34 = arith.addf %0, %33 : vector<264x32xf32>
    %cst = arith.constant dense<0.000000e+00> : vector<264xf32>
    %35 = vector.multi_reduction <add>, %34, %cst [1] : vector<264x32xf32> to vector<264xf32>
    %36 = vector.shape_cast %35 : vector<264xf32> to vector<264x1xf32>
    %cst_24 = arith.constant 3.200000e+01 : f32
    %37 = vector.broadcast %cst_24 : f32 to vector<264x1xf32>
    %38 = arith.divf %36, %37 : vector<264x1xf32>
    %39 = vector.broadcast %38 : vector<264x1xf32> to vector<264x32xf32>
    %40 = arith.subf %34, %39 : vector<264x32xf32>
    %41 = arith.mulf %40, %40 : vector<264x32xf32>
    %cst_25 = arith.constant dense<0.000000e+00> : vector<264xf32>
    %42 = vector.multi_reduction <add>, %41, %cst_25 [1] : vector<264x32xf32> to vector<264xf32>
    %43 = vector.shape_cast %42 : vector<264xf32> to vector<264x1xf32>
    %cst_26 = arith.constant 3.200000e+01 : f32
    %44 = vector.broadcast %cst_26 : f32 to vector<264x1xf32>
    %45 = arith.divf %43, %44 : vector<264x1xf32>
    %cst_27 = arith.constant 9.99999997E-7 : f32
    %46 = vector.broadcast %cst_27 : f32 to vector<264x1xf32>
    %47 = arith.addf %45, %46 : vector<264x1xf32>
    %48 = math.rsqrt %47 : vector<264x1xf32>
    %49 = vector.broadcast %48 : vector<264x1xf32> to vector<264x32xf32>
    %50 = arith.mulf %40, %49 : vector<264x32xf32>
    %51 = vector.broadcast %1 : vector<1x32xf32> to vector<264x32xf32>
    %52 = arith.mulf %50, %51 : vector<264x32xf32>
    %53 = vector.broadcast %2 : vector<1x32xf32> to vector<264x32xf32>
    %54 = arith.addf %52, %53 : vector<264x32xf32>
    %c0_28 = arith.constant 0 : index
    %c0_29 = arith.constant 0 : index
    %55 = vector.load %arg4[%c0_28, %c0_29] : memref<32x128xbf16, #tpu.memory_space<vmem>>, vector<32x128xbf16>
    %56 = arith.extf %55 : vector<32x128xbf16> to vector<32x128xf32>
    %57 = vector.extract_strided_slice %56 {offsets = [0, 0], sizes = [32, 96], strides = [1, 1]} : vector<32x128xf32> to vector<32x96xf32>
    %cst_30 = arith.constant dense<0.000000e+00> : vector<264x96xf32>
    %58 = tpu.matmul %54, %57, %cst_30 {dimension_numbers = #tpu.dot_dimension_numbers<[1], [0], [0], [1], [0, 0, 1, 1], [], []>} : vector<264x32xf32>, vector<32x96xf32>, vector<264x96xf32> -> vector<264x96xf32>
    %c0_31 = arith.constant 0 : index
    %c0_32 = arith.constant 0 : index
    %59 = vector.load %arg5[%c0_31, %c0_32] : memref<1x96xf32, #tpu.memory_space<vmem>>, vector<1x96xf32>
    %60 = vector.broadcast %59 : vector<1x96xf32> to vector<264x96xf32>
    %61 = arith.addf %58, %60 : vector<264x96xf32>
    %62 = vector.extract_strided_slice %61 {offsets = [0, 0], sizes = [264, 32], strides = [1, 1]} : vector<264x96xf32> to vector<264x32xf32>
    %63 = vector.extract_strided_slice %61 {offsets = [0, 32], sizes = [264, 32], strides = [1, 1]} : vector<264x96xf32> to vector<264x32xf32>
    %64 = vector.extract_strided_slice %61 {offsets = [0, 64], sizes = [264, 32], strides = [1, 1]} : vector<264x96xf32> to vector<264x32xf32>
    %65 = arith.mulf %62, %62 : vector<264x32xf32>
    %66 = arith.mulf %63, %63 : vector<264x32xf32>
    %67 = tpu.concatenate %65, %66 in 1 : vector<264x32xf32>, vector<264x32xf32> -> vector<264x64xf32>
    %cst_33 = arith.constant dense<0.000000e+00> : vector<24x64xf32>
    %68 = tpu.matmul %31, %67, %cst_33 {dimension_numbers = #tpu.dot_dimension_numbers<[1], [0], [0], [1], [0, 0, 1, 1], [], []>} : vector<24x264xf32>, vector<264x64xf32>, vector<24x64xf32> -> vector<24x64xf32>
    %69 = math.rsqrt %68 : vector<24x64xf32>
    %cst_34 = arith.constant 9.99999995E+11 : f32
    %70 = vector.broadcast %cst_34 : f32 to vector<24x64xf32>
    %71 = arith.minimumf %69, %70 : vector<24x64xf32>
    %cst_35 = arith.constant dense<0.000000e+00> : vector<264x64xf32>
    %72 = tpu.matmul %31, %71, %cst_35 {dimension_numbers = #tpu.dot_dimension_numbers<[0], [0], [1], [1], [0, 1, 1, 1], [], []>} : vector<24x264xf32>, vector<24x64xf32>, vector<264x64xf32> -> vector<264x64xf32>
    %73 = vector.extract_strided_slice %72 {offsets = [0, 0], sizes = [264, 32], strides = [1, 1]} : vector<264x64xf32> to vector<264x32xf32>
    %74 = arith.mulf %62, %73 : vector<264x32xf32>
    %75 = vector.broadcast %4 : vector<1x32xf32> to vector<264x32xf32>
    %76 = arith.mulf %74, %75 : vector<264x32xf32>
    %77 = vector.extract_strided_slice %72 {offsets = [0, 32], sizes = [264, 32], strides = [1, 1]} : vector<264x64xf32> to vector<264x32xf32>
    %78 = arith.mulf %63, %77 : vector<264x32xf32>
    %cst_36 = arith.constant dense<0.000000e+00> : vector<264x768xf32>
    %79 = tpu.matmul %76, %26, %cst_36 {dimension_numbers = #tpu.dot_dimension_numbers<[1], [0], [0], [1], [0, 0, 1, 1], [], []>} : vector<264x32xf32>, vector<32x768xf32>, vector<264x768xf32> -> vector<264x768xf32>
    %80 = arith.mulf %79, %21 : vector<264x768xf32>
    %cst_37 = arith.constant dense<0.000000e+00> : vector<768x32xf32>
    %81 = tpu.matmul %80, %78, %cst_37 {dimension_numbers = #tpu.dot_dimension_numbers<[0], [0], [1], [1], [0, 1, 1, 1], [], []>} : vector<264x768xf32>, vector<264x32xf32>, vector<768x32xf32> -> vector<768x32xf32>
    %c0_38 = arith.constant 0 : index
    %c0_39 = arith.constant 0 : index
    %82 = vector.load %arg7[%c0_38, %c0_39] : memref<32x32xf32, #tpu.memory_space<vmem>>, vector<32x32xf32>
    %83 = tpu.concatenate %82, %82, %82, %82, %82, %82, %82, %82, %82, %82, %82, %82, %82, %82, %82, %82 in 0 : vector<32x32xf32>, vector<32x32xf32>, vector<32x32xf32>, vector<32x32xf32>, vector<32x32xf32>, vector<32x32xf32>, vector<32x32xf32>, vector<32x32xf32>, vector<32x32xf32>, vector<32x32xf32>, vector<32x32xf32>, vector<32x32xf32>, vector<32x32xf32>, vector<32x32xf32>, vector<32x32xf32>, vector<32x32xf32> -> vector<512x32xf32>
    %84 = tpu.concatenate %82, %82, %82, %82, %82, %82, %82, %82 in 0 : vector<32x32xf32>, vector<32x32xf32>, vector<32x32xf32>, vector<32x32xf32>, vector<32x32xf32>, vector<32x32xf32>, vector<32x32xf32>, vector<32x32xf32> -> vector<256x32xf32>
    %85 = tpu.concatenate %83, %84 in 0 : vector<512x32xf32>, vector<256x32xf32> -> vector<768x32xf32>
    %86 = arith.addf %81, %85 : vector<768x32xf32>
    %cst_40 = arith.constant dense<0xFF800000> : vector<768xf32>
    %87 = vector.multi_reduction <maximumf>, %86, %cst_40 [1] : vector<768x32xf32> to vector<768xf32>
    %88 = vector.shape_cast %87 : vector<768xf32> to vector<768x1xf32>
    %89 = vector.broadcast %88 : vector<768x1xf32> to vector<768x32xf32>
    %90 = arith.subf %86, %89 : vector<768x32xf32>
    %91 = math.exp %90 : vector<768x32xf32>
    %cst_41 = arith.constant dense<0.000000e+00> : vector<768xf32>
    %92 = vector.multi_reduction <add>, %91, %cst_41 [1] : vector<768x32xf32> to vector<768xf32>
    %93 = vector.shape_cast %92 : vector<768xf32> to vector<768x1xf32>
    %94 = tpu.reciprocal %93 : vector<768x1xf32> -> vector<768x1xf32>
    %95 = vector.broadcast %94 : vector<768x1xf32> to vector<768x32xf32>
    %96 = arith.mulf %91, %95 : vector<768x32xf32>
    %cst_42 = arith.constant dense<0.000000e+00> : vector<264x768xf32>
    %97 = tpu.matmul %64, %96, %cst_42 {dimension_numbers = #tpu.dot_dimension_numbers<[1], [1], [0], [0], [0, 0, 1, 0], [], []>} : vector<264x32xf32>, vector<768x32xf32>, vector<264x768xf32> -> vector<264x768xf32>
    %98 = arith.mulf %97, %21 : vector<264x768xf32>
    %cst_43 = arith.constant dense<0.000000e+00> : vector<264x32xf32>
    %99 = tpu.matmul %98, %26, %cst_43 {dimension_numbers = #tpu.dot_dimension_numbers<[1], [1], [0], [0], [0, 0, 1, 0], [], []>} : vector<264x768xf32>, vector<32x768xf32>, vector<264x32xf32> -> vector<264x32xf32>
    %100 = vector.extract_strided_slice %56 {offsets = [0, 96], sizes = [32, 32], strides = [1, 1]} : vector<32x128xf32> to vector<32x32xf32>
    %cst_44 = arith.constant dense<0.000000e+00> : vector<264x32xf32>
    %101 = tpu.matmul %99, %100, %cst_44 {dimension_numbers = #tpu.dot_dimension_numbers<[1], [0], [0], [1], [0, 0, 1, 1], [], []>} : vector<264x32xf32>, vector<32x32xf32>, vector<264x32xf32> -> vector<264x32xf32>
    %102 = vector.broadcast %5 : vector<1x32xf32> to vector<264x32xf32>
    %103 = arith.addf %101, %102 : vector<264x32xf32>
    %104 = vector.broadcast %3 : vector<1x32xf32> to vector<264x32xf32>
    %105 = arith.mulf %104, %103 : vector<264x32xf32>
    %106 = arith.addf %34, %105 : vector<264x32xf32>
    %c0_45 = arith.constant 0 : index
    %c0_46 = arith.constant 0 : index
    %107 = vector.load %arg6[%c0_45, %c0_46] : memref<32x96xbf16, #tpu.memory_space<vmem>>, vector<32x96xbf16>
    %108 = arith.extf %107 : vector<32x96xbf16> to vector<32x96xf32>
    %cst_47 = arith.constant dense<0.000000e+00> : vector<264x96xf32>
    %109 = tpu.matmul %106, %108, %cst_47 {dimension_numbers = #tpu.dot_dimension_numbers<[1], [0], [0], [1], [0, 0, 1, 1], [], []>} : vector<264x32xf32>, vector<32x96xf32>, vector<264x96xf32> -> vector<264x96xf32>
    %110 = vector.extract_strided_slice %109 {offsets = [0, 0], sizes = [264, 32], strides = [1, 1]} : vector<264x96xf32> to vector<264x32xf32>
    %c1_i32 = arith.constant 1 : i32
    %111 = tpu.dynamic_rotate %110 by %c1_i32 dim 0 : vector<264x32xf32>, i32 -> vector<264x32xf32>
    %112 = vector.broadcast %11 : vector<264x1xf32> to vector<264x32xf32>
    %113 = arith.mulf %111, %112 : vector<264x32xf32>
    %114 = vector.extract_strided_slice %109 {offsets = [0, 32], sizes = [264, 32], strides = [1, 1]} : vector<264x96xf32> to vector<264x32xf32>
    %115 = arith.addf %113, %114 : vector<264x32xf32>
    %116 = vector.extract_strided_slice %109 {offsets = [0, 64], sizes = [264, 32], strides = [1, 1]} : vector<264x96xf32> to vector<264x32xf32>
    %c263_i32 = arith.constant 263 : i32
    %117 = tpu.dynamic_rotate %116 by %c263_i32 dim 0 : vector<264x32xf32>, i32 -> vector<264x32xf32>
    %118 = vector.broadcast %13 : vector<264x1xf32> to vector<264x32xf32>
    %119 = arith.mulf %117, %118 : vector<264x32xf32>
    %120 = arith.addf %115, %119 : vector<264x32xf32>
    %121 = vector.broadcast %6 : vector<1x32xf32> to vector<264x32xf32>
    %122 = arith.mulf %120, %121 : vector<264x32xf32>
    %123 = vector.broadcast %7 : vector<1x32xf32> to vector<264x32xf32>
    %124 = arith.addf %122, %123 : vector<264x32xf32>
    %125 = arith.negf %124 : vector<264x32xf32>
    %126 = math.exp %125 : vector<264x32xf32>
    %cst_48 = arith.constant 1.000000e+00 : f32
    %127 = vector.broadcast %cst_48 : f32 to vector<264x32xf32>
    %128 = arith.addf %127, %126 : vector<264x32xf32>
    %129 = arith.divf %127, %128 : vector<264x32xf32>
    %130 = arith.mulf %124, %129 : vector<264x32xf32>
    %131 = arith.addf %106, %130 : vector<264x32xf32>
    %132 = vector.broadcast %8 : vector<1x32xf32> to vector<264x32xf32>
    %133 = arith.mulf %131, %132 : vector<264x32xf32>
    %134 = arith.addf %0, %133 : vector<264x32xf32>
    %c0_49 = arith.constant 0 : index
    %c0_50 = arith.constant 0 : index
    %135 = vector.load %arg11[%c0_49, %c0_50] : memref<264x32xf32, #tpu.memory_space<vmem>>, vector<264x32xf32>
    tpu.vector_store %arg11[%c0_49, %c0_50], %134 {strides = array<i32>} : memref<264x32xf32, #tpu.memory_space<vmem>>, vector<264x32xf32>,
    return
  }
  func.func @transform_0(%arg0: i32) -> (i32, i32) {
    %c0_i32 = arith.constant 0 : i32
    %c0_i32_0 = arith.constant 0 : i32
    return %arg0, %c0_i32 : i32, i32
  }
  func.func @transform_1(%arg0: i32) -> (i32, i32) {
    %c0_i32 = arith.constant 0 : i32
    %c0_i32_0 = arith.constant 0 : i32
    %c0_i32_1 = arith.constant 0 : i32
    return %c0_i32, %c0_i32_0 : i32, i32
  }
  func.func @transform_2(%arg0: i32) -> (i32, i32) {
    %c0_i32 = arith.constant 0 : i32
    %c0_i32_0 = arith.constant 0 : i32
    %c0_i32_1 = arith.constant 0 : i32
    return %c0_i32, %c0_i32_0 : i32, i32
  }
  func.func @transform_3(%arg0: i32) -> (i32, i32) {
    %c0_i32 = arith.constant 0 : i32
    %c0_i32_0 = arith.constant 0 : i32
    %c0_i32_1 = arith.constant 0 : i32
    return %c0_i32, %c0_i32_0 : i32, i32
  }
  func.func @transform_4(%arg0: i32) -> (i32, i32) {
    %c0_i32 = arith.constant 0 : i32
    %c0_i32_0 = arith.constant 0 : i32
    %c0_i32_1 = arith.constant 0 : i32
    return %c0_i32, %c0_i32_0 : i32, i32
  }
  func.func @transform_5(%arg0: i32) -> (i32, i32) {
    %c0_i32 = arith.constant 0 : i32
    %c0_i32_0 = arith.constant 0 : i32
    %c0_i32_1 = arith.constant 0 : i32
    return %c0_i32, %c0_i32_0 : i32, i32
  }
  func.func @transform_6(%arg0: i32) -> (i32, i32) {
    %c0_i32 = arith.constant 0 : i32
    %c0_i32_0 = arith.constant 0 : i32
    %c0_i32_1 = arith.constant 0 : i32
    return %c0_i32, %c0_i32_0 : i32, i32
  }
  func.func @transform_7(%arg0: i32) -> (i32, i32) {
    %c0_i32 = arith.constant 0 : i32
    %c0_i32_0 = arith.constant 0 : i32
    %c0_i32_1 = arith.constant 0 : i32
    return %c0_i32, %c0_i32_0 : i32, i32
  }
  func.func @transform_8(%arg0: i32) -> (i32, i32) {
    %c0_i32 = arith.constant 0 : i32
    %c0_i32_0 = arith.constant 0 : i32
    %c0_i32_1 = arith.constant 0 : i32
    return %c0_i32, %c0_i32_0 : i32, i32
  }
  func.func @transform_9(%arg0: i32) -> (i32, i32) {
    %c0_i32 = arith.constant 0 : i32
    %c0_i32_0 = arith.constant 0 : i32
    %c0_i32_1 = arith.constant 0 : i32
    return %c0_i32, %c0_i32_0 : i32, i32
  }
  func.func @transform_10(%arg0: i32) -> (i32, i32) {
    %c0_i32 = arith.constant 0 : i32
    %c0_i32_0 = arith.constant 0 : i32
    return %arg0, %c0_i32 : i32, i32
  }
}

</mosaic_0001>

<llo_original>
// kernel: tpu_custom_call.1
$region0: #{tpu_custom_call.1}
  #allocation0 [shape = 'u32[]', space=smem, size = 0x4, offset = 0x4, fixed_abs, tag = 'smem constant byte address 0x4 - core index']
  #allocation1 [shape = 'u32[72,128]{1,0:T(1,128)}', space=vmem, size = 0x9000, scoped, tag = 'internal scratch']
  %s0 = inlined_call_operand.vmem [shape: f32[264,32], index: 0, kind: input, shape index: {}]
  %s1 = inlined_call_operand.vmem [shape: bf16[264,32], index: 1, kind: input, shape index: {}]
  %s2 = inlined_call_operand.vmem [shape: f32[8,32], index: 2, kind: input, shape index: {}]
  %s3 = inlined_call_operand.vmem [shape: bf16[32,128], index: 3, kind: input, shape index: {}]
  %s4 = inlined_call_operand.vmem [shape: f32[1,96], index: 4, kind: input, shape index: {}]
  %s5 = inlined_call_operand.vmem [shape: bf16[32,96], index: 5, kind: input, shape index: {}]
  %s6 = inlined_call_operand.vmem [shape: f32[32,32], index: 6, kind: input, shape index: {}]
  %s7 = inlined_call_operand.vmem [shape: s32[264,3], index: 7, kind: input, shape index: {}]
  %s8 = inlined_call_operand.vmem [shape: s32[2,768], index: 8, kind: input, shape index: {}]
  %s9 = inlined_call_operand.vmem [shape: s32[1,264], index: 9, kind: input, shape index: {}]
  %s10 = inlined_call_operand.vmem [shape: f32[264,32], index: 10, kind: output, shape index: {}]
  %s11 = sld [smem:[#allocation0]]
  $region50: #{tpu_custom_call.1} parent=0
    _
  %s13 = ssub.s32 1, %s11
  %s14 = scalar_select 0, %s13, %s11
  // Predicated region
  $region2: #{tpu_custom_call.1} parent=0 // pred_check
    _
  $region3: #{tpu_custom_call.1} parent=0 // pred_check_branch
    %16 = sbr.rel (0) target = $region5
  $region4: #{tpu_custom_call.1} parent=0 // pred_region
    _
  $region5: #{tpu_custom_call.1} parent=0 // pred_fallthru
    _
  // Predicated region
  $region6: #{tpu_custom_call.1} parent=0 // pred_check
    _
  $region7: #{tpu_custom_call.1} parent=0 // pred_check_branch
    %18 = sbr.rel (0) target = $region9
  $region8: #{tpu_custom_call.1} parent=0 // pred_region
    _
  $region9: #{tpu_custom_call.1} parent=0 // pred_fallthru
    _
  // Predicated region
  $region10: #{tpu_custom_call.1} parent=0 // pred_check
    _
  $region11: #{tpu_custom_call.1} parent=0 // pred_check_branch
    %20 = sbr.rel (0) target = $region13
  $region12: #{tpu_custom_call.1} parent=0 // pred_region
    _
  $region13: #{tpu_custom_call.1} parent=0 // pred_fallthru
    _
  // Predicated region
  $region14: #{tpu_custom_call.1} parent=0 // pred_check
    _
  $region15: #{tpu_custom_call.1} parent=0 // pred_check_branch
    %22 = sbr.rel (0) target = $region17
  $region16: #{tpu_custom_call.1} parent=0 // pred_region
    _
  $region17: #{tpu_custom_call.1} parent=0 // pred_fallthru
    _
  // Predicated region
  $region18: #{tpu_custom_call.1} parent=0 // pred_check
    _
  $region19: #{tpu_custom_call.1} parent=0 // pred_check_branch
    %24 = sbr.rel (0) target = $region21
  $region20: #{tpu_custom_call.1} parent=0 // pred_region
    _
  $region21: #{tpu_custom_call.1} parent=0 // pred_fallthru
    _
  // Predicated region
  $region22: #{tpu_custom_call.1} parent=0 // pred_check
    _
  $region23: #{tpu_custom_call.1} parent=0 // pred_check_branch
    %26 = sbr.rel (0) target = $region25
  $region24: #{tpu_custom_call.1} parent=0 // pred_region
    _
  $region25: #{tpu_custom_call.1} parent=0 // pred_fallthru
    _
  // Predicated region
  $region26: #{tpu_custom_call.1} parent=0 // pred_check
    _
  $region27: #{tpu_custom_call.1} parent=0 // pred_check_branch
    %28 = sbr.rel (0) target = $region29
  $region28: #{tpu_custom_call.1} parent=0 // pred_region
    _
  $region29: #{tpu_custom_call.1} parent=0 // pred_fallthru
    _
  // Predicated region
  $region30: #{tpu_custom_call.1} parent=0 // pred_check
    _
  $region31: #{tpu_custom_call.1} parent=0 // pred_check_branch
    %30 = sbr.rel (0) target = $region33
  $region32: #{tpu_custom_call.1} parent=0 // pred_region
    _
  $region33: #{tpu_custom_call.1} parent=0 // pred_fallthru
    _
  // Predicated region
  $region34: #{tpu_custom_call.1} parent=0 // pred_check
    _
  $region35: #{tpu_custom_call.1} parent=0 // pred_check_branch
    %32 = sbr.rel (0) target = $region37
  $region36: #{tpu_custom_call.1} parent=0 // pred_region
    _
  $region37: #{tpu_custom_call.1} parent=0 // pred_fallthru
    _
  // Predicated region
  $region38: #{tpu_custom_call.1} parent=0 // pred_check
    _
  $region39: #{tpu_custom_call.1} parent=0 // pred_check_branch
    %34 = sbr.rel (0) target = $region41
  $region40: #{tpu_custom_call.1} parent=0 // pred_region
    _
  $region41: #{tpu_custom_call.1} parent=0 // pred_fallthru
    _
  %v35 = vld [vmem:[%s0] sm:$0xff]
  %v36 = vld [vmem:[%s0 + $0x8] sm:$0xff]
  %v37 = vld [vmem:[%s0 + $0x10] sm:$0xff]
  %v38 = vld [vmem:[%s0 + $0x18] sm:$0xff]
  %v39 = vld [vmem:[%s0 + $0x20] sm:$0xff]
  %v40 = vld [vmem:[%s0 + $0x28] sm:$0xff]
  %v41 = vld [vmem:[%s0 + $0x30] sm:$0xff]
  %v42 = vld [vmem:[%s0 + $0x38] sm:$0xff]
  %v43 = vld [vmem:[%s0 + $0x40] sm:$0xff]
  %v44 = vld [vmem:[%s0 + $0x48] sm:$0xff]
  %v45 = vld [vmem:[%s0 + $0x50] sm:$0xff]
  %v46 = vld [vmem:[%s0 + $0x58] sm:$0xff]
  %v47 = vld [vmem:[%s0 + $0x60] sm:$0xff]
  %v48 = vld [vmem:[%s0 + $0x68] sm:$0xff]
  %v49 = vld [vmem:[%s0 + $0x70] sm:$0xff]
  %v50 = vld [vmem:[%s0 + $0x78] sm:$0xff]
  %v51 = vld [vmem:[%s0 + $0x80] sm:$0xff]
  %v52 = vld [vmem:[%s0 + $0x88] sm:$0xff]
  %v53 = vld [vmem:[%s0 + $0x90] sm:$0xff]
  %v54 = vld [vmem:[%s0 + $0x98] sm:$0xff]
  %v55 = vld [vmem:[%s0 + $0xa0] sm:$0xff]
  %v56 = vld [vmem:[%s0 + $0xa8] sm:$0xff]
  %v57 = vld [vmem:[%s0 + $0xb0] sm:$0xff]
  %v58 = vld [vmem:[%s0 + $0xb8] sm:$0xff]
  %v59 = vld [vmem:[%s0 + $0xc0] sm:$0xff]
  %v60 = vld [vmem:[%s0 + $0xc8] sm:$0xff]
  %v61 = vld [vmem:[%s0 + $0xd0] sm:$0xff]
  %v62 = vld [vmem:[%s0 + $0xd8] sm:$0xff]
  %v63 = vld [vmem:[%s0 + $0xe0] sm:$0xff]
  %v64 = vld [vmem:[%s0 + $0xe8] sm:$0xff]
  %v65 = vld [vmem:[%s0 + $0xf0] sm:$0xff]
  %v66 = vld [vmem:[%s0 + $0xf8] sm:$0xff]
  %v67 = vld [vmem:[%s0 + $0x100] sm:$0xff]
  %v68 = vld [vmem:[%s2] sm:$0x1]
  %v69 = vld [vmem:[%s2 + $0x1] sm:$0x1]
  %v70 = vld [vmem:[%s2 + $0x2] sm:$0x1]
  %v71 = vld [vmem:[%s2 + $0x3] sm:$0x1]
  %v72 = vld [vmem:[%s2 + $0x4] sm:$0x1]
  %v73 = vld [vmem:[%s2 + $0x5] sm:$0x1]
  %v74 = vld [vmem:[%s2 + $0x6] sm:$0x1]
  %v75 = vld [vmem:[%s2 + $0x7] sm:$0x1]
  %v76 = vld [vmem:[%s7] sm:$0xff]
  %v77 = vld [vmem:[%s7 + $0x8] sm:$0xff]
  %v78 = vld [vmem:[%s7 + $0x10] sm:$0xff]
  %v79 = vld [vmem:[%s7 + $0x18] sm:$0xff]
  %v80 = vld [vmem:[%s7 + $0x20] sm:$0xff]
  %v81 = vld [vmem:[%s7 + $0x28] sm:$0xff]
  %v82 = vld [vmem:[%s7 + $0x30] sm:$0xff]
  %v83 = vld [vmem:[%s7 + $0x38] sm:$0xff]
  %v84 = vld [vmem:[%s7 + $0x40] sm:$0xff]
  %v85 = vld [vmem:[%s7 + $0x48] sm:$0xff]
  %v86 = vld [vmem:[%s7 + $0x50] sm:$0xff]
  %v87 = vld [vmem:[%s7 + $0x58] sm:$0xff]
  %v88 = vld [vmem:[%s7 + $0x60] sm:$0xff]
  %v89 = vld [vmem:[%s7 + $0x68] sm:$0xff]
  %v90 = vld [vmem:[%s7 + $0x70] sm:$0xff]
  %v91 = vld [vmem:[%s7 + $0x78] sm:$0xff]
  %v92 = vld [vmem:[%s7 + $0x80] sm:$0xff]
  %v93 = vld [vmem:[%s7 + $0x88] sm:$0xff]
  %v94 = vld [vmem:[%s7 + $0x90] sm:$0xff]
  %v95 = vld [vmem:[%s7 + $0x98] sm:$0xff]
  %v96 = vld [vmem:[%s7 + $0xa0] sm:$0xff]
  %v97 = vld [vmem:[%s7 + $0xa8] sm:$0xff]
  %v98 = vld [vmem:[%s7 + $0xb0] sm:$0xff]
  %v99 = vld [vmem:[%s7 + $0xb8] sm:$0xff]
  %v100 = vld [vmem:[%s7 + $0xc0] sm:$0xff]
  %v101 = vld [vmem:[%s7 + $0xc8] sm:$0xff]
  %v102 = vld [vmem:[%s7 + $0xd0] sm:$0xff]
  %v103 = vld [vmem:[%s7 + $0xd8] sm:$0xff]
  %v104 = vld [vmem:[%s7 + $0xe0] sm:$0xff]
  %v105 = vld [vmem:[%s7 + $0xe8] sm:$0xff]
  %v106 = vld [vmem:[%s7 + $0xf0] sm:$0xff]
  %v107 = vld [vmem:[%s7 + $0xf8] sm:$0xff]
  %v108 = vld [vmem:[%s7 + $0x100] sm:$0xff]
  %v109 = vcvt.s32.f32 %v76
  %v110 = vcvt.s32.f32 %v77
  %v111 = vcvt.s32.f32 %v78
  %v112 = vcvt.s32.f32 %v79
  %v113 = vcvt.s32.f32 %v80
  %v114 = vcvt.s32.f32 %v81
  %v115 = vcvt.s32.f32 %v82
  %v116 = vcvt.s32.f32 %v83
  %v117 = vcvt.s32.f32 %v84
  %v118 = vcvt.s32.f32 %v85
  %v119 = vcvt.s32.f32 %v86
  %v120 = vcvt.s32.f32 %v87
  %v121 = vcvt.s32.f32 %v88
  %v122 = vcvt.s32.f32 %v89
  %v123 = vcvt.s32.f32 %v90
  %v124 = vcvt.s32.f32 %v91
  %v125 = vcvt.s32.f32 %v92
  %v126 = vcvt.s32.f32 %v93
  %v127 = vcvt.s32.f32 %v94
  %v128 = vcvt.s32.f32 %v95
  %v129 = vcvt.s32.f32 %v96
  %v130 = vcvt.s32.f32 %v97
  %v131 = vcvt.s32.f32 %v98
  %v132 = vcvt.s32.f32 %v99
  %v133 = vcvt.s32.f32 %v100
  %v134 = vcvt.s32.f32 %v101
  %v135 = vcvt.s32.f32 %v102
  %v136 = vcvt.s32.f32 %v103
  %v137 = vcvt.s32.f32 %v104
  %v138 = vcvt.s32.f32 %v105
  %v139 = vcvt.s32.f32 %v106
  %v140 = vcvt.s32.f32 %v107
  %v141 = vcvt.s32.f32 %v108
  %v142 = vld [vmem:[%s8] ss:$2 sm:$0x3f]
  %s143 = scalar_lea.vmem %s8, 1
  %v144 = vld [vmem:[%s143] ss:$2 sm:$0x3f]
  %v145 = vld [vmem:[%s9] sm:$0x7]
  %146 = vset.pattern.permute.xlu0 0
  %147 = vperm.xlu0 %146, %v76
  %v148 = vpop.permute.xlu0 %147
  %149 = vset.pattern.permute.xlu0 0
  %150 = vperm.xlu0 %149, %v77
  %v151 = vpop.permute.xlu0 %150
  %152 = vset.pattern.permute.xlu0 0
  %153 = vperm.xlu0 %152, %v78
  %v154 = vpop.permute.xlu0 %153
  %155 = vset.pattern.permute.xlu0 0
  %156 = vperm.xlu0 %155, %v79
  %v157 = vpop.permute.xlu0 %156
  %158 = vset.pattern.permute.xlu0 0
  %159 = vperm.xlu0 %158, %v80
  %v160 = vpop.permute.xlu0 %159
  %161 = vset.pattern.permute.xlu0 0
  %162 = vperm.xlu0 %161, %v81
  %v163 = vpop.permute.xlu0 %162
  %164 = vset.pattern.permute.xlu0 0
  %165 = vperm.xlu0 %164, %v82
  %v166 = vpop.permute.xlu0 %165
  %167 = vset.pattern.permute.xlu0 0
  %168 = vperm.xlu0 %167, %v83
  %v169 = vpop.permute.xlu0 %168
  %170 = vset.pattern.permute.xlu0 0
  %171 = vperm.xlu0 %170, %v84
  %v172 = vpop.permute.xlu0 %171
  %173 = vset.pattern.permute.xlu0 0
  %174 = vperm.xlu0 %173, %v85
  %v175 = vpop.permute.xlu0 %174
  %176 = vset.pattern.permute.xlu0 0
  %177 = vperm.xlu0 %176, %v86
  %v178 = vpop.permute.xlu0 %177
  %179 = vset.pattern.permute.xlu0 0
  %180 = vperm.xlu0 %179, %v87
  %v181 = vpop.permute.xlu0 %180
  %182 = vset.pattern.permute.xlu0 0
  %183 = vperm.xlu0 %182, %v88
  %v184 = vpop.permute.xlu0 %183
  %185 = vset.pattern.permute.xlu0 0
  %186 = vperm.xlu0 %185, %v89
  %v187 = vpop.permute.xlu0 %186
  %188 = vset.pattern.permute.xlu0 0
  %189 = vperm.xlu0 %188, %v90
  %v190 = vpop.permute.xlu0 %189
  %191 = vset.pattern.permute.xlu0 0
  %192 = vperm.xlu0 %191, %v91
  %v193 = vpop.permute.xlu0 %192
  %194 = vset.pattern.permute.xlu0 0
  %195 = vperm.xlu0 %194, %v92
  %v196 = vpop.permute.xlu0 %195
  %197 = vset.pattern.permute.xlu0 0
  %198 = vperm.xlu0 %197, %v93
  %v199 = vpop.permute.xlu0 %198
  %200 = vset.pattern.permute.xlu0 0
  %201 = vperm.xlu0 %200, %v94
  %v202 = vpop.permute.xlu0 %201
  %203 = vset.pattern.permute.xlu0 0
  %204 = vperm.xlu0 %203, %v95
  %v205 = vpop.permute.xlu0 %204
  %206 = vset.pattern.permute.xlu0 0
  %207 = vperm.xlu0 %206, %v96
  %v208 = vpop.permute.xlu0 %207
  %209 = vset.pattern.permute.xlu0 0
  %210 = vperm.xlu0 %209, %v97
  %v211 = vpop.permute.xlu0 %210
  %212 = vset.pattern.permute.xlu0 0
  %213 = vperm.xlu0 %212, %v98
  %v214 = vpop.permute.xlu0 %213
  %215 = vset.pattern.permute.xlu0 0
  %216 = vperm.xlu0 %215, %v99
  %v217 = vpop.permute.xlu0 %216
  %218 = vset.pattern.permute.xlu0 0
  %219 = vperm.xlu0 %218, %v100
  %v220 = vpop.permute.xlu0 %219
  %221 = vset.pattern.permute.xlu0 0
  %222 = vperm.xlu0 %221, %v101
  %v223 = vpop.permute.xlu0 %222
  %224 = vset.pattern.permute.xlu0 0
  %225 = vperm.xlu0 %224, %v102
  %v226 = vpop.permute.xlu0 %225
  %227 = vset.pattern.permute.xlu0 0
  %228 = vperm.xlu0 %227, %v103
  %v229 = vpop.permute.xlu0 %228
  %230 = vset.pattern.permute.xlu0 0
  %231 = vperm.xlu0 %230, %v104
  %v232 = vpop.permute.xlu0 %231
  %233 = vset.pattern.permute.xlu0 0
  %234 = vperm.xlu0 %233, %v105
  %v235 = vpop.permute.xlu0 %234
  %236 = vset.pattern.permute.xlu0 0
  %237 = vperm.xlu0 %236, %v106
  %v238 = vpop.permute.xlu0 %237
  %239 = vset.pattern.permute.xlu0 0
  %240 = vperm.xlu0 %239, %v107
  %v241 = vpop.permute.xlu0 %240
  %242 = vset.pattern.permute.xlu0 0
  %243 = vperm.xlu0 %242, %v108
  %v244 = vpop.permute.xlu0 %243
  %v245 = vperm.slane %v142, 0
  %v246 = vperm.slane %v142, 1
  %v247 = vperm.slane %v142, 2
  %v248 = vperm.slane %v142, 3
  %v249 = vperm.slane %v142, 4
  %v250 = vperm.slane %v142, 5
  %vm251 = vcmp.eq.s32.totalorder %v148, %v245
  %vm252 = vcmp.eq.s32.totalorder %v148, %v246
  %vm253 = vcmp.eq.s32.totalorder %v148, %v247
  %vm254 = vcmp.eq.s32.totalorder %v148, %v248
  %vm255 = vcmp.eq.s32.totalorder %v148, %v249
  %vm256 = vcmp.eq.s32.totalorder %v148, %v250
  %vm257 = vcmp.eq.s32.totalorder %v151, %v245
  %vm258 = vcmp.eq.s32.totalorder %v151, %v246
  %vm259 = vcmp.eq.s32.totalorder %v151, %v247
  %vm260 = vcmp.eq.s32.totalorder %v151, %v248
  %vm261 = vcmp.eq.s32.totalorder %v151, %v249
  %vm262 = vcmp.eq.s32.totalorder %v151, %v250
  %vm263 = vcmp.eq.s32.totalorder %v154, %v245
  %vm264 = vcmp.eq.s32.totalorder %v154, %v246
  %vm265 = vcmp.eq.s32.totalorder %v154, %v247
  %vm266 = vcmp.eq.s32.totalorder %v154, %v248
  %vm267 = vcmp.eq.s32.totalorder %v154, %v249
  %vm268 = vcmp.eq.s32.totalorder %v154, %v250
  %vm269 = vcmp.eq.s32.totalorder %v157, %v245
  %vm270 = vcmp.eq.s32.totalorder %v157, %v246
  %vm271 = vcmp.eq.s32.totalorder %v157, %v247
  %vm272 = vcmp.eq.s32.totalorder %v157, %v248
  %vm273 = vcmp.eq.s32.totalorder %v157, %v249
  %vm274 = vcmp.eq.s32.totalorder %v157, %v250
  %vm275 = vcmp.eq.s32.totalorder %v160, %v245
  %vm276 = vcmp.eq.s32.totalorder %v160, %v246
  %vm277 = vcmp.eq.s32.totalorder %v160, %v247
  %vm278 = vcmp.eq.s32.totalorder %v160, %v248
  %vm279 = vcmp.eq.s32.totalorder %v160, %v249
  %vm280 = vcmp.eq.s32.totalorder %v160, %v250
  %vm281 = vcmp.eq.s32.totalorder %v163, %v245
  %vm282 = vcmp.eq.s32.totalorder %v163, %v246
  %vm283 = vcmp.eq.s32.totalorder %v163, %v247
  %vm284 = vcmp.eq.s32.totalorder %v163, %v248
  %vm285 = vcmp.eq.s32.totalorder %v163, %v249
  %vm286 = vcmp.eq.s32.totalorder %v163, %v250
  %vm287 = vcmp.eq.s32.totalorder %v166, %v245
  %vm288 = vcmp.eq.s32.totalorder %v166, %v246
  %vm289 = vcmp.eq.s32.totalorder %v166, %v247
  %vm290 = vcmp.eq.s32.totalorder %v166, %v248
  %vm291 = vcmp.eq.s32.totalorder %v166, %v249
  %vm292 = vcmp.eq.s32.totalorder %v166, %v250
  %vm293 = vcmp.eq.s32.totalorder %v169, %v245
  %vm294 = vcmp.eq.s32.totalorder %v169, %v246
  %vm295 = vcmp.eq.s32.totalorder %v169, %v247
  %vm296 = vcmp.eq.s32.totalorder %v169, %v248
  %vm297 = vcmp.eq.s32.totalorder %v169, %v249
  %vm298 = vcmp.eq.s32.totalorder %v169, %v250
  %vm299 = vcmp.eq.s32.totalorder %v172, %v245
  %vm300 = vcmp.eq.s32.totalorder %v172, %v246
  %vm301 = vcmp.eq.s32.totalorder %v172, %v247
  %vm302 = vcmp.eq.s32.totalorder %v172, %v248
  %vm303 = vcmp.eq.s32.totalorder %v172, %v249
  %vm304 = vcmp.eq.s32.totalorder %v172, %v250
  %vm305 = vcmp.eq.s32.totalorder %v175, %v245
  %vm306 = vcmp.eq.s32.totalorder %v175, %v246
  %vm307 = vcmp.eq.s32.totalorder %v175, %v247
  %vm308 = vcmp.eq.s32.totalorder %v175, %v248
  %vm309 = vcmp.eq.s32.totalorder %v175, %v249
  %vm310 = vcmp.eq.s32.totalorder %v175, %v250
  %vm311 = vcmp.eq.s32.totalorder %v178, %v245
  %vm312 = vcmp.eq.s32.totalorder %v178, %v246
  %vm313 = vcmp.eq.s32.totalorder %v178, %v247
  %vm314 = vcmp.eq.s32.totalorder %v178, %v248
  %vm315 = vcmp.eq.s32.totalorder %v178, %v249
  %vm316 = vcmp.eq.s32.totalorder %v178, %v250
  %vm317 = vcmp.eq.s32.totalorder %v181, %v245
  %vm318 = vcmp.eq.s32.totalorder %v181, %v246
  %vm319 = vcmp.eq.s32.totalorder %v181, %v247
  %vm320 = vcmp.eq.s32.totalorder %v181, %v248
  %vm321 = vcmp.eq.s32.totalorder %v181, %v249
  %vm322 = vcmp.eq.s32.totalorder %v181, %v250
  %vm323 = vcmp.eq.s32.totalorder %v184, %v245
  %vm324 = vcmp.eq.s32.totalorder %v184, %v246
  %vm325 = vcmp.eq.s32.totalorder %v184, %v247
  %vm326 = vcmp.eq.s32.totalorder %v184, %v248
  %vm327 = vcmp.eq.s32.totalorder %v184, %v249
  %vm328 = vcmp.eq.s32.totalorder %v184, %v250
  %vm329 = vcmp.eq.s32.totalorder %v187, %v245
  %vm330 = vcmp.eq.s32.totalorder %v187, %v246
  %vm331 = vcmp.eq.s32.totalorder %v187, %v247
  %vm332 = vcmp.eq.s32.totalorder %v187, %v248
  %vm333 = vcmp.eq.s32.totalorder %v187, %v249
  %vm334 = vcmp.eq.s32.totalorder %v187, %v250
  %vm335 = vcmp.eq.s32.totalorder %v190, %v245
  %vm336 = vcmp.eq.s32.totalorder %v190, %v246
  %vm337 = vcmp.eq.s32.totalorder %v190, %v247
  %vm338 = vcmp.eq.s32.totalorder %v190, %v248
  %vm339 = vcmp.eq.s32.totalorder %v190, %v249
  %vm340 = vcmp.eq.s32.totalorder %v190, %v250
  %vm341 = vcmp.eq.s32.totalorder %v193, %v245
  %vm342 = vcmp.eq.s32.totalorder %v193, %v246
  %vm343 = vcmp.eq.s32.totalorder %v193, %v247
  %vm344 = vcmp.eq.s32.totalorder %v193, %v248
  %vm345 = vcmp.eq.s32.totalorder %v193, %v249
  %vm346 = vcmp.eq.s32.totalorder %v193, %v250
  %vm347 = vcmp.eq.s32.totalorder %v196, %v245
  %vm348 = vcmp.eq.s32.totalorder %v196, %v246
  %vm349 = vcmp.eq.s32.totalorder %v196, %v247
  %vm350 = vcmp.eq.s32.totalorder %v196, %v248
  %vm351 = vcmp.eq.s32.totalorder %v196, %v249
  %vm352 = vcmp.eq.s32.totalorder %v196, %v250
  %vm353 = vcmp.eq.s32.totalorder %v199, %v245
  %vm354 = vcmp.eq.s32.totalorder %v199, %v246
  %vm355 = vcmp.eq.s32.totalorder %v199, %v247
  %vm356 = vcmp.eq.s32.totalorder %v199, %v248
  %vm357 = vcmp.eq.s32.totalorder %v199, %v249
  %vm358 = vcmp.eq.s32.totalorder %v199, %v250
  %vm359 = vcmp.eq.s32.totalorder %v202, %v245
  %vm360 = vcmp.eq.s32.totalorder %v202, %v246
  %vm361 = vcmp.eq.s32.totalorder %v202, %v247
  %vm362 = vcmp.eq.s32.totalorder %v202, %v248
  %vm363 = vcmp.eq.s32.totalorder %v202, %v249
  %vm364 = vcmp.eq.s32.totalorder %v202, %v250
  %vm365 = vcmp.eq.s32.totalorder %v205, %v245
  %vm366 = vcmp.eq.s32.totalorder %v205, %v246
  %vm367 = vcmp.eq.s32.totalorder %v205, %v247
  %vm368 = vcmp.eq.s32.totalorder %v205, %v248
  %vm369 = vcmp.eq.s32.totalorder %v205, %v249
  %vm370 = vcmp.eq.s32.totalorder %v205, %v250
  %vm371 = vcmp.eq.s32.totalorder %v208, %v245
  %vm372 = vcmp.eq.s32.totalorder %v208, %v246
  %vm373 = vcmp.eq.s32.totalorder %v208, %v247
  %vm374 = vcmp.eq.s32.totalorder %v208, %v248
  %vm375 = vcmp.eq.s32.totalorder %v208, %v249
  %vm376 = vcmp.eq.s32.totalorder %v208, %v250
  %vm377 = vcmp.eq.s32.totalorder %v211, %v245
  %vm378 = vcmp.eq.s32.totalorder %v211, %v246
  %vm379 = vcmp.eq.s32.totalorder %v211, %v247
  %vm380 = vcmp.eq.s32.totalorder %v211, %v248
  %vm381 = vcmp.eq.s32.totalorder %v211, %v249
  %vm382 = vcmp.eq.s32.totalorder %v211, %v250
  %vm383 = vcmp.eq.s32.totalorder %v214, %v245
  %vm384 = vcmp.eq.s32.totalorder %v214, %v246
  %vm385 = vcmp.eq.s32.totalorder %v214, %v247
  %vm386 = vcmp.eq.s32.totalorder %v214, %v248
  %vm387 = vcmp.eq.s32.totalorder %v214, %v249
  %vm388 = vcmp.eq.s32.totalorder %v214, %v250
  %vm389 = vcmp.eq.s32.totalorder %v217, %v245
  %vm390 = vcmp.eq.s32.totalorder %v217, %v246
  %vm391 = vcmp.eq.s32.totalorder %v217, %v247
  %vm392 = vcmp.eq.s32.totalorder %v217, %v248
  %vm393 = vcmp.eq.s32.totalorder %v217, %v249
  %vm394 = vcmp.eq.s32.totalorder %v217, %v250
  %vm395 = vcmp.eq.s32.totalorder %v220, %v245
  %vm396 = vcmp.eq.s32.totalorder %v220, %v246
  %vm397 = vcmp.eq.s32.totalorder %v220, %v247
  %vm398 = vcmp.eq.s32.totalorder %v220, %v248
  %vm399 = vcmp.eq.s32.totalorder %v220, %v249
  %vm400 = vcmp.eq.s32.totalorder %v220, %v250
  %vm401 = vcmp.eq.s32.totalorder %v223, %v245
  %vm402 = vcmp.eq.s32.totalorder %v223, %v246
  %vm403 = vcmp.eq.s32.totalorder %v223, %v247
  %vm404 = vcmp.eq.s32.totalorder %v223, %v248
  %vm405 = vcmp.eq.s32.totalorder %v223, %v249
  %vm406 = vcmp.eq.s32.totalorder %v223, %v250
  %vm407 = vcmp.eq.s32.totalorder %v226, %v245
  %vm408 = vcmp.eq.s32.totalorder %v226, %v246
  %vm409 = vcmp.eq.s32.totalorder %v226, %v247
  %vm410 = vcmp.eq.s32.totalorder %v226, %v248
  %vm411 = vcmp.eq.s32.totalorder %v226, %v249
  %vm412 = vcmp.eq.s32.totalorder %v226, %v250
  %vm413 = vcmp.eq.s32.totalorder %v229, %v245
  %vm414 = vcmp.eq.s32.totalorder %v229, %v246
  %vm415 = vcmp.eq.s32.totalorder %v229, %v247
  %vm416 = vcmp.eq.s32.totalorder %v229, %v248
  %vm417 = vcmp.eq.s32.totalorder %v229, %v249
  %vm418 = vcmp.eq.s32.totalorder %v229, %v250
  %vm419 = vcmp.eq.s32.totalorder %v232, %v245
  %vm420 = vcmp.eq.s32.totalorder %v232, %v246
  %vm421 = vcmp.eq.s32.totalorder %v232, %v247
  %vm422 = vcmp.eq.s32.totalorder %v232, %v248
  %vm423 = vcmp.eq.s32.totalorder %v232, %v249
  %vm424 = vcmp.eq.s32.totalorder %v232, %v250
  %vm425 = vcmp.eq.s32.totalorder %v235, %v245
  %vm426 = vcmp.eq.s32.totalorder %v235, %v246
  %vm427 = vcmp.eq.s32.totalorder %v235, %v247
  %vm428 = vcmp.eq.s32.totalorder %v235, %v248
  %vm429 = vcmp.eq.s32.totalorder %v235, %v249
  %vm430 = vcmp.eq.s32.totalorder %v235, %v250
  %vm431 = vcmp.eq.s32.totalorder %v238, %v245
  %vm432 = vcmp.eq.s32.totalorder %v238, %v246
  %vm433 = vcmp.eq.s32.totalorder %v238, %v247
  %vm434 = vcmp.eq.s32.totalorder %v238, %v248
  %vm435 = vcmp.eq.s32.totalorder %v238, %v249
  %vm436 = vcmp.eq.s32.totalorder %v238, %v250
  %vm437 = vcmp.eq.s32.totalorder %v241, %v245
  %vm438 = vcmp.eq.s32.totalorder %v241, %v246
  %vm439 = vcmp.eq.s32.totalorder %v241, %v247
  %vm440 = vcmp.eq.s32.totalorder %v241, %v248
  %vm441 = vcmp.eq.s32.totalorder %v241, %v249
  %vm442 = vcmp.eq.s32.totalorder %v241, %v250
  %vm443 = vcmp.eq.s32.totalorder %v244, %v245
  %vm444 = vcmp.eq.s32.totalorder %v244, %v246
  %vm445 = vcmp.eq.s32.totalorder %v244, %v247
  %vm446 = vcmp.eq.s32.totalorder %v244, %v248
  %vm447 = vcmp.eq.s32.totalorder %v244, %v249
  %vm448 = vcmp.eq.s32.totalorder %v244, %v250
  %v449 = vsel %vm251, 1, 0
  %v450 = vsel %vm252, 1, 0
  %v451 = vsel %vm253, 1, 0
  %v452 = vsel %vm254, 1, 0
  %v453 = vsel %vm255, 1, 0
  %v454 = vsel %vm256, 1, 0
  %v455 = vsel %vm257, 1, 0
  %v456 = vsel %vm258, 1, 0
  %v457 = vsel %vm259, 1, 0
  %v458 = vsel %vm260, 1, 0
  %v459 = vsel %vm261, 1, 0
  %v460 = vsel %vm262, 1, 0
  %v461 = vsel %vm263, 1, 0
  %v462 = vsel %vm264, 1, 0
  %v463 = vsel %vm265, 1, 0
  %v464 = vsel %vm266, 1, 0
  %v465 = vsel %vm267, 1, 0
  %v466 = vsel %vm268, 1, 0
  %v467 = vsel %vm269, 1, 0
  %v468 = vsel %vm270, 1, 0
  %v469 = vsel %vm271, 1, 0
  %v470 = vsel %vm272, 1, 0
  %v471 = vsel %vm273, 1, 0
  %v472 = vsel %vm274, 1, 0
  %v473 = vsel %vm275, 1, 0
  %v474 = vsel %vm276, 1, 0
  %v475 = vsel %vm277, 1, 0
  %v476 = vsel %vm278, 1, 0
  %v477 = vsel %vm279, 1, 0
  %v478 = vsel %vm280, 1, 0
  %v479 = vsel %vm281, 1, 0
  %v480 = vsel %vm282, 1, 0
  %v481 = vsel %vm283, 1, 0
  %v482 = vsel %vm284, 1, 0
  %v483 = vsel %vm285, 1, 0
  %v484 = vsel %vm286, 1, 0
  %v485 = vsel %vm287, 1, 0
  %v486 = vsel %vm288, 1, 0
  %v487 = vsel %vm289, 1, 0
  %v488 = vsel %vm290, 1, 0
  %v489 = vsel %vm291, 1, 0
  %v490 = vsel %vm292, 1, 0
  %v491 = vsel %vm293, 1, 0
  %v492 = vsel %vm294, 1, 0
  %v493 = vsel %vm295, 1, 0
  %v494 = vsel %vm296, 1, 0
  %v495 = vsel %vm297, 1, 0
  %v496 = vsel %vm298, 1, 0
  %v497 = vsel %vm299, 1, 0
  %v498 = vsel %vm300, 1, 0
  %v499 = vsel %vm301, 1, 0
  %v500 = vsel %vm302, 1, 0
  %v501 = vsel %vm303, 1, 0
  %v502 = vsel %vm304, 1, 0
  %v503 = vsel %vm305, 1, 0
  %v504 = vsel %vm306, 1, 0
  %v505 = vsel %vm307, 1, 0
  %v506 = vsel %vm308, 1, 0
  %v507 = vsel %vm309, 1, 0
  %v508 = vsel %vm310, 1, 0
  %v509 = vsel %vm311, 1, 0
  %v510 = vsel %vm312, 1, 0
  %v511 = vsel %vm313, 1, 0
  %v512 = vsel %vm314, 1, 0
  %v513 = vsel %vm315, 1, 0
  %v514 = vsel %vm316, 1, 0
  %v515 = vsel %vm317, 1, 0
  %v516 = vsel %vm318, 1, 0
  %v517 = vsel %vm319, 1, 0
  %v518 = vsel %vm320, 1, 0
  %v519 = vsel %vm321, 1, 0
  %v520 = vsel %vm322, 1, 0
  %v521 = vsel %vm323, 1, 0
  %v522 = vsel %vm324, 1, 0
  %v523 = vsel %vm325, 1, 0
  %v524 = vsel %vm326, 1, 0
  %v525 = vsel %vm327, 1, 0
  %v526 = vsel %vm328, 1, 0
  %v527 = vsel %vm329, 1, 0
  %v528 = vsel %vm330, 1, 0
  %v529 = vsel %vm331, 1, 0
  %v530 = vsel %vm332, 1, 0
  %v531 = vsel %vm333, 1, 0
  %v532 = vsel %vm334, 1, 0
  %v533 = vsel %vm335, 1, 0
  %v534 = vsel %vm336, 1, 0
  %v535 = vsel %vm337, 1, 0
  %v536 = vsel %vm338, 1, 0
  %v537 = vsel %vm339, 1, 0
  %v538 = vsel %vm340, 1, 0
  %v539 = vsel %vm341, 1, 0
  %v540 = vsel %vm342, 1, 0
  %v541 = vsel %vm343, 1, 0
  %v542 = vsel %vm344, 1, 0
  %v543 = vsel %vm345, 1, 0
  %v544 = vsel %vm346, 1, 0
  %v545 = vsel %vm347, 1, 0
  %v546 = vsel %vm348, 1, 0
  %v547 = vsel %vm349, 1, 0
  %v548 = vsel %vm350, 1, 0
  %v549 = vsel %vm351, 1, 0
  %v550 = vsel %vm352, 1, 0
  %v551 = vsel %vm353, 1, 0
  %v552 = vsel %vm354, 1, 0
  %v553 = vsel %vm355, 1, 0
  %v554 = vsel %vm356, 1, 0
  %v555 = vsel %vm357, 1, 0
  %v556 = vsel %vm358, 1, 0
  %v557 = vsel %vm359, 1, 0
  %v558 = vsel %vm360, 1, 0
  %v559 = vsel %vm361, 1, 0
  %v560 = vsel %vm362, 1, 0
  %v561 = vsel %vm363, 1, 0
  %v562 = vsel %vm364, 1, 0
  %v563 = vsel %vm365, 1, 0
  %v564 = vsel %vm366, 1, 0
  %v565 = vsel %vm367, 1, 0
  %v566 = vsel %vm368, 1, 0
  %v567 = vsel %vm369, 1, 0
  %v568 = vsel %vm370, 1, 0
  %v569 = vsel %vm371, 1, 0
  %v570 = vsel %vm372, 1, 0
  %v571 = vsel %vm373, 1, 0
  %v572 = vsel %vm374, 1, 0
  %v573 = vsel %vm375, 1, 0
  %v574 = vsel %vm376, 1, 0
  %v575 = vsel %vm377, 1, 0
  %v576 = vsel %vm378, 1, 0
  %v577 = vsel %vm379, 1, 0
  %v578 = vsel %vm380, 1, 0
  %v579 = vsel %vm381, 1, 0
  %v580 = vsel %vm382, 1, 0
  %v581 = vsel %vm383, 1, 0
  %v582 = vsel %vm384, 1, 0
  %v583 = vsel %vm385, 1, 0
  %v584 = vsel %vm386, 1, 0
  %v585 = vsel %vm387, 1, 0
  %v586 = vsel %vm388, 1, 0
  %v587 = vsel %vm389, 1, 0
  %v588 = vsel %vm390, 1, 0
  %v589 = vsel %vm391, 1, 0
  %v590 = vsel %vm392, 1, 0
  %v591 = vsel %vm393, 1, 0
  %v592 = vsel %vm394, 1, 0
  %v593 = vsel %vm395, 1, 0
  %v594 = vsel %vm396, 1, 0
  %v595 = vsel %vm397, 1, 0
  %v596 = vsel %vm398, 1, 0
  %v597 = vsel %vm399, 1, 0
  %v598 = vsel %vm400, 1, 0
  %v599 = vsel %vm401, 1, 0
  %v600 = vsel %vm402, 1, 0
  %v601 = vsel %vm403, 1, 0
  %v602 = vsel %vm404, 1, 0
  %v603 = vsel %vm405, 1, 0
  %v604 = vsel %vm406, 1, 0
  %v605 = vsel %vm407, 1, 0
  %v606 = vsel %vm408, 1, 0
  %v607 = vsel %vm409, 1, 0
  %v608 = vsel %vm410, 1, 0
  %v609 = vsel %vm411, 1, 0
  %v610 = vsel %vm412, 1, 0
  %v611 = vsel %vm413, 1, 0
  %v612 = vsel %vm414, 1, 0
  %v613 = vsel %vm415, 1, 0
  %v614 = vsel %vm416, 1, 0
  %v615 = vsel %vm417, 1, 0
  %v616 = vsel %vm418, 1, 0
  %v617 = vsel %vm419, 1, 0
  %v618 = vsel %vm420, 1, 0
  %v619 = vsel %vm421, 1, 0
  %v620 = vsel %vm422, 1, 0
  %v621 = vsel %vm423, 1, 0
  %v622 = vsel %vm424, 1, 0
  %v623 = vsel %vm425, 1, 0
  %v624 = vsel %vm426, 1, 0
  %v625 = vsel %vm427, 1, 0
  %v626 = vsel %vm428, 1, 0
  %v627 = vsel %vm429, 1, 0
  %v628 = vsel %vm430, 1, 0
  %v629 = vsel %vm431, 1, 0
  %v630 = vsel %vm432, 1, 0
  %v631 = vsel %vm433, 1, 0
  %v632 = vsel %vm434, 1, 0
  %v633 = vsel %vm435, 1, 0
  %v634 = vsel %vm436, 1, 0
  %v635 = vsel %vm437, 1, 0
  %v636 = vsel %vm438, 1, 0
  %v637 = vsel %vm439, 1, 0
  %v638 = vsel %vm440, 1, 0
  %v639 = vsel %vm441, 1, 0
  %v640 = vsel %vm442, 1, 0
  %v641 = vsel %vm443, 1, 0
  %v642 = vsel %vm444, 1, 0
  %v643 = vsel %vm445, 1, 0
  %v644 = vsel %vm446, 1, 0
  %v645 = vsel %vm447, 1, 0
  %v646 = vsel %vm448, 1, 0
  %v647 = vcvt.s32.f32 %v449
  %v648 = vcvt.s32.f32 %v450
  %v649 = vcvt.s32.f32 %v451
  %v650 = vcvt.s32.f32 %v452
  %v651 = vcvt.s32.f32 %v453
  %v652 = vcvt.s32.f32 %v454
  %v653 = vcvt.s32.f32 %v455
  %v654 = vcvt.s32.f32 %v456
  %v655 = vcvt.s32.f32 %v457
  %v656 = vcvt.s32.f32 %v458
  %v657 = vcvt.s32.f32 %v459
  %v658 = vcvt.s32.f32 %v460
  %v659 = vcvt.s32.f32 %v461
  %v660 = vcvt.s32.f32 %v462
  %v661 = vcvt.s32.f32 %v463
  %v662 = vcvt.s32.f32 %v464
  %v663 = vcvt.s32.f32 %v465
  %v664 = vcvt.s32.f32 %v466
  %v665 = vcvt.s32.f32 %v467
  %v666 = vcvt.s32.f32 %v468
  %v667 = vcvt.s32.f32 %v469
  %v668 = vcvt.s32.f32 %v470
  %v669 = vcvt.s32.f32 %v471
  %v670 = vcvt.s32.f32 %v472
  %v671 = vcvt.s32.f32 %v473
  %v672 = vcvt.s32.f32 %v474
  %v673 = vcvt.s32.f32 %v475
  %v674 = vcvt.s32.f32 %v476
  %v675 = vcvt.s32.f32 %v477
  %v676 = vcvt.s32.f32 %v478
  %v677 = vcvt.s32.f32 %v479
  %v678 = vcvt.s32.f32 %v480
  %v679 = vcvt.s32.f32 %v481
  %v680 = vcvt.s32.f32 %v482
  %v681 = vcvt.s32.f32 %v483
  %v682 = vcvt.s32.f32 %v484
  %v683 = vcvt.s32.f32 %v485
  %v684 = vcvt.s32.f32 %v486
  %v685 = vcvt.s32.f32 %v487
  %v686 = vcvt.s32.f32 %v488
  %v687 = vcvt.s32.f32 %v489
  %v688 = vcvt.s32.f32 %v490
  %v689 = vcvt.s32.f32 %v491
  %v690 = vcvt.s32.f32 %v492
  %v691 = vcvt.s32.f32 %v493
  %v692 = vcvt.s32.f32 %v494
  %v693 = vcvt.s32.f32 %v495
  %v694 = vcvt.s32.f32 %v496
  %v695 = vcvt.s32.f32 %v497
  %v696 = vcvt.s32.f32 %v498
  %v697 = vcvt.s32.f32 %v499
  %v698 = vcvt.s32.f32 %v500
  %v699 = vcvt.s32.f32 %v501
  %v700 = vcvt.s32.f32 %v502
  %v701 = vcvt.s32.f32 %v503
  %v702 = vcvt.s32.f32 %v504
  %v703 = vcvt.s32.f32 %v505
  %v704 = vcvt.s32.f32 %v506
  %v705 = vcvt.s32.f32 %v507
  %v706 = vcvt.s32.f32 %v508
  %v707 = vcvt.s32.f32 %v509
  %v708 = vcvt.s32.f32 %v510
  %v709 = vcvt.s32.f32 %v511
  %v710 = vcvt.s32.f32 %v512
  %v711 = vcvt.s32.f32 %v513
  %v712 = vcvt.s32.f32 %v514
  %v713 = vcvt.s32.f32 %v515
  %v714 = vcvt.s32.f32 %v516
  %v715 = vcvt.s32.f32 %v517
  %v716 = vcvt.s32.f32 %v518
  %v717 = vcvt.s32.f32 %v519
  %v718 = vcvt.s32.f32 %v520
  %v719 = vcvt.s32.f32 %v521
  %v720 = vcvt.s32.f32 %v522
  %v721 = vcvt.s32.f32 %v523
  %v722 = vcvt.s32.f32 %v524
  %v723 = vcvt.s32.f32 %v525
  %v724 = vcvt.s32.f32 %v526
  %v725 = vcvt.s32.f32 %v527
  %v726 = vcvt.s32.f32 %v528
  %v727 = vcvt.s32.f32 %v529
  %v728 = vcvt.s32.f32 %v530
  %v729 = vcvt.s32.f32 %v531
  %v730 = vcvt.s32.f32 %v532
  %v731 = vcvt.s32.f32 %v533
  %v732 = vcvt.s32.f32 %v534
  %v733 = vcvt.s32.f32 %v535
  %v734 = vcvt.s32.f32 %v536
  %v735 = vcvt.s32.f32 %v537
  %v736 = vcvt.s32.f32 %v538
  %v737 = vcvt.s32.f32 %v539
  %v738 = vcvt.s32.f32 %v540
  %v739 = vcvt.s32.f32 %v541
  %v740 = vcvt.s32.f32 %v542
  %v741 = vcvt.s32.f32 %v543
  %v742 = vcvt.s32.f32 %v544
  %v743 = vcvt.s32.f32 %v545
  %v744 = vcvt.s32.f32 %v546
  %v745 = vcvt.s32.f32 %v547
  %v746 = vcvt.s32.f32 %v548
  %v747 = vcvt.s32.f32 %v549
  %v748 = vcvt.s32.f32 %v550
  %v749 = vcvt.s32.f32 %v551
  %v750 = vcvt.s32.f32 %v552
  %v751 = vcvt.s32.f32 %v553
  %v752 = vcvt.s32.f32 %v554
  %v753 = vcvt.s32.f32 %v555
  %v754 = vcvt.s32.f32 %v556
  %v755 = vcvt.s32.f32 %v557
  %v756 = vcvt.s32.f32 %v558
  %v757 = vcvt.s32.f32 %v559
  %v758 = vcvt.s32.f32 %v560
  %v759 = vcvt.s32.f32 %v561
  %v760 = vcvt.s32.f32 %v562
  %v761 = vcvt.s32.f32 %v563
  %v762 = vcvt.s32.f32 %v564
  %v763 = vcvt.s32.f32 %v565
  %v764 = vcvt.s32.f32 %v566
  %v765 = vcvt.s32.f32 %v567
  %v766 = vcvt.s32.f32 %v568
  %v767 = vcvt.s32.f32 %v569
  %v768 = vcvt.s32.f32 %v570
  %v769 = vcvt.s32.f32 %v571
  %v770 = vcvt.s32.f32 %v572
  %v771 = vcvt.s32.f32 %v573
  %v772 = vcvt.s32.f32 %v574
  %v773 = vcvt.s32.f32 %v575
  %v774 = vcvt.s32.f32 %v576
  %v775 = vcvt.s32.f32 %v577
  %v776 = vcvt.s32.f32 %v578
  %v777 = vcvt.s32.f32 %v579
  %v778 = vcvt.s32.f32 %v580
  %v779 = vcvt.s32.f32 %v581
  %v780 = vcvt.s32.f32 %v582
  %v781 = vcvt.s32.f32 %v583
  %v782 = vcvt.s32.f32 %v584
  %v783 = vcvt.s32.f32 %v585
  %v784 = vcvt.s32.f32 %v586
  %v785 = vcvt.s32.f32 %v587
  %v786 = vcvt.s32.f32 %v588
  %v787 = vcvt.s32.f32 %v589
  %v788 = vcvt.s32.f32 %v590
  %v789 = vcvt.s32.f32 %v591
  %v790 = vcvt.s32.f32 %v592
  %v791 = vcvt.s32.f32 %v593
  %v792 = vcvt.s32.f32 %v594
  %v793 = vcvt.s32.f32 %v595
  %v794 = vcvt.s32.f32 %v596
  %v795 = vcvt.s32.f32 %v597
  %v796 = vcvt.s32.f32 %v598
  %v797 = vcvt.s32.f32 %v599
  %v798 = vcvt.s32.f32 %v600
  %v799 = vcvt.s32.f32 %v601
  %v800 = vcvt.s32.f32 %v602
  %v801 = vcvt.s32.f32 %v603
  %v802 = vcvt.s32.f32 %v604
  %v803 = vcvt.s32.f32 %v605
  %v804 = vcvt.s32.f32 %v606
  %v805 = vcvt.s32.f32 %v607
  %v806 = vcvt.s32.f32 %v608
  %v807 = vcvt.s32.f32 %v609
  %v808 = vcvt.s32.f32 %v610
  %v809 = vcvt.s32.f32 %v611
  %v810 = vcvt.s32.f32 %v612
  %v811 = vcvt.s32.f32 %v613
  %v812 = vcvt.s32.f32 %v614
  %v813 = vcvt.s32.f32 %v615
  %v814 = vcvt.s32.f32 %v616
  %v815 = vcvt.s32.f32 %v617
  %v816 = vcvt.s32.f32 %v618
  %v817 = vcvt.s32.f32 %v619
  %v818 = vcvt.s32.f32 %v620
  %v819 = vcvt.s32.f32 %v621
  %v820 = vcvt.s32.f32 %v622
  %v821 = vcvt.s32.f32 %v623
  %v822 = vcvt.s32.f32 %v624
  %v823 = vcvt.s32.f32 %v625
  %v824 = vcvt.s32.f32 %v626
  %v825 = vcvt.s32.f32 %v627
  %v826 = vcvt.s32.f32 %v628
  %v827 = vcvt.s32.f32 %v629
  %v828 = vcvt.s32.f32 %v630
  %v829 = vcvt.s32.f32 %v631
  %v830 = vcvt.s32.f32 %v632
  %v831 = vcvt.s32.f32 %v633
  %v832 = vcvt.s32.f32 %v634
  %v833 = vcvt.s32.f32 %v635
  %v834 = vcvt.s32.f32 %v636
  %v835 = vcvt.s32.f32 %v637
  %v836 = vcvt.s32.f32 %v638
  %v837 = vcvt.s32.f32 %v639
  %v838 = vcvt.s32.f32 %v640
  %v839 = vcvt.s32.f32 %v641
  %v840 = vcvt.s32.f32 %v642
  %v841 = vcvt.s32.f32 %v643
  %v842 = vcvt.s32.f32 %v644
  %v843 = vcvt.s32.f32 %v645
  %v844 = vcvt.s32.f32 %v646
  %v845 = vlaneseq
  %v846 = vshrl.u32 %v845, 7
  %v847 = vadd.s32 %v846, 8
  %v848 = vadd.s32 %v846, 16
  %v849 = vadd.s32 %v846, 24
  %v850 = vperm.slane %v144, 0
  %v851 = vperm.slane %v144, 1
  %v852 = vperm.slane %v144, 2
  %v853 = vperm.slane %v144, 3
  %v854 = vperm.slane %v144, 4
  %v855 = vperm.slane %v144, 5
  %vm856 = vcmp.eq.s32.totalorder %v846, %v850
  %vm857 = vcmp.eq.s32.totalorder %v846, %v851
  %vm858 = vcmp.eq.s32.totalorder %v846, %v852
  %vm859 = vcmp.eq.s32.totalorder %v846, %v853
  %vm860 = vcmp.eq.s32.totalorder %v846, %v854
  %vm861 = vcmp.eq.s32.totalorder %v846, %v855
  %vm862 = vcmp.eq.s32.totalorder %v847, %v850
  %vm863 = vcmp.eq.s32.totalorder %v847, %v851
  %vm864 = vcmp.eq.s32.totalorder %v847, %v852
  %vm865 = vcmp.eq.s32.totalorder %v847, %v853
  %vm866 = vcmp.eq.s32.totalorder %v847, %v854
  %vm867 = vcmp.eq.s32.totalorder %v847, %v855
  %vm868 = vcmp.eq.s32.totalorder %v848, %v850
  %vm869 = vcmp.eq.s32.totalorder %v848, %v851
  %vm870 = vcmp.eq.s32.totalorder %v848, %v852
  %vm871 = vcmp.eq.s32.totalorder %v848, %v853
  %vm872 = vcmp.eq.s32.totalorder %v848, %v854
  %vm873 = vcmp.eq.s32.totalorder %v848, %v855
  %vm874 = vcmp.eq.s32.totalorder %v849, %v850
  %vm875 = vcmp.eq.s32.totalorder %v849, %v851
  %vm876 = vcmp.eq.s32.totalorder %v849, %v852
  %vm877 = vcmp.eq.s32.totalorder %v849, %v853
  %vm878 = vcmp.eq.s32.totalorder %v849, %v854
  %vm879 = vcmp.eq.s32.totalorder %v849, %v855
  %v880 = vsel %vm856, 1, 0
  %v881 = vsel %vm857, 1, 0
  %v882 = vsel %vm858, 1, 0
  %v883 = vsel %vm859, 1, 0
  %v884 = vsel %vm860, 1, 0
  %v885 = vsel %vm861, 1, 0
  %v886 = vsel %vm862, 1, 0
  %v887 = vsel %vm863, 1, 0
  %v888 = vsel %vm864, 1, 0
  %v889 = vsel %vm865, 1, 0
  %v890 = vsel %vm866, 1, 0
  %v891 = vsel %vm867, 1, 0
  %v892 = vsel %vm868, 1, 0
  %v893 = vsel %vm869, 1, 0
  %v894 = vsel %vm870, 1, 0
  %v895 = vsel %vm871, 1, 0
  %v896 = vsel %vm872, 1, 0
  %v897 = vsel %vm873, 1, 0
  %v898 = vsel %vm874, 1, 0
  %v899 = vsel %vm875, 1, 0
  %v900 = vsel %vm876, 1, 0
  %v901 = vsel %vm877, 1, 0
  %v902 = vsel %vm878, 1, 0
  %v903 = vsel %vm879, 1, 0
  %v904 = vcvt.s32.f32 %v880
  %v905 = vcvt.s32.f32 %v881
  %v906 = vcvt.s32.f32 %v882
  %v907 = vcvt.s32.f32 %v883
  %v908 = vcvt.s32.f32 %v884
  %v909 = vcvt.s32.f32 %v885
  %v910 = vcvt.s32.f32 %v886
  %v911 = vcvt.s32.f32 %v887
  %v912 = vcvt.s32.f32 %v888
  %v913 = vcvt.s32.f32 %v889
  %v914 = vcvt.s32.f32 %v890
  %v915 = vcvt.s32.f32 %v891
  %v916 = vcvt.s32.f32 %v892
  %v917 = vcvt.s32.f32 %v893
  %v918 = vcvt.s32.f32 %v894
  %v919 = vcvt.s32.f32 %v895
  %v920 = vcvt.s32.f32 %v896
  %v921 = vcvt.s32.f32 %v897
  %v922 = vcvt.s32.f32 %v898
  %v923 = vcvt.s32.f32 %v899
  %v924 = vcvt.s32.f32 %v900
  %v925 = vcvt.s32.f32 %v901
  %v926 = vcvt.s32.f32 %v902
  %v927 = vcvt.s32.f32 %v903
  %v928 = vperm.slane %v145, 0
  %v929 = vperm.slane %v145, 1
  %v930 = vperm.slane %v145, 2
  %vm931 = vcmp.eq.s32.totalorder %v846, %v928
  %vm932 = vcmp.eq.s32.totalorder %v846, %v929
  %vm933 = vcmp.eq.s32.totalorder %v846, %v930
  %vm934 = vcmp.eq.s32.totalorder %v847, %v928
  %vm935 = vcmp.eq.s32.totalorder %v847, %v929
  %vm936 = vcmp.eq.s32.totalorder %v847, %v930
  %vm937 = vcmp.eq.s32.totalorder %v848, %v928
  %vm938 = vcmp.eq.s32.totalorder %v848, %v929
  %vm939 = vcmp.eq.s32.totalorder %v848, %v930
  %v940 = vsel %vm931, 1, 0
  %v941 = vsel %vm932, 1, 0
  %v942 = vsel %vm933, 1, 0
  %v943 = vsel %vm934, 1, 0
  %v944 = vsel %vm935, 1, 0
  %v945 = vsel %vm936, 1, 0
  %v946 = vsel %vm937, 1, 0
  %v947 = vsel %vm938, 1, 0
  %v948 = vsel %vm939, 1, 0
  %v949 = vcvt.s32.f32 %v940
  %v950 = vcvt.s32.f32 %v941
  %v951 = vcvt.s32.f32 %v942
  %v952 = vcvt.s32.f32 %v943
  %v953 = vcvt.s32.f32 %v944
  %v954 = vcvt.s32.f32 %v945
  %v955 = vcvt.s32.f32 %v946
  %v956 = vcvt.s32.f32 %v947
  %v957 = vcvt.s32.f32 %v948
  %v958 = vld [vmem:[%s1] sm:$0xf]
  %v959 = vld [vmem:[%s1 + $0x4] sm:$0xf]
  %v960 = vld [vmem:[%s1 + $0x8] sm:$0xf]
  %v961 = vld [vmem:[%s1 + $0xc] sm:$0xf]
  %v962 = vld [vmem:[%s1 + $0x10] sm:$0xf]
  %v963 = vld [vmem:[%s1 + $0x14] sm:$0xf]
  %v964 = vld [vmem:[%s1 + $0x18] sm:$0xf]
  %v965 = vld [vmem:[%s1 + $0x1c] sm:$0xf]
  %v966 = vld [vmem:[%s1 + $0x20] sm:$0xf]
  %v967 = vld [vmem:[%s1 + $0x24] sm:$0xf]
  %v968 = vld [vmem:[%s1 + $0x28] sm:$0xf]
  %v969 = vld [vmem:[%s1 + $0x2c] sm:$0xf]
  %v970 = vld [vmem:[%s1 + $0x30] sm:$0xf]
  %v971 = vld [vmem:[%s1 + $0x34] sm:$0xf]
  %v972 = vld [vmem:[%s1 + $0x38] sm:$0xf]
  %v973 = vld [vmem:[%s1 + $0x3c] sm:$0xf]
  %v974 = vld [vmem:[%s1 + $0x40] sm:$0xf]
  %v975 = vld [vmem:[%s1 + $0x44] sm:$0xf]
  %v976 = vld [vmem:[%s1 + $0x48] sm:$0xf]
  %v977 = vld [vmem:[%s1 + $0x4c] sm:$0xf]
  %v978 = vld [vmem:[%s1 + $0x50] sm:$0xf]
  %v979 = vld [vmem:[%s1 + $0x54] sm:$0xf]
  %v980 = vld [vmem:[%s1 + $0x58] sm:$0xf]
  %v981 = vld [vmem:[%s1 + $0x5c] sm:$0xf]
  %v982 = vld [vmem:[%s1 + $0x60] sm:$0xf]
  %v983 = vld [vmem:[%s1 + $0x64] sm:$0xf]
  %v984 = vld [vmem:[%s1 + $0x68] sm:$0xf]
  %v985 = vld [vmem:[%s1 + $0x6c] sm:$0xf]
  %v986 = vld [vmem:[%s1 + $0x70] sm:$0xf]
  %v987 = vld [vmem:[%s1 + $0x74] sm:$0xf]
  %v988 = vld [vmem:[%s1 + $0x78] sm:$0xf]
  %v989 = vld [vmem:[%s1 + $0x7c] sm:$0xf]
  %v990 = vld [vmem:[%s1 + $0x80] sm:$0xf]
  %v991 = vunpack.c.l.bf16 %v958
  %v992 = vunpack.c.l.bf16 %v959
  %v993 = vunpack.c.l.bf16 %v960
  %v994 = vunpack.c.l.bf16 %v961
  %v995 = vunpack.c.l.bf16 %v962
  %v996 = vunpack.c.l.bf16 %v963
  %v997 = vunpack.c.l.bf16 %v964
  %v998 = vunpack.c.l.bf16 %v965
  %v999 = vunpack.c.l.bf16 %v966
  %v1000 = vunpack.c.l.bf16 %v967
  %v1001 = vunpack.c.l.bf16 %v968
  %v1002 = vunpack.c.l.bf16 %v969
  %v1003 = vunpack.c.l.bf16 %v970
  %v1004 = vunpack.c.l.bf16 %v971
  %v1005 = vunpack.c.l.bf16 %v972
  %v1006 = vunpack.c.l.bf16 %v973
  %v1007 = vunpack.c.l.bf16 %v974
  %v1008 = vunpack.c.l.bf16 %v975
  %v1009 = vunpack.c.l.bf16 %v976
  %v1010 = vunpack.c.l.bf16 %v977
  %v1011 = vunpack.c.l.bf16 %v978
  %v1012 = vunpack.c.l.bf16 %v979
  %v1013 = vunpack.c.l.bf16 %v980
  %v1014 = vunpack.c.l.bf16 %v981
  %v1015 = vunpack.c.l.bf16 %v982
  %v1016 = vunpack.c.l.bf16 %v983
  %v1017 = vunpack.c.l.bf16 %v984
  %v1018 = vunpack.c.l.bf16 %v985
  %v1019 = vunpack.c.l.bf16 %v986
  %v1020 = vunpack.c.l.bf16 %v987
  %v1021 = vunpack.c.l.bf16 %v988
  %v1022 = vunpack.c.l.bf16 %v989
  %v1023 = vunpack.c.l.bf16 %v990
  %v1024 = vadd.f32 %v35, %v991
  %v1025 = vadd.f32 %v36, %v992
  %v1026 = vadd.f32 %v37, %v993
  %v1027 = vadd.f32 %v38, %v994
  %v1028 = vadd.f32 %v39, %v995
  %v1029 = vadd.f32 %v40, %v996
  %v1030 = vadd.f32 %v41, %v997
  %v1031 = vadd.f32 %v42, %v998
  %v1032 = vadd.f32 %v43, %v999
  %v1033 = vadd.f32 %v44, %v1000
  %v1034 = vadd.f32 %v45, %v1001
  %v1035 = vadd.f32 %v46, %v1002
  %v1036 = vadd.f32 %v47, %v1003
  %v1037 = vadd.f32 %v48, %v1004
  %v1038 = vadd.f32 %v49, %v1005
  %v1039 = vadd.f32 %v50, %v1006
  %v1040 = vadd.f32 %v51, %v1007
  %v1041 = vadd.f32 %v52, %v1008
  %v1042 = vadd.f32 %v53, %v1009
  %v1043 = vadd.f32 %v54, %v1010
  %v1044 = vadd.f32 %v55, %v1011
  %v1045 = vadd.f32 %v56, %v1012
  %v1046 = vadd.f32 %v57, %v1013
  %v1047 = vadd.f32 %v58, %v1014
  %v1048 = vadd.f32 %v59, %v1015
  %v1049 = vadd.f32 %v60, %v1016
  %v1050 = vadd.f32 %v61, %v1017
  %v1051 = vadd.f32 %v62, %v1018
  %v1052 = vadd.f32 %v63, %v1019
  %v1053 = vadd.f32 %v64, %v1020
  %v1054 = vadd.f32 %v65, %v1021
  %v1055 = vadd.f32 %v66, %v1022
  %v1056 = vadd.f32 %v67, %v1023
  %vm1057 = vcmask 261120
  %v1058 = vsel %vm1057, %v1024, 0.0
  %1059 = vadd.xlane.f32.xlu0 %v1058
  %v1060 = vpop.xlane.xlu0 %1059
  %v1061 = vsel %vm1057, %v1025, 0.0
  %1062 = vadd.xlane.f32.xlu0 %v1061
  %v1063 = vpop.xlane.xlu0 %1062
  %v1064 = vsel %vm1057, %v1026, 0.0
  %1065 = vadd.xlane.f32.xlu0 %v1064
  %v1066 = vpop.xlane.xlu0 %1065
  %v1067 = vsel %vm1057, %v1027, 0.0
  %1068 = vadd.xlane.f32.xlu0 %v1067
  %v1069 = vpop.xlane.xlu0 %1068
  %v1070 = vsel %vm1057, %v1028, 0.0
  %1071 = vadd.xlane.f32.xlu0 %v1070
  %v1072 = vpop.xlane.xlu0 %1071
  %v1073 = vsel %vm1057, %v1029, 0.0
  %1074 = vadd.xlane.f32.xlu0 %v1073
  %v1075 = vpop.xlane.xlu0 %1074
  %v1076 = vsel %vm1057, %v1030, 0.0
  %1077 = vadd.xlane.f32.xlu0 %v1076
  %v1078 = vpop.xlane.xlu0 %1077
  %v1079 = vsel %vm1057, %v1031, 0.0
  %1080 = vadd.xlane.f32.xlu0 %v1079
  %v1081 = vpop.xlane.xlu0 %1080
  %v1082 = vsel %vm1057, %v1032, 0.0
  %1083 = vadd.xlane.f32.xlu0 %v1082
  %v1084 = vpop.xlane.xlu0 %1083
  %v1085 = vsel %vm1057, %v1033, 0.0
  %1086 = vadd.xlane.f32.xlu0 %v1085
  %v1087 = vpop.xlane.xlu0 %1086
  %v1088 = vsel %vm1057, %v1034, 0.0
  %1089 = vadd.xlane.f32.xlu0 %v1088
  %v1090 = vpop.xlane.xlu0 %1089
  %v1091 = vsel %vm1057, %v1035, 0.0
  %1092 = vadd.xlane.f32.xlu0 %v1091
  %v1093 = vpop.xlane.xlu0 %1092
  %v1094 = vsel %vm1057, %v1036, 0.0
  %1095 = vadd.xlane.f32.xlu0 %v1094
  %v1096 = vpop.xlane.xlu0 %1095
  %v1097 = vsel %vm1057, %v1037, 0.0
  %1098 = vadd.xlane.f32.xlu0 %v1097
  %v1099 = vpop.xlane.xlu0 %1098
  %v1100 = vsel %vm1057, %v1038, 0.0
  %1101 = vadd.xlane.f32.xlu0 %v1100
  %v1102 = vpop.xlane.xlu0 %1101
  %v1103 = vsel %vm1057, %v1039, 0.0
  %1104 = vadd.xlane.f32.xlu0 %v1103
  %v1105 = vpop.xlane.xlu0 %1104
  %v1106 = vsel %vm1057, %v1040, 0.0
  %1107 = vadd.xlane.f32.xlu0 %v1106
  %v1108 = vpop.xlane.xlu0 %1107
  %v1109 = vsel %vm1057, %v1041, 0.0
  %1110 = vadd.xlane.f32.xlu0 %v1109
  %v1111 = vpop.xlane.xlu0 %1110
  %v1112 = vsel %vm1057, %v1042, 0.0
  %1113 = vadd.xlane.f32.xlu0 %v1112
  %v1114 = vpop.xlane.xlu0 %1113
  %v1115 = vsel %vm1057, %v1043, 0.0
  %1116 = vadd.xlane.f32.xlu0 %v1115
  %v1117 = vpop.xlane.xlu0 %1116
  %v1118 = vsel %vm1057, %v1044, 0.0
  %1119 = vadd.xlane.f32.xlu0 %v1118
  %v1120 = vpop.xlane.xlu0 %1119
  %v1121 = vsel %vm1057, %v1045, 0.0
  %1122 = vadd.xlane.f32.xlu0 %v1121
  %v1123 = vpop.xlane.xlu0 %1122
  %v1124 = vsel %vm1057, %v1046, 0.0
  %1125 = vadd.xlane.f32.xlu0 %v1124
  %v1126 = vpop.xlane.xlu0 %1125
  %v1127 = vsel %vm1057, %v1047, 0.0
  %1128 = vadd.xlane.f32.xlu0 %v1127
  %v1129 = vpop.xlane.xlu0 %1128
  %v1130 = vsel %vm1057, %v1048, 0.0
  %1131 = vadd.xlane.f32.xlu0 %v1130
  %v1132 = vpop.xlane.xlu0 %1131
  %v1133 = vsel %vm1057, %v1049, 0.0
  %1134 = vadd.xlane.f32.xlu0 %v1133
  %v1135 = vpop.xlane.xlu0 %1134
  %v1136 = vsel %vm1057, %v1050, 0.0
  %1137 = vadd.xlane.f32.xlu0 %v1136
  %v1138 = vpop.xlane.xlu0 %1137
  %v1139 = vsel %vm1057, %v1051, 0.0
  %1140 = vadd.xlane.f32.xlu0 %v1139
  %v1141 = vpop.xlane.xlu0 %1140
  %v1142 = vsel %vm1057, %v1052, 0.0
  %1143 = vadd.xlane.f32.xlu0 %v1142
  %v1144 = vpop.xlane.xlu0 %1143
  %v1145 = vsel %vm1057, %v1053, 0.0
  %1146 = vadd.xlane.f32.xlu0 %v1145
  %v1147 = vpop.xlane.xlu0 %1146
  %v1148 = vsel %vm1057, %v1054, 0.0
  %1149 = vadd.xlane.f32.xlu0 %v1148
  %v1150 = vpop.xlane.xlu0 %1149
  %v1151 = vsel %vm1057, %v1055, 0.0
  %1152 = vadd.xlane.f32.xlu0 %v1151
  %v1153 = vpop.xlane.xlu0 %1152
  %v1154 = vsel %vm1057, %v1056, 0.0
  %1155 = vadd.xlane.f32.xlu0 %v1154
  %v1156 = vpop.xlane.xlu0 %1155
  %v1157 = vrcp.pop 32.0
  %v1158 = vmul.f32 32.0, %v1157
  %v1159 = vsub.f32 1.0, %v1158
  %v1160 = vmul.f32 %v1157, %v1159
  %v1161 = vadd.f32 %v1157, %v1160
  %vm1162 = vweird.f32 %v1157
  %v1163 = vsel %vm1162, %v1157, %v1161
  %v1164 = vmul.f32 %v1060, %v1163
  %v1165 = vmul.f32 %v1063, %v1163
  %v1166 = vmul.f32 %v1066, %v1163
  %v1167 = vmul.f32 %v1069, %v1163
  %v1168 = vmul.f32 %v1072, %v1163
  %v1169 = vmul.f32 %v1075, %v1163
  %v1170 = vmul.f32 %v1078, %v1163
  %v1171 = vmul.f32 %v1081, %v1163
  %v1172 = vmul.f32 %v1084, %v1163
  %v1173 = vmul.f32 %v1087, %v1163
  %v1174 = vmul.f32 %v1090, %v1163
  %v1175 = vmul.f32 %v1093, %v1163
  %v1176 = vmul.f32 %v1096, %v1163
  %v1177 = vmul.f32 %v1099, %v1163
  %v1178 = vmul.f32 %v1102, %v1163
  %v1179 = vmul.f32 %v1105, %v1163
  %v1180 = vmul.f32 %v1108, %v1163
  %v1181 = vmul.f32 %v1111, %v1163
  %v1182 = vmul.f32 %v1114, %v1163
  %v1183 = vmul.f32 %v1117, %v1163
  %v1184 = vmul.f32 %v1120, %v1163
  %v1185 = vmul.f32 %v1123, %v1163
  %v1186 = vmul.f32 %v1126, %v1163
  %v1187 = vmul.f32 %v1129, %v1163
  %v1188 = vmul.f32 %v1132, %v1163
  %v1189 = vmul.f32 %v1135, %v1163
  %v1190 = vmul.f32 %v1138, %v1163
  %v1191 = vmul.f32 %v1141, %v1163
  %v1192 = vmul.f32 %v1144, %v1163
  %v1193 = vmul.f32 %v1147, %v1163
  %v1194 = vmul.f32 %v1150, %v1163
  %v1195 = vmul.f32 %v1153, %v1163
  %v1196 = vmul.f32 %v1156, %v1163
  %v1197 = vsub.f32 %v1024, %v1164
  %v1198 = vsub.f32 %v1025, %v1165
  %v1199 = vsub.f32 %v1026, %v1166
  %v1200 = vsub.f32 %v1027, %v1167
  %v1201 = vsub.f32 %v1028, %v1168
  %v1202 = vsub.f32 %v1029, %v1169
  %v1203 = vsub.f32 %v1030, %v1170
  %v1204 = vsub.f32 %v1031, %v1171
  %v1205 = vsub.f32 %v1032, %v1172
  %v1206 = vsub.f32 %v1033, %v1173
  %v1207 = vsub.f32 %v1034, %v1174
  %v1208 = vsub.f32 %v1035, %v1175
  %v1209 = vsub.f32 %v1036, %v1176
  %v1210 = vsub.f32 %v1037, %v1177
  %v1211 = vsub.f32 %v1038, %v1178
  %v1212 = vsub.f32 %v1039, %v1179
  %v1213 = vsub.f32 %v1040, %v1180
  %v1214 = vsub.f32 %v1041, %v1181
  %v1215 = vsub.f32 %v1042, %v1182
  %v1216 = vsub.f32 %v1043, %v1183
  %v1217 = vsub.f32 %v1044, %v1184
  %v1218 = vsub.f32 %v1045, %v1185
  %v1219 = vsub.f32 %v1046, %v1186
  %v1220 = vsub.f32 %v1047, %v1187
  %v1221 = vsub.f32 %v1048, %v1188
  %v1222 = vsub.f32 %v1049, %v1189
  %v1223 = vsub.f32 %v1050, %v1190
  %v1224 = vsub.f32 %v1051, %v1191
  %v1225 = vsub.f32 %v1052, %v1192
  %v1226 = vsub.f32 %v1053, %v1193
  %v1227 = vsub.f32 %v1054, %v1194
  %v1228 = vsub.f32 %v1055, %v1195
  %v1229 = vsub.f32 %v1056, %v1196
  %v1230 = vmul.f32 %v1197, %v1197
  %v1231 = vmul.f32 %v1198, %v1198
  %v1232 = vmul.f32 %v1199, %v1199
  %v1233 = vmul.f32 %v1200, %v1200
  %v1234 = vmul.f32 %v1201, %v1201
  %v1235 = vmul.f32 %v1202, %v1202
  %v1236 = vmul.f32 %v1203, %v1203
  %v1237 = vmul.f32 %v1204, %v1204
  %v1238 = vmul.f32 %v1205, %v1205
  %v1239 = vmul.f32 %v1206, %v1206
  %v1240 = vmul.f32 %v1207, %v1207
  %v1241 = vmul.f32 %v1208, %v1208
  %v1242 = vmul.f32 %v1209, %v1209
  %v1243 = vmul.f32 %v1210, %v1210
  %v1244 = vmul.f32 %v1211, %v1211
  %v1245 = vmul.f32 %v1212, %v1212
  %v1246 = vmul.f32 %v1213, %v1213
  %v1247 = vmul.f32 %v1214, %v1214
  %v1248 = vmul.f32 %v1215, %v1215
  %v1249 = vmul.f32 %v1216, %v1216
  %v1250 = vmul.f32 %v1217, %v1217
  %v1251 = vmul.f32 %v1218, %v1218
  %v1252 = vmul.f32 %v1219, %v1219
  %v1253 = vmul.f32 %v1220, %v1220
  %v1254 = vmul.f32 %v1221, %v1221
  %v1255 = vmul.f32 %v1222, %v1222
  %v1256 = vmul.f32 %v1223, %v1223
  %v1257 = vmul.f32 %v1224, %v1224
  %v1258 = vmul.f32 %v1225, %v1225
  %v1259 = vmul.f32 %v1226, %v1226
  %v1260 = vmul.f32 %v1227, %v1227
  %v1261 = vmul.f32 %v1228, %v1228
  %v1262 = vmul.f32 %v1229, %v1229
  %v1263 = vsel %vm1057, %v1230, 0.0
  %1264 = vadd.xlane.f32.xlu0 %v1263
  %v1265 = vpop.xlane.xlu0 %1264
  %v1266 = vsel %vm1057, %v1231, 0.0
  %1267 = vadd.xlane.f32.xlu0 %v1266
  %v1268 = vpop.xlane.xlu0 %1267
  %v1269 = vsel %vm1057, %v1232, 0.0
  %1270 = vadd.xlane.f32.xlu0 %v1269
  %v1271 = vpop.xlane.xlu0 %1270
  %v1272 = vsel %vm1057, %v1233, 0.0
  %1273 = vadd.xlane.f32.xlu0 %v1272
  %v1274 = vpop.xlane.xlu0 %1273
  %v1275 = vsel %vm1057, %v1234, 0.0
  %1276 = vadd.xlane.f32.xlu0 %v1275
  %v1277 = vpop.xlane.xlu0 %1276
  %v1278 = vsel %vm1057, %v1235, 0.0
  %1279 = vadd.xlane.f32.xlu0 %v1278
  %v1280 = vpop.xlane.xlu0 %1279
  %v1281 = vsel %vm1057, %v1236, 0.0
  %1282 = vadd.xlane.f32.xlu0 %v1281
  %v1283 = vpop.xlane.xlu0 %1282
  %v1284 = vsel %vm1057, %v1237, 0.0
  %1285 = vadd.xlane.f32.xlu0 %v1284
  %v1286 = vpop.xlane.xlu0 %1285
  %v1287 = vsel %vm1057, %v1238, 0.0
  %1288 = vadd.xlane.f32.xlu0 %v1287
  %v1289 = vpop.xlane.xlu0 %1288
  %v1290 = vsel %vm1057, %v1239, 0.0
  %1291 = vadd.xlane.f32.xlu0 %v1290
  %v1292 = vpop.xlane.xlu0 %1291
  %v1293 = vsel %vm1057, %v1240, 0.0
  %1294 = vadd.xlane.f32.xlu0 %v1293
  %v1295 = vpop.xlane.xlu0 %1294
  %v1296 = vsel %vm1057, %v1241, 0.0
  %1297 = vadd.xlane.f32.xlu0 %v1296
  %v1298 = vpop.xlane.xlu0 %1297
  %v1299 = vsel %vm1057, %v1242, 0.0
  %1300 = vadd.xlane.f32.xlu0 %v1299
  %v1301 = vpop.xlane.xlu0 %1300
  %v1302 = vsel %vm1057, %v1243, 0.0
  %1303 = vadd.xlane.f32.xlu0 %v1302
  %v1304 = vpop.xlane.xlu0 %1303
  %v1305 = vsel %vm1057, %v1244, 0.0
  %1306 = vadd.xlane.f32.xlu0 %v1305
  %v1307 = vpop.xlane.xlu0 %1306
  %v1308 = vsel %vm1057, %v1245, 0.0
  %1309 = vadd.xlane.f32.xlu0 %v1308
  %v1310 = vpop.xlane.xlu0 %1309
  %v1311 = vsel %vm1057, %v1246, 0.0
  %1312 = vadd.xlane.f32.xlu0 %v1311
  %v1313 = vpop.xlane.xlu0 %1312
  %v1314 = vsel %vm1057, %v1247, 0.0
  %1315 = vadd.xlane.f32.xlu0 %v1314
  %v1316 = vpop.xlane.xlu0 %1315
  %v1317 = vsel %vm1057, %v1248, 0.0
  %1318 = vadd.xlane.f32.xlu0 %v1317
  %v1319 = vpop.xlane.xlu0 %1318
  %v1320 = vsel %vm1057, %v1249, 0.0
  %1321 = vadd.xlane.f32.xlu0 %v1320
  %v1322 = vpop.xlane.xlu0 %1321
  %v1323 = vsel %vm1057, %v1250, 0.0
  %1324 = vadd.xlane.f32.xlu0 %v1323
  %v1325 = vpop.xlane.xlu0 %1324
  %v1326 = vsel %vm1057, %v1251, 0.0
  %1327 = vadd.xlane.f32.xlu0 %v1326
  %v1328 = vpop.xlane.xlu0 %1327
  %v1329 = vsel %vm1057, %v1252, 0.0
  %1330 = vadd.xlane.f32.xlu0 %v1329
  %v1331 = vpop.xlane.xlu0 %1330
  %v1332 = vsel %vm1057, %v1253, 0.0
  %1333 = vadd.xlane.f32.xlu0 %v1332
  %v1334 = vpop.xlane.xlu0 %1333
  %v1335 = vsel %vm1057, %v1254, 0.0
  %1336 = vadd.xlane.f32.xlu0 %v1335
  %v1337 = vpop.xlane.xlu0 %1336
  %v1338 = vsel %vm1057, %v1255, 0.0
  %1339 = vadd.xlane.f32.xlu0 %v1338
  %v1340 = vpop.xlane.xlu0 %1339
  %v1341 = vsel %vm1057, %v1256, 0.0
  %1342 = vadd.xlane.f32.xlu0 %v1341
  %v1343 = vpop.xlane.xlu0 %1342
  %v1344 = vsel %vm1057, %v1257, 0.0
  %1345 = vadd.xlane.f32.xlu0 %v1344
  %v1346 = vpop.xlane.xlu0 %1345
  %v1347 = vsel %vm1057, %v1258, 0.0
  %1348 = vadd.xlane.f32.xlu0 %v1347
  %v1349 = vpop.xlane.xlu0 %1348
  %v1350 = vsel %vm1057, %v1259, 0.0
  %1351 = vadd.xlane.f32.xlu0 %v1350
  %v1352 = vpop.xlane.xlu0 %1351
  %v1353 = vsel %vm1057, %v1260, 0.0
  %1354 = vadd.xlane.f32.xlu0 %v1353
  %v1355 = vpop.xlane.xlu0 %1354
  %v1356 = vsel %vm1057, %v1261, 0.0
  %1357 = vadd.xlane.f32.xlu0 %v1356
  %v1358 = vpop.xlane.xlu0 %1357
  %v1359 = vsel %vm1057, %v1262, 0.0
  %1360 = vadd.xlane.f32.xlu0 %v1359
  %v1361 = vpop.xlane.xlu0 %1360
  %v1362 = vmul.f32 %v1265, %v1163
  %v1363 = vmul.f32 %v1268, %v1163
  %v1364 = vmul.f32 %v1271, %v1163
  %v1365 = vmul.f32 %v1274, %v1163
  %v1366 = vmul.f32 %v1277, %v1163
  %v1367 = vmul.f32 %v1280, %v1163
  %v1368 = vmul.f32 %v1283, %v1163
  %v1369 = vmul.f32 %v1286, %v1163
  %v1370 = vmul.f32 %v1289, %v1163
  %v1371 = vmul.f32 %v1292, %v1163
  %v1372 = vmul.f32 %v1295, %v1163
  %v1373 = vmul.f32 %v1298, %v1163
  %v1374 = vmul.f32 %v1301, %v1163
  %v1375 = vmul.f32 %v1304, %v1163
  %v1376 = vmul.f32 %v1307, %v1163
  %v1377 = vmul.f32 %v1310, %v1163
  %v1378 = vmul.f32 %v1313, %v1163
  %v1379 = vmul.f32 %v1316, %v1163
  %v1380 = vmul.f32 %v1319, %v1163
  %v1381 = vmul.f32 %v1322, %v1163
  %v1382 = vmul.f32 %v1325, %v1163
  %v1383 = vmul.f32 %v1328, %v1163
  %v1384 = vmul.f32 %v1331, %v1163
  %v1385 = vmul.f32 %v1334, %v1163
  %v1386 = vmul.f32 %v1337, %v1163
  %v1387 = vmul.f32 %v1340, %v1163
  %v1388 = vmul.f32 %v1343, %v1163
  %v1389 = vmul.f32 %v1346, %v1163
  %v1390 = vmul.f32 %v1349, %v1163
  %v1391 = vmul.f32 %v1352, %v1163
  %v1392 = vmul.f32 %v1355, %v1163
  %v1393 = vmul.f32 %v1358, %v1163
  %v1394 = vmul.f32 %v1361, %v1163
  %v1395 = vadd.f32 %v1362, 1e-06
  %v1396 = vadd.f32 %v1363, 1e-06
  %v1397 = vadd.f32 %v1364, 1e-06
  %v1398 = vadd.f32 %v1365, 1e-06
  %v1399 = vadd.f32 %v1366, 1e-06
  %v1400 = vadd.f32 %v1367, 1e-06
  %v1401 = vadd.f32 %v1368, 1e-06
  %v1402 = vadd.f32 %v1369, 1e-06
  %v1403 = vadd.f32 %v1370, 1e-06
  %v1404 = vadd.f32 %v1371, 1e-06
  %v1405 = vadd.f32 %v1372, 1e-06
  %v1406 = vadd.f32 %v1373, 1e-06
  %v1407 = vadd.f32 %v1374, 1e-06
  %v1408 = vadd.f32 %v1375, 1e-06
  %v1409 = vadd.f32 %v1376, 1e-06
  %v1410 = vadd.f32 %v1377, 1e-06
  %v1411 = vadd.f32 %v1378, 1e-06
  %v1412 = vadd.f32 %v1379, 1e-06
  %v1413 = vadd.f32 %v1380, 1e-06
  %v1414 = vadd.f32 %v1381, 1e-06
  %v1415 = vadd.f32 %v1382, 1e-06
  %v1416 = vadd.f32 %v1383, 1e-06
  %v1417 = vadd.f32 %v1384, 1e-06
  %v1418 = vadd.f32 %v1385, 1e-06
  %v1419 = vadd.f32 %v1386, 1e-06
  %v1420 = vadd.f32 %v1387, 1e-06
  %v1421 = vadd.f32 %v1388, 1e-06
  %v1422 = vadd.f32 %v1389, 1e-06
  %v1423 = vadd.f32 %v1390, 1e-06
  %v1424 = vadd.f32 %v1391, 1e-06
  %v1425 = vadd.f32 %v1392, 1e-06
  %v1426 = vadd.f32 %v1393, 1e-06
  %v1427 = vadd.f32 %v1394, 1e-06
  %v1428 = vrsqrt.pop %v1395
  %v1429 = vmul.f32 %v1428, %v1395
  %v1430 = vmul.f32 %v1429, %v1428
  %v1431 = vmul.f32 0.5, %v1430
  %v1432 = vsub.f32 1.5, %v1431
  %v1433 = vmul.f32 %v1428, %v1432
  %vm1434 = vweird.f32 %v1395
  %vm1435 = vweird.f32 %v1428
  %vm1436 = vmor %vm1434, %vm1435
  %v1437 = vsel %vm1436, %v1428, %v1433
  %v1438 = vrsqrt.pop %v1396
  %v1439 = vmul.f32 %v1438, %v1396
  %v1440 = vmul.f32 %v1439, %v1438
  %v1441 = vmul.f32 0.5, %v1440
  %v1442 = vsub.f32 1.5, %v1441
  %v1443 = vmul.f32 %v1438, %v1442
  %vm1444 = vweird.f32 %v1396
  %vm1445 = vweird.f32 %v1438
  %vm1446 = vmor %vm1444, %vm1445
  %v1447 = vsel %vm1446, %v1438, %v1443
  %v1448 = vrsqrt.pop %v1397
  %v1449 = vmul.f32 %v1448, %v1397
  %v1450 = vmul.f32 %v1449, %v1448
  %v1451 = vmul.f32 0.5, %v1450
  %v1452 = vsub.f32 1.5, %v1451
  %v1453 = vmul.f32 %v1448, %v1452
  %vm1454 = vweird.f32 %v1397
  %vm1455 = vweird.f32 %v1448
  %vm1456 = vmor %vm1454, %vm1455
  %v1457 = vsel %vm1456, %v1448, %v1453
  %v1458 = vrsqrt.pop %v1398
  %v1459 = vmul.f32 %v1458, %v1398
  %v1460 = vmul.f32 %v1459, %v1458
  %v1461 = vmul.f32 0.5, %v1460
  %v1462 = vsub.f32 1.5, %v1461
  %v1463 = vmul.f32 %v1458, %v1462
  %vm1464 = vweird.f32 %v1398
  %vm1465 = vweird.f32 %v1458
  %vm1466 = vmor %vm1464, %vm1465
  %v1467 = vsel %vm1466, %v1458, %v1463
  %v1468 = vrsqrt.pop %v1399
  %v1469 = vmul.f32 %v1468, %v1399
  %v1470 = vmul.f32 %v1469, %v1468
  %v1471 = vmul.f32 0.5, %v1470
  %v1472 = vsub.f32 1.5, %v1471
  %v1473 = vmul.f32 %v1468, %v1472
  %vm1474 = vweird.f32 %v1399
  %vm1475 = vweird.f32 %v1468
  %vm1476 = vmor %vm1474, %vm1475
  %v1477 = vsel %vm1476, %v1468, %v1473
  %v1478 = vrsqrt.pop %v1400
  %v1479 = vmul.f32 %v1478, %v1400
  %v1480 = vmul.f32 %v1479, %v1478
  %v1481 = vmul.f32 0.5, %v1480
  %v1482 = vsub.f32 1.5, %v1481
  %v1483 = vmul.f32 %v1478, %v1482
  %vm1484 = vweird.f32 %v1400
  %vm1485 = vweird.f32 %v1478
  %vm1486 = vmor %vm1484, %vm1485
  %v1487 = vsel %vm1486, %v1478, %v1483
  %v1488 = vrsqrt.pop %v1401
  %v1489 = vmul.f32 %v1488, %v1401
  %v1490 = vmul.f32 %v1489, %v1488
  %v1491 = vmul.f32 0.5, %v1490
  %v1492 = vsub.f32 1.5, %v1491
  %v1493 = vmul.f32 %v1488, %v1492
  %vm1494 = vweird.f32 %v1401
  %vm1495 = vweird.f32 %v1488
  %vm1496 = vmor %vm1494, %vm1495
  %v1497 = vsel %vm1496, %v1488, %v1493
  %v1498 = vrsqrt.pop %v1402
  %v1499 = vmul.f32 %v1498, %v1402
  %v1500 = vmul.f32 %v1499, %v1498
  %v1501 = vmul.f32 0.5, %v1500
  %v1502 = vsub.f32 1.5, %v1501
  %v1503 = vmul.f32 %v1498, %v1502
  %vm1504 = vweird.f32 %v1402
  %vm1505 = vweird.f32 %v1498
  %vm1506 = vmor %vm1504, %vm1505
  %v1507 = vsel %vm1506, %v1498, %v1503
  %v1508 = vrsqrt.pop %v1403
  %v1509 = vmul.f32 %v1508, %v1403
  %v1510 = vmul.f32 %v1509, %v1508
  %v1511 = vmul.f32 0.5, %v1510
  %v1512 = vsub.f32 1.5, %v1511
  %v1513 = vmul.f32 %v1508, %v1512
  %vm1514 = vweird.f32 %v1403
  %vm1515 = vweird.f32 %v1508
  %vm1516 = vmor %vm1514, %vm1515
  %v1517 = vsel %vm1516, %v1508, %v1513
  %v1518 = vrsqrt.pop %v1404
  %v1519 = vmul.f32 %v1518, %v1404
  %v1520 = vmul.f32 %v1519, %v1518
  %v1521 = vmul.f32 0.5, %v1520
  %v1522 = vsub.f32 1.5, %v1521
  %v1523 = vmul.f32 %v1518, %v1522
  %vm1524 = vweird.f32 %v1404
  %vm1525 = vweird.f32 %v1518
  %vm1526 = vmor %vm1524, %vm1525
  %v1527 = vsel %vm1526, %v1518, %v1523
  %v1528 = vrsqrt.pop %v1405
  %v1529 = vmul.f32 %v1528, %v1405
  %v1530 = vmul.f32 %v1529, %v1528
  %v1531 = vmul.f32 0.5, %v1530
  %v1532 = vsub.f32 1.5, %v1531
  %v1533 = vmul.f32 %v1528, %v1532
  %vm1534 = vweird.f32 %v1405
  %vm1535 = vweird.f32 %v1528
  %vm1536 = vmor %vm1534, %vm1535
  %v1537 = vsel %vm1536, %v1528, %v1533
  %v1538 = vrsqrt.pop %v1406
  %v1539 = vmul.f32 %v1538, %v1406
  %v1540 = vmul.f32 %v1539, %v1538
  %v1541 = vmul.f32 0.5, %v1540
  %v1542 = vsub.f32 1.5, %v1541
  %v1543 = vmul.f32 %v1538, %v1542
  %vm1544 = vweird.f32 %v1406
  %vm1545 = vweird.f32 %v1538
  %vm1546 = vmor %vm1544, %vm1545
  %v1547 = vsel %vm1546, %v1538, %v1543
  %v1548 = vrsqrt.pop %v1407
  %v1549 = vmul.f32 %v1548, %v1407
  %v1550 = vmul.f32 %v1549, %v1548
  %v1551 = vmul.f32 0.5, %v1550
  %v1552 = vsub.f32 1.5, %v1551
  %v1553 = vmul.f32 %v1548, %v1552
  %vm1554 = vweird.f32 %v1407
  %vm1555 = vweird.f32 %v1548
  %vm1556 = vmor %vm1554, %vm1555
  %v1557 = vsel %vm1556, %v1548, %v1553
  %v1558 = vrsqrt.pop %v1408
  %v1559 = vmul.f32 %v1558, %v1408
  %v1560 = vmul.f32 %v1559, %v1558
  %v1561 = vmul.f32 0.5, %v1560
  %v1562 = vsub.f32 1.5, %v1561
  %v1563 = vmul.f32 %v1558, %v1562
  %vm1564 = vweird.f32 %v1408
  %vm1565 = vweird.f32 %v1558
  %vm1566 = vmor %vm1564, %vm1565
  %v1567 = vsel %vm1566, %v1558, %v1563
  %v1568 = vrsqrt.pop %v1409
  %v1569 = vmul.f32 %v1568, %v1409
  %v1570 = vmul.f32 %v1569, %v1568
  %v1571 = vmul.f32 0.5, %v1570
  %v1572 = vsub.f32 1.5, %v1571
  %v1573 = vmul.f32 %v1568, %v1572
  %vm1574 = vweird.f32 %v1409
  %vm1575 = vweird.f32 %v1568
  %vm1576 = vmor %vm1574, %vm1575
  %v1577 = vsel %vm1576, %v1568, %v1573
  %v1578 = vrsqrt.pop %v1410
  %v1579 = vmul.f32 %v1578, %v1410
  %v1580 = vmul.f32 %v1579, %v1578
  %v1581 = vmul.f32 0.5, %v1580
  %v1582 = vsub.f32 1.5, %v1581
  %v1583 = vmul.f32 %v1578, %v1582
  %vm1584 = vweird.f32 %v1410
  %vm1585 = vweird.f32 %v1578
  %vm1586 = vmor %vm1584, %vm1585
  %v1587 = vsel %vm1586, %v1578, %v1583
  %v1588 = vrsqrt.pop %v1411
  %v1589 = vmul.f32 %v1588, %v1411
  %v1590 = vmul.f32 %v1589, %v1588
  %v1591 = vmul.f32 0.5, %v1590
  %v1592 = vsub.f32 1.5, %v1591
  %v1593 = vmul.f32 %v1588, %v1592
  %vm1594 = vweird.f32 %v1411
  %vm1595 = vweird.f32 %v1588
  %vm1596 = vmor %vm1594, %vm1595
  %v1597 = vsel %vm1596, %v1588, %v1593
  %v1598 = vrsqrt.pop %v1412
  %v1599 = vmul.f32 %v1598, %v1412
  %v1600 = vmul.f32 %v1599, %v1598
  %v1601 = vmul.f32 0.5, %v1600
  %v1602 = vsub.f32 1.5, %v1601
  %v1603 = vmul.f32 %v1598, %v1602
  %vm1604 = vweird.f32 %v1412
  %vm1605 = vweird.f32 %v1598
  %vm1606 = vmor %vm1604, %vm1605
  %v1607 = vsel %vm1606, %v1598, %v1603
  %v1608 = vrsqrt.pop %v1413
  %v1609 = vmul.f32 %v1608, %v1413
  %v1610 = vmul.f32 %v1609, %v1608
  %v1611 = vmul.f32 0.5, %v1610
  %v1612 = vsub.f32 1.5, %v1611
  %v1613 = vmul.f32 %v1608, %v1612
  %vm1614 = vweird.f32 %v1413
  %vm1615 = vweird.f32 %v1608
  %vm1616 = vmor %vm1614, %vm1615
  %v1617 = vsel %vm1616, %v1608, %v1613
  %v1618 = vrsqrt.pop %v1414
  %v1619 = vmul.f32 %v1618, %v1414
  %v1620 = vmul.f32 %v1619, %v1618
  %v1621 = vmul.f32 0.5, %v1620
  %v1622 = vsub.f32 1.5, %v1621
  %v1623 = vmul.f32 %v1618, %v1622
  %vm1624 = vweird.f32 %v1414
  %vm1625 = vweird.f32 %v1618
  %vm1626 = vmor %vm1624, %vm1625
  %v1627 = vsel %vm1626, %v1618, %v1623
  %v1628 = vrsqrt.pop %v1415
  %v1629 = vmul.f32 %v1628, %v1415
  %v1630 = vmul.f32 %v1629, %v1628
  %v1631 = vmul.f32 0.5, %v1630
  %v1632 = vsub.f32 1.5, %v1631
  %v1633 = vmul.f32 %v1628, %v1632
  %vm1634 = vweird.f32 %v1415
  %vm1635 = vweird.f32 %v1628
  %vm1636 = vmor %vm1634, %vm1635
  %v1637 = vsel %vm1636, %v1628, %v1633
  %v1638 = vrsqrt.pop %v1416
  %v1639 = vmul.f32 %v1638, %v1416
  %v1640 = vmul.f32 %v1639, %v1638
  %v1641 = vmul.f32 0.5, %v1640
  %v1642 = vsub.f32 1.5, %v1641
  %v1643 = vmul.f32 %v1638, %v1642
  %vm1644 = vweird.f32 %v1416
  %vm1645 = vweird.f32 %v1638
  %vm1646 = vmor %vm1644, %vm1645
  %v1647 = vsel %vm1646, %v1638, %v1643
  %v1648 = vrsqrt.pop %v1417
  %v1649 = vmul.f32 %v1648, %v1417
  %v1650 = vmul.f32 %v1649, %v1648
  %v1651 = vmul.f32 0.5, %v1650
  %v1652 = vsub.f32 1.5, %v1651
  %v1653 = vmul.f32 %v1648, %v1652
  %vm1654 = vweird.f32 %v1417
  %vm1655 = vweird.f32 %v1648
  %vm1656 = vmor %vm1654, %vm1655
  %v1657 = vsel %vm1656, %v1648, %v1653
  %v1658 = vrsqrt.pop %v1418
  %v1659 = vmul.f32 %v1658, %v1418
  %v1660 = vmul.f32 %v1659, %v1658
  %v1661 = vmul.f32 0.5, %v1660
  %v1662 = vsub.f32 1.5, %v1661
  %v1663 = vmul.f32 %v1658, %v1662
  %vm1664 = vweird.f32 %v1418
  %vm1665 = vweird.f32 %v1658
  %vm1666 = vmor %vm1664, %vm1665
  %v1667 = vsel %vm1666, %v1658, %v1663
  %v1668 = vrsqrt.pop %v1419
  %v1669 = vmul.f32 %v1668, %v1419
  %v1670 = vmul.f32 %v1669, %v1668
  %v1671 = vmul.f32 0.5, %v1670
  %v1672 = vsub.f32 1.5, %v1671
  %v1673 = vmul.f32 %v1668, %v1672
  %vm1674 = vweird.f32 %v1419
  %vm1675 = vweird.f32 %v1668
  %vm1676 = vmor %vm1674, %vm1675
  %v1677 = vsel %vm1676, %v1668, %v1673
  %v1678 = vrsqrt.pop %v1420
  %v1679 = vmul.f32 %v1678, %v1420
  %v1680 = vmul.f32 %v1679, %v1678
  %v1681 = vmul.f32 0.5, %v1680
  %v1682 = vsub.f32 1.5, %v1681
  %v1683 = vmul.f32 %v1678, %v1682
  %vm1684 = vweird.f32 %v1420
  %vm1685 = vweird.f32 %v1678
  %vm1686 = vmor %vm1684, %vm1685
  %v1687 = vsel %vm1686, %v1678, %v1683
  %v1688 = vrsqrt.pop %v1421
  %v1689 = vmul.f32 %v1688, %v1421
  %v1690 = vmul.f32 %v1689, %v1688
  %v1691 = vmul.f32 0.5, %v1690
  %v1692 = vsub.f32 1.5, %v1691
  %v1693 = vmul.f32 %v1688, %v1692
  %vm1694 = vweird.f32 %v1421
  %vm1695 = vweird.f32 %v1688
  %vm1696 = vmor %vm1694, %vm1695
  %v1697 = vsel %vm1696, %v1688, %v1693
  %v1698 = vrsqrt.pop %v1422
  %v1699 = vmul.f32 %v1698, %v1422
  %v1700 = vmul.f32 %v1699, %v1698
  %v1701 = vmul.f32 0.5, %v1700
  %v1702 = vsub.f32 1.5, %v1701
  %v1703 = vmul.f32 %v1698, %v1702
  %vm1704 = vweird.f32 %v1422
  %vm1705 = vweird.f32 %v1698
  %vm1706 = vmor %vm1704, %vm1705
  %v1707 = vsel %vm1706, %v1698, %v1703
  %v1708 = vrsqrt.pop %v1423
  %v1709 = vmul.f32 %v1708, %v1423
  %v1710 = vmul.f32 %v1709, %v1708
  %v1711 = vmul.f32 0.5, %v1710
  %v1712 = vsub.f32 1.5, %v1711
  %v1713 = vmul.f32 %v1708, %v1712
  %vm1714 = vweird.f32 %v1423
  %vm1715 = vweird.f32 %v1708
  %vm1716 = vmor %vm1714, %vm1715
  %v1717 = vsel %vm1716, %v1708, %v1713
  %v1718 = vrsqrt.pop %v1424
  %v1719 = vmul.f32 %v1718, %v1424
  %v1720 = vmul.f32 %v1719, %v1718
  %v1721 = vmul.f32 0.5, %v1720
  %v1722 = vsub.f32 1.5, %v1721
  %v1723 = vmul.f32 %v1718, %v1722
  %vm1724 = vweird.f32 %v1424
  %vm1725 = vweird.f32 %v1718
  %vm1726 = vmor %vm1724, %vm1725
  %v1727 = vsel %vm1726, %v1718, %v1723
  %v1728 = vrsqrt.pop %v1425
  %v1729 = vmul.f32 %v1728, %v1425
  %v1730 = vmul.f32 %v1729, %v1728
  %v1731 = vmul.f32 0.5, %v1730
  %v1732 = vsub.f32 1.5, %v1731
  %v1733 = vmul.f32 %v1728, %v1732
  %vm1734 = vweird.f32 %v1425
  %vm1735 = vweird.f32 %v1728
  %vm1736 = vmor %vm1734, %vm1735
  %v1737 = vsel %vm1736, %v1728, %v1733
  %v1738 = vrsqrt.pop %v1426
  %v1739 = vmul.f32 %v1738, %v1426
  %v1740 = vmul.f32 %v1739, %v1738
  %v1741 = vmul.f32 0.5, %v1740
  %v1742 = vsub.f32 1.5, %v1741
  %v1743 = vmul.f32 %v1738, %v1742
  %vm1744 = vweird.f32 %v1426
  %vm1745 = vweird.f32 %v1738
  %vm1746 = vmor %vm1744, %vm1745
  %v1747 = vsel %vm1746, %v1738, %v1743
  %v1748 = vrsqrt.pop %v1427
  %v1749 = vmul.f32 %v1748, %v1427
  %v1750 = vmul.f32 %v1749, %v1748
  %v1751 = vmul.f32 0.5, %v1750
  %v1752 = vsub.f32 1.5, %v1751
  %v1753 = vmul.f32 %v1748, %v1752
  %vm1754 = vweird.f32 %v1427
  %vm1755 = vweird.f32 %v1748
  %vm1756 = vmor %vm1754, %vm1755
  %v1757 = vsel %vm1756, %v1748, %v1753
  %v1758 = vmul.f32 %v1197, %v1437
  %v1759 = vmul.f32 %v1198, %v1447
  %v1760 = vmul.f32 %v1199, %v1457
  %v1761 = vmul.f32 %v1200, %v1467
  %v1762 = vmul.f32 %v1201, %v1477
  %v1763 = vmul.f32 %v1202, %v1487
  %v1764 = vmul.f32 %v1203, %v1497
  %v1765 = vmul.f32 %v1204, %v1507
  %v1766 = vmul.f32 %v1205, %v1517
  %v1767 = vmul.f32 %v1206, %v1527
  %v1768 = vmul.f32 %v1207, %v1537
  %v1769 = vmul.f32 %v1208, %v1547
  %v1770 = vmul.f32 %v1209, %v1557
  %v1771 = vmul.f32 %v1210, %v1567
  %v1772 = vmul.f32 %v1211, %v1577
  %v1773 = vmul.f32 %v1212, %v1587
  %v1774 = vmul.f32 %v1213, %v1597
  %v1775 = vmul.f32 %v1214, %v1607
  %v1776 = vmul.f32 %v1215, %v1617
  %v1777 = vmul.f32 %v1216, %v1627
  %v1778 = vmul.f32 %v1217, %v1637
  %v1779 = vmul.f32 %v1218, %v1647
  %v1780 = vmul.f32 %v1219, %v1657
  %v1781 = vmul.f32 %v1220, %v1667
  %v1782 = vmul.f32 %v1221, %v1677
  %v1783 = vmul.f32 %v1222, %v1687
  %v1784 = vmul.f32 %v1223, %v1697
  %v1785 = vmul.f32 %v1224, %v1707
  %v1786 = vmul.f32 %v1225, %v1717
  %v1787 = vmul.f32 %v1226, %v1727
  %v1788 = vmul.f32 %v1227, %v1737
  %v1789 = vmul.f32 %v1228, %v1747
  %v1790 = vmul.f32 %v1229, %v1757
  %v1791 = vperm.slane %v68, 0
  %v1792 = vmul.f32 %v1758, %v1791
  %v1793 = vmul.f32 %v1759, %v1791
  %v1794 = vmul.f32 %v1760, %v1791
  %v1795 = vmul.f32 %v1761, %v1791
  %v1796 = vmul.f32 %v1762, %v1791
  %v1797 = vmul.f32 %v1763, %v1791
  %v1798 = vmul.f32 %v1764, %v1791
  %v1799 = vmul.f32 %v1765, %v1791
  %v1800 = vmul.f32 %v1766, %v1791
  %v1801 = vmul.f32 %v1767, %v1791
  %v1802 = vmul.f32 %v1768, %v1791
  %v1803 = vmul.f32 %v1769, %v1791
  %v1804 = vmul.f32 %v1770, %v1791
  %v1805 = vmul.f32 %v1771, %v1791
  %v1806 = vmul.f32 %v1772, %v1791
  %v1807 = vmul.f32 %v1773, %v1791
  %v1808 = vmul.f32 %v1774, %v1791
  %v1809 = vmul.f32 %v1775, %v1791
  %v1810 = vmul.f32 %v1776, %v1791
  %v1811 = vmul.f32 %v1777, %v1791
  %v1812 = vmul.f32 %v1778, %v1791
  %v1813 = vmul.f32 %v1779, %v1791
  %v1814 = vmul.f32 %v1780, %v1791
  %v1815 = vmul.f32 %v1781, %v1791
  %v1816 = vmul.f32 %v1782, %v1791
  %v1817 = vmul.f32 %v1783, %v1791
  %v1818 = vmul.f32 %v1784, %v1791
  %v1819 = vmul.f32 %v1785, %v1791
  %v1820 = vmul.f32 %v1786, %v1791
  %v1821 = vmul.f32 %v1787, %v1791
  %v1822 = vmul.f32 %v1788, %v1791
  %v1823 = vmul.f32 %v1789, %v1791
  %v1824 = vmul.f32 %v1790, %v1791
  %v1825 = vperm.slane %v69, 0
  %v1826 = vadd.f32 %v1792, %v1825
  %v1827 = vadd.f32 %v1793, %v1825
  %v1828 = vadd.f32 %v1794, %v1825
  %v1829 = vadd.f32 %v1795, %v1825
  %v1830 = vadd.f32 %v1796, %v1825
  %v1831 = vadd.f32 %v1797, %v1825
  %v1832 = vadd.f32 %v1798, %v1825
  %v1833 = vadd.f32 %v1799, %v1825
  %v1834 = vadd.f32 %v1800, %v1825
  %v1835 = vadd.f32 %v1801, %v1825
  %v1836 = vadd.f32 %v1802, %v1825
  %v1837 = vadd.f32 %v1803, %v1825
  %v1838 = vadd.f32 %v1804, %v1825
  %v1839 = vadd.f32 %v1805, %v1825
  %v1840 = vadd.f32 %v1806, %v1825
  %v1841 = vadd.f32 %v1807, %v1825
  %v1842 = vadd.f32 %v1808, %v1825
  %v1843 = vadd.f32 %v1809, %v1825
  %v1844 = vadd.f32 %v1810, %v1825
  %v1845 = vadd.f32 %v1811, %v1825
  %v1846 = vadd.f32 %v1812, %v1825
  %v1847 = vadd.f32 %v1813, %v1825
  %v1848 = vadd.f32 %v1814, %v1825
  %v1849 = vadd.f32 %v1815, %v1825
  %v1850 = vadd.f32 %v1816, %v1825
  %v1851 = vadd.f32 %v1817, %v1825
  %v1852 = vadd.f32 %v1818, %v1825
  %v1853 = vadd.f32 %v1819, %v1825
  %v1854 = vadd.f32 %v1820, %v1825
  %v1855 = vadd.f32 %v1821, %v1825
  %v1856 = vadd.f32 %v1822, %v1825
  %v1857 = vadd.f32 %v1823, %v1825
  %v1858 = vadd.f32 %v1824, %v1825
  %v1859 = vld [vmem:[%s3] sm:$0xf]
  %v1860 = vld [vmem:[%s3 + $0x4] sm:$0xf]
  %v1861 = vld [vmem:[%s3 + $0x8] sm:$0xf]
  %v1862 = vld [vmem:[%s3 + $0xc] sm:$0xf]
  %v1863 = vunpack.c.l.bf16 %v1859
  %v1864 = vunpack.c.l.bf16 %v1860
  %v1865 = vunpack.c.l.bf16 %v1861
  %v1866 = vunpack.c.l.bf16 %v1862
  %v1867 = vld [vmem:[%s4] sm:$0x1]
  %v1869 = vperm.slane %v1867, 0
  %v1872 = vsel %vm1057, %v1826, 0
  %v1875 = vsel %vm1057, %v1827, 0
  %v1878 = vsel %vm1057, %v1828, 0
  %v1881 = vsel %vm1057, %v1829, 0
  %v1884 = vsel %vm1057, %v1830, 0
  %v1887 = vsel %vm1057, %v1831, 0
  %v1890 = vsel %vm1057, %v1832, 0
  %v1893 = vsel %vm1057, %v1833, 0
  %v1896 = vsel %vm1057, %v1834, 0
  %v1899 = vsel %vm1057, %v1835, 0
  %v1902 = vsel %vm1057, %v1836, 0
  %v1905 = vsel %vm1057, %v1837, 0
  %v1908 = vsel %vm1057, %v1838, 0
  %v1911 = vsel %vm1057, %v1839, 0
  %v1914 = vsel %vm1057, %v1840, 0
  %v1917 = vsel %vm1057, %v1841, 0
  %v1920 = vsel %vm1057, %v1842, 0
  %v1923 = vsel %vm1057, %v1843, 0
  %v1926 = vsel %vm1057, %v1844, 0
  %v1929 = vsel %vm1057, %v1845, 0
  %v1932 = vsel %vm1057, %v1846, 0
  %v1935 = vsel %vm1057, %v1847, 0
  %v1938 = vsel %vm1057, %v1848, 0
  %v1941 = vsel %vm1057, %v1849, 0
  %v1944 = vsel %vm1057, %v1850, 0
  %v1947 = vsel %vm1057, %v1851, 0
  %v1950 = vsel %vm1057, %v1852, 0
  %v1953 = vsel %vm1057, %v1853, 0
  %v1956 = vsel %vm1057, %v1854, 0
  %v1959 = vsel %vm1057, %v1855, 0
  %v1962 = vsel %vm1057, %v1856, 0
  %v1965 = vsel %vm1057, %v1857, 0
  %v1968 = vsel %vm1057, %v1858, 0
  %1970 = vmatpush.msra.mxu0 0.0
  %1971 = vmatpush.msra.mxu0 0.0
  %1972 = vmatpush.msra.mxu0 0.0
  %1973 = vmatpush.msra.mxu0 0.0
  %1974 = vmatpush.msra.mxu0 0.0
  %1975 = vmatpush.msra.mxu0 0.0
  %1976 = vmatpush.msra.mxu0 0.0
  %1977 = vmatpush.msra.mxu0 0.0
  %1978 = vmatpush.msra.mxu0 0.0
  %1979 = vmatpush.msra.mxu0 0.0
  %1980 = vmatpush.msra.mxu0 0.0
  %1981 = vmatpush.msra.mxu0 0.0
  %1982 = vmatpush.msra.mxu0 %v1866
  %1983 = vmatpush.msra.mxu0 %v1865
  %1984 = vmatpush.msra.mxu0 %v1864
  %1985 = vmatpush.msra.mxu0 %v1863
  %1986 = vmatmul.f32.gmra.mxu0 %v1872
  %v1987 = vpop.f32.mrf.mxu0
  %v1988 = vadd.f32 %v1869, %v1987
  %1989 = vmatmul.f32.gmra.mxu0 %v1875
  %v1990 = vpop.f32.mrf.mxu0
  %v1991 = vadd.f32 %v1869, %v1990
  %1992 = vmatmul.f32.gmra.mxu0 %v1878
  %v1993 = vpop.f32.mrf.mxu0
  %v1994 = vadd.f32 %v1869, %v1993
  %1995 = vmatmul.f32.gmra.mxu0 %v1881
  %v1996 = vpop.f32.mrf.mxu0
  %v1997 = vadd.f32 %v1869, %v1996
  %1998 = vmatmul.f32.gmra.mxu0 %v1884
  %v1999 = vpop.f32.mrf.mxu0
  %v2000 = vadd.f32 %v1869, %v1999
  %2001 = vmatmul.f32.gmra.mxu0 %v1887
  %v2002 = vpop.f32.mrf.mxu0
  %v2003 = vadd.f32 %v1869, %v2002
  %2004 = vmatmul.f32.gmra.mxu0 %v1890
  %v2005 = vpop.f32.mrf.mxu0
  %v2006 = vadd.f32 %v1869, %v2005
  %2007 = vmatmul.f32.gmra.mxu0 %v1893
  %v2008 = vpop.f32.mrf.mxu0
  %v2009 = vadd.f32 %v1869, %v2008
  %2010 = vmatmul.f32.gmra.mxu0 %v1896
  %v2011 = vpop.f32.mrf.mxu0
  %v2012 = vadd.f32 %v1869, %v2011
  %2013 = vmatmul.f32.gmra.mxu0 %v1899
  %v2014 = vpop.f32.mrf.mxu0
  %v2015 = vadd.f32 %v1869, %v2014
  %2016 = vmatmul.f32.gmra.mxu0 %v1902
  %v2017 = vpop.f32.mrf.mxu0
  %v2018 = vadd.f32 %v1869, %v2017
  %2019 = vmatmul.f32.gmra.mxu0 %v1905
  %v2020 = vpop.f32.mrf.mxu0
  %v2021 = vadd.f32 %v1869, %v2020
  %2022 = vmatmul.f32.gmra.mxu0 %v1908
  %v2023 = vpop.f32.mrf.mxu0
  %v2024 = vadd.f32 %v1869, %v2023
  %2025 = vmatmul.f32.gmra.mxu0 %v1911
  %v2026 = vpop.f32.mrf.mxu0
  %v2027 = vadd.f32 %v1869, %v2026
  %2028 = vmatmul.f32.gmra.mxu0 %v1914
  %v2029 = vpop.f32.mrf.mxu0
  %v2030 = vadd.f32 %v1869, %v2029
  %2031 = vmatmul.f32.gmra.mxu0 %v1917
  %v2032 = vpop.f32.mrf.mxu0
  %v2033 = vadd.f32 %v1869, %v2032
  %2034 = vmatmul.f32.gmra.mxu0 %v1920
  %v2035 = vpop.f32.mrf.mxu0
  %v2036 = vadd.f32 %v1869, %v2035
  %2037 = vmatmul.f32.gmra.mxu0 %v1923
  %v2038 = vpop.f32.mrf.mxu0
  %v2039 = vadd.f32 %v1869, %v2038
  %2040 = vmatmul.f32.gmra.mxu0 %v1926
  %v2041 = vpop.f32.mrf.mxu0
  %v2042 = vadd.f32 %v1869, %v2041
  %2043 = vmatmul.f32.gmra.mxu0 %v1929
  %v2044 = vpop.f32.mrf.mxu0
  %v2045 = vadd.f32 %v1869, %v2044
  %2046 = vmatmul.f32.gmra.mxu0 %v1932
  %v2047 = vpop.f32.mrf.mxu0
  %v2048 = vadd.f32 %v1869, %v2047
  %2049 = vmatmul.f32.gmra.mxu0 %v1935
  %v2050 = vpop.f32.mrf.mxu0
  %v2051 = vadd.f32 %v1869, %v2050
  %2052 = vmatmul.f32.gmra.mxu0 %v1938
  %v2053 = vpop.f32.mrf.mxu0
  %v2054 = vadd.f32 %v1869, %v2053
  %2055 = vmatmul.f32.gmra.mxu0 %v1941
  %v2056 = vpop.f32.mrf.mxu0
  %v2057 = vadd.f32 %v1869, %v2056
  %2058 = vmatmul.f32.gmra.mxu0 %v1944
  %v2059 = vpop.f32.mrf.mxu0
  %v2060 = vadd.f32 %v1869, %v2059
  %2061 = vmatmul.f32.gmra.mxu0 %v1947
  %v2062 = vpop.f32.mrf.mxu0
  %v2063 = vadd.f32 %v1869, %v2062
  %2064 = vmatmul.f32.gmra.mxu0 %v1950
  %v2065 = vpop.f32.mrf.mxu0
  %v2066 = vadd.f32 %v1869, %v2065
  %2067 = vmatmul.f32.gmra.mxu0 %v1953
  %v2068 = vpop.f32.mrf.mxu0
  %v2069 = vadd.f32 %v1869, %v2068
  %2070 = vmatmul.f32.gmra.mxu0 %v1956
  %v2071 = vpop.f32.mrf.mxu0
  %v2072 = vadd.f32 %v1869, %v2071
  %2073 = vmatmul.f32.gmra.mxu0 %v1959
  %v2074 = vpop.f32.mrf.mxu0
  %v2075 = vadd.f32 %v1869, %v2074
  %2076 = vmatmul.f32.gmra.mxu0 %v1962
  %v2077 = vpop.f32.mrf.mxu0
  %v2078 = vadd.f32 %v1869, %v2077
  %2079 = vmatmul.f32.gmra.mxu0 %v1965
  %v2080 = vpop.f32.mrf.mxu0
  %v2081 = vadd.f32 %v1869, %v2080
  %2082 = vmatmul.f32.gmra.mxu0 %v1968
  %v2083 = vpop.f32.mrf.mxu0
  %v2084 = vadd.f32 %v1869, %v2083
  %2085 = vdwg.mxu0
  %v2086 = vmul.f32 %v1988, %v1988
  %v2087 = vmul.f32 %v1991, %v1991
  %v2088 = vmul.f32 %v1994, %v1994
  %v2089 = vmul.f32 %v1997, %v1997
  %v2090 = vmul.f32 %v2000, %v2000
  %v2091 = vmul.f32 %v2003, %v2003
  %v2092 = vmul.f32 %v2006, %v2006
  %v2093 = vmul.f32 %v2009, %v2009
  %v2094 = vmul.f32 %v2012, %v2012
  %v2095 = vmul.f32 %v2015, %v2015
  %v2096 = vmul.f32 %v2018, %v2018
  %v2097 = vmul.f32 %v2021, %v2021
  %v2098 = vmul.f32 %v2024, %v2024
  %v2099 = vmul.f32 %v2027, %v2027
  %v2100 = vmul.f32 %v2030, %v2030
  %v2101 = vmul.f32 %v2033, %v2033
  %v2102 = vmul.f32 %v2036, %v2036
  %v2103 = vmul.f32 %v2039, %v2039
  %v2104 = vmul.f32 %v2042, %v2042
  %v2105 = vmul.f32 %v2045, %v2045
  %v2106 = vmul.f32 %v2048, %v2048
  %v2107 = vmul.f32 %v2051, %v2051
  %v2108 = vmul.f32 %v2054, %v2054
  %v2109 = vmul.f32 %v2057, %v2057
  %v2110 = vmul.f32 %v2060, %v2060
  %v2111 = vmul.f32 %v2063, %v2063
  %v2112 = vmul.f32 %v2066, %v2066
  %v2113 = vmul.f32 %v2069, %v2069
  %v2114 = vmul.f32 %v2072, %v2072
  %v2115 = vmul.f32 %v2075, %v2075
  %v2116 = vmul.f32 %v2078, %v2078
  %v2117 = vmul.f32 %v2081, %v2081
  %v2118 = vmul.f32 %v2084, %v2084
  %vm2119 = vcmask 64512
  %v2121 = vsel %vm2119, %v951, 0
  %v2124 = vsel %vm2119, %v954, 0
  %v2127 = vsel %vm2119, %v957, 0
  %2129 = vmatpush.msra.mxu0 %v2101
  %2130 = vmatpush.msra.mxu0 %v2100
  %2131 = vmatpush.msra.mxu0 %v2099
  %2132 = vmatpush.msra.mxu0 %v2098
  %2133 = vmatpush.msra.mxu0 %v2097
  %2134 = vmatpush.msra.mxu0 %v2096
  %2135 = vmatpush.msra.mxu0 %v2095
  %2136 = vmatpush.msra.mxu0 %v2094
  %2137 = vmatpush.msra.mxu0 %v2093
  %2138 = vmatpush.msra.mxu0 %v2092
  %2139 = vmatpush.msra.mxu0 %v2091
  %2140 = vmatpush.msra.mxu0 %v2090
  %2141 = vmatpush.msra.mxu0 %v2089
  %2142 = vmatpush.msra.mxu0 %v2088
  %2143 = vmatpush.msra.mxu0 %v2087
  %2144 = vmatpush.msra.mxu0 %v2086
  %2145 = vmatmul.f32.gmra.mxu0 %v949
  %v2146 = vpop.f32.mrf.mxu0
  %v2147 = vadd.f32 0.0, %v2146
  %2148 = vmatmul.f32.gmra.mxu0 %v952
  %v2149 = vpop.f32.mrf.mxu0
  %v2150 = vadd.f32 0.0, %v2149
  %2151 = vmatmul.f32.gmra.mxu0 %v955
  %v2152 = vpop.f32.mrf.mxu0
  %v2153 = vadd.f32 0.0, %v2152
  %2154 = vdwg.mxu0
  %2155 = vmatpush.msra.mxu0 %v2117
  %2156 = vmatpush.msra.mxu0 %v2116
  %2157 = vmatpush.msra.mxu0 %v2115
  %2158 = vmatpush.msra.mxu0 %v2114
  %2159 = vmatpush.msra.mxu0 %v2113
  %2160 = vmatpush.msra.mxu0 %v2112
  %2161 = vmatpush.msra.mxu0 %v2111
  %2162 = vmatpush.msra.mxu0 %v2110
  %2163 = vmatpush.msra.mxu0 %v2109
  %2164 = vmatpush.msra.mxu0 %v2108
  %2165 = vmatpush.msra.mxu0 %v2107
  %2166 = vmatpush.msra.mxu0 %v2106
  %2167 = vmatpush.msra.mxu0 %v2105
  %2168 = vmatpush.msra.mxu0 %v2104
  %2169 = vmatpush.msra.mxu0 %v2103
  %2170 = vmatpush.msra.mxu0 %v2102
  %2171 = vmatmul.f32.gmra.mxu0 %v950
  %v2172 = vpop.f32.mrf.mxu0
  %v2173 = vadd.f32 %v2147, %v2172
  %2174 = vmatmul.f32.gmra.mxu0 %v953
  %v2175 = vpop.f32.mrf.mxu0
  %v2176 = vadd.f32 %v2150, %v2175
  %2177 = vmatmul.f32.gmra.mxu0 %v956
  %v2178 = vpop.f32.mrf.mxu0
  %v2179 = vadd.f32 %v2153, %v2178
  %2180 = vdwg.mxu0
  %2181 = vmatpush.msra.mxu0 0.0
  %2182 = vmatpush.msra.mxu0 0.0
  %2183 = vmatpush.msra.mxu0 0.0
  %2184 = vmatpush.msra.mxu0 0.0
  %2185 = vmatpush.msra.mxu0 0.0
  %2186 = vmatpush.msra.mxu0 0.0
  %2187 = vmatpush.msra.mxu0 0.0
  %2188 = vmatpush.msra.mxu0 0.0
  %2189 = vmatpush.msra.mxu0 0.0
  %2190 = vmatpush.msra.mxu0 0.0
  %2191 = vmatpush.msra.mxu0 0.0
  %2192 = vmatpush.msra.mxu0 0.0
  %2193 = vmatpush.msra.mxu0 0.0
  %2194 = vmatpush.msra.mxu0 0.0
  %2195 = vmatpush.msra.mxu0 0.0
  %2196 = vmatpush.msra.mxu0 %v2118
  %2197 = vmatmul.f32.gmra.mxu0 %v2121
  %v2198 = vpop.f32.mrf.mxu0
  %v2199 = vadd.f32 %v2173, %v2198
  %2200 = vmatmul.f32.gmra.mxu0 %v2124
  %v2201 = vpop.f32.mrf.mxu0
  %v2202 = vadd.f32 %v2176, %v2201
  %2203 = vmatmul.f32.gmra.mxu0 %v2127
  %v2204 = vpop.f32.mrf.mxu0
  %v2205 = vadd.f32 %v2179, %v2204
  %2206 = vdwg.mxu0
  %v2207 = vrsqrt.pop %v2199
  %v2208 = vmul.f32 %v2207, %v2199
  %v2209 = vmul.f32 %v2208, %v2207
  %v2210 = vmul.f32 0.5, %v2209
  %v2211 = vsub.f32 1.5, %v2210
  %v2212 = vmul.f32 %v2207, %v2211
  %vm2213 = vweird.f32 %v2199
  %vm2214 = vweird.f32 %v2207
  %vm2215 = vmor %vm2213, %vm2214
  %v2216 = vsel %vm2215, %v2207, %v2212
  %v2217 = vrsqrt.pop %v2202
  %v2218 = vmul.f32 %v2217, %v2202
  %v2219 = vmul.f32 %v2218, %v2217
  %v2220 = vmul.f32 0.5, %v2219
  %v2221 = vsub.f32 1.5, %v2220
  %v2222 = vmul.f32 %v2217, %v2221
  %vm2223 = vweird.f32 %v2202
  %vm2224 = vweird.f32 %v2217
  %vm2225 = vmor %vm2223, %vm2224
  %v2226 = vsel %vm2225, %v2217, %v2222
  %v2227 = vrsqrt.pop %v2205
  %v2228 = vmul.f32 %v2227, %v2205
  %v2229 = vmul.f32 %v2228, %v2227
  %v2230 = vmul.f32 0.5, %v2229
  %v2231 = vsub.f32 1.5, %v2230
  %v2232 = vmul.f32 %v2227, %v2231
  %vm2233 = vweird.f32 %v2205
  %vm2234 = vweird.f32 %v2227
  %vm2235 = vmor %vm2233, %vm2234
  %v2236 = vsel %vm2235, %v2227, %v2232
  %v2237 = vmin.f32 %v2216, 1e+12
  %v2238 = vmin.f32 %v2226, 1e+12
  %v2239 = vmin.f32 %v2236, 1e+12
  %2240 = vxpose.xlu0.b32.start [1/16] %v949, 128
  %2241 = vxpose.xlu0.b32.cont [2/16] %v952, 128
  %2242 = vxpose.xlu0.b32.cont [3/16] %v955, 128
  %2243 = vxpose.xlu0.b32.cont [4/16] 0.0, 128
  %2244 = vxpose.xlu0.b32.cont [5/16] 0.0, 128
  %2245 = vxpose.xlu0.b32.cont [6/16] 0.0, 128
  %2246 = vxpose.xlu0.b32.cont [7/16] 0.0, 128
  %2247 = vxpose.xlu0.b32.cont [8/16] 0.0, 128
  %2248 = vxpose.xlu0.b32.cont [9/16] 0.0, 128
  %2249 = vxpose.xlu0.b32.cont [10/16] 0.0, 128
  %2250 = vxpose.xlu0.b32.cont [11/16] 0.0, 128
  %2251 = vxpose.xlu0.b32.cont [12/16] 0.0, 128
  %2252 = vxpose.xlu0.b32.cont [13/16] 0.0, 128
  %2253 = vxpose.xlu0.b32.cont [14/16] 0.0, 128
  %2254 = vxpose.xlu0.b32.cont [15/16] 0.0, 128
  %2255 = vxpose.xlu0.b32.end [16/16] 0.0, 128
  %v2256 = vpop.trf.xlu0
  %v2257 = vpop.trf.xlu0
  %v2258 = vpop.trf.xlu0
  %v2259 = vpop.trf.xlu0
  %v2260 = vpop.trf.xlu0
  %v2261 = vpop.trf.xlu0
  %v2262 = vpop.trf.xlu0
  %v2263 = vpop.trf.xlu0
  %v2264 = vpop.trf.xlu0
  %v2265 = vpop.trf.xlu0
  %v2266 = vpop.trf.xlu0
  %v2267 = vpop.trf.xlu0
  %v2268 = vpop.trf.xlu0
  %v2269 = vpop.trf.xlu0
  %v2270 = vpop.trf.xlu0
  %v2271 = vpop.trf.xlu0
  %2272 = vxpose.xlu0.b32.start [1/16] %v950, 128
  %2273 = vxpose.xlu0.b32.cont [2/16] %v953, 128
  %2274 = vxpose.xlu0.b32.cont [3/16] %v956, 128
  %2275 = vxpose.xlu0.b32.cont [4/16] 0.0, 128
  %2276 = vxpose.xlu0.b32.cont [5/16] 0.0, 128
  %2277 = vxpose.xlu0.b32.cont [6/16] 0.0, 128
  %2278 = vxpose.xlu0.b32.cont [7/16] 0.0, 128
  %2279 = vxpose.xlu0.b32.cont [8/16] 0.0, 128
  %2280 = vxpose.xlu0.b32.cont [9/16] 0.0, 128
  %2281 = vxpose.xlu0.b32.cont [10/16] 0.0, 128
  %2282 = vxpose.xlu0.b32.cont [11/16] 0.0, 128
  %2283 = vxpose.xlu0.b32.cont [12/16] 0.0, 128
  %2284 = vxpose.xlu0.b32.cont [13/16] 0.0, 128
  %2285 = vxpose.xlu0.b32.cont [14/16] 0.0, 128
  %2286 = vxpose.xlu0.b32.cont [15/16] 0.0, 128
  %2287 = vxpose.xlu0.b32.end [16/16] 0.0, 128
  %v2288 = vpop.trf.xlu0
  %v2289 = vpop.trf.xlu0
  %v2290 = vpop.trf.xlu0
  %v2291 = vpop.trf.xlu0
  %v2292 = vpop.trf.xlu0
  %v2293 = vpop.trf.xlu0
  %v2294 = vpop.trf.xlu0
  %v2295 = vpop.trf.xlu0
  %v2296 = vpop.trf.xlu0
  %v2297 = vpop.trf.xlu0
  %v2298 = vpop.trf.xlu0
  %v2299 = vpop.trf.xlu0
  %v2300 = vpop.trf.xlu0
  %v2301 = vpop.trf.xlu0
  %v2302 = vpop.trf.xlu0
  %v2303 = vpop.trf.xlu0
  %2304 = vxpose.xlu0.b32.start [1/16] %v951, 128
  %2305 = vxpose.xlu0.b32.cont [2/16] %v954, 128
  %2306 = vxpose.xlu0.b32.cont [3/16] %v957, 128
  %2307 = vxpose.xlu0.b32.cont [4/16] 0.0, 128
  %2308 = vxpose.xlu0.b32.cont [5/16] 0.0, 128
  %2309 = vxpose.xlu0.b32.cont [6/16] 0.0, 128
  %2310 = vxpose.xlu0.b32.cont [7/16] 0.0, 128
  %2311 = vxpose.xlu0.b32.cont [8/16] 0.0, 128
  %2312 = vxpose.xlu0.b32.cont [9/16] 0.0, 128
  %2313 = vxpose.xlu0.b32.cont [10/16] 0.0, 128
  %2314 = vxpose.xlu0.b32.cont [11/16] 0.0, 128
  %2315 = vxpose.xlu0.b32.cont [12/16] 0.0, 128
  %2316 = vxpose.xlu0.b32.cont [13/16] 0.0, 128
  %2317 = vxpose.xlu0.b32.cont [14/16] 0.0, 128
  %2318 = vxpose.xlu0.b32.cont [15/16] 0.0, 128
  %2319 = vxpose.xlu0.b32.end [16/16] 0.0, 128
  %v2320 = vpop.trf.xlu0
  %v2321 = vpop.trf.xlu0
  %v2322 = vpop.trf.xlu0
  %v2323 = vpop.trf.xlu0
  %v2324 = vpop.trf.xlu0
  %v2325 = vpop.trf.xlu0
  %v2326 = vpop.trf.xlu0
  %v2327 = vpop.trf.xlu0
  %v2328 = vpop.trf.xlu0
  %v2329 = vpop.trf.xlu0
  %v2330 = vpop.trf.xlu0
  %v2331 = vpop.trf.xlu0
  %v2332 = vpop.trf.xlu0
  %v2333 = vpop.trf.xlu0
  %v2334 = vpop.trf.xlu0
  %v2335 = vpop.trf.xlu0
  %vm2336 = vcmask 195584
  %v2338 = vsel %vm2336, %v2256, 0
  %v2341 = vsel %vm2336, %v2257, 0
  %v2344 = vsel %vm2336, %v2258, 0
  %v2347 = vsel %vm2336, %v2259, 0
  %v2350 = vsel %vm2336, %v2260, 0
  %v2353 = vsel %vm2336, %v2261, 0
  %v2356 = vsel %vm2336, %v2262, 0
  %v2359 = vsel %vm2336, %v2263, 0
  %v2362 = vsel %vm2336, %v2264, 0
  %v2365 = vsel %vm2336, %v2265, 0
  %v2368 = vsel %vm2336, %v2266, 0
  %v2371 = vsel %vm2336, %v2267, 0
  %v2374 = vsel %vm2336, %v2268, 0
  %v2377 = vsel %vm2336, %v2269, 0
  %v2380 = vsel %vm2336, %v2270, 0
  %v2383 = vsel %vm2336, %v2271, 0
  %v2386 = vsel %vm2336, %v2288, 0
  %v2389 = vsel %vm2336, %v2289, 0
  %v2392 = vsel %vm2336, %v2290, 0
  %v2395 = vsel %vm2336, %v2291, 0
  %v2398 = vsel %vm2336, %v2292, 0
  %v2401 = vsel %vm2336, %v2293, 0
  %v2404 = vsel %vm2336, %v2294, 0
  %v2407 = vsel %vm2336, %v2295, 0
  %v2410 = vsel %vm2336, %v2296, 0
  %v2413 = vsel %vm2336, %v2297, 0
  %v2416 = vsel %vm2336, %v2298, 0
  %v2419 = vsel %vm2336, %v2299, 0
  %v2422 = vsel %vm2336, %v2300, 0
  %v2425 = vsel %vm2336, %v2301, 0
  %v2428 = vsel %vm2336, %v2302, 0
  %v2431 = vsel %vm2336, %v2303, 0
  %v2434 = vsel %vm2336, %v2320, 0
  %2436 = vmatpush.msra.mxu0 0.0
  %2437 = vmatpush.msra.mxu0 0.0
  %2438 = vmatpush.msra.mxu0 0.0
  %2439 = vmatpush.msra.mxu0 0.0
  %2440 = vmatpush.msra.mxu0 0.0
  %2441 = vmatpush.msra.mxu0 0.0
  %2442 = vmatpush.msra.mxu0 0.0
  %2443 = vmatpush.msra.mxu0 0.0
  %2444 = vmatpush.msra.mxu0 0.0
  %2445 = vmatpush.msra.mxu0 0.0
  %2446 = vmatpush.msra.mxu0 0.0
  %2447 = vmatpush.msra.mxu0 0.0
  %2448 = vmatpush.msra.mxu0 0.0
  %2449 = vmatpush.msra.mxu0 %v2239
  %2450 = vmatpush.msra.mxu0 %v2238
  %2451 = vmatpush.msra.mxu0 %v2237
  %2452 = vmatmul.f32.gmra.mxu0 %v2338
  %v2453 = vpop.f32.mrf.mxu0
  %v2454 = vadd.f32 0.0, %v2453
  %2455 = vmatmul.f32.gmra.mxu0 %v2341
  %v2456 = vpop.f32.mrf.mxu0
  %v2457 = vadd.f32 0.0, %v2456
  %2458 = vmatmul.f32.gmra.mxu0 %v2344
  %v2459 = vpop.f32.mrf.mxu0
  %v2460 = vadd.f32 0.0, %v2459
  %2461 = vmatmul.f32.gmra.mxu0 %v2347
  %v2462 = vpop.f32.mrf.mxu0
  %v2463 = vadd.f32 0.0, %v2462
  %2464 = vmatmul.f32.gmra.mxu0 %v2350
  %v2465 = vpop.f32.mrf.mxu0
  %v2466 = vadd.f32 0.0, %v2465
  %2467 = vmatmul.f32.gmra.mxu0 %v2353
  %v2468 = vpop.f32.mrf.mxu0
  %v2469 = vadd.f32 0.0, %v2468
  %2470 = vmatmul.f32.gmra.mxu0 %v2356
  %v2471 = vpop.f32.mrf.mxu0
  %v2472 = vadd.f32 0.0, %v2471
  %2473 = vmatmul.f32.gmra.mxu0 %v2359
  %v2474 = vpop.f32.mrf.mxu0
  %v2475 = vadd.f32 0.0, %v2474
  %2476 = vmatmul.f32.gmra.mxu0 %v2362
  %v2477 = vpop.f32.mrf.mxu0
  %v2478 = vadd.f32 0.0, %v2477
  %2479 = vmatmul.f32.gmra.mxu0 %v2365
  %v2480 = vpop.f32.mrf.mxu0
  %v2481 = vadd.f32 0.0, %v2480
  %2482 = vmatmul.f32.gmra.mxu0 %v2368
  %v2483 = vpop.f32.mrf.mxu0
  %v2484 = vadd.f32 0.0, %v2483
  %2485 = vmatmul.f32.gmra.mxu0 %v2371
  %v2486 = vpop.f32.mrf.mxu0
  %v2487 = vadd.f32 0.0, %v2486
  %2488 = vmatmul.f32.gmra.mxu0 %v2374
  %v2489 = vpop.f32.mrf.mxu0
  %v2490 = vadd.f32 0.0, %v2489
  %2491 = vmatmul.f32.gmra.mxu0 %v2377
  %v2492 = vpop.f32.mrf.mxu0
  %v2493 = vadd.f32 0.0, %v2492
  %2494 = vmatmul.f32.gmra.mxu0 %v2380
  %v2495 = vpop.f32.mrf.mxu0
  %v2496 = vadd.f32 0.0, %v2495
  %2497 = vmatmul.f32.gmra.mxu0 %v2383
  %v2498 = vpop.f32.mrf.mxu0
  %v2499 = vadd.f32 0.0, %v2498
  %2500 = vmatmul.f32.gmra.mxu0 %v2386
  %v2501 = vpop.f32.mrf.mxu0
  %v2502 = vadd.f32 0.0, %v2501
  %2503 = vmatmul.f32.gmra.mxu0 %v2389
  %v2504 = vpop.f32.mrf.mxu0
  %v2505 = vadd.f32 0.0, %v2504
  %2506 = vmatmul.f32.gmra.mxu0 %v2392
  %v2507 = vpop.f32.mrf.mxu0
  %v2508 = vadd.f32 0.0, %v2507
  %2509 = vmatmul.f32.gmra.mxu0 %v2395
  %v2510 = vpop.f32.mrf.mxu0
  %v2511 = vadd.f32 0.0, %v2510
  %2512 = vmatmul.f32.gmra.mxu0 %v2398
  %v2513 = vpop.f32.mrf.mxu0
  %v2514 = vadd.f32 0.0, %v2513
  %2515 = vmatmul.f32.gmra.mxu0 %v2401
  %v2516 = vpop.f32.mrf.mxu0
  %v2517 = vadd.f32 0.0, %v2516
  %2518 = vmatmul.f32.gmra.mxu0 %v2404
  %v2519 = vpop.f32.mrf.mxu0
  %v2520 = vadd.f32 0.0, %v2519
  %2521 = vmatmul.f32.gmra.mxu0 %v2407
  %v2522 = vpop.f32.mrf.mxu0
  %v2523 = vadd.f32 0.0, %v2522
  %2524 = vmatmul.f32.gmra.mxu0 %v2410
  %v2525 = vpop.f32.mrf.mxu0
  %v2526 = vadd.f32 0.0, %v2525
  %2527 = vmatmul.f32.gmra.mxu0 %v2413
  %v2528 = vpop.f32.mrf.mxu0
  %v2529 = vadd.f32 0.0, %v2528
  %2530 = vmatmul.f32.gmra.mxu0 %v2416
  %v2531 = vpop.f32.mrf.mxu0
  %v2532 = vadd.f32 0.0, %v2531
  %2533 = vmatmul.f32.gmra.mxu0 %v2419
  %v2534 = vpop.f32.mrf.mxu0
  %v2535 = vadd.f32 0.0, %v2534
  %2536 = vmatmul.f32.gmra.mxu0 %v2422
  %v2537 = vpop.f32.mrf.mxu0
  %v2538 = vadd.f32 0.0, %v2537
  %2539 = vmatmul.f32.gmra.mxu0 %v2425
  %v2540 = vpop.f32.mrf.mxu0
  %v2541 = vadd.f32 0.0, %v2540
  %2542 = vmatmul.f32.gmra.mxu0 %v2428
  %v2543 = vpop.f32.mrf.mxu0
  %v2544 = vadd.f32 0.0, %v2543
  %2545 = vmatmul.f32.gmra.mxu0 %v2431
  %v2546 = vpop.f32.mrf.mxu0
  %v2547 = vadd.f32 0.0, %v2546
  %2548 = vmatmul.f32.gmra.mxu0 %v2434
  %v2549 = vpop.f32.mrf.mxu0
  %v2550 = vadd.f32 0.0, %v2549
  %2551 = vdwg.mxu0
  %v2552 = vmul.f32 %v1988, %v2454
  %v2553 = vmul.f32 %v1991, %v2457
  %v2554 = vmul.f32 %v1994, %v2460
  %v2555 = vmul.f32 %v1997, %v2463
  %v2556 = vmul.f32 %v2000, %v2466
  %v2557 = vmul.f32 %v2003, %v2469
  %v2558 = vmul.f32 %v2006, %v2472
  %v2559 = vmul.f32 %v2009, %v2475
  %v2560 = vmul.f32 %v2012, %v2478
  %v2561 = vmul.f32 %v2015, %v2481
  %v2562 = vmul.f32 %v2018, %v2484
  %v2563 = vmul.f32 %v2021, %v2487
  %v2564 = vmul.f32 %v2024, %v2490
  %v2565 = vmul.f32 %v2027, %v2493
  %v2566 = vmul.f32 %v2030, %v2496
  %v2567 = vmul.f32 %v2033, %v2499
  %v2568 = vmul.f32 %v2036, %v2502
  %v2569 = vmul.f32 %v2039, %v2505
  %v2570 = vmul.f32 %v2042, %v2508
  %v2571 = vmul.f32 %v2045, %v2511
  %v2572 = vmul.f32 %v2048, %v2514
  %v2573 = vmul.f32 %v2051, %v2517
  %v2574 = vmul.f32 %v2054, %v2520
  %v2575 = vmul.f32 %v2057, %v2523
  %v2576 = vmul.f32 %v2060, %v2526
  %v2577 = vmul.f32 %v2063, %v2529
  %v2578 = vmul.f32 %v2066, %v2532
  %v2579 = vmul.f32 %v2069, %v2535
  %v2580 = vmul.f32 %v2072, %v2538
  %v2581 = vmul.f32 %v2075, %v2541
  %v2582 = vmul.f32 %v2078, %v2544
  %v2583 = vmul.f32 %v2081, %v2547
  %v2584 = vmul.f32 %v2084, %v2550
  %v2585 = vperm.slane %v71, 0
  %v2586 = vmul.f32 %v2552, %v2585
  %v2587 = vmul.f32 %v2553, %v2585
  %v2588 = vmul.f32 %v2554, %v2585
  %v2589 = vmul.f32 %v2555, %v2585
  %v2590 = vmul.f32 %v2556, %v2585
  %v2591 = vmul.f32 %v2557, %v2585
  %v2592 = vmul.f32 %v2558, %v2585
  %v2593 = vmul.f32 %v2559, %v2585
  %v2594 = vmul.f32 %v2560, %v2585
  %v2595 = vmul.f32 %v2561, %v2585
  %v2596 = vmul.f32 %v2562, %v2585
  %v2597 = vmul.f32 %v2563, %v2585
  %v2598 = vmul.f32 %v2564, %v2585
  %v2599 = vmul.f32 %v2565, %v2585
  %v2600 = vmul.f32 %v2566, %v2585
  %v2601 = vmul.f32 %v2567, %v2585
  %v2602 = vmul.f32 %v2568, %v2585
  %v2603 = vmul.f32 %v2569, %v2585
  %v2604 = vmul.f32 %v2570, %v2585
  %v2605 = vmul.f32 %v2571, %v2585
  %v2606 = vmul.f32 %v2572, %v2585
  %v2607 = vmul.f32 %v2573, %v2585
  %v2608 = vmul.f32 %v2574, %v2585
  %v2609 = vmul.f32 %v2575, %v2585
  %v2610 = vmul.f32 %v2576, %v2585
  %v2611 = vmul.f32 %v2577, %v2585
  %v2612 = vmul.f32 %v2578, %v2585
  %v2613 = vmul.f32 %v2579, %v2585
  %v2614 = vmul.f32 %v2580, %v2585
  %v2615 = vmul.f32 %v2581, %v2585
  %v2616 = vmul.f32 %v2582, %v2585
  %v2617 = vmul.f32 %v2583, %v2585
  %v2618 = vmul.f32 %v2584, %v2585
  %v2620 = vsel %vm1057, %v2586, 0
  %v2623 = vsel %vm1057, %v2587, 0
  %v2626 = vsel %vm1057, %v2588, 0
  %v2629 = vsel %vm1057, %v2589, 0
  %v2632 = vsel %vm1057, %v2590, 0
  %v2635 = vsel %vm1057, %v2591, 0
  %v2638 = vsel %vm1057, %v2592, 0
  %v2641 = vsel %vm1057, %v2593, 0
  %v2644 = vsel %vm1057, %v2594, 0
  %v2647 = vsel %vm1057, %v2595, 0
  %v2650 = vsel %vm1057, %v2596, 0
  %v2653 = vsel %vm1057, %v2597, 0
  %v2656 = vsel %vm1057, %v2598, 0
  %v2659 = vsel %vm1057, %v2599, 0
  %v2662 = vsel %vm1057, %v2600, 0
  %v2665 = vsel %vm1057, %v2601, 0
  %v2668 = vsel %vm1057, %v2602, 0
  %v2671 = vsel %vm1057, %v2603, 0
  %v2674 = vsel %vm1057, %v2604, 0
  %v2677 = vsel %vm1057, %v2605, 0
  %v2680 = vsel %vm1057, %v2606, 0
  %v2683 = vsel %vm1057, %v2607, 0
  %v2686 = vsel %vm1057, %v2608, 0
  %v2689 = vsel %vm1057, %v2609, 0
  %v2692 = vsel %vm1057, %v2610, 0
  %v2695 = vsel %vm1057, %v2611, 0
  %v2698 = vsel %vm1057, %v2612, 0
  %v2701 = vsel %vm1057, %v2613, 0
  %v2704 = vsel %vm1057, %v2614, 0
  %v2707 = vsel %vm1057, %v2615, 0
  %v2710 = vsel %vm1057, %v2616, 0
  %v2713 = vsel %vm1057, %v2617, 0
  %v2716 = vsel %vm1057, %v2618, 0
  %2718 = vmatpush.msra.mxu0 0.0
  %2719 = vmatpush.msra.mxu0 0.0
  %2720 = vmatpush.msra.mxu0 0.0
  %2721 = vmatpush.msra.mxu0 0.0
  %2722 = vmatpush.msra.mxu0 0.0
  %2723 = vmatpush.msra.mxu0 0.0
  %2724 = vmatpush.msra.mxu0 0.0
  %2725 = vmatpush.msra.mxu0 0.0
  %2726 = vmatpush.msra.mxu0 0.0
  %2727 = vmatpush.msra.mxu0 0.0
  %2728 = vmatpush.msra.mxu0 0.0
  %2729 = vmatpush.msra.mxu0 0.0
  %2730 = vmatpush.msra.mxu0 %v922
  %2731 = vmatpush.msra.mxu0 %v916
  %2732 = vmatpush.msra.mxu0 %v910
  %2733 = vmatpush.msra.mxu0 %v904
  %2734 = vmatmul.f32.gmra.mxu0 %v2620
  %v2735 = vpop.f32.mrf.mxu0
  %v2736 = vadd.f32 0.0, %v2735
  %2737 = vmatmul.f32.gmra.mxu0 %v2623
  %v2738 = vpop.f32.mrf.mxu0
  %v2739 = vadd.f32 0.0, %v2738
  %2740 = vmatmul.f32.gmra.mxu0 %v2626
  %v2741 = vpop.f32.mrf.mxu0
  %v2742 = vadd.f32 0.0, %v2741
  %2743 = vmatmul.f32.gmra.mxu0 %v2629
  %v2744 = vpop.f32.mrf.mxu0
  %v2745 = vadd.f32 0.0, %v2744
  %2746 = vmatmul.f32.gmra.mxu0 %v2632
  %v2747 = vpop.f32.mrf.mxu0
  %v2748 = vadd.f32 0.0, %v2747
  %2749 = vmatmul.f32.gmra.mxu0 %v2635
  %v2750 = vpop.f32.mrf.mxu0
  %v2751 = vadd.f32 0.0, %v2750
  %2752 = vmatmul.f32.gmra.mxu0 %v2638
  %v2753 = vpop.f32.mrf.mxu0
  %v2754 = vadd.f32 0.0, %v2753
  %2755 = vmatmul.f32.gmra.mxu0 %v2641
  %v2756 = vpop.f32.mrf.mxu0
  %v2757 = vadd.f32 0.0, %v2756
  %2758 = vmatmul.f32.gmra.mxu0 %v2644
  %v2759 = vpop.f32.mrf.mxu0
  %v2760 = vadd.f32 0.0, %v2759
  %2761 = vmatmul.f32.gmra.mxu0 %v2647
  %v2762 = vpop.f32.mrf.mxu0
  %v2763 = vadd.f32 0.0, %v2762
  %2764 = vmatmul.f32.gmra.mxu0 %v2650
  %v2765 = vpop.f32.mrf.mxu0
  %v2766 = vadd.f32 0.0, %v2765
  %2767 = vmatmul.f32.gmra.mxu0 %v2653
  %v2768 = vpop.f32.mrf.mxu0
  %v2769 = vadd.f32 0.0, %v2768
  %2770 = vmatmul.f32.gmra.mxu0 %v2656
  %v2771 = vpop.f32.mrf.mxu0
  %v2772 = vadd.f32 0.0, %v2771
  %2773 = vmatmul.f32.gmra.mxu0 %v2659
  %v2774 = vpop.f32.mrf.mxu0
  %v2775 = vadd.f32 0.0, %v2774
  %2776 = vmatmul.f32.gmra.mxu0 %v2662
  %v2777 = vpop.f32.mrf.mxu0
  %v2778 = vadd.f32 0.0, %v2777
  %2779 = vmatmul.f32.gmra.mxu0 %v2665
  %v2780 = vpop.f32.mrf.mxu0
  %v2781 = vadd.f32 0.0, %v2780
  %2782 = vmatmul.f32.gmra.mxu0 %v2668
  %v2783 = vpop.f32.mrf.mxu0
  %v2784 = vadd.f32 0.0, %v2783
  %2785 = vmatmul.f32.gmra.mxu0 %v2671
  %v2786 = vpop.f32.mrf.mxu0
  %v2787 = vadd.f32 0.0, %v2786
  %2788 = vmatmul.f32.gmra.mxu0 %v2674
  %v2789 = vpop.f32.mrf.mxu0
  %v2790 = vadd.f32 0.0, %v2789
  %2791 = vmatmul.f32.gmra.mxu0 %v2677
  %v2792 = vpop.f32.mrf.mxu0
  %v2793 = vadd.f32 0.0, %v2792
  %2794 = vmatmul.f32.gmra.mxu0 %v2680
  %v2795 = vpop.f32.mrf.mxu0
  %v2796 = vadd.f32 0.0, %v2795
  %2797 = vmatmul.f32.gmra.mxu0 %v2683
  %v2798 = vpop.f32.mrf.mxu0
  %v2799 = vadd.f32 0.0, %v2798
  %2800 = vmatmul.f32.gmra.mxu0 %v2686
  %v2801 = vpop.f32.mrf.mxu0
  %v2802 = vadd.f32 0.0, %v2801
  %2803 = vmatmul.f32.gmra.mxu0 %v2689
  %v2804 = vpop.f32.mrf.mxu0
  %v2805 = vadd.f32 0.0, %v2804
  %2806 = vmatmul.f32.gmra.mxu0 %v2692
  %v2807 = vpop.f32.mrf.mxu0
  %v2808 = vadd.f32 0.0, %v2807
  %2809 = vmatmul.f32.gmra.mxu0 %v2695
  %v2810 = vpop.f32.mrf.mxu0
  %v2811 = vadd.f32 0.0, %v2810
  %2812 = vmatmul.f32.gmra.mxu0 %v2698
  %v2813 = vpop.f32.mrf.mxu0
  %v2814 = vadd.f32 0.0, %v2813
  %2815 = vmatmul.f32.gmra.mxu0 %v2701
  %v2816 = vpop.f32.mrf.mxu0
  %v2817 = vadd.f32 0.0, %v2816
  %2818 = vmatmul.f32.gmra.mxu0 %v2704
  %v2819 = vpop.f32.mrf.mxu0
  %v2820 = vadd.f32 0.0, %v2819
  %2821 = vmatmul.f32.gmra.mxu0 %v2707
  %v2822 = vpop.f32.mrf.mxu0
  %v2823 = vadd.f32 0.0, %v2822
  %2824 = vmatmul.f32.gmra.mxu0 %v2710
  %v2825 = vpop.f32.mrf.mxu0
  %v2826 = vadd.f32 0.0, %v2825
  %2827 = vmatmul.f32.gmra.mxu0 %v2713
  %v2828 = vpop.f32.mrf.mxu0
  %v2829 = vadd.f32 0.0, %v2828
  %2830 = vmatmul.f32.gmra.mxu0 %v2716
  %v2831 = vpop.f32.mrf.mxu0
  %v2832 = vadd.f32 0.0, %v2831
  %2833 = vdwg.mxu0
  %2834 = vmatpush.msra.mxu0 0.0
  %2835 = vmatpush.msra.mxu0 0.0
  %2836 = vmatpush.msra.mxu0 0.0
  %2837 = vmatpush.msra.mxu0 0.0
  %2838 = vmatpush.msra.mxu0 0.0
  %2839 = vmatpush.msra.mxu0 0.0
  %2840 = vmatpush.msra.mxu0 0.0
  %2841 = vmatpush.msra.mxu0 0.0
  %2842 = vmatpush.msra.mxu0 0.0
  %2843 = vmatpush.msra.mxu0 0.0
  %2844 = vmatpush.msra.mxu0 0.0
  %2845 = vmatpush.msra.mxu0 0.0
  %2846 = vmatpush.msra.mxu0 %v923
  %2847 = vmatpush.msra.mxu0 %v917
  %2848 = vmatpush.msra.mxu0 %v911
  %2849 = vmatpush.msra.mxu0 %v905
  %2850 = vmatmul.f32.gmra.mxu0 %v2620
  %v2851 = vpop.f32.mrf.mxu0
  %v2852 = vadd.f32 0.0, %v2851
  %2853 = vmatmul.f32.gmra.mxu0 %v2623
  %v2854 = vpop.f32.mrf.mxu0
  %v2855 = vadd.f32 0.0, %v2854
  %2856 = vmatmul.f32.gmra.mxu0 %v2626
  %v2857 = vpop.f32.mrf.mxu0
  %v2858 = vadd.f32 0.0, %v2857
  %2859 = vmatmul.f32.gmra.mxu0 %v2629
  %v2860 = vpop.f32.mrf.mxu0
  %v2861 = vadd.f32 0.0, %v2860
  %2862 = vmatmul.f32.gmra.mxu0 %v2632
  %v2863 = vpop.f32.mrf.mxu0
  %v2864 = vadd.f32 0.0, %v2863
  %2865 = vmatmul.f32.gmra.mxu0 %v2635
  %v2866 = vpop.f32.mrf.mxu0
  %v2867 = vadd.f32 0.0, %v2866
  %2868 = vmatmul.f32.gmra.mxu0 %v2638
  %v2869 = vpop.f32.mrf.mxu0
  %v2870 = vadd.f32 0.0, %v2869
  %2871 = vmatmul.f32.gmra.mxu0 %v2641
  %v2872 = vpop.f32.mrf.mxu0
  %v2873 = vadd.f32 0.0, %v2872
  %2874 = vmatmul.f32.gmra.mxu0 %v2644
  %v2875 = vpop.f32.mrf.mxu0
  %v2876 = vadd.f32 0.0, %v2875
  %2877 = vmatmul.f32.gmra.mxu0 %v2647
  %v2878 = vpop.f32.mrf.mxu0
  %v2879 = vadd.f32 0.0, %v2878
  %2880 = vmatmul.f32.gmra.mxu0 %v2650
  %v2881 = vpop.f32.mrf.mxu0
  %v2882 = vadd.f32 0.0, %v2881
  %2883 = vmatmul.f32.gmra.mxu0 %v2653
  %v2884 = vpop.f32.mrf.mxu0
  %v2885 = vadd.f32 0.0, %v2884
  %2886 = vmatmul.f32.gmra.mxu0 %v2656
  %v2887 = vpop.f32.mrf.mxu0
  %v2888 = vadd.f32 0.0, %v2887
  %2889 = vmatmul.f32.gmra.mxu0 %v2659
  %v2890 = vpop.f32.mrf.mxu0
  %v2891 = vadd.f32 0.0, %v2890
  %2892 = vmatmul.f32.gmra.mxu0 %v2662
  %v2893 = vpop.f32.mrf.mxu0
  %v2894 = vadd.f32 0.0, %v2893
  %2895 = vmatmul.f32.gmra.mxu0 %v2665
  %v2896 = vpop.f32.mrf.mxu0
  %v2897 = vadd.f32 0.0, %v2896
  %2898 = vmatmul.f32.gmra.mxu0 %v2668
  %v2899 = vpop.f32.mrf.mxu0
  %v2900 = vadd.f32 0.0, %v2899
  %2901 = vmatmul.f32.gmra.mxu0 %v2671
  %v2902 = vpop.f32.mrf.mxu0
  %v2903 = vadd.f32 0.0, %v2902
  %2904 = vmatmul.f32.gmra.mxu0 %v2674
  %v2905 = vpop.f32.mrf.mxu0
  %v2906 = vadd.f32 0.0, %v2905
  %2907 = vmatmul.f32.gmra.mxu0 %v2677
  %v2908 = vpop.f32.mrf.mxu0
  %v2909 = vadd.f32 0.0, %v2908
  %2910 = vmatmul.f32.gmra.mxu0 %v2680
  %v2911 = vpop.f32.mrf.mxu0
  %v2912 = vadd.f32 0.0, %v2911
  %2913 = vmatmul.f32.gmra.mxu0 %v2683
  %v2914 = vpop.f32.mrf.mxu0
  %v2915 = vadd.f32 0.0, %v2914
  %2916 = vmatmul.f32.gmra.mxu0 %v2686
  %v2917 = vpop.f32.mrf.mxu0
  %v2918 = vadd.f32 0.0, %v2917
  %2919 = vmatmul.f32.gmra.mxu0 %v2689
  %v2920 = vpop.f32.mrf.mxu0
  %v2921 = vadd.f32 0.0, %v2920
  %2922 = vmatmul.f32.gmra.mxu0 %v2692
  %v2923 = vpop.f32.mrf.mxu0
  %v2924 = vadd.f32 0.0, %v2923
  %2925 = vmatmul.f32.gmra.mxu0 %v2695
  %v2926 = vpop.f32.mrf.mxu0
  %v2927 = vadd.f32 0.0, %v2926
  %2928 = vmatmul.f32.gmra.mxu0 %v2698
  %v2929 = vpop.f32.mrf.mxu0
  %v2930 = vadd.f32 0.0, %v2929
  %2931 = vmatmul.f32.gmra.mxu0 %v2701
  %v2932 = vpop.f32.mrf.mxu0
  %v2933 = vadd.f32 0.0, %v2932
  %2934 = vmatmul.f32.gmra.mxu0 %v2704
  %v2935 = vpop.f32.mrf.mxu0
  %v2936 = vadd.f32 0.0, %v2935
  %2937 = vmatmul.f32.gmra.mxu0 %v2707
  %v2938 = vpop.f32.mrf.mxu0
  %v2939 = vadd.f32 0.0, %v2938
  %2940 = vmatmul.f32.gmra.mxu0 %v2710
  %v2941 = vpop.f32.mrf.mxu0
  %v2942 = vadd.f32 0.0, %v2941
  %2943 = vmatmul.f32.gmra.mxu0 %v2713
  %v2944 = vpop.f32.mrf.mxu0
  %v2945 = vadd.f32 0.0, %v2944
  %2946 = vmatmul.f32.gmra.mxu0 %v2716
  %v2947 = vpop.f32.mrf.mxu0
  %v2948 = vadd.f32 0.0, %v2947
  %2949 = vdwg.mxu0
  %2950 = vmatpush.msra.mxu0 0.0
  %2951 = vmatpush.msra.mxu0 0.0
  %2952 = vmatpush.msra.mxu0 0.0
  %2953 = vmatpush.msra.mxu0 0.0
  %2954 = vmatpush.msra.mxu0 0.0
  %2955 = vmatpush.msra.mxu0 0.0
  %2956 = vmatpush.msra.mxu0 0.0
  %2957 = vmatpush.msra.mxu0 0.0
  %2958 = vmatpush.msra.mxu0 0.0
  %2959 = vmatpush.msra.mxu0 0.0
  %2960 = vmatpush.msra.mxu0 0.0
  %2961 = vmatpush.msra.mxu0 0.0
  %2962 = vmatpush.msra.mxu0 %v924
  %2963 = vmatpush.msra.mxu0 %v918
  %2964 = vmatpush.msra.mxu0 %v912
  %2965 = vmatpush.msra.mxu0 %v906
  %2966 = vmatmul.f32.gmra.mxu0 %v2620
  %v2967 = vpop.f32.mrf.mxu0
  %v2968 = vadd.f32 0.0, %v2967
  %2969 = vmatmul.f32.gmra.mxu0 %v2623
  %v2970 = vpop.f32.mrf.mxu0
  %v2971 = vadd.f32 0.0, %v2970
  %2972 = vmatmul.f32.gmra.mxu0 %v2626
  %v2973 = vpop.f32.mrf.mxu0
  %v2974 = vadd.f32 0.0, %v2973
  %2975 = vmatmul.f32.gmra.mxu0 %v2629
  %v2976 = vpop.f32.mrf.mxu0
  %v2977 = vadd.f32 0.0, %v2976
  %2978 = vmatmul.f32.gmra.mxu0 %v2632
  %v2979 = vpop.f32.mrf.mxu0
  %v2980 = vadd.f32 0.0, %v2979
  %2981 = vmatmul.f32.gmra.mxu0 %v2635
  %v2982 = vpop.f32.mrf.mxu0
  %v2983 = vadd.f32 0.0, %v2982
  %2984 = vmatmul.f32.gmra.mxu0 %v2638
  %v2985 = vpop.f32.mrf.mxu0
  %v2986 = vadd.f32 0.0, %v2985
  %2987 = vmatmul.f32.gmra.mxu0 %v2641
  %v2988 = vpop.f32.mrf.mxu0
  %v2989 = vadd.f32 0.0, %v2988
  %2990 = vmatmul.f32.gmra.mxu0 %v2644
  %v2991 = vpop.f32.mrf.mxu0
  %v2992 = vadd.f32 0.0, %v2991
  %2993 = vmatmul.f32.gmra.mxu0 %v2647
  %v2994 = vpop.f32.mrf.mxu0
  %v2995 = vadd.f32 0.0, %v2994
  %2996 = vmatmul.f32.gmra.mxu0 %v2650
  %v2997 = vpop.f32.mrf.mxu0
  %v2998 = vadd.f32 0.0, %v2997
  %2999 = vmatmul.f32.gmra.mxu0 %v2653
  %v3000 = vpop.f32.mrf.mxu0
  %v3001 = vadd.f32 0.0, %v3000
  %3002 = vmatmul.f32.gmra.mxu0 %v2656
  %v3003 = vpop.f32.mrf.mxu0
  %v3004 = vadd.f32 0.0, %v3003
  %3005 = vmatmul.f32.gmra.mxu0 %v2659
  %v3006 = vpop.f32.mrf.mxu0
  %v3007 = vadd.f32 0.0, %v3006
  %3008 = vmatmul.f32.gmra.mxu0 %v2662
  %v3009 = vpop.f32.mrf.mxu0
  %v3010 = vadd.f32 0.0, %v3009
  %3011 = vmatmul.f32.gmra.mxu0 %v2665
  %v3012 = vpop.f32.mrf.mxu0
  %v3013 = vadd.f32 0.0, %v3012
  %3014 = vmatmul.f32.gmra.mxu0 %v2668
  %v3015 = vpop.f32.mrf.mxu0
  %v3016 = vadd.f32 0.0, %v3015
  %3017 = vmatmul.f32.gmra.mxu0 %v2671
  %v3018 = vpop.f32.mrf.mxu0
  %v3019 = vadd.f32 0.0, %v3018
  %3020 = vmatmul.f32.gmra.mxu0 %v2674
  %v3021 = vpop.f32.mrf.mxu0
  %v3022 = vadd.f32 0.0, %v3021
  %3023 = vmatmul.f32.gmra.mxu0 %v2677
  %v3024 = vpop.f32.mrf.mxu0
  %v3025 = vadd.f32 0.0, %v3024
  %3026 = vmatmul.f32.gmra.mxu0 %v2680
  %v3027 = vpop.f32.mrf.mxu0
  %v3028 = vadd.f32 0.0, %v3027
  %3029 = vmatmul.f32.gmra.mxu0 %v2683
  %v3030 = vpop.f32.mrf.mxu0
  %v3031 = vadd.f32 0.0, %v3030
  %3032 = vmatmul.f32.gmra.mxu0 %v2686
  %v3033 = vpop.f32.mrf.mxu0
  %v3034 = vadd.f32 0.0, %v3033
  %3035 = vmatmul.f32.gmra.mxu0 %v2689
  %v3036 = vpop.f32.mrf.mxu0
  %v3037 = vadd.f32 0.0, %v3036
  %3038 = vmatmul.f32.gmra.mxu0 %v2692
  %v3039 = vpop.f32.mrf.mxu0
  %v3040 = vadd.f32 0.0, %v3039
  %3041 = vmatmul.f32.gmra.mxu0 %v2695
  %v3042 = vpop.f32.mrf.mxu0
  %v3043 = vadd.f32 0.0, %v3042
  %3044 = vmatmul.f32.gmra.mxu0 %v2698
  %v3045 = vpop.f32.mrf.mxu0
  %v3046 = vadd.f32 0.0, %v3045
  %3047 = vmatmul.f32.gmra.mxu0 %v2701
  %v3048 = vpop.f32.mrf.mxu0
  %v3049 = vadd.f32 0.0, %v3048
  %3050 = vmatmul.f32.gmra.mxu0 %v2704
  %v3051 = vpop.f32.mrf.mxu0
  %v3052 = vadd.f32 0.0, %v3051
  %3053 = vmatmul.f32.gmra.mxu0 %v2707
  %v3054 = vpop.f32.mrf.mxu0
  %v3055 = vadd.f32 0.0, %v3054
  %3056 = vmatmul.f32.gmra.mxu0 %v2710
  %v3057 = vpop.f32.mrf.mxu0
  %v3058 = vadd.f32 0.0, %v3057
  %3059 = vmatmul.f32.gmra.mxu0 %v2713
  %v3060 = vpop.f32.mrf.mxu0
  %v3061 = vadd.f32 0.0, %v3060
  %3062 = vmatmul.f32.gmra.mxu0 %v2716
  %v3063 = vpop.f32.mrf.mxu0
  %v3064 = vadd.f32 0.0, %v3063
  %3065 = vdwg.mxu0
  %3066 = vmatpush.msra.mxu0 0.0
  %3067 = vmatpush.msra.mxu0 0.0
  %3068 = vmatpush.msra.mxu0 0.0
  %3069 = vmatpush.msra.mxu0 0.0
  %3070 = vmatpush.msra.mxu0 0.0
  %3071 = vmatpush.msra.mxu0 0.0
  %3072 = vmatpush.msra.mxu0 0.0
  %3073 = vmatpush.msra.mxu0 0.0
  %3074 = vmatpush.msra.mxu0 0.0
  %3075 = vmatpush.msra.mxu0 0.0
  %3076 = vmatpush.msra.mxu0 0.0
  %3077 = vmatpush.msra.mxu0 0.0
  %3078 = vmatpush.msra.mxu0 %v925
  %3079 = vmatpush.msra.mxu0 %v919
  %3080 = vmatpush.msra.mxu0 %v913
  %3081 = vmatpush.msra.mxu0 %v907
  %3082 = vmatmul.f32.gmra.mxu0 %v2620
  %v3083 = vpop.f32.mrf.mxu0
  %v3084 = vadd.f32 0.0, %v3083
  %3085 = vmatmul.f32.gmra.mxu0 %v2623
  %v3086 = vpop.f32.mrf.mxu0
  %v3087 = vadd.f32 0.0, %v3086
  %3088 = vmatmul.f32.gmra.mxu0 %v2626
  %v3089 = vpop.f32.mrf.mxu0
  %v3090 = vadd.f32 0.0, %v3089
  %3091 = vmatmul.f32.gmra.mxu0 %v2629
  %v3092 = vpop.f32.mrf.mxu0
  %v3093 = vadd.f32 0.0, %v3092
  %3094 = vmatmul.f32.gmra.mxu0 %v2632
  %v3095 = vpop.f32.mrf.mxu0
  %v3096 = vadd.f32 0.0, %v3095
  %3097 = vmatmul.f32.gmra.mxu0 %v2635
  %v3098 = vpop.f32.mrf.mxu0
  %v3099 = vadd.f32 0.0, %v3098
  %3100 = vmatmul.f32.gmra.mxu0 %v2638
  %v3101 = vpop.f32.mrf.mxu0
  %v3102 = vadd.f32 0.0, %v3101
  %3103 = vmatmul.f32.gmra.mxu0 %v2641
  %v3104 = vpop.f32.mrf.mxu0
  %v3105 = vadd.f32 0.0, %v3104
  %3106 = vmatmul.f32.gmra.mxu0 %v2644
  %v3107 = vpop.f32.mrf.mxu0
  %v3108 = vadd.f32 0.0, %v3107
  %3109 = vmatmul.f32.gmra.mxu0 %v2647
  %v3110 = vpop.f32.mrf.mxu0
  %v3111 = vadd.f32 0.0, %v3110
  %3112 = vmatmul.f32.gmra.mxu0 %v2650
  %v3113 = vpop.f32.mrf.mxu0
  %v3114 = vadd.f32 0.0, %v3113
  %3115 = vmatmul.f32.gmra.mxu0 %v2653
  %v3116 = vpop.f32.mrf.mxu0
  %v3117 = vadd.f32 0.0, %v3116
  %3118 = vmatmul.f32.gmra.mxu0 %v2656
  %v3119 = vpop.f32.mrf.mxu0
  %v3120 = vadd.f32 0.0, %v3119
  %3121 = vmatmul.f32.gmra.mxu0 %v2659
  %v3122 = vpop.f32.mrf.mxu0
  %v3123 = vadd.f32 0.0, %v3122
  %3124 = vmatmul.f32.gmra.mxu0 %v2662
  %v3125 = vpop.f32.mrf.mxu0
  %v3126 = vadd.f32 0.0, %v3125
  %3127 = vmatmul.f32.gmra.mxu0 %v2665
  %v3128 = vpop.f32.mrf.mxu0
  %v3129 = vadd.f32 0.0, %v3128
  %3130 = vmatmul.f32.gmra.mxu0 %v2668
  %v3131 = vpop.f32.mrf.mxu0
  %v3132 = vadd.f32 0.0, %v3131
  %3133 = vmatmul.f32.gmra.mxu0 %v2671
  %v3134 = vpop.f32.mrf.mxu0
  %v3135 = vadd.f32 0.0, %v3134
  %3136 = vmatmul.f32.gmra.mxu0 %v2674
  %v3137 = vpop.f32.mrf.mxu0
  %v3138 = vadd.f32 0.0, %v3137
  %3139 = vmatmul.f32.gmra.mxu0 %v2677
  %v3140 = vpop.f32.mrf.mxu0
  %v3141 = vadd.f32 0.0, %v3140
  %3142 = vmatmul.f32.gmra.mxu0 %v2680
  %v3143 = vpop.f32.mrf.mxu0
  %v3144 = vadd.f32 0.0, %v3143
  %3145 = vmatmul.f32.gmra.mxu0 %v2683
  %v3146 = vpop.f32.mrf.mxu0
  %v3147 = vadd.f32 0.0, %v3146
  %3148 = vmatmul.f32.gmra.mxu0 %v2686
  %v3149 = vpop.f32.mrf.mxu0
  %v3150 = vadd.f32 0.0, %v3149
  %3151 = vmatmul.f32.gmra.mxu0 %v2689
  %v3152 = vpop.f32.mrf.mxu0
  %v3153 = vadd.f32 0.0, %v3152
  %3154 = vmatmul.f32.gmra.mxu0 %v2692
  %v3155 = vpop.f32.mrf.mxu0
  %v3156 = vadd.f32 0.0, %v3155
  %3157 = vmatmul.f32.gmra.mxu0 %v2695
  %v3158 = vpop.f32.mrf.mxu0
  %v3159 = vadd.f32 0.0, %v3158
  %3160 = vmatmul.f32.gmra.mxu0 %v2698
  %v3161 = vpop.f32.mrf.mxu0
  %v3162 = vadd.f32 0.0, %v3161
  %3163 = vmatmul.f32.gmra.mxu0 %v2701
  %v3164 = vpop.f32.mrf.mxu0
  %v3165 = vadd.f32 0.0, %v3164
  %3166 = vmatmul.f32.gmra.mxu0 %v2704
  %v3167 = vpop.f32.mrf.mxu0
  %v3168 = vadd.f32 0.0, %v3167
  %3169 = vmatmul.f32.gmra.mxu0 %v2707
  %v3170 = vpop.f32.mrf.mxu0
  %v3171 = vadd.f32 0.0, %v3170
  %3172 = vmatmul.f32.gmra.mxu0 %v2710
  %v3173 = vpop.f32.mrf.mxu0
  %v3174 = vadd.f32 0.0, %v3173
  %3175 = vmatmul.f32.gmra.mxu0 %v2713
  %v3176 = vpop.f32.mrf.mxu0
  %v3177 = vadd.f32 0.0, %v3176
  %3178 = vmatmul.f32.gmra.mxu0 %v2716
  %v3179 = vpop.f32.mrf.mxu0
  %v3180 = vadd.f32 0.0, %v3179
  %3181 = vdwg.mxu0
  %3182 = vmatpush.msra.mxu0 0.0
  %3183 = vmatpush.msra.mxu0 0.0
  %3184 = vmatpush.msra.mxu0 0.0
  %3185 = vmatpush.msra.mxu0 0.0
  %3186 = vmatpush.msra.mxu0 0.0
  %3187 = vmatpush.msra.mxu0 0.0
  %3188 = vmatpush.msra.mxu0 0.0
  %3189 = vmatpush.msra.mxu0 0.0
  %3190 = vmatpush.msra.mxu0 0.0
  %3191 = vmatpush.msra.mxu0 0.0
  %3192 = vmatpush.msra.mxu0 0.0
  %3193 = vmatpush.msra.mxu0 0.0
  %3194 = vmatpush.msra.mxu0 %v926
  %3195 = vmatpush.msra.mxu0 %v920
  %3196 = vmatpush.msra.mxu0 %v914
  %3197 = vmatpush.msra.mxu0 %v908
  %3198 = vmatmul.f32.gmra.mxu0 %v2620
  %v3199 = vpop.f32.mrf.mxu0
  %v3200 = vadd.f32 0.0, %v3199
  %3201 = vmatmul.f32.gmra.mxu0 %v2623
  %v3202 = vpop.f32.mrf.mxu0
  %v3203 = vadd.f32 0.0, %v3202
  %3204 = vmatmul.f32.gmra.mxu0 %v2626
  %v3205 = vpop.f32.mrf.mxu0
  %v3206 = vadd.f32 0.0, %v3205
  %3207 = vmatmul.f32.gmra.mxu0 %v2629
  %v3208 = vpop.f32.mrf.mxu0
  %v3209 = vadd.f32 0.0, %v3208
  %3210 = vmatmul.f32.gmra.mxu0 %v2632
  %v3211 = vpop.f32.mrf.mxu0
  %v3212 = vadd.f32 0.0, %v3211
  %3213 = vmatmul.f32.gmra.mxu0 %v2635
  %v3214 = vpop.f32.mrf.mxu0
  %v3215 = vadd.f32 0.0, %v3214
  %3216 = vmatmul.f32.gmra.mxu0 %v2638
  %v3217 = vpop.f32.mrf.mxu0
  %v3218 = vadd.f32 0.0, %v3217
  %3219 = vmatmul.f32.gmra.mxu0 %v2641
  %v3220 = vpop.f32.mrf.mxu0
  %v3221 = vadd.f32 0.0, %v3220
  %3222 = vmatmul.f32.gmra.mxu0 %v2644
  %v3223 = vpop.f32.mrf.mxu0
  %v3224 = vadd.f32 0.0, %v3223
  %3225 = vmatmul.f32.gmra.mxu0 %v2647
  %v3226 = vpop.f32.mrf.mxu0
  %v3227 = vadd.f32 0.0, %v3226
  %3228 = vmatmul.f32.gmra.mxu0 %v2650
  %v3229 = vpop.f32.mrf.mxu0
  %v3230 = vadd.f32 0.0, %v3229
  %3231 = vmatmul.f32.gmra.mxu0 %v2653
  %v3232 = vpop.f32.mrf.mxu0
  %v3233 = vadd.f32 0.0, %v3232
  %3234 = vmatmul.f32.gmra.mxu0 %v2656
  %v3235 = vpop.f32.mrf.mxu0
  %v3236 = vadd.f32 0.0, %v3235
  %3237 = vmatmul.f32.gmra.mxu0 %v2659
  %v3238 = vpop.f32.mrf.mxu0
  %v3239 = vadd.f32 0.0, %v3238
  %3240 = vmatmul.f32.gmra.mxu0 %v2662
  %v3241 = vpop.f32.mrf.mxu0
  %v3242 = vadd.f32 0.0, %v3241
  %3243 = vmatmul.f32.gmra.mxu0 %v2665
  %v3244 = vpop.f32.mrf.mxu0
  %v3245 = vadd.f32 0.0, %v3244
  %3246 = vmatmul.f32.gmra.mxu0 %v2668
  %v3247 = vpop.f32.mrf.mxu0
  %v3248 = vadd.f32 0.0, %v3247
  %3249 = vmatmul.f32.gmra.mxu0 %v2671
  %v3250 = vpop.f32.mrf.mxu0
  %v3251 = vadd.f32 0.0, %v3250
  %3252 = vmatmul.f32.gmra.mxu0 %v2674
  %v3253 = vpop.f32.mrf.mxu0
  %v3254 = vadd.f32 0.0, %v3253
  %3255 = vmatmul.f32.gmra.mxu0 %v2677
  %v3256 = vpop.f32.mrf.mxu0
  %v3257 = vadd.f32 0.0, %v3256
  %3258 = vmatmul.f32.gmra.mxu0 %v2680
  %v3259 = vpop.f32.mrf.mxu0
  %v3260 = vadd.f32 0.0, %v3259
  %3261 = vmatmul.f32.gmra.mxu0 %v2683
  %v3262 = vpop.f32.mrf.mxu0
  %v3263 = vadd.f32 0.0, %v3262
  %3264 = vmatmul.f32.gmra.mxu0 %v2686
  %v3265 = vpop.f32.mrf.mxu0
  %v3266 = vadd.f32 0.0, %v3265
  %3267 = vmatmul.f32.gmra.mxu0 %v2689
  %v3268 = vpop.f32.mrf.mxu0
  %v3269 = vadd.f32 0.0, %v3268
  %3270 = vmatmul.f32.gmra.mxu0 %v2692
  %v3271 = vpop.f32.mrf.mxu0
  %v3272 = vadd.f32 0.0, %v3271
  %3273 = vmatmul.f32.gmra.mxu0 %v2695
  %v3274 = vpop.f32.mrf.mxu0
  %v3275 = vadd.f32 0.0, %v3274
  %3276 = vmatmul.f32.gmra.mxu0 %v2698
  %v3277 = vpop.f32.mrf.mxu0
  %v3278 = vadd.f32 0.0, %v3277
  %3279 = vmatmul.f32.gmra.mxu0 %v2701
  %v3280 = vpop.f32.mrf.mxu0
  %v3281 = vadd.f32 0.0, %v3280
  %3282 = vmatmul.f32.gmra.mxu0 %v2704
  %v3283 = vpop.f32.mrf.mxu0
  %v3284 = vadd.f32 0.0, %v3283
  %3285 = vmatmul.f32.gmra.mxu0 %v2707
  %v3286 = vpop.f32.mrf.mxu0
  %v3287 = vadd.f32 0.0, %v3286
  %3288 = vmatmul.f32.gmra.mxu0 %v2710
  %v3289 = vpop.f32.mrf.mxu0
  %v3290 = vadd.f32 0.0, %v3289
  %3291 = vmatmul.f32.gmra.mxu0 %v2713
  %v3292 = vpop.f32.mrf.mxu0
  %v3293 = vadd.f32 0.0, %v3292
  %3294 = vmatmul.f32.gmra.mxu0 %v2716
  %v3295 = vpop.f32.mrf.mxu0
  %v3296 = vadd.f32 0.0, %v3295
  %3297 = vdwg.mxu0
  %3298 = vmatpush.msra.mxu0 0.0
  %3299 = vmatpush.msra.mxu0 0.0
  %3300 = vmatpush.msra.mxu0 0.0
  %3301 = vmatpush.msra.mxu0 0.0
  %3302 = vmatpush.msra.mxu0 0.0
  %3303 = vmatpush.msra.mxu0 0.0
  %3304 = vmatpush.msra.mxu0 0.0
  %3305 = vmatpush.msra.mxu0 0.0
  %3306 = vmatpush.msra.mxu0 0.0
  %3307 = vmatpush.msra.mxu0 0.0
  %3308 = vmatpush.msra.mxu0 0.0
  %3309 = vmatpush.msra.mxu0 0.0
  %3310 = vmatpush.msra.mxu0 %v927
  %3311 = vmatpush.msra.mxu0 %v921
  %3312 = vmatpush.msra.mxu0 %v915
  %3313 = vmatpush.msra.mxu0 %v909
  %3314 = vmatmul.f32.gmra.mxu0 %v2620
  %v3315 = vpop.f32.mrf.mxu0
  %v3316 = vadd.f32 0.0, %v3315
  %3317 = vmatmul.f32.gmra.mxu0 %v2623
  %v3318 = vpop.f32.mrf.mxu0
  %v3319 = vadd.f32 0.0, %v3318
  %3320 = vmatmul.f32.gmra.mxu0 %v2626
  %v3321 = vpop.f32.mrf.mxu0
  %v3322 = vadd.f32 0.0, %v3321
  %3323 = vmatmul.f32.gmra.mxu0 %v2629
  %v3324 = vpop.f32.mrf.mxu0
  %v3325 = vadd.f32 0.0, %v3324
  %3326 = vmatmul.f32.gmra.mxu0 %v2632
  %v3327 = vpop.f32.mrf.mxu0
  %v3328 = vadd.f32 0.0, %v3327
  %3329 = vmatmul.f32.gmra.mxu0 %v2635
  %v3330 = vpop.f32.mrf.mxu0
  %v3331 = vadd.f32 0.0, %v3330
  %3332 = vmatmul.f32.gmra.mxu0 %v2638
  %v3333 = vpop.f32.mrf.mxu0
  %v3334 = vadd.f32 0.0, %v3333
  %3335 = vmatmul.f32.gmra.mxu0 %v2641
  %v3336 = vpop.f32.mrf.mxu0
  %v3337 = vadd.f32 0.0, %v3336
  %3338 = vmatmul.f32.gmra.mxu0 %v2644
  %v3339 = vpop.f32.mrf.mxu0
  %v3340 = vadd.f32 0.0, %v3339
  %3341 = vmatmul.f32.gmra.mxu0 %v2647
  %v3342 = vpop.f32.mrf.mxu0
  %v3343 = vadd.f32 0.0, %v3342
  %3344 = vmatmul.f32.gmra.mxu0 %v2650
  %v3345 = vpop.f32.mrf.mxu0
  %v3346 = vadd.f32 0.0, %v3345
  %3347 = vmatmul.f32.gmra.mxu0 %v2653
  %v3348 = vpop.f32.mrf.mxu0
  %v3349 = vadd.f32 0.0, %v3348
  %3350 = vmatmul.f32.gmra.mxu0 %v2656
  %v3351 = vpop.f32.mrf.mxu0
  %v3352 = vadd.f32 0.0, %v3351
  %3353 = vmatmul.f32.gmra.mxu0 %v2659
  %v3354 = vpop.f32.mrf.mxu0
  %v3355 = vadd.f32 0.0, %v3354
  %3356 = vmatmul.f32.gmra.mxu0 %v2662
  %v3357 = vpop.f32.mrf.mxu0
  %v3358 = vadd.f32 0.0, %v3357
  %3359 = vmatmul.f32.gmra.mxu0 %v2665
  %v3360 = vpop.f32.mrf.mxu0
  %v3361 = vadd.f32 0.0, %v3360
  %3362 = vmatmul.f32.gmra.mxu0 %v2668
  %v3363 = vpop.f32.mrf.mxu0
  %v3364 = vadd.f32 0.0, %v3363
  %3365 = vmatmul.f32.gmra.mxu0 %v2671
  %v3366 = vpop.f32.mrf.mxu0
  %v3367 = vadd.f32 0.0, %v3366
  %3368 = vmatmul.f32.gmra.mxu0 %v2674
  %v3369 = vpop.f32.mrf.mxu0
  %v3370 = vadd.f32 0.0, %v3369
  %3371 = vmatmul.f32.gmra.mxu0 %v2677
  %v3372 = vpop.f32.mrf.mxu0
  %v3373 = vadd.f32 0.0, %v3372
  %3374 = vmatmul.f32.gmra.mxu0 %v2680
  %v3375 = vpop.f32.mrf.mxu0
  %v3376 = vadd.f32 0.0, %v3375
  %3377 = vmatmul.f32.gmra.mxu0 %v2683
  %v3378 = vpop.f32.mrf.mxu0
  %v3379 = vadd.f32 0.0, %v3378
  %3380 = vmatmul.f32.gmra.mxu0 %v2686
  %v3381 = vpop.f32.mrf.mxu0
  %v3382 = vadd.f32 0.0, %v3381
  %3383 = vmatmul.f32.gmra.mxu0 %v2689
  %v3384 = vpop.f32.mrf.mxu0
  %v3385 = vadd.f32 0.0, %v3384
  %3386 = vmatmul.f32.gmra.mxu0 %v2692
  %v3387 = vpop.f32.mrf.mxu0
  %v3388 = vadd.f32 0.0, %v3387
  %3389 = vmatmul.f32.gmra.mxu0 %v2695
  %v3390 = vpop.f32.mrf.mxu0
  %v3391 = vadd.f32 0.0, %v3390
  %3392 = vmatmul.f32.gmra.mxu0 %v2698
  %v3393 = vpop.f32.mrf.mxu0
  %v3394 = vadd.f32 0.0, %v3393
  %3395 = vmatmul.f32.gmra.mxu0 %v2701
  %v3396 = vpop.f32.mrf.mxu0
  %v3397 = vadd.f32 0.0, %v3396
  %3398 = vmatmul.f32.gmra.mxu0 %v2704
  %v3399 = vpop.f32.mrf.mxu0
  %v3400 = vadd.f32 0.0, %v3399
  %3401 = vmatmul.f32.gmra.mxu0 %v2707
  %v3402 = vpop.f32.mrf.mxu0
  %v3403 = vadd.f32 0.0, %v3402
  %3404 = vmatmul.f32.gmra.mxu0 %v2710
  %v3405 = vpop.f32.mrf.mxu0
  %v3406 = vadd.f32 0.0, %v3405
  %3407 = vmatmul.f32.gmra.mxu0 %v2713
  %v3408 = vpop.f32.mrf.mxu0
  %v3409 = vadd.f32 0.0, %v3408
  %3410 = vmatmul.f32.gmra.mxu0 %v2716
  %v3411 = vpop.f32.mrf.mxu0
  %v3412 = vadd.f32 0.0, %v3411
  %3413 = vdwg.mxu0
  %v3414 = vmul.f32 %v2736, %v647
  %v3415 = vmul.f32 %v2852, %v648
  %v3416 = vmul.f32 %v2968, %v649
  %v3417 = vmul.f32 %v3084, %v650
  %v3418 = vmul.f32 %v3200, %v651
  %v3419 = vmul.f32 %v3316, %v652
  %v3420 = vmul.f32 %v2739, %v653
  %v3421 = vmul.f32 %v2855, %v654
  %v3422 = vmul.f32 %v2971, %v655
  %v3423 = vmul.f32 %v3087, %v656
  %v3424 = vmul.f32 %v3203, %v657
  %v3425 = vmul.f32 %v3319, %v658
  %v3426 = vmul.f32 %v2742, %v659
  %v3427 = vmul.f32 %v2858, %v660
  %v3428 = vmul.f32 %v2974, %v661
  %v3429 = vmul.f32 %v3090, %v662
  %v3430 = vmul.f32 %v3206, %v663
  %v3431 = vmul.f32 %v3322, %v664
  %v3432 = vmul.f32 %v2745, %v665
  %v3433 = vmul.f32 %v2861, %v666
  %v3434 = vmul.f32 %v2977, %v667
  %v3435 = vmul.f32 %v3093, %v668
  %v3436 = vmul.f32 %v3209, %v669
  %v3437 = vmul.f32 %v3325, %v670
  %v3438 = vmul.f32 %v2748, %v671
  %v3439 = vmul.f32 %v2864, %v672
  %v3440 = vmul.f32 %v2980, %v673
  %v3441 = vmul.f32 %v3096, %v674
  %v3442 = vmul.f32 %v3212, %v675
  %v3443 = vmul.f32 %v3328, %v676
  %v3444 = vmul.f32 %v2751, %v677
  %v3445 = vmul.f32 %v2867, %v678
  %v3446 = vmul.f32 %v2983, %v679
  %v3447 = vmul.f32 %v3099, %v680
  %v3448 = vmul.f32 %v3215, %v681
  %v3449 = vmul.f32 %v3331, %v682
  %v3450 = vmul.f32 %v2754, %v683
  %v3451 = vmul.f32 %v2870, %v684
  %v3452 = vmul.f32 %v2986, %v685
  %v3453 = vmul.f32 %v3102, %v686
  %v3454 = vmul.f32 %v3218, %v687
  %v3455 = vmul.f32 %v3334, %v688
  %v3456 = vmul.f32 %v2757, %v689
  %v3457 = vmul.f32 %v2873, %v690
  %v3458 = vmul.f32 %v2989, %v691
  %v3459 = vmul.f32 %v3105, %v692
  %v3460 = vmul.f32 %v3221, %v693
  %v3461 = vmul.f32 %v3337, %v694
  %v3462 = vmul.f32 %v2760, %v695
  %v3463 = vmul.f32 %v2876, %v696
  %v3464 = vmul.f32 %v2992, %v697
  %v3465 = vmul.f32 %v3108, %v698
  %v3466 = vmul.f32 %v3224, %v699
  %v3467 = vmul.f32 %v3340, %v700
  %v3468 = vmul.f32 %v2763, %v701
  %v3469 = vmul.f32 %v2879, %v702
  %v3470 = vmul.f32 %v2995, %v703
  %v3471 = vmul.f32 %v3111, %v704
  %v3472 = vmul.f32 %v3227, %v705
  %v3473 = vmul.f32 %v3343, %v706
  %v3474 = vmul.f32 %v2766, %v707
  %v3475 = vmul.f32 %v2882, %v708
  %v3476 = vmul.f32 %v2998, %v709
  %v3477 = vmul.f32 %v3114, %v710
  %v3478 = vmul.f32 %v3230, %v711
  %v3479 = vmul.f32 %v3346, %v712
  %v3480 = vmul.f32 %v2769, %v713
  %v3481 = vmul.f32 %v2885, %v714
  %v3482 = vmul.f32 %v3001, %v715
  %v3483 = vmul.f32 %v3117, %v716
  %v3484 = vmul.f32 %v3233, %v717
  %v3485 = vmul.f32 %v3349, %v718
  %v3486 = vmul.f32 %v2772, %v719
  %v3487 = vmul.f32 %v2888, %v720
  %v3488 = vmul.f32 %v3004, %v721
  %v3489 = vmul.f32 %v3120, %v722
  %v3490 = vmul.f32 %v3236, %v723
  %v3491 = vmul.f32 %v3352, %v724
  %v3492 = vmul.f32 %v2775, %v725
  %v3493 = vmul.f32 %v2891, %v726
  %v3494 = vmul.f32 %v3007, %v727
  %v3495 = vmul.f32 %v3123, %v728
  %v3496 = vmul.f32 %v3239, %v729
  %v3497 = vmul.f32 %v3355, %v730
  %v3498 = vmul.f32 %v2778, %v731
  %v3499 = vmul.f32 %v2894, %v732
  %v3500 = vmul.f32 %v3010, %v733
  %v3501 = vmul.f32 %v3126, %v734
  %v3502 = vmul.f32 %v3242, %v735
  %v3503 = vmul.f32 %v3358, %v736
  %v3504 = vmul.f32 %v2781, %v737
  %v3505 = vmul.f32 %v2897, %v738
  %v3506 = vmul.f32 %v3013, %v739
  %v3507 = vmul.f32 %v3129, %v740
  %v3508 = vmul.f32 %v3245, %v741
  %v3509 = vmul.f32 %v3361, %v742
  %v3510 = vmul.f32 %v2784, %v743
  %v3511 = vmul.f32 %v2900, %v744
  %v3512 = vmul.f32 %v3016, %v745
  %v3513 = vmul.f32 %v3132, %v746
  %v3514 = vmul.f32 %v3248, %v747
  %v3515 = vmul.f32 %v3364, %v748
  %v3516 = vmul.f32 %v2787, %v749
  %v3517 = vmul.f32 %v2903, %v750
  %v3518 = vmul.f32 %v3019, %v751
  %v3519 = vmul.f32 %v3135, %v752
  %v3520 = vmul.f32 %v3251, %v753
  %v3521 = vmul.f32 %v3367, %v754
  %v3522 = vmul.f32 %v2790, %v755
  %v3523 = vmul.f32 %v2906, %v756
  %v3524 = vmul.f32 %v3022, %v757
  %v3525 = vmul.f32 %v3138, %v758
  %v3526 = vmul.f32 %v3254, %v759
  %v3527 = vmul.f32 %v3370, %v760
  %v3528 = vmul.f32 %v2793, %v761
  %v3529 = vmul.f32 %v2909, %v762
  %v3530 = vmul.f32 %v3025, %v763
  %v3531 = vmul.f32 %v3141, %v764
  %v3532 = vmul.f32 %v3257, %v765
  %v3533 = vmul.f32 %v3373, %v766
  %v3534 = vmul.f32 %v2796, %v767
  %v3535 = vmul.f32 %v2912, %v768
  %v3536 = vmul.f32 %v3028, %v769
  %v3537 = vmul.f32 %v3144, %v770
  %v3538 = vmul.f32 %v3260, %v771
  %v3539 = vmul.f32 %v3376, %v772
  %v3540 = vmul.f32 %v2799, %v773
  %v3541 = vmul.f32 %v2915, %v774
  %v3542 = vmul.f32 %v3031, %v775
  %v3543 = vmul.f32 %v3147, %v776
  %v3544 = vmul.f32 %v3263, %v777
  %v3545 = vmul.f32 %v3379, %v778
  %v3546 = vmul.f32 %v2802, %v779
  %v3547 = vmul.f32 %v2918, %v780
  %v3548 = vmul.f32 %v3034, %v781
  %v3549 = vmul.f32 %v3150, %v782
  %v3550 = vmul.f32 %v3266, %v783
  %v3551 = vmul.f32 %v3382, %v784
  %v3552 = vmul.f32 %v2805, %v785
  %v3553 = vmul.f32 %v2921, %v786
  %v3554 = vmul.f32 %v3037, %v787
  %v3555 = vmul.f32 %v3153, %v788
  %v3556 = vmul.f32 %v3269, %v789
  %v3557 = vmul.f32 %v3385, %v790
  %v3558 = vmul.f32 %v2808, %v791
  %v3559 = vmul.f32 %v2924, %v792
  %v3560 = vmul.f32 %v3040, %v793
  %v3561 = vmul.f32 %v3156, %v794
  %v3562 = vmul.f32 %v3272, %v795
  %v3563 = vmul.f32 %v3388, %v796
  %v3564 = vmul.f32 %v2811, %v797
  %v3565 = vmul.f32 %v2927, %v798
  %v3566 = vmul.f32 %v3043, %v799
  %v3567 = vmul.f32 %v3159, %v800
  %v3568 = vmul.f32 %v3275, %v801
  %v3569 = vmul.f32 %v3391, %v802
  %v3570 = vmul.f32 %v2814, %v803
  %v3571 = vmul.f32 %v2930, %v804
  %v3572 = vmul.f32 %v3046, %v805
  %v3573 = vmul.f32 %v3162, %v806
  %v3574 = vmul.f32 %v3278, %v807
  %v3575 = vmul.f32 %v3394, %v808
  %v3576 = vmul.f32 %v2817, %v809
  %v3577 = vmul.f32 %v2933, %v810
  %v3578 = vmul.f32 %v3049, %v811
  %v3579 = vmul.f32 %v3165, %v812
  %v3580 = vmul.f32 %v3281, %v813
  %v3581 = vmul.f32 %v3397, %v814
  %v3582 = vmul.f32 %v2820, %v815
  %v3583 = vmul.f32 %v2936, %v816
  %v3584 = vmul.f32 %v3052, %v817
  %v3585 = vmul.f32 %v3168, %v818
  %v3586 = vmul.f32 %v3284, %v819
  %v3587 = vmul.f32 %v3400, %v820
  %v3588 = vmul.f32 %v2823, %v821
  %v3589 = vmul.f32 %v2939, %v822
  %v3590 = vmul.f32 %v3055, %v823
  %v3591 = vmul.f32 %v3171, %v824
  %v3592 = vmul.f32 %v3287, %v825
  %v3593 = vmul.f32 %v3403, %v826
  %v3594 = vmul.f32 %v2826, %v827
  %v3595 = vmul.f32 %v2942, %v828
  %v3596 = vmul.f32 %v3058, %v829
  %v3597 = vmul.f32 %v3174, %v830
  %v3598 = vmul.f32 %v3290, %v831
  %v3599 = vmul.f32 %v3406, %v832
  %v3600 = vmul.f32 %v2829, %v833
  %v3601 = vmul.f32 %v2945, %v834
  %v3602 = vmul.f32 %v3061, %v835
  %v3603 = vmul.f32 %v3177, %v836
  %v3604 = vmul.f32 %v3293, %v837
  %v3605 = vmul.f32 %v3409, %v838
  %v3606 = vmul.f32 %v2832, %v839
  %v3607 = vmul.f32 %v2948, %v840
  %v3608 = vmul.f32 %v3064, %v841
  %v3609 = vmul.f32 %v3180, %v842
  %v3610 = vmul.f32 %v3296, %v843
  %v3611 = vmul.f32 %v3412, %v844
  %v3612 = vld [vmem:[%s6] sm:$0xff]
  %v3613 = vld [vmem:[%s6 + $0x8] sm:$0xff]
  %v3614 = vld [vmem:[%s6 + $0x10] sm:$0xff]
  %v3615 = vld [vmem:[%s6 + $0x18] sm:$0xff]
  %3616 = vxpose.xlu0.b32.start [1/16] %v3414, 128
  %3617 = vxpose.xlu0.b32.cont [2/16] %v3420, 128
  %3618 = vxpose.xlu0.b32.cont [3/16] %v3426, 128
  %3619 = vxpose.xlu0.b32.cont [4/16] %v3432, 128
  %3620 = vxpose.xlu0.b32.cont [5/16] %v3438, 128
  %3621 = vxpose.xlu0.b32.cont [6/16] %v3444, 128
  %3622 = vxpose.xlu0.b32.cont [7/16] %v3450, 128
  %3623 = vxpose.xlu0.b32.cont [8/16] %v3456, 128
  %3624 = vxpose.xlu0.b32.cont [9/16] %v3462, 128
  %3625 = vxpose.xlu0.b32.cont [10/16] %v3468, 128
  %3626 = vxpose.xlu0.b32.cont [11/16] %v3474, 128
  %3627 = vxpose.xlu0.b32.cont [12/16] %v3480, 128
  %3628 = vxpose.xlu0.b32.cont [13/16] %v3486, 128
  %3629 = vxpose.xlu0.b32.cont [14/16] %v3492, 128
  %3630 = vxpose.xlu0.b32.cont [15/16] %v3498, 128
  %3631 = vxpose.xlu0.b32.end [16/16] %v3504, 128
  %v3632 = vpop.trf.xlu0
  %v3633 = vpop.trf.xlu0
  %v3634 = vpop.trf.xlu0
  %v3635 = vpop.trf.xlu0
  %v3636 = vpop.trf.xlu0
  %v3637 = vpop.trf.xlu0
  %v3638 = vpop.trf.xlu0
  %v3639 = vpop.trf.xlu0
  %v3640 = vpop.trf.xlu0
  %v3641 = vpop.trf.xlu0
  %v3642 = vpop.trf.xlu0
  %v3643 = vpop.trf.xlu0
  %v3644 = vpop.trf.xlu0
  %v3645 = vpop.trf.xlu0
  %v3646 = vpop.trf.xlu0
  %v3647 = vpop.trf.xlu0
  %3648 = vxpose.xlu0.b32.start [1/16] %v3415, 128
  %3649 = vxpose.xlu0.b32.cont [2/16] %v3421, 128
  %3650 = vxpose.xlu0.b32.cont [3/16] %v3427, 128
  %3651 = vxpose.xlu0.b32.cont [4/16] %v3433, 128
  %3652 = vxpose.xlu0.b32.cont [5/16] %v3439, 128
  %3653 = vxpose.xlu0.b32.cont [6/16] %v3445, 128
  %3654 = vxpose.xlu0.b32.cont [7/16] %v3451, 128
  %3655 = vxpose.xlu0.b32.cont [8/16] %v3457, 128
  %3656 = vxpose.xlu0.b32.cont [9/16] %v3463, 128
  %3657 = vxpose.xlu0.b32.cont [10/16] %v3469, 128
  %3658 = vxpose.xlu0.b32.cont [11/16] %v3475, 128
  %3659 = vxpose.xlu0.b32.cont [12/16] %v3481, 128
  %3660 = vxpose.xlu0.b32.cont [13/16] %v3487, 128
  %3661 = vxpose.xlu0.b32.cont [14/16] %v3493, 128
  %3662 = vxpose.xlu0.b32.cont [15/16] %v3499, 128
  %3663 = vxpose.xlu0.b32.end [16/16] %v3505, 128
  %v3664 = vpop.trf.xlu0
  %v3665 = vpop.trf.xlu0
  %v3666 = vpop.trf.xlu0
  %v3667 = vpop.trf.xlu0
  %v3668 = vpop.trf.xlu0
  %v3669 = vpop.trf.xlu0
  %v3670 = vpop.trf.xlu0
  %v3671 = vpop.trf.xlu0
  %v3672 = vpop.trf.xlu0
  %v3673 = vpop.trf.xlu0
  %v3674 = vpop.trf.xlu0
  %v3675 = vpop.trf.xlu0
  %v3676 = vpop.trf.xlu0
  %v3677 = vpop.trf.xlu0
  %v3678 = vpop.trf.xlu0
  %v3679 = vpop.trf.xlu0
  %3680 = vxpose.xlu0.b32.start [1/16] %v3416, 128
  %3681 = vxpose.xlu0.b32.cont [2/16] %v3422, 128
  %3682 = vxpose.xlu0.b32.cont [3/16] %v3428, 128
  %3683 = vxpose.xlu0.b32.cont [4/16] %v3434, 128
  %3684 = vxpose.xlu0.b32.cont [5/16] %v3440, 128
  %3685 = vxpose.xlu0.b32.cont [6/16] %v3446, 128
  %3686 = vxpose.xlu0.b32.cont [7/16] %v3452, 128
  %3687 = vxpose.xlu0.b32.cont [8/16] %v3458, 128
  %3688 = vxpose.xlu0.b32.cont [9/16] %v3464, 128
  %3689 = vxpose.xlu0.b32.cont [10/16] %v3470, 128
  %3690 = vxpose.xlu0.b32.cont [11/16] %v3476, 128
  %3691 = vxpose.xlu0.b32.cont [12/16] %v3482, 128
  %3692 = vxpose.xlu0.b32.cont [13/16] %v3488, 128
  %3693 = vxpose.xlu0.b32.cont [14/16] %v3494, 128
  %3694 = vxpose.xlu0.b32.cont [15/16] %v3500, 128
  %3695 = vxpose.xlu0.b32.end [16/16] %v3506, 128
  %v3696 = vpop.trf.xlu0
  %v3697 = vpop.trf.xlu0
  %v3698 = vpop.trf.xlu0
  %v3699 = vpop.trf.xlu0
  %v3700 = vpop.trf.xlu0
  %v3701 = vpop.trf.xlu0
  %v3702 = vpop.trf.xlu0
  %v3703 = vpop.trf.xlu0
  %v3704 = vpop.trf.xlu0
  %v3705 = vpop.trf.xlu0
  %v3706 = vpop.trf.xlu0
  %v3707 = vpop.trf.xlu0
  %v3708 = vpop.trf.xlu0
  %v3709 = vpop.trf.xlu0
  %v3710 = vpop.trf.xlu0
  %v3711 = vpop.trf.xlu0
  %3712 = vxpose.xlu0.b32.start [1/16] %v3417, 128
  %3713 = vxpose.xlu0.b32.cont [2/16] %v3423, 128
  %3714 = vxpose.xlu0.b32.cont [3/16] %v3429, 128
  %3715 = vxpose.xlu0.b32.cont [4/16] %v3435, 128
  %3716 = vxpose.xlu0.b32.cont [5/16] %v3441, 128
  %3717 = vxpose.xlu0.b32.cont [6/16] %v3447, 128
  %3718 = vxpose.xlu0.b32.cont [7/16] %v3453, 128
  %3719 = vxpose.xlu0.b32.cont [8/16] %v3459, 128
  %3720 = vxpose.xlu0.b32.cont [9/16] %v3465, 128
  %3721 = vxpose.xlu0.b32.cont [10/16] %v3471, 128
  %3722 = vxpose.xlu0.b32.cont [11/16] %v3477, 128
  %3723 = vxpose.xlu0.b32.cont [12/16] %v3483, 128
  %3724 = vxpose.xlu0.b32.cont [13/16] %v3489, 128
  %3725 = vxpose.xlu0.b32.cont [14/16] %v3495, 128
  %3726 = vxpose.xlu0.b32.cont [15/16] %v3501, 128
  %3727 = vxpose.xlu0.b32.end [16/16] %v3507, 128
  %v3728 = vpop.trf.xlu0
  %v3729 = vpop.trf.xlu0
  %v3730 = vpop.trf.xlu0
  %v3731 = vpop.trf.xlu0
  %v3732 = vpop.trf.xlu0
  %v3733 = vpop.trf.xlu0
  %v3734 = vpop.trf.xlu0
  %v3735 = vpop.trf.xlu0
  %v3736 = vpop.trf.xlu0
  %v3737 = vpop.trf.xlu0
  %v3738 = vpop.trf.xlu0
  %v3739 = vpop.trf.xlu0
  %v3740 = vpop.trf.xlu0
  %v3741 = vpop.trf.xlu0
  %v3742 = vpop.trf.xlu0
  %v3743 = vpop.trf.xlu0
  %3744 = vxpose.xlu0.b32.start [1/16] %v3418, 128
  %3745 = vxpose.xlu0.b32.cont [2/16] %v3424, 128
  %3746 = vxpose.xlu0.b32.cont [3/16] %v3430, 128
  %3747 = vxpose.xlu0.b32.cont [4/16] %v3436, 128
  %3748 = vxpose.xlu0.b32.cont [5/16] %v3442, 128
  %3749 = vxpose.xlu0.b32.cont [6/16] %v3448, 128
  %3750 = vxpose.xlu0.b32.cont [7/16] %v3454, 128
  %3751 = vxpose.xlu0.b32.cont [8/16] %v3460, 128
  %3752 = vxpose.xlu0.b32.cont [9/16] %v3466, 128
  %3753 = vxpose.xlu0.b32.cont [10/16] %v3472, 128
  %3754 = vxpose.xlu0.b32.cont [11/16] %v3478, 128
  %3755 = vxpose.xlu0.b32.cont [12/16] %v3484, 128
  %3756 = vxpose.xlu0.b32.cont [13/16] %v3490, 128
  %3757 = vxpose.xlu0.b32.cont [14/16] %v3496, 128
  %3758 = vxpose.xlu0.b32.cont [15/16] %v3502, 128
  %3759 = vxpose.xlu0.b32.end [16/16] %v3508, 128
  %v3760 = vpop.trf.xlu0
  %v3761 = vpop.trf.xlu0
  %v3762 = vpop.trf.xlu0
  %v3763 = vpop.trf.xlu0
  %v3764 = vpop.trf.xlu0
  %v3765 = vpop.trf.xlu0
  %v3766 = vpop.trf.xlu0
  %v3767 = vpop.trf.xlu0
  %v3768 = vpop.trf.xlu0
  %v3769 = vpop.trf.xlu0
  %v3770 = vpop.trf.xlu0
  %v3771 = vpop.trf.xlu0
  %v3772 = vpop.trf.xlu0
  %v3773 = vpop.trf.xlu0
  %v3774 = vpop.trf.xlu0
  %v3775 = vpop.trf.xlu0
  %3776 = vxpose.xlu0.b32.start [1/16] %v3419, 128
  %3777 = vxpose.xlu0.b32.cont [2/16] %v3425, 128
  %3778 = vxpose.xlu0.b32.cont [3/16] %v3431, 128
  %3779 = vxpose.xlu0.b32.cont [4/16] %v3437, 128
  %3780 = vxpose.xlu0.b32.cont [5/16] %v3443, 128
  %3781 = vxpose.xlu0.b32.cont [6/16] %v3449, 128
  %3782 = vxpose.xlu0.b32.cont [7/16] %v3455, 128
  %3783 = vxpose.xlu0.b32.cont [8/16] %v3461, 128
  %3784 = vxpose.xlu0.b32.cont [9/16] %v3467, 128
  %3785 = vxpose.xlu0.b32.cont [10/16] %v3473, 128
  %3786 = vxpose.xlu0.b32.cont [11/16] %v3479, 128
  %3787 = vxpose.xlu0.b32.cont [12/16] %v3485, 128
  %3788 = vxpose.xlu0.b32.cont [13/16] %v3491, 128
  %3789 = vxpose.xlu0.b32.cont [14/16] %v3497, 128
  %3790 = vxpose.xlu0.b32.cont [15/16] %v3503, 128
  %3791 = vxpose.xlu0.b32.end [16/16] %v3509, 128
  %v3792 = vpop.trf.xlu0
  %v3793 = vpop.trf.xlu0
  %v3794 = vpop.trf.xlu0
  %v3795 = vpop.trf.xlu0
  %v3796 = vpop.trf.xlu0
  %v3797 = vpop.trf.xlu0
  %v3798 = vpop.trf.xlu0
  %v3799 = vpop.trf.xlu0
  %v3800 = vpop.trf.xlu0
  %v3801 = vpop.trf.xlu0
  %v3802 = vpop.trf.xlu0
  %v3803 = vpop.trf.xlu0
  %v3804 = vpop.trf.xlu0
  %v3805 = vpop.trf.xlu0
  %v3806 = vpop.trf.xlu0
  %v3807 = vpop.trf.xlu0
  %3808 = vxpose.xlu0.b32.start [1/16] %v3510, 128
  %3809 = vxpose.xlu0.b32.cont [2/16] %v3516, 128
  %3810 = vxpose.xlu0.b32.cont [3/16] %v3522, 128
  %3811 = vxpose.xlu0.b32.cont [4/16] %v3528, 128
  %3812 = vxpose.xlu0.b32.cont [5/16] %v3534, 128
  %3813 = vxpose.xlu0.b32.cont [6/16] %v3540, 128
  %3814 = vxpose.xlu0.b32.cont [7/16] %v3546, 128
  %3815 = vxpose.xlu0.b32.cont [8/16] %v3552, 128
  %3816 = vxpose.xlu0.b32.cont [9/16] %v3558, 128
  %3817 = vxpose.xlu0.b32.cont [10/16] %v3564, 128
  %3818 = vxpose.xlu0.b32.cont [11/16] %v3570, 128
  %3819 = vxpose.xlu0.b32.cont [12/16] %v3576, 128
  %3820 = vxpose.xlu0.b32.cont [13/16] %v3582, 128
  %3821 = vxpose.xlu0.b32.cont [14/16] %v3588, 128
  %3822 = vxpose.xlu0.b32.cont [15/16] %v3594, 128
  %3823 = vxpose.xlu0.b32.end [16/16] %v3600, 128
  %v3824 = vpop.trf.xlu0
  %v3825 = vpop.trf.xlu0
  %v3826 = vpop.trf.xlu0
  %v3827 = vpop.trf.xlu0
  %v3828 = vpop.trf.xlu0
  %v3829 = vpop.trf.xlu0
  %v3830 = vpop.trf.xlu0
  %v3831 = vpop.trf.xlu0
  %v3832 = vpop.trf.xlu0
  %v3833 = vpop.trf.xlu0
  %v3834 = vpop.trf.xlu0
  %v3835 = vpop.trf.xlu0
  %v3836 = vpop.trf.xlu0
  %v3837 = vpop.trf.xlu0
  %v3838 = vpop.trf.xlu0
  %v3839 = vpop.trf.xlu0
  %3840 = vxpose.xlu0.b32.start [1/16] %v3511, 128
  %3841 = vxpose.xlu0.b32.cont [2/16] %v3517, 128
  %3842 = vxpose.xlu0.b32.cont [3/16] %v3523, 128
  %3843 = vxpose.xlu0.b32.cont [4/16] %v3529, 128
  %3844 = vxpose.xlu0.b32.cont [5/16] %v3535, 128
  %3845 = vxpose.xlu0.b32.cont [6/16] %v3541, 128
  %3846 = vxpose.xlu0.b32.cont [7/16] %v3547, 128
  %3847 = vxpose.xlu0.b32.cont [8/16] %v3553, 128
  %3848 = vxpose.xlu0.b32.cont [9/16] %v3559, 128
  %3849 = vxpose.xlu0.b32.cont [10/16] %v3565, 128
  %3850 = vxpose.xlu0.b32.cont [11/16] %v3571, 128
  %3851 = vxpose.xlu0.b32.cont [12/16] %v3577, 128
  %3852 = vxpose.xlu0.b32.cont [13/16] %v3583, 128
  %3853 = vxpose.xlu0.b32.cont [14/16] %v3589, 128
  %3854 = vxpose.xlu0.b32.cont [15/16] %v3595, 128
  %3855 = vxpose.xlu0.b32.end [16/16] %v3601, 128
  %v3856 = vpop.trf.xlu0
  %v3857 = vpop.trf.xlu0
  %v3858 = vpop.trf.xlu0
  %v3859 = vpop.trf.xlu0
  %v3860 = vpop.trf.xlu0
  %v3861 = vpop.trf.xlu0
  %v3862 = vpop.trf.xlu0
  %v3863 = vpop.trf.xlu0
  %v3864 = vpop.trf.xlu0
  %v3865 = vpop.trf.xlu0
  %v3866 = vpop.trf.xlu0
  %v3867 = vpop.trf.xlu0
  %v3868 = vpop.trf.xlu0
  %v3869 = vpop.trf.xlu0
  %v3870 = vpop.trf.xlu0
  %v3871 = vpop.trf.xlu0
  %3872 = vxpose.xlu0.b32.start [1/16] %v3512, 128
  %3873 = vxpose.xlu0.b32.cont [2/16] %v3518, 128
  %3874 = vxpose.xlu0.b32.cont [3/16] %v3524, 128
  %3875 = vxpose.xlu0.b32.cont [4/16] %v3530, 128
  %3876 = vxpose.xlu0.b32.cont [5/16] %v3536, 128
  %3877 = vxpose.xlu0.b32.cont [6/16] %v3542, 128
  %3878 = vxpose.xlu0.b32.cont [7/16] %v3548, 128
  %3879 = vxpose.xlu0.b32.cont [8/16] %v3554, 128
  %3880 = vxpose.xlu0.b32.cont [9/16] %v3560, 128
  %3881 = vxpose.xlu0.b32.cont [10/16] %v3566, 128
  %3882 = vxpose.xlu0.b32.cont [11/16] %v3572, 128
  %3883 = vxpose.xlu0.b32.cont [12/16] %v3578, 128
  %3884 = vxpose.xlu0.b32.cont [13/16] %v3584, 128
  %3885 = vxpose.xlu0.b32.cont [14/16] %v3590, 128
  %3886 = vxpose.xlu0.b32.cont [15/16] %v3596, 128
  %3887 = vxpose.xlu0.b32.end [16/16] %v3602, 128
  %v3888 = vpop.trf.xlu0
  %v3889 = vpop.trf.xlu0
  %v3890 = vpop.trf.xlu0
  %v3891 = vpop.trf.xlu0
  %v3892 = vpop.trf.xlu0
  %v3893 = vpop.trf.xlu0
  %v3894 = vpop.trf.xlu0
  %v3895 = vpop.trf.xlu0
  %v3896 = vpop.trf.xlu0
  %v3897 = vpop.trf.xlu0
  %v3898 = vpop.trf.xlu0
  %v3899 = vpop.trf.xlu0
  %v3900 = vpop.trf.xlu0
  %v3901 = vpop.trf.xlu0
  %v3902 = vpop.trf.xlu0
  %v3903 = vpop.trf.xlu0
  %3904 = vxpose.xlu0.b32.start [1/16] %v3513, 128
  %3905 = vxpose.xlu0.b32.cont [2/16] %v3519, 128
  %3906 = vxpose.xlu0.b32.cont [3/16] %v3525, 128
  %3907 = vxpose.xlu0.b32.cont [4/16] %v3531, 128
  %3908 = vxpose.xlu0.b32.cont [5/16] %v3537, 128
  %3909 = vxpose.xlu0.b32.cont [6/16] %v3543, 128
  %3910 = vxpose.xlu0.b32.cont [7/16] %v3549, 128
  %3911 = vxpose.xlu0.b32.cont [8/16] %v3555, 128
  %3912 = vxpose.xlu0.b32.cont [9/16] %v3561, 128
  %3913 = vxpose.xlu0.b32.cont [10/16] %v3567, 128
  %3914 = vxpose.xlu0.b32.cont [11/16] %v3573, 128
  %3915 = vxpose.xlu0.b32.cont [12/16] %v3579, 128
  %3916 = vxpose.xlu0.b32.cont [13/16] %v3585, 128
  %3917 = vxpose.xlu0.b32.cont [14/16] %v3591, 128
  %3918 = vxpose.xlu0.b32.cont [15/16] %v3597, 128
  %3919 = vxpose.xlu0.b32.end [16/16] %v3603, 128
  %v3920 = vpop.trf.xlu0
  %v3921 = vpop.trf.xlu0
  %v3922 = vpop.trf.xlu0
  %v3923 = vpop.trf.xlu0
  %v3924 = vpop.trf.xlu0
  %v3925 = vpop.trf.xlu0
  %v3926 = vpop.trf.xlu0
  %v3927 = vpop.trf.xlu0
  %v3928 = vpop.trf.xlu0
  %v3929 = vpop.trf.xlu0
  %v3930 = vpop.trf.xlu0
  %v3931 = vpop.trf.xlu0
  %v3932 = vpop.trf.xlu0
  %v3933 = vpop.trf.xlu0
  %v3934 = vpop.trf.xlu0
  %v3935 = vpop.trf.xlu0
  %3936 = vxpose.xlu0.b32.start [1/16] %v3514, 128
  %3937 = vxpose.xlu0.b32.cont [2/16] %v3520, 128
  %3938 = vxpose.xlu0.b32.cont [3/16] %v3526, 128
  %3939 = vxpose.xlu0.b32.cont [4/16] %v3532, 128
  %3940 = vxpose.xlu0.b32.cont [5/16] %v3538, 128
  %3941 = vxpose.xlu0.b32.cont [6/16] %v3544, 128
  %3942 = vxpose.xlu0.b32.cont [7/16] %v3550, 128
  %3943 = vxpose.xlu0.b32.cont [8/16] %v3556, 128
  %3944 = vxpose.xlu0.b32.cont [9/16] %v3562, 128
  %3945 = vxpose.xlu0.b32.cont [10/16] %v3568, 128
  %3946 = vxpose.xlu0.b32.cont [11/16] %v3574, 128
  %3947 = vxpose.xlu0.b32.cont [12/16] %v3580, 128
  %3948 = vxpose.xlu0.b32.cont [13/16] %v3586, 128
  %3949 = vxpose.xlu0.b32.cont [14/16] %v3592, 128
  %3950 = vxpose.xlu0.b32.cont [15/16] %v3598, 128
  %3951 = vxpose.xlu0.b32.end [16/16] %v3604, 128
  %v3952 = vpop.trf.xlu0
  %v3953 = vpop.trf.xlu0
  %v3954 = vpop.trf.xlu0
  %v3955 = vpop.trf.xlu0
  %v3956 = vpop.trf.xlu0
  %v3957 = vpop.trf.xlu0
  %v3958 = vpop.trf.xlu0
  %v3959 = vpop.trf.xlu0
  %v3960 = vpop.trf.xlu0
  %v3961 = vpop.trf.xlu0
  %v3962 = vpop.trf.xlu0
  %v3963 = vpop.trf.xlu0
  %v3964 = vpop.trf.xlu0
  %v3965 = vpop.trf.xlu0
  %v3966 = vpop.trf.xlu0
  %v3967 = vpop.trf.xlu0
  %3968 = vxpose.xlu0.b32.start [1/16] %v3515, 128
  %3969 = vxpose.xlu0.b32.cont [2/16] %v3521, 128
  %3970 = vxpose.xlu0.b32.cont [3/16] %v3527, 128
  %3971 = vxpose.xlu0.b32.cont [4/16] %v3533, 128
  %3972 = vxpose.xlu0.b32.cont [5/16] %v3539, 128
  %3973 = vxpose.xlu0.b32.cont [6/16] %v3545, 128
  %3974 = vxpose.xlu0.b32.cont [7/16] %v3551, 128
  %3975 = vxpose.xlu0.b32.cont [8/16] %v3557, 128
  %3976 = vxpose.xlu0.b32.cont [9/16] %v3563, 128
  %3977 = vxpose.xlu0.b32.cont [10/16] %v3569, 128
  %3978 = vxpose.xlu0.b32.cont [11/16] %v3575, 128
  %3979 = vxpose.xlu0.b32.cont [12/16] %v3581, 128
  %3980 = vxpose.xlu0.b32.cont [13/16] %v3587, 128
  %3981 = vxpose.xlu0.b32.cont [14/16] %v3593, 128
  %3982 = vxpose.xlu0.b32.cont [15/16] %v3599, 128
  %3983 = vxpose.xlu0.b32.end [16/16] %v3605, 128
  %v3984 = vpop.trf.xlu0
  %v3985 = vpop.trf.xlu0
  %v3986 = vpop.trf.xlu0
  %v3987 = vpop.trf.xlu0
  %v3988 = vpop.trf.xlu0
  %v3989 = vpop.trf.xlu0
  %v3990 = vpop.trf.xlu0
  %v3991 = vpop.trf.xlu0
  %v3992 = vpop.trf.xlu0
  %v3993 = vpop.trf.xlu0
  %v3994 = vpop.trf.xlu0
  %v3995 = vpop.trf.xlu0
  %v3996 = vpop.trf.xlu0
  %v3997 = vpop.trf.xlu0
  %v3998 = vpop.trf.xlu0
  %v3999 = vpop.trf.xlu0
  %4000 = vxpose.xlu0.b32.start [1/16] %v3606, 128
  %4001 = vxpose.xlu0.b32.cont [2/16] 0.0, 128
  %4002 = vxpose.xlu0.b32.cont [3/16] 0.0, 128
  %4003 = vxpose.xlu0.b32.cont [4/16] 0.0, 128
  %4004 = vxpose.xlu0.b32.cont [5/16] 0.0, 128
  %4005 = vxpose.xlu0.b32.cont [6/16] 0.0, 128
  %4006 = vxpose.xlu0.b32.cont [7/16] 0.0, 128
  %4007 = vxpose.xlu0.b32.cont [8/16] 0.0, 128
  %4008 = vxpose.xlu0.b32.cont [9/16] 0.0, 128
  %4009 = vxpose.xlu0.b32.cont [10/16] 0.0, 128
  %4010 = vxpose.xlu0.b32.cont [11/16] 0.0, 128
  %4011 = vxpose.xlu0.b32.cont [12/16] 0.0, 128
  %4012 = vxpose.xlu0.b32.cont [13/16] 0.0, 128
  %4013 = vxpose.xlu0.b32.cont [14/16] 0.0, 128
  %4014 = vxpose.xlu0.b32.cont [15/16] 0.0, 128
  %4015 = vxpose.xlu0.b32.end [16/16] 0.0, 128
  %v4016 = vpop.trf.xlu0
  %v4017 = vpop.trf.xlu0
  %v4018 = vpop.trf.xlu0
  %v4019 = vpop.trf.xlu0
  %v4020 = vpop.trf.xlu0
  %v4021 = vpop.trf.xlu0
  %v4022 = vpop.trf.xlu0
  %v4023 = vpop.trf.xlu0
  %v4024 = vpop.trf.xlu0
  %v4025 = vpop.trf.xlu0
  %v4026 = vpop.trf.xlu0
  %v4027 = vpop.trf.xlu0
  %v4028 = vpop.trf.xlu0
  %v4029 = vpop.trf.xlu0
  %v4030 = vpop.trf.xlu0
  %v4031 = vpop.trf.xlu0
  %4032 = vxpose.xlu0.b32.start [1/16] %v3607, 128
  %4033 = vxpose.xlu0.b32.cont [2/16] 0.0, 128
  %4034 = vxpose.xlu0.b32.cont [3/16] 0.0, 128
  %4035 = vxpose.xlu0.b32.cont [4/16] 0.0, 128
  %4036 = vxpose.xlu0.b32.cont [5/16] 0.0, 128
  %4037 = vxpose.xlu0.b32.cont [6/16] 0.0, 128
  %4038 = vxpose.xlu0.b32.cont [7/16] 0.0, 128
  %4039 = vxpose.xlu0.b32.cont [8/16] 0.0, 128
  %4040 = vxpose.xlu0.b32.cont [9/16] 0.0, 128
  %4041 = vxpose.xlu0.b32.cont [10/16] 0.0, 128
  %4042 = vxpose.xlu0.b32.cont [11/16] 0.0, 128
  %4043 = vxpose.xlu0.b32.cont [12/16] 0.0, 128
  %4044 = vxpose.xlu0.b32.cont [13/16] 0.0, 128
  %4045 = vxpose.xlu0.b32.cont [14/16] 0.0, 128
  %4046 = vxpose.xlu0.b32.cont [15/16] 0.0, 128
  %4047 = vxpose.xlu0.b32.end [16/16] 0.0, 128
  %v4048 = vpop.trf.xlu0
  %v4049 = vpop.trf.xlu0
  %v4050 = vpop.trf.xlu0
  %v4051 = vpop.trf.xlu0
  %v4052 = vpop.trf.xlu0
  %v4053 = vpop.trf.xlu0
  %v4054 = vpop.trf.xlu0
  %v4055 = vpop.trf.xlu0
  %v4056 = vpop.trf.xlu0
  %v4057 = vpop.trf.xlu0
  %v4058 = vpop.trf.xlu0
  %v4059 = vpop.trf.xlu0
  %v4060 = vpop.trf.xlu0
  %v4061 = vpop.trf.xlu0
  %v4062 = vpop.trf.xlu0
  %v4063 = vpop.trf.xlu0
  %4064 = vxpose.xlu0.b32.start [1/16] %v3608, 128
  %4065 = vxpose.xlu0.b32.cont [2/16] 0.0, 128
  %4066 = vxpose.xlu0.b32.cont [3/16] 0.0, 128
  %4067 = vxpose.xlu0.b32.cont [4/16] 0.0, 128
  %4068 = vxpose.xlu0.b32.cont [5/16] 0.0, 128
  %4069 = vxpose.xlu0.b32.cont [6/16] 0.0, 128
  %4070 = vxpose.xlu0.b32.cont [7/16] 0.0, 128
  %4071 = vxpose.xlu0.b32.cont [8/16] 0.0, 128
  %4072 = vxpose.xlu0.b32.cont [9/16] 0.0, 128
  %4073 = vxpose.xlu0.b32.cont [10/16] 0.0, 128
  %4074 = vxpose.xlu0.b32.cont [11/16] 0.0, 128
  %4075 = vxpose.xlu0.b32.cont [12/16] 0.0, 128
  %4076 = vxpose.xlu0.b32.cont [13/16] 0.0, 128
  %4077 = vxpose.xlu0.b32.cont [14/16] 0.0, 128
  %4078 = vxpose.xlu0.b32.cont [15/16] 0.0, 128
  %4079 = vxpose.xlu0.b32.end [16/16] 0.0, 128
  %v4080 = vpop.trf.xlu0
  %v4081 = vpop.trf.xlu0
  %v4082 = vpop.trf.xlu0
  %v4083 = vpop.trf.xlu0
  %v4084 = vpop.trf.xlu0
  %v4085 = vpop.trf.xlu0
  %v4086 = vpop.trf.xlu0
  %v4087 = vpop.trf.xlu0
  %v4088 = vpop.trf.xlu0
  %v4089 = vpop.trf.xlu0
  %v4090 = vpop.trf.xlu0
  %v4091 = vpop.trf.xlu0
  %v4092 = vpop.trf.xlu0
  %v4093 = vpop.trf.xlu0
  %v4094 = vpop.trf.xlu0
  %v4095 = vpop.trf.xlu0
  %4096 = vxpose.xlu0.b32.start [1/16] %v3609, 128
  %4097 = vxpose.xlu0.b32.cont [2/16] 0.0, 128
  %4098 = vxpose.xlu0.b32.cont [3/16] 0.0, 128
  %4099 = vxpose.xlu0.b32.cont [4/16] 0.0, 128
  %4100 = vxpose.xlu0.b32.cont [5/16] 0.0, 128
  %4101 = vxpose.xlu0.b32.cont [6/16] 0.0, 128
  %4102 = vxpose.xlu0.b32.cont [7/16] 0.0, 128
  %4103 = vxpose.xlu0.b32.cont [8/16] 0.0, 128
  %4104 = vxpose.xlu0.b32.cont [9/16] 0.0, 128
  %4105 = vxpose.xlu0.b32.cont [10/16] 0.0, 128
  %4106 = vxpose.xlu0.b32.cont [11/16] 0.0, 128
  %4107 = vxpose.xlu0.b32.cont [12/16] 0.0, 128
  %4108 = vxpose.xlu0.b32.cont [13/16] 0.0, 128
  %4109 = vxpose.xlu0.b32.cont [14/16] 0.0, 128
  %4110 = vxpose.xlu0.b32.cont [15/16] 0.0, 128
  %4111 = vxpose.xlu0.b32.end [16/16] 0.0, 128
  %v4112 = vpop.trf.xlu0
  %v4113 = vpop.trf.xlu0
  %v4114 = vpop.trf.xlu0
  %v4115 = vpop.trf.xlu0
  %v4116 = vpop.trf.xlu0
  %v4117 = vpop.trf.xlu0
  %v4118 = vpop.trf.xlu0
  %v4119 = vpop.trf.xlu0
  %v4120 = vpop.trf.xlu0
  %v4121 = vpop.trf.xlu0
  %v4122 = vpop.trf.xlu0
  %v4123 = vpop.trf.xlu0
  %v4124 = vpop.trf.xlu0
  %v4125 = vpop.trf.xlu0
  %v4126 = vpop.trf.xlu0
  %v4127 = vpop.trf.xlu0
  %4128 = vxpose.xlu0.b32.start [1/16] %v3610, 128
  %4129 = vxpose.xlu0.b32.cont [2/16] 0.0, 128
  %4130 = vxpose.xlu0.b32.cont [3/16] 0.0, 128
  %4131 = vxpose.xlu0.b32.cont [4/16] 0.0, 128
  %4132 = vxpose.xlu0.b32.cont [5/16] 0.0, 128
  %4133 = vxpose.xlu0.b32.cont [6/16] 0.0, 128
  %4134 = vxpose.xlu0.b32.cont [7/16] 0.0, 128
  %4135 = vxpose.xlu0.b32.cont [8/16] 0.0, 128
  %4136 = vxpose.xlu0.b32.cont [9/16] 0.0, 128
  %4137 = vxpose.xlu0.b32.cont [10/16] 0.0, 128
  %4138 = vxpose.xlu0.b32.cont [11/16] 0.0, 128
  %4139 = vxpose.xlu0.b32.cont [12/16] 0.0, 128
  %4140 = vxpose.xlu0.b32.cont [13/16] 0.0, 128
  %4141 = vxpose.xlu0.b32.cont [14/16] 0.0, 128
  %4142 = vxpose.xlu0.b32.cont [15/16] 0.0, 128
  %4143 = vxpose.xlu0.b32.end [16/16] 0.0, 128
  %v4144 = vpop.trf.xlu0
  %v4145 = vpop.trf.xlu0
  %v4146 = vpop.trf.xlu0
  %v4147 = vpop.trf.xlu0
  %v4148 = vpop.trf.xlu0
  %v4149 = vpop.trf.xlu0
  %v4150 = vpop.trf.xlu0
  %v4151 = vpop.trf.xlu0
  %v4152 = vpop.trf.xlu0
  %v4153 = vpop.trf.xlu0
  %v4154 = vpop.trf.xlu0
  %v4155 = vpop.trf.xlu0
  %v4156 = vpop.trf.xlu0
  %v4157 = vpop.trf.xlu0
  %v4158 = vpop.trf.xlu0
  %v4159 = vpop.trf.xlu0
  %4160 = vxpose.xlu0.b32.start [1/16] %v3611, 128
  %4161 = vxpose.xlu0.b32.cont [2/16] 0.0, 128
  %4162 = vxpose.xlu0.b32.cont [3/16] 0.0, 128
  %4163 = vxpose.xlu0.b32.cont [4/16] 0.0, 128
  %4164 = vxpose.xlu0.b32.cont [5/16] 0.0, 128
  %4165 = vxpose.xlu0.b32.cont [6/16] 0.0, 128
  %4166 = vxpose.xlu0.b32.cont [7/16] 0.0, 128
  %4167 = vxpose.xlu0.b32.cont [8/16] 0.0, 128
  %4168 = vxpose.xlu0.b32.cont [9/16] 0.0, 128
  %4169 = vxpose.xlu0.b32.cont [10/16] 0.0, 128
  %4170 = vxpose.xlu0.b32.cont [11/16] 0.0, 128
  %4171 = vxpose.xlu0.b32.cont [12/16] 0.0, 128
  %4172 = vxpose.xlu0.b32.cont [13/16] 0.0, 128
  %4173 = vxpose.xlu0.b32.cont [14/16] 0.0, 128
  %4174 = vxpose.xlu0.b32.cont [15/16] 0.0, 128
  %4175 = vxpose.xlu0.b32.end [16/16] 0.0, 128
  %v4176 = vpop.trf.xlu0
  %v4177 = vpop.trf.xlu0
  %v4178 = vpop.trf.xlu0
  %v4179 = vpop.trf.xlu0
  %v4180 = vpop.trf.xlu0
  %v4181 = vpop.trf.xlu0
  %v4182 = vpop.trf.xlu0
  %v4183 = vpop.trf.xlu0
  %v4184 = vpop.trf.xlu0
  %v4185 = vpop.trf.xlu0
  %v4186 = vpop.trf.xlu0
  %v4187 = vpop.trf.xlu0
  %v4188 = vpop.trf.xlu0
  %v4189 = vpop.trf.xlu0
  %v4190 = vpop.trf.xlu0
  %v4191 = vpop.trf.xlu0
  %4225 = vrot.lane.b32.xlu0 %v2552, 96
  %v4226 = vpop.permute.xlu0 %4225
  %4227 = vrot.lane.b32.xlu0 %v2553, 96
  %v4228 = vpop.permute.xlu0 %4227
  %4229 = vrot.lane.b32.xlu0 %v2554, 96
  %v4230 = vpop.permute.xlu0 %4229
  %4231 = vrot.lane.b32.xlu0 %v2555, 96
  %v4232 = vpop.permute.xlu0 %4231
  %4233 = vrot.lane.b32.xlu0 %v2556, 96
  %v4234 = vpop.permute.xlu0 %4233
  %4235 = vrot.lane.b32.xlu0 %v2557, 96
  %v4236 = vpop.permute.xlu0 %4235
  %4237 = vrot.lane.b32.xlu0 %v2558, 96
  %v4238 = vpop.permute.xlu0 %4237
  %4239 = vrot.lane.b32.xlu0 %v2559, 96
  %v4240 = vpop.permute.xlu0 %4239
  %4241 = vrot.lane.b32.xlu0 %v2560, 96
  %v4242 = vpop.permute.xlu0 %4241
  %4243 = vrot.lane.b32.xlu0 %v2561, 96
  %v4244 = vpop.permute.xlu0 %4243
  %4245 = vrot.lane.b32.xlu0 %v2562, 96
  %v4246 = vpop.permute.xlu0 %4245
  %4247 = vrot.lane.b32.xlu0 %v2563, 96
  %v4248 = vpop.permute.xlu0 %4247
  %4249 = vrot.lane.b32.xlu0 %v2564, 96
  %v4250 = vpop.permute.xlu0 %4249
  %4251 = vrot.lane.b32.xlu0 %v2565, 96
  %v4252 = vpop.permute.xlu0 %4251
  %4253 = vrot.lane.b32.xlu0 %v2566, 96
  %v4254 = vpop.permute.xlu0 %4253
  %4255 = vrot.lane.b32.xlu0 %v2567, 96
  %v4256 = vpop.permute.xlu0 %4255
  %4257 = vrot.lane.b32.xlu0 %v2568, 96
  %v4258 = vpop.permute.xlu0 %4257
  %4259 = vrot.lane.b32.xlu0 %v2569, 96
  %v4260 = vpop.permute.xlu0 %4259
  %4261 = vrot.lane.b32.xlu0 %v2570, 96
  %v4262 = vpop.permute.xlu0 %4261
  %4263 = vrot.lane.b32.xlu0 %v2571, 96
  %v4264 = vpop.permute.xlu0 %4263
  %4265 = vrot.lane.b32.xlu0 %v2572, 96
  %v4266 = vpop.permute.xlu0 %4265
  %4267 = vrot.lane.b32.xlu0 %v2573, 96
  %v4268 = vpop.permute.xlu0 %4267
  %4269 = vrot.lane.b32.xlu0 %v2574, 96
  %v4270 = vpop.permute.xlu0 %4269
  %4271 = vrot.lane.b32.xlu0 %v2575, 96
  %v4272 = vpop.permute.xlu0 %4271
  %4273 = vrot.lane.b32.xlu0 %v2576, 96
  %v4274 = vpop.permute.xlu0 %4273
  %4275 = vrot.lane.b32.xlu0 %v2577, 96
  %v4276 = vpop.permute.xlu0 %4275
  %4277 = vrot.lane.b32.xlu0 %v2578, 96
  %v4278 = vpop.permute.xlu0 %4277
  %4279 = vrot.lane.b32.xlu0 %v2579, 96
  %v4280 = vpop.permute.xlu0 %4279
  %4281 = vrot.lane.b32.xlu0 %v2580, 96
  %v4282 = vpop.permute.xlu0 %4281
  %4283 = vrot.lane.b32.xlu0 %v2581, 96
  %v4284 = vpop.permute.xlu0 %4283
  %4285 = vrot.lane.b32.xlu0 %v2582, 96
  %v4286 = vpop.permute.xlu0 %4285
  %4287 = vrot.lane.b32.xlu0 %v2583, 96
  %v4288 = vpop.permute.xlu0 %4287
  %4289 = vrot.lane.b32.xlu0 %v2584, 96
  %v4290 = vpop.permute.xlu0 %4289
  %v4325 = vsel %vm2119, %v4016, 0
  %v4328 = vsel %vm2119, %v4017, 0
  %v4331 = vsel %vm2119, %v4018, 0
  %v4334 = vsel %vm2119, %v4019, 0
  %v4337 = vsel %vm2119, %v4020, 0
  %v4340 = vsel %vm2119, %v4021, 0
  %v4343 = vsel %vm2119, %v4022, 0
  %v4346 = vsel %vm2119, %v4023, 0
  %v4349 = vsel %vm2119, %v4024, 0
  %v4352 = vsel %vm2119, %v4025, 0
  %v4355 = vsel %vm2119, %v4026, 0
  %v4358 = vsel %vm2119, %v4027, 0
  %v4361 = vsel %vm2119, %v4028, 0
  %v4364 = vsel %vm2119, %v4029, 0
  %v4367 = vsel %vm2119, %v4030, 0
  %v4370 = vsel %vm2119, %v4031, 0
  %v4373 = vsel %vm2119, %v4048, 0
  %v4376 = vsel %vm2119, %v4049, 0
  %v4379 = vsel %vm2119, %v4050, 0
  %v4382 = vsel %vm2119, %v4051, 0
  %v4385 = vsel %vm2119, %v4052, 0
  %v4388 = vsel %vm2119, %v4053, 0
  %v4391 = vsel %vm2119, %v4054, 0
  %v4394 = vsel %vm2119, %v4055, 0
  %v4397 = vsel %vm2119, %v4056, 0
  %v4400 = vsel %vm2119, %v4057, 0
  %v4403 = vsel %vm2119, %v4058, 0
  %v4406 = vsel %vm2119, %v4059, 0
  %v4409 = vsel %vm2119, %v4060, 0
  %v4412 = vsel %vm2119, %v4061, 0
  %v4415 = vsel %vm2119, %v4062, 0
  %v4418 = vsel %vm2119, %v4063, 0
  %v4421 = vsel %vm2119, %v4080, 0
  %v4424 = vsel %vm2119, %v4081, 0
  %v4427 = vsel %vm2119, %v4082, 0
  %v4430 = vsel %vm2119, %v4083, 0
  %v4433 = vsel %vm2119, %v4084, 0
  %v4436 = vsel %vm2119, %v4085, 0
  %v4439 = vsel %vm2119, %v4086, 0
  %v4442 = vsel %vm2119, %v4087, 0
  %v4445 = vsel %vm2119, %v4088, 0
  %v4448 = vsel %vm2119, %v4089, 0
  %v4451 = vsel %vm2119, %v4090, 0
  %v4454 = vsel %vm2119, %v4091, 0
  %v4457 = vsel %vm2119, %v4092, 0
  %v4460 = vsel %vm2119, %v4093, 0
  %v4463 = vsel %vm2119, %v4094, 0
  %v4466 = vsel %vm2119, %v4095, 0
  %v4469 = vsel %vm2119, %v4112, 0
  %v4472 = vsel %vm2119, %v4113, 0
  %v4475 = vsel %vm2119, %v4114, 0
  %v4478 = vsel %vm2119, %v4115, 0
  %v4481 = vsel %vm2119, %v4116, 0
  %v4484 = vsel %vm2119, %v4117, 0
  %v4487 = vsel %vm2119, %v4118, 0
  %v4490 = vsel %vm2119, %v4119, 0
  %v4493 = vsel %vm2119, %v4120, 0
  %v4496 = vsel %vm2119, %v4121, 0
  %v4499 = vsel %vm2119, %v4122, 0
  %v4502 = vsel %vm2119, %v4123, 0
  %v4505 = vsel %vm2119, %v4124, 0
  %v4508 = vsel %vm2119, %v4125, 0
  %v4511 = vsel %vm2119, %v4126, 0
  %v4514 = vsel %vm2119, %v4127, 0
  %v4517 = vsel %vm2119, %v4144, 0
  %v4520 = vsel %vm2119, %v4145, 0
  %v4523 = vsel %vm2119, %v4146, 0
  %v4526 = vsel %vm2119, %v4147, 0
  %v4529 = vsel %vm2119, %v4148, 0
  %v4532 = vsel %vm2119, %v4149, 0
  %v4535 = vsel %vm2119, %v4150, 0
  %v4538 = vsel %vm2119, %v4151, 0
  %v4541 = vsel %vm2119, %v4152, 0
  %v4544 = vsel %vm2119, %v4153, 0
  %v4547 = vsel %vm2119, %v4154, 0
  %v4550 = vsel %vm2119, %v4155, 0
  %v4553 = vsel %vm2119, %v4156, 0
  %v4556 = vsel %vm2119, %v4157, 0
  %v4559 = vsel %vm2119, %v4158, 0
  %v4562 = vsel %vm2119, %v4159, 0
  %v4565 = vsel %vm2119, %v4176, 0
  %v4568 = vsel %vm2119, %v4177, 0
  %v4571 = vsel %vm2119, %v4178, 0
  %v4574 = vsel %vm2119, %v4179, 0
  %v4577 = vsel %vm2119, %v4180, 0
  %v4580 = vsel %vm2119, %v4181, 0
  %v4583 = vsel %vm2119, %v4182, 0
  %v4586 = vsel %vm2119, %v4183, 0
  %v4589 = vsel %vm2119, %v4184, 0
  %v4592 = vsel %vm2119, %v4185, 0
  %v4595 = vsel %vm2119, %v4186, 0
  %v4598 = vsel %vm2119, %v4187, 0
  %v4601 = vsel %vm2119, %v4188, 0
  %v4604 = vsel %vm2119, %v4189, 0
  %v4607 = vsel %vm2119, %v4190, 0
  %v4610 = vsel %vm2119, %v4191, 0
  %4612 = vmatpush.msra.mxu0 %v4256
  %4613 = vmatpush.msra.mxu0 %v4254
  %4614 = vmatpush.msra.mxu0 %v4252
  %4615 = vmatpush.msra.mxu0 %v4250
  %4616 = vmatpush.msra.mxu0 %v4248
  %4617 = vmatpush.msra.mxu0 %v4246
  %4618 = vmatpush.msra.mxu0 %v4244
  %4619 = vmatpush.msra.mxu0 %v4242
  %4620 = vmatpush.msra.mxu0 %v4240
  %4621 = vmatpush.msra.mxu0 %v4238
  %4622 = vmatpush.msra.mxu0 %v4236
  %4623 = vmatpush.msra.mxu0 %v4234
  %4624 = vmatpush.msra.mxu0 %v4232
  %4625 = vmatpush.msra.mxu0 %v4230
  %4626 = vmatpush.msra.mxu0 %v4228
  %4627 = vmatpush.msra.mxu0 %v4226
  %4628 = vmatmul.f32.gmra.mxu0 %v3632
  %v4629 = vpop.f32.mrf.mxu0
  %v4630 = vadd.f32 %v3612, %v4629
  %4631 = vmatmul.f32.gmra.mxu0 %v3633
  %v4632 = vpop.f32.mrf.mxu0
  %v4633 = vadd.f32 %v3613, %v4632
  %4634 = vmatmul.f32.gmra.mxu0 %v3634
  %v4635 = vpop.f32.mrf.mxu0
  %v4636 = vadd.f32 %v3614, %v4635
  %4637 = vmatmul.f32.gmra.mxu0 %v3635
  %v4638 = vpop.f32.mrf.mxu0
  %v4639 = vadd.f32 %v3615, %v4638
  %4640 = vmatmul.f32.gmra.mxu0 %v3636
  %v4641 = vpop.f32.mrf.mxu0
  %v4642 = vadd.f32 %v3612, %v4641
  %4643 = vmatmul.f32.gmra.mxu0 %v3637
  %v4644 = vpop.f32.mrf.mxu0
  %v4645 = vadd.f32 %v3613, %v4644
  %4646 = vmatmul.f32.gmra.mxu0 %v3638
  %v4647 = vpop.f32.mrf.mxu0
  %v4648 = vadd.f32 %v3614, %v4647
  %4649 = vmatmul.f32.gmra.mxu0 %v3639
  %v4650 = vpop.f32.mrf.mxu0
  %v4651 = vadd.f32 %v3615, %v4650
  %4652 = vmatmul.f32.gmra.mxu0 %v3640
  %v4653 = vpop.f32.mrf.mxu0
  %v4654 = vadd.f32 %v3612, %v4653
  %4655 = vmatmul.f32.gmra.mxu0 %v3641
  %v4656 = vpop.f32.mrf.mxu0
  %v4657 = vadd.f32 %v3613, %v4656
  %4658 = vmatmul.f32.gmra.mxu0 %v3642
  %v4659 = vpop.f32.mrf.mxu0
  %v4660 = vadd.f32 %v3614, %v4659
  %4661 = vmatmul.f32.gmra.mxu0 %v3643
  %v4662 = vpop.f32.mrf.mxu0
  %v4663 = vadd.f32 %v3615, %v4662
  %4664 = vmatmul.f32.gmra.mxu0 %v3644
  %v4665 = vpop.f32.mrf.mxu0
  %v4666 = vadd.f32 %v3612, %v4665
  %4667 = vmatmul.f32.gmra.mxu0 %v3645
  %v4668 = vpop.f32.mrf.mxu0
  %v4669 = vadd.f32 %v3613, %v4668
  %4670 = vmatmul.f32.gmra.mxu0 %v3646
  %v4671 = vpop.f32.mrf.mxu0
  %v4672 = vadd.f32 %v3614, %v4671
  %4673 = vmatmul.f32.gmra.mxu0 %v3647
  %v4674 = vpop.f32.mrf.mxu0
  %v4675 = vadd.f32 %v3615, %v4674
  %4676 = vmatmul.f32.gmra.mxu0 %v3664
  %v4677 = vpop.f32.mrf.mxu0
  %v4678 = vadd.f32 %v3612, %v4677
  %4679 = vmatmul.f32.gmra.mxu0 %v3665
  %v4680 = vpop.f32.mrf.mxu0
  %v4681 = vadd.f32 %v3613, %v4680
  %4682 = vmatmul.f32.gmra.mxu0 %v3666
  %v4683 = vpop.f32.mrf.mxu0
  %v4684 = vadd.f32 %v3614, %v4683
  %4685 = vmatmul.f32.gmra.mxu0 %v3667
  %v4686 = vpop.f32.mrf.mxu0
  %v4687 = vadd.f32 %v3615, %v4686
  %4688 = vmatmul.f32.gmra.mxu0 %v3668
  %v4689 = vpop.f32.mrf.mxu0
  %v4690 = vadd.f32 %v3612, %v4689
  %4691 = vmatmul.f32.gmra.mxu0 %v3669
  %v4692 = vpop.f32.mrf.mxu0
  %v4693 = vadd.f32 %v3613, %v4692
  %4694 = vmatmul.f32.gmra.mxu0 %v3670
  %v4695 = vpop.f32.mrf.mxu0
  %v4696 = vadd.f32 %v3614, %v4695
  %4697 = vmatmul.f32.gmra.mxu0 %v3671
  %v4698 = vpop.f32.mrf.mxu0
  %v4699 = vadd.f32 %v3615, %v4698
  %4700 = vmatmul.f32.gmra.mxu0 %v3672
  %v4701 = vpop.f32.mrf.mxu0
  %v4702 = vadd.f32 %v3612, %v4701
  %4703 = vmatmul.f32.gmra.mxu0 %v3673
  %v4704 = vpop.f32.mrf.mxu0
  %v4705 = vadd.f32 %v3613, %v4704
  %4706 = vmatmul.f32.gmra.mxu0 %v3674
  %v4707 = vpop.f32.mrf.mxu0
  %v4708 = vadd.f32 %v3614, %v4707
  %4709 = vmatmul.f32.gmra.mxu0 %v3675
  %v4710 = vpop.f32.mrf.mxu0
  %v4711 = vadd.f32 %v3615, %v4710
  %4712 = vmatmul.f32.gmra.mxu0 %v3676
  %v4713 = vpop.f32.mrf.mxu0
  %v4714 = vadd.f32 %v3612, %v4713
  %4715 = vmatmul.f32.gmra.mxu0 %v3677
  %v4716 = vpop.f32.mrf.mxu0
  %v4717 = vadd.f32 %v3613, %v4716
  %4718 = vmatmul.f32.gmra.mxu0 %v3678
  %v4719 = vpop.f32.mrf.mxu0
  %v4720 = vadd.f32 %v3614, %v4719
  %4721 = vmatmul.f32.gmra.mxu0 %v3679
  %v4722 = vpop.f32.mrf.mxu0
  %v4723 = vadd.f32 %v3615, %v4722
  %4724 = vmatmul.f32.gmra.mxu0 %v3696
  %v4725 = vpop.f32.mrf.mxu0
  %v4726 = vadd.f32 %v3612, %v4725
  %4727 = vmatmul.f32.gmra.mxu0 %v3697
  %v4728 = vpop.f32.mrf.mxu0
  %v4729 = vadd.f32 %v3613, %v4728
  %4730 = vmatmul.f32.gmra.mxu0 %v3698
  %v4731 = vpop.f32.mrf.mxu0
  %v4732 = vadd.f32 %v3614, %v4731
  %4733 = vmatmul.f32.gmra.mxu0 %v3699
  %v4734 = vpop.f32.mrf.mxu0
  %v4735 = vadd.f32 %v3615, %v4734
  %4736 = vmatmul.f32.gmra.mxu0 %v3700
  %v4737 = vpop.f32.mrf.mxu0
  %v4738 = vadd.f32 %v3612, %v4737
  %4739 = vmatmul.f32.gmra.mxu0 %v3701
  %v4740 = vpop.f32.mrf.mxu0
  %v4741 = vadd.f32 %v3613, %v4740
  %4742 = vmatmul.f32.gmra.mxu0 %v3702
  %v4743 = vpop.f32.mrf.mxu0
  %v4744 = vadd.f32 %v3614, %v4743
  %4745 = vmatmul.f32.gmra.mxu0 %v3703
  %v4746 = vpop.f32.mrf.mxu0
  %v4747 = vadd.f32 %v3615, %v4746
  %4748 = vmatmul.f32.gmra.mxu0 %v3704
  %v4749 = vpop.f32.mrf.mxu0
  %v4750 = vadd.f32 %v3612, %v4749
  %4751 = vmatmul.f32.gmra.mxu0 %v3705
  %v4752 = vpop.f32.mrf.mxu0
  %v4753 = vadd.f32 %v3613, %v4752
  %4754 = vmatmul.f32.gmra.mxu0 %v3706
  %v4755 = vpop.f32.mrf.mxu0
  %v4756 = vadd.f32 %v3614, %v4755
  %4757 = vmatmul.f32.gmra.mxu0 %v3707
  %v4758 = vpop.f32.mrf.mxu0
  %v4759 = vadd.f32 %v3615, %v4758
  %4760 = vmatmul.f32.gmra.mxu0 %v3708
  %v4761 = vpop.f32.mrf.mxu0
  %v4762 = vadd.f32 %v3612, %v4761
  %4763 = vmatmul.f32.gmra.mxu0 %v3709
  %v4764 = vpop.f32.mrf.mxu0
  %v4765 = vadd.f32 %v3613, %v4764
  %4766 = vmatmul.f32.gmra.mxu0 %v3710
  %v4767 = vpop.f32.mrf.mxu0
  %v4768 = vadd.f32 %v3614, %v4767
  %4769 = vmatmul.f32.gmra.mxu0 %v3711
  %v4770 = vpop.f32.mrf.mxu0
  %v4771 = vadd.f32 %v3615, %v4770
  %4772 = vmatmul.f32.gmra.mxu0 %v3728
  %v4773 = vpop.f32.mrf.mxu0
  %v4774 = vadd.f32 %v3612, %v4773
  %4775 = vmatmul.f32.gmra.mxu0 %v3729
  %v4776 = vpop.f32.mrf.mxu0
  %v4777 = vadd.f32 %v3613, %v4776
  %4778 = vmatmul.f32.gmra.mxu0 %v3730
  %v4779 = vpop.f32.mrf.mxu0
  %v4780 = vadd.f32 %v3614, %v4779
  %4781 = vmatmul.f32.gmra.mxu0 %v3731
  %v4782 = vpop.f32.mrf.mxu0
  %v4783 = vadd.f32 %v3615, %v4782
  %4784 = vmatmul.f32.gmra.mxu0 %v3732
  %v4785 = vpop.f32.mrf.mxu0
  %v4786 = vadd.f32 %v3612, %v4785
  %4787 = vmatmul.f32.gmra.mxu0 %v3733
  %v4788 = vpop.f32.mrf.mxu0
  %v4789 = vadd.f32 %v3613, %v4788
  %4790 = vmatmul.f32.gmra.mxu0 %v3734
  %v4791 = vpop.f32.mrf.mxu0
  %v4792 = vadd.f32 %v3614, %v4791
  %4793 = vmatmul.f32.gmra.mxu0 %v3735
  %v4794 = vpop.f32.mrf.mxu0
  %v4795 = vadd.f32 %v3615, %v4794
  %4796 = vmatmul.f32.gmra.mxu0 %v3736
  %v4797 = vpop.f32.mrf.mxu0
  %v4798 = vadd.f32 %v3612, %v4797
  %4799 = vmatmul.f32.gmra.mxu0 %v3737
  %v4800 = vpop.f32.mrf.mxu0
  %v4801 = vadd.f32 %v3613, %v4800
  %4802 = vmatmul.f32.gmra.mxu0 %v3738
  %v4803 = vpop.f32.mrf.mxu0
  %v4804 = vadd.f32 %v3614, %v4803
  %4805 = vmatmul.f32.gmra.mxu0 %v3739
  %v4806 = vpop.f32.mrf.mxu0
  %v4807 = vadd.f32 %v3615, %v4806
  %4808 = vmatmul.f32.gmra.mxu0 %v3740
  %v4809 = vpop.f32.mrf.mxu0
  %v4810 = vadd.f32 %v3612, %v4809
  %4811 = vmatmul.f32.gmra.mxu0 %v3741
  %v4812 = vpop.f32.mrf.mxu0
  %v4813 = vadd.f32 %v3613, %v4812
  %4814 = vmatmul.f32.gmra.mxu0 %v3742
  %v4815 = vpop.f32.mrf.mxu0
  %v4816 = vadd.f32 %v3614, %v4815
  %4817 = vmatmul.f32.gmra.mxu0 %v3743
  %v4818 = vpop.f32.mrf.mxu0
  %v4819 = vadd.f32 %v3615, %v4818
  %4820 = vmatmul.f32.gmra.mxu0 %v3760
  %v4821 = vpop.f32.mrf.mxu0
  %v4822 = vadd.f32 %v3612, %v4821
  %4823 = vmatmul.f32.gmra.mxu0 %v3761
  %v4824 = vpop.f32.mrf.mxu0
  %v4825 = vadd.f32 %v3613, %v4824
  %4826 = vmatmul.f32.gmra.mxu0 %v3762
  %v4827 = vpop.f32.mrf.mxu0
  %v4828 = vadd.f32 %v3614, %v4827
  %4829 = vmatmul.f32.gmra.mxu0 %v3763
  %v4830 = vpop.f32.mrf.mxu0
  %v4831 = vadd.f32 %v3615, %v4830
  %4832 = vmatmul.f32.gmra.mxu0 %v3764
  %v4833 = vpop.f32.mrf.mxu0
  %v4834 = vadd.f32 %v3612, %v4833
  %4835 = vmatmul.f32.gmra.mxu0 %v3765
  %v4836 = vpop.f32.mrf.mxu0
  %v4837 = vadd.f32 %v3613, %v4836
  %4838 = vmatmul.f32.gmra.mxu0 %v3766
  %v4839 = vpop.f32.mrf.mxu0
  %v4840 = vadd.f32 %v3614, %v4839
  %4841 = vmatmul.f32.gmra.mxu0 %v3767
  %v4842 = vpop.f32.mrf.mxu0
  %v4843 = vadd.f32 %v3615, %v4842
  %4844 = vmatmul.f32.gmra.mxu0 %v3768
  %v4845 = vpop.f32.mrf.mxu0
  %v4846 = vadd.f32 %v3612, %v4845
  %4847 = vmatmul.f32.gmra.mxu0 %v3769
  %v4848 = vpop.f32.mrf.mxu0
  %v4849 = vadd.f32 %v3613, %v4848
  %4850 = vmatmul.f32.gmra.mxu0 %v3770
  %v4851 = vpop.f32.mrf.mxu0
  %v4852 = vadd.f32 %v3614, %v4851
  %4853 = vmatmul.f32.gmra.mxu0 %v3771
  %v4854 = vpop.f32.mrf.mxu0
  %v4855 = vadd.f32 %v3615, %v4854
  %4856 = vmatmul.f32.gmra.mxu0 %v3772
  %v4857 = vpop.f32.mrf.mxu0
  %v4858 = vadd.f32 %v3612, %v4857
  %4859 = vmatmul.f32.gmra.mxu0 %v3773
  %v4860 = vpop.f32.mrf.mxu0
  %v4861 = vadd.f32 %v3613, %v4860
  %4862 = vmatmul.f32.gmra.mxu0 %v3774
  %v4863 = vpop.f32.mrf.mxu0
  %v4864 = vadd.f32 %v3614, %v4863
  %4865 = vmatmul.f32.gmra.mxu0 %v3775
  %v4866 = vpop.f32.mrf.mxu0
  %v4867 = vadd.f32 %v3615, %v4866
  %4868 = vmatmul.f32.gmra.mxu0 %v3792
  %v4869 = vpop.f32.mrf.mxu0
  %v4870 = vadd.f32 %v3612, %v4869
  %4871 = vmatmul.f32.gmra.mxu0 %v3793
  %v4872 = vpop.f32.mrf.mxu0
  %v4873 = vadd.f32 %v3613, %v4872
  %4874 = vmatmul.f32.gmra.mxu0 %v3794
  %v4875 = vpop.f32.mrf.mxu0
  %v4876 = vadd.f32 %v3614, %v4875
  %4877 = vmatmul.f32.gmra.mxu0 %v3795
  %v4878 = vpop.f32.mrf.mxu0
  %v4879 = vadd.f32 %v3615, %v4878
  %4880 = vmatmul.f32.gmra.mxu0 %v3796
  %v4881 = vpop.f32.mrf.mxu0
  %v4882 = vadd.f32 %v3612, %v4881
  %4883 = vmatmul.f32.gmra.mxu0 %v3797
  %v4884 = vpop.f32.mrf.mxu0
  %v4885 = vadd.f32 %v3613, %v4884
  %4886 = vmatmul.f32.gmra.mxu0 %v3798
  %v4887 = vpop.f32.mrf.mxu0
  %v4888 = vadd.f32 %v3614, %v4887
  %4889 = vmatmul.f32.gmra.mxu0 %v3799
  %v4890 = vpop.f32.mrf.mxu0
  %v4891 = vadd.f32 %v3615, %v4890
  %4892 = vmatmul.f32.gmra.mxu0 %v3800
  %v4893 = vpop.f32.mrf.mxu0
  %v4894 = vadd.f32 %v3612, %v4893
  %4895 = vmatmul.f32.gmra.mxu0 %v3801
  %v4896 = vpop.f32.mrf.mxu0
  %v4897 = vadd.f32 %v3613, %v4896
  %4898 = vmatmul.f32.gmra.mxu0 %v3802
  %v4899 = vpop.f32.mrf.mxu0
  %v4900 = vadd.f32 %v3614, %v4899
  %4901 = vmatmul.f32.gmra.mxu0 %v3803
  %v4902 = vpop.f32.mrf.mxu0
  %v4903 = vadd.f32 %v3615, %v4902
  %4904 = vmatmul.f32.gmra.mxu0 %v3804
  %v4905 = vpop.f32.mrf.mxu0
  %v4906 = vadd.f32 %v3612, %v4905
  %4907 = vmatmul.f32.gmra.mxu0 %v3805
  %v4908 = vpop.f32.mrf.mxu0
  %v4909 = vadd.f32 %v3613, %v4908
  %4910 = vmatmul.f32.gmra.mxu0 %v3806
  %v4911 = vpop.f32.mrf.mxu0
  %v4912 = vadd.f32 %v3614, %v4911
  %4913 = vmatmul.f32.gmra.mxu0 %v3807
  %v4914 = vpop.f32.mrf.mxu0
  %v4915 = vadd.f32 %v3615, %v4914
  %4916 = vdwg.mxu0
  %4917 = vmatpush.msra.mxu0 %v4288
  %4918 = vmatpush.msra.mxu0 %v4286
  %4919 = vmatpush.msra.mxu0 %v4284
  %4920 = vmatpush.msra.mxu0 %v4282
  %4921 = vmatpush.msra.mxu0 %v4280
  %4922 = vmatpush.msra.mxu0 %v4278
  %4923 = vmatpush.msra.mxu0 %v4276
  %4924 = vmatpush.msra.mxu0 %v4274
  %4925 = vmatpush.msra.mxu0 %v4272
  %4926 = vmatpush.msra.mxu0 %v4270
  %4927 = vmatpush.msra.mxu0 %v4268
  %4928 = vmatpush.msra.mxu0 %v4266
  %4929 = vmatpush.msra.mxu0 %v4264
  %4930 = vmatpush.msra.mxu0 %v4262
  %4931 = vmatpush.msra.mxu0 %v4260
  %4932 = vmatpush.msra.mxu0 %v4258
  %4933 = vmatmul.f32.gmra.mxu0 %v3824
  %v4934 = vpop.f32.mrf.mxu0
  %v4935 = vadd.f32 %v4630, %v4934
  %4936 = vmatmul.f32.gmra.mxu0 %v3825
  %v4937 = vpop.f32.mrf.mxu0
  %v4938 = vadd.f32 %v4633, %v4937
  %4939 = vmatmul.f32.gmra.mxu0 %v3826
  %v4940 = vpop.f32.mrf.mxu0
  %v4941 = vadd.f32 %v4636, %v4940
  %4942 = vmatmul.f32.gmra.mxu0 %v3827
  %v4943 = vpop.f32.mrf.mxu0
  %v4944 = vadd.f32 %v4639, %v4943
  %4945 = vmatmul.f32.gmra.mxu0 %v3828
  %v4946 = vpop.f32.mrf.mxu0
  %v4947 = vadd.f32 %v4642, %v4946
  %4948 = vmatmul.f32.gmra.mxu0 %v3829
  %v4949 = vpop.f32.mrf.mxu0
  %v4950 = vadd.f32 %v4645, %v4949
  %4951 = vmatmul.f32.gmra.mxu0 %v3830
  %v4952 = vpop.f32.mrf.mxu0
  %v4953 = vadd.f32 %v4648, %v4952
  %4954 = vmatmul.f32.gmra.mxu0 %v3831
  %v4955 = vpop.f32.mrf.mxu0
  %v4956 = vadd.f32 %v4651, %v4955
  %4957 = vmatmul.f32.gmra.mxu0 %v3832
  %v4958 = vpop.f32.mrf.mxu0
  %v4959 = vadd.f32 %v4654, %v4958
  %4960 = vmatmul.f32.gmra.mxu0 %v3833
  %v4961 = vpop.f32.mrf.mxu0
  %v4962 = vadd.f32 %v4657, %v4961
  %4963 = vmatmul.f32.gmra.mxu0 %v3834
  %v4964 = vpop.f32.mrf.mxu0
  %v4965 = vadd.f32 %v4660, %v4964
  %4966 = vmatmul.f32.gmra.mxu0 %v3835
  %v4967 = vpop.f32.mrf.mxu0
  %v4968 = vadd.f32 %v4663, %v4967
  %4969 = vmatmul.f32.gmra.mxu0 %v3836
  %v4970 = vpop.f32.mrf.mxu0
  %v4971 = vadd.f32 %v4666, %v4970
  %4972 = vmatmul.f32.gmra.mxu0 %v3837
  %v4973 = vpop.f32.mrf.mxu0
  %v4974 = vadd.f32 %v4669, %v4973
  %4975 = vmatmul.f32.gmra.mxu0 %v3838
  %v4976 = vpop.f32.mrf.mxu0
  %v4977 = vadd.f32 %v4672, %v4976
  %4978 = vmatmul.f32.gmra.mxu0 %v3839
  %v4979 = vpop.f32.mrf.mxu0
  %v4980 = vadd.f32 %v4675, %v4979
  %4981 = vmatmul.f32.gmra.mxu0 %v3856
  %v4982 = vpop.f32.mrf.mxu0
  %v4983 = vadd.f32 %v4678, %v4982
  %4984 = vmatmul.f32.gmra.mxu0 %v3857
  %v4985 = vpop.f32.mrf.mxu0
  %v4986 = vadd.f32 %v4681, %v4985
  %4987 = vmatmul.f32.gmra.mxu0 %v3858
  %v4988 = vpop.f32.mrf.mxu0
  %v4989 = vadd.f32 %v4684, %v4988
  %4990 = vmatmul.f32.gmra.mxu0 %v3859
  %v4991 = vpop.f32.mrf.mxu0
  %v4992 = vadd.f32 %v4687, %v4991
  %4993 = vmatmul.f32.gmra.mxu0 %v3860
  %v4994 = vpop.f32.mrf.mxu0
  %v4995 = vadd.f32 %v4690, %v4994
  %4996 = vmatmul.f32.gmra.mxu0 %v3861
  %v4997 = vpop.f32.mrf.mxu0
  %v4998 = vadd.f32 %v4693, %v4997
  %4999 = vmatmul.f32.gmra.mxu0 %v3862
  %v5000 = vpop.f32.mrf.mxu0
  %v5001 = vadd.f32 %v4696, %v5000
  %5002 = vmatmul.f32.gmra.mxu0 %v3863
  %v5003 = vpop.f32.mrf.mxu0
  %v5004 = vadd.f32 %v4699, %v5003
  %5005 = vmatmul.f32.gmra.mxu0 %v3864
  %v5006 = vpop.f32.mrf.mxu0
  %v5007 = vadd.f32 %v4702, %v5006
  %5008 = vmatmul.f32.gmra.mxu0 %v3865
  %v5009 = vpop.f32.mrf.mxu0
  %v5010 = vadd.f32 %v4705, %v5009
  %5011 = vmatmul.f32.gmra.mxu0 %v3866
  %v5012 = vpop.f32.mrf.mxu0
  %v5013 = vadd.f32 %v4708, %v5012
  %5014 = vmatmul.f32.gmra.mxu0 %v3867
  %v5015 = vpop.f32.mrf.mxu0
  %v5016 = vadd.f32 %v4711, %v5015
  %5017 = vmatmul.f32.gmra.mxu0 %v3868
  %v5018 = vpop.f32.mrf.mxu0
  %v5019 = vadd.f32 %v4714, %v5018
  %5020 = vmatmul.f32.gmra.mxu0 %v3869
  %v5021 = vpop.f32.mrf.mxu0
  %v5022 = vadd.f32 %v4717, %v5021
  %5023 = vmatmul.f32.gmra.mxu0 %v3870
  %v5024 = vpop.f32.mrf.mxu0
  %v5025 = vadd.f32 %v4720, %v5024
  %5026 = vmatmul.f32.gmra.mxu0 %v3871
  %v5027 = vpop.f32.mrf.mxu0
  %v5028 = vadd.f32 %v4723, %v5027
  %5029 = vmatmul.f32.gmra.mxu0 %v3888
  %v5030 = vpop.f32.mrf.mxu0
  %v5031 = vadd.f32 %v4726, %v5030
  %5032 = vmatmul.f32.gmra.mxu0 %v3889
  %v5033 = vpop.f32.mrf.mxu0
  %v5034 = vadd.f32 %v4729, %v5033
  %5035 = vmatmul.f32.gmra.mxu0 %v3890
  %v5036 = vpop.f32.mrf.mxu0
  %v5037 = vadd.f32 %v4732, %v5036
  %5038 = vmatmul.f32.gmra.mxu0 %v3891
  %v5039 = vpop.f32.mrf.mxu0
  %v5040 = vadd.f32 %v4735, %v5039
  %5041 = vmatmul.f32.gmra.mxu0 %v3892
  %v5042 = vpop.f32.mrf.mxu0
  %v5043 = vadd.f32 %v4738, %v5042
  %5044 = vmatmul.f32.gmra.mxu0 %v3893
  %v5045 = vpop.f32.mrf.mxu0
  %v5046 = vadd.f32 %v4741, %v5045
  %5047 = vmatmul.f32.gmra.mxu0 %v3894
  %v5048 = vpop.f32.mrf.mxu0
  %v5049 = vadd.f32 %v4744, %v5048
  %5050 = vmatmul.f32.gmra.mxu0 %v3895
  %v5051 = vpop.f32.mrf.mxu0
  %v5052 = vadd.f32 %v4747, %v5051
  %5053 = vmatmul.f32.gmra.mxu0 %v3896
  %v5054 = vpop.f32.mrf.mxu0
  %v5055 = vadd.f32 %v4750, %v5054
  %5056 = vmatmul.f32.gmra.mxu0 %v3897
  %v5057 = vpop.f32.mrf.mxu0
  %v5058 = vadd.f32 %v4753, %v5057
  %5059 = vmatmul.f32.gmra.mxu0 %v3898
  %v5060 = vpop.f32.mrf.mxu0
  %v5061 = vadd.f32 %v4756, %v5060
  %5062 = vmatmul.f32.gmra.mxu0 %v3899
  %v5063 = vpop.f32.mrf.mxu0
  %v5064 = vadd.f32 %v4759, %v5063
  %5065 = vmatmul.f32.gmra.mxu0 %v3900
  %v5066 = vpop.f32.mrf.mxu0
  %v5067 = vadd.f32 %v4762, %v5066
  %5068 = vmatmul.f32.gmra.mxu0 %v3901
  %v5069 = vpop.f32.mrf.mxu0
  %v5070 = vadd.f32 %v4765, %v5069
  %5071 = vmatmul.f32.gmra.mxu0 %v3902
  %v5072 = vpop.f32.mrf.mxu0
  %v5073 = vadd.f32 %v4768, %v5072
  %5074 = vmatmul.f32.gmra.mxu0 %v3903
  %v5075 = vpop.f32.mrf.mxu0
  %v5076 = vadd.f32 %v4771, %v5075
  %5077 = vmatmul.f32.gmra.mxu0 %v3920
  %v5078 = vpop.f32.mrf.mxu0
  %v5079 = vadd.f32 %v4774, %v5078
  %5080 = vmatmul.f32.gmra.mxu0 %v3921
  %v5081 = vpop.f32.mrf.mxu0
  %v5082 = vadd.f32 %v4777, %v5081
  %5083 = vmatmul.f32.gmra.mxu0 %v3922
  %v5084 = vpop.f32.mrf.mxu0
  %v5085 = vadd.f32 %v4780, %v5084
  %5086 = vmatmul.f32.gmra.mxu0 %v3923
  %v5087 = vpop.f32.mrf.mxu0
  %v5088 = vadd.f32 %v4783, %v5087
  %5089 = vmatmul.f32.gmra.mxu0 %v3924
  %v5090 = vpop.f32.mrf.mxu0
  %v5091 = vadd.f32 %v4786, %v5090
  %5092 = vmatmul.f32.gmra.mxu0 %v3925
  %v5093 = vpop.f32.mrf.mxu0
  %v5094 = vadd.f32 %v4789, %v5093
  %5095 = vmatmul.f32.gmra.mxu0 %v3926
  %v5096 = vpop.f32.mrf.mxu0
  %v5097 = vadd.f32 %v4792, %v5096
  %5098 = vmatmul.f32.gmra.mxu0 %v3927
  %v5099 = vpop.f32.mrf.mxu0
  %v5100 = vadd.f32 %v4795, %v5099
  %5101 = vmatmul.f32.gmra.mxu0 %v3928
  %v5102 = vpop.f32.mrf.mxu0
  %v5103 = vadd.f32 %v4798, %v5102
  %5104 = vmatmul.f32.gmra.mxu0 %v3929
  %v5105 = vpop.f32.mrf.mxu0
  %v5106 = vadd.f32 %v4801, %v5105
  %5107 = vmatmul.f32.gmra.mxu0 %v3930
  %v5108 = vpop.f32.mrf.mxu0
  %v5109 = vadd.f32 %v4804, %v5108
  %5110 = vmatmul.f32.gmra.mxu0 %v3931
  %v5111 = vpop.f32.mrf.mxu0
  %v5112 = vadd.f32 %v4807, %v5111
  %5113 = vmatmul.f32.gmra.mxu0 %v3932
  %v5114 = vpop.f32.mrf.mxu0
  %v5115 = vadd.f32 %v4810, %v5114
  %5116 = vmatmul.f32.gmra.mxu0 %v3933
  %v5117 = vpop.f32.mrf.mxu0
  %v5118 = vadd.f32 %v4813, %v5117
  %5119 = vmatmul.f32.gmra.mxu0 %v3934
  %v5120 = vpop.f32.mrf.mxu0
  %v5121 = vadd.f32 %v4816, %v5120
  %5122 = vmatmul.f32.gmra.mxu0 %v3935
  %v5123 = vpop.f32.mrf.mxu0
  %v5124 = vadd.f32 %v4819, %v5123
  %5125 = vmatmul.f32.gmra.mxu0 %v3952
  %v5126 = vpop.f32.mrf.mxu0
  %v5127 = vadd.f32 %v4822, %v5126
  %5128 = vmatmul.f32.gmra.mxu0 %v3953
  %v5129 = vpop.f32.mrf.mxu0
  %v5130 = vadd.f32 %v4825, %v5129
  %5131 = vmatmul.f32.gmra.mxu0 %v3954
  %v5132 = vpop.f32.mrf.mxu0
  %v5133 = vadd.f32 %v4828, %v5132
  %5134 = vmatmul.f32.gmra.mxu0 %v3955
  %v5135 = vpop.f32.mrf.mxu0
  %v5136 = vadd.f32 %v4831, %v5135
  %5137 = vmatmul.f32.gmra.mxu0 %v3956
  %v5138 = vpop.f32.mrf.mxu0
  %v5139 = vadd.f32 %v4834, %v5138
  %5140 = vmatmul.f32.gmra.mxu0 %v3957
  %v5141 = vpop.f32.mrf.mxu0
  %v5142 = vadd.f32 %v4837, %v5141
  %5143 = vmatmul.f32.gmra.mxu0 %v3958
  %v5144 = vpop.f32.mrf.mxu0
  %v5145 = vadd.f32 %v4840, %v5144
  %5146 = vmatmul.f32.gmra.mxu0 %v3959
  %v5147 = vpop.f32.mrf.mxu0
  %v5148 = vadd.f32 %v4843, %v5147
  %5149 = vmatmul.f32.gmra.mxu0 %v3960
  %v5150 = vpop.f32.mrf.mxu0
  %v5151 = vadd.f32 %v4846, %v5150
  %5152 = vmatmul.f32.gmra.mxu0 %v3961
  %v5153 = vpop.f32.mrf.mxu0
  %v5154 = vadd.f32 %v4849, %v5153
  %5155 = vmatmul.f32.gmra.mxu0 %v3962
  %v5156 = vpop.f32.mrf.mxu0
  %v5157 = vadd.f32 %v4852, %v5156
  %5158 = vmatmul.f32.gmra.mxu0 %v3963
  %v5159 = vpop.f32.mrf.mxu0
  %v5160 = vadd.f32 %v4855, %v5159
  %5161 = vmatmul.f32.gmra.mxu0 %v3964
  %v5162 = vpop.f32.mrf.mxu0
  %v5163 = vadd.f32 %v4858, %v5162
  %5164 = vmatmul.f32.gmra.mxu0 %v3965
  %v5165 = vpop.f32.mrf.mxu0
  %v5166 = vadd.f32 %v4861, %v5165
  %5167 = vmatmul.f32.gmra.mxu0 %v3966
  %v5168 = vpop.f32.mrf.mxu0
  %v5169 = vadd.f32 %v4864, %v5168
  %5170 = vmatmul.f32.gmra.mxu0 %v3967
  %v5171 = vpop.f32.mrf.mxu0
  %v5172 = vadd.f32 %v4867, %v5171
  %5173 = vmatmul.f32.gmra.mxu0 %v3984
  %v5174 = vpop.f32.mrf.mxu0
  %v5175 = vadd.f32 %v4870, %v5174
  %5176 = vmatmul.f32.gmra.mxu0 %v3985
  %v5177 = vpop.f32.mrf.mxu0
  %v5178 = vadd.f32 %v4873, %v5177
  %5179 = vmatmul.f32.gmra.mxu0 %v3986
  %v5180 = vpop.f32.mrf.mxu0
  %v5181 = vadd.f32 %v4876, %v5180
  %5182 = vmatmul.f32.gmra.mxu0 %v3987
  %v5183 = vpop.f32.mrf.mxu0
  %v5184 = vadd.f32 %v4879, %v5183
  %5185 = vmatmul.f32.gmra.mxu0 %v3988
  %v5186 = vpop.f32.mrf.mxu0
  %v5187 = vadd.f32 %v4882, %v5186
  %5188 = vmatmul.f32.gmra.mxu0 %v3989
  %v5189 = vpop.f32.mrf.mxu0
  %v5190 = vadd.f32 %v4885, %v5189
  %5191 = vmatmul.f32.gmra.mxu0 %v3990
  %v5192 = vpop.f32.mrf.mxu0
  %v5193 = vadd.f32 %v4888, %v5192
  %5194 = vmatmul.f32.gmra.mxu0 %v3991
  %v5195 = vpop.f32.mrf.mxu0
  %v5196 = vadd.f32 %v4891, %v5195
  %5197 = vmatmul.f32.gmra.mxu0 %v3992
  %v5198 = vpop.f32.mrf.mxu0
  %v5199 = vadd.f32 %v4894, %v5198
  %5200 = vmatmul.f32.gmra.mxu0 %v3993
  %v5201 = vpop.f32.mrf.mxu0
  %v5202 = vadd.f32 %v4897, %v5201
  %5203 = vmatmul.f32.gmra.mxu0 %v3994
  %v5204 = vpop.f32.mrf.mxu0
  %v5205 = vadd.f32 %v4900, %v5204
  %5206 = vmatmul.f32.gmra.mxu0 %v3995
  %v5207 = vpop.f32.mrf.mxu0
  %v5208 = vadd.f32 %v4903, %v5207
  %5209 = vmatmul.f32.gmra.mxu0 %v3996
  %v5210 = vpop.f32.mrf.mxu0
  %v5211 = vadd.f32 %v4906, %v5210
  %5212 = vmatmul.f32.gmra.mxu0 %v3997
  %v5213 = vpop.f32.mrf.mxu0
  %v5214 = vadd.f32 %v4909, %v5213
  %5215 = vmatmul.f32.gmra.mxu0 %v3998
  %v5216 = vpop.f32.mrf.mxu0
  %v5217 = vadd.f32 %v4912, %v5216
  %5218 = vmatmul.f32.gmra.mxu0 %v3999
  %v5219 = vpop.f32.mrf.mxu0
  %v5220 = vadd.f32 %v4915, %v5219
  %5221 = vdwg.mxu0
  %5222 = vmatpush.msra.mxu0 0.0
  %5223 = vmatpush.msra.mxu0 0.0
  %5224 = vmatpush.msra.mxu0 0.0
  %5225 = vmatpush.msra.mxu0 0.0
  %5226 = vmatpush.msra.mxu0 0.0
  %5227 = vmatpush.msra.mxu0 0.0
  %5228 = vmatpush.msra.mxu0 0.0
  %5229 = vmatpush.msra.mxu0 0.0
  %5230 = vmatpush.msra.mxu0 0.0
  %5231 = vmatpush.msra.mxu0 0.0
  %5232 = vmatpush.msra.mxu0 0.0
  %5233 = vmatpush.msra.mxu0 0.0
  %5234 = vmatpush.msra.mxu0 0.0
  %5235 = vmatpush.msra.mxu0 0.0
  %5236 = vmatpush.msra.mxu0 0.0
  %5237 = vmatpush.msra.mxu0 %v4290
  %5238 = vmatmul.f32.gmra.mxu0 %v4325
  %v5239 = vpop.f32.mrf.mxu0
  %v5240 = vadd.f32 %v4935, %v5239
  %5241 = vmatmul.f32.gmra.mxu0 %v4328
  %v5242 = vpop.f32.mrf.mxu0
  %v5243 = vadd.f32 %v4938, %v5242
  %5244 = vmatmul.f32.gmra.mxu0 %v4331
  %v5245 = vpop.f32.mrf.mxu0
  %v5246 = vadd.f32 %v4941, %v5245
  %5247 = vmatmul.f32.gmra.mxu0 %v4334
  %v5248 = vpop.f32.mrf.mxu0
  %v5249 = vadd.f32 %v4944, %v5248
  %5250 = vmatmul.f32.gmra.mxu0 %v4337
  %v5251 = vpop.f32.mrf.mxu0
  %v5252 = vadd.f32 %v4947, %v5251
  %5253 = vmatmul.f32.gmra.mxu0 %v4340
  %v5254 = vpop.f32.mrf.mxu0
  %v5255 = vadd.f32 %v4950, %v5254
  %5256 = vmatmul.f32.gmra.mxu0 %v4343
  %v5257 = vpop.f32.mrf.mxu0
  %v5258 = vadd.f32 %v4953, %v5257
  %5259 = vmatmul.f32.gmra.mxu0 %v4346
  %v5260 = vpop.f32.mrf.mxu0
  %v5261 = vadd.f32 %v4956, %v5260
  %5262 = vmatmul.f32.gmra.mxu0 %v4349
  %v5263 = vpop.f32.mrf.mxu0
  %v5264 = vadd.f32 %v4959, %v5263
  %5265 = vmatmul.f32.gmra.mxu0 %v4352
  %v5266 = vpop.f32.mrf.mxu0
  %v5267 = vadd.f32 %v4962, %v5266
  %5268 = vmatmul.f32.gmra.mxu0 %v4355
  %v5269 = vpop.f32.mrf.mxu0
  %v5270 = vadd.f32 %v4965, %v5269
  %5271 = vmatmul.f32.gmra.mxu0 %v4358
  %v5272 = vpop.f32.mrf.mxu0
  %v5273 = vadd.f32 %v4968, %v5272
  %5274 = vmatmul.f32.gmra.mxu0 %v4361
  %v5275 = vpop.f32.mrf.mxu0
  %v5276 = vadd.f32 %v4971, %v5275
  %5277 = vmatmul.f32.gmra.mxu0 %v4364
  %v5278 = vpop.f32.mrf.mxu0
  %v5279 = vadd.f32 %v4974, %v5278
  %5280 = vmatmul.f32.gmra.mxu0 %v4367
  %v5281 = vpop.f32.mrf.mxu0
  %v5282 = vadd.f32 %v4977, %v5281
  %5283 = vmatmul.f32.gmra.mxu0 %v4370
  %v5284 = vpop.f32.mrf.mxu0
  %v5285 = vadd.f32 %v4980, %v5284
  %5286 = vmatmul.f32.gmra.mxu0 %v4373
  %v5287 = vpop.f32.mrf.mxu0
  %v5288 = vadd.f32 %v4983, %v5287
  %5289 = vmatmul.f32.gmra.mxu0 %v4376
  %v5290 = vpop.f32.mrf.mxu0
  %v5291 = vadd.f32 %v4986, %v5290
  %5292 = vmatmul.f32.gmra.mxu0 %v4379
  %v5293 = vpop.f32.mrf.mxu0
  %v5294 = vadd.f32 %v4989, %v5293
  %5295 = vmatmul.f32.gmra.mxu0 %v4382
  %v5296 = vpop.f32.mrf.mxu0
  %v5297 = vadd.f32 %v4992, %v5296
  %5298 = vmatmul.f32.gmra.mxu0 %v4385
  %v5299 = vpop.f32.mrf.mxu0
  %v5300 = vadd.f32 %v4995, %v5299
  %5301 = vmatmul.f32.gmra.mxu0 %v4388
  %v5302 = vpop.f32.mrf.mxu0
  %v5303 = vadd.f32 %v4998, %v5302
  %5304 = vmatmul.f32.gmra.mxu0 %v4391
  %v5305 = vpop.f32.mrf.mxu0
  %v5306 = vadd.f32 %v5001, %v5305
  %5307 = vmatmul.f32.gmra.mxu0 %v4394
  %v5308 = vpop.f32.mrf.mxu0
  %v5309 = vadd.f32 %v5004, %v5308
  %5310 = vmatmul.f32.gmra.mxu0 %v4397
  %v5311 = vpop.f32.mrf.mxu0
  %v5312 = vadd.f32 %v5007, %v5311
  %5313 = vmatmul.f32.gmra.mxu0 %v4400
  %v5314 = vpop.f32.mrf.mxu0
  %v5315 = vadd.f32 %v5010, %v5314
  %5316 = vmatmul.f32.gmra.mxu0 %v4403
  %v5317 = vpop.f32.mrf.mxu0
  %v5318 = vadd.f32 %v5013, %v5317
  %5319 = vmatmul.f32.gmra.mxu0 %v4406
  %v5320 = vpop.f32.mrf.mxu0
  %v5321 = vadd.f32 %v5016, %v5320
  %5322 = vmatmul.f32.gmra.mxu0 %v4409
  %v5323 = vpop.f32.mrf.mxu0
  %v5324 = vadd.f32 %v5019, %v5323
  %5325 = vmatmul.f32.gmra.mxu0 %v4412
  %v5326 = vpop.f32.mrf.mxu0
  %v5327 = vadd.f32 %v5022, %v5326
  %5328 = vmatmul.f32.gmra.mxu0 %v4415
  %v5329 = vpop.f32.mrf.mxu0
  %v5330 = vadd.f32 %v5025, %v5329
  %5331 = vmatmul.f32.gmra.mxu0 %v4418
  %v5332 = vpop.f32.mrf.mxu0
  %v5333 = vadd.f32 %v5028, %v5332
  %5334 = vmatmul.f32.gmra.mxu0 %v4421
  %v5335 = vpop.f32.mrf.mxu0
  %v5336 = vadd.f32 %v5031, %v5335
  %5337 = vmatmul.f32.gmra.mxu0 %v4424
  %v5338 = vpop.f32.mrf.mxu0
  %v5339 = vadd.f32 %v5034, %v5338
  %5340 = vmatmul.f32.gmra.mxu0 %v4427
  %v5341 = vpop.f32.mrf.mxu0
  %v5342 = vadd.f32 %v5037, %v5341
  %5343 = vmatmul.f32.gmra.mxu0 %v4430
  %v5344 = vpop.f32.mrf.mxu0
  %v5345 = vadd.f32 %v5040, %v5344
  %5346 = vmatmul.f32.gmra.mxu0 %v4433
  %v5347 = vpop.f32.mrf.mxu0
  %v5348 = vadd.f32 %v5043, %v5347
  %5349 = vmatmul.f32.gmra.mxu0 %v4436
  %v5350 = vpop.f32.mrf.mxu0
  %v5351 = vadd.f32 %v5046, %v5350
  %5352 = vmatmul.f32.gmra.mxu0 %v4439
  %v5353 = vpop.f32.mrf.mxu0
  %v5354 = vadd.f32 %v5049, %v5353
  %5355 = vmatmul.f32.gmra.mxu0 %v4442
  %v5356 = vpop.f32.mrf.mxu0
  %v5357 = vadd.f32 %v5052, %v5356
  %5358 = vmatmul.f32.gmra.mxu0 %v4445
  %v5359 = vpop.f32.mrf.mxu0
  %v5360 = vadd.f32 %v5055, %v5359
  %5361 = vmatmul.f32.gmra.mxu0 %v4448
  %v5362 = vpop.f32.mrf.mxu0
  %v5363 = vadd.f32 %v5058, %v5362
  %5364 = vmatmul.f32.gmra.mxu0 %v4451
  %v5365 = vpop.f32.mrf.mxu0
  %v5366 = vadd.f32 %v5061, %v5365
  %5367 = vmatmul.f32.gmra.mxu0 %v4454
  %v5368 = vpop.f32.mrf.mxu0
  %v5369 = vadd.f32 %v5064, %v5368
  %5370 = vmatmul.f32.gmra.mxu0 %v4457
  %v5371 = vpop.f32.mrf.mxu0
  %v5372 = vadd.f32 %v5067, %v5371
  %5373 = vmatmul.f32.gmra.mxu0 %v4460
  %v5374 = vpop.f32.mrf.mxu0
  %v5375 = vadd.f32 %v5070, %v5374
  %5376 = vmatmul.f32.gmra.mxu0 %v4463
  %v5377 = vpop.f32.mrf.mxu0
  %v5378 = vadd.f32 %v5073, %v5377
  %5379 = vmatmul.f32.gmra.mxu0 %v4466
  %v5380 = vpop.f32.mrf.mxu0
  %v5381 = vadd.f32 %v5076, %v5380
  %5382 = vmatmul.f32.gmra.mxu0 %v4469
  %v5383 = vpop.f32.mrf.mxu0
  %v5384 = vadd.f32 %v5079, %v5383
  %5385 = vmatmul.f32.gmra.mxu0 %v4472
  %v5386 = vpop.f32.mrf.mxu0
  %v5387 = vadd.f32 %v5082, %v5386
  %5388 = vmatmul.f32.gmra.mxu0 %v4475
  %v5389 = vpop.f32.mrf.mxu0
  %v5390 = vadd.f32 %v5085, %v5389
  %5391 = vmatmul.f32.gmra.mxu0 %v4478
  %v5392 = vpop.f32.mrf.mxu0
  %v5393 = vadd.f32 %v5088, %v5392
  %5394 = vmatmul.f32.gmra.mxu0 %v4481
  %v5395 = vpop.f32.mrf.mxu0
  %v5396 = vadd.f32 %v5091, %v5395
  %5397 = vmatmul.f32.gmra.mxu0 %v4484
  %v5398 = vpop.f32.mrf.mxu0
  %v5399 = vadd.f32 %v5094, %v5398
  %5400 = vmatmul.f32.gmra.mxu0 %v4487
  %v5401 = vpop.f32.mrf.mxu0
  %v5402 = vadd.f32 %v5097, %v5401
  %5403 = vmatmul.f32.gmra.mxu0 %v4490
  %v5404 = vpop.f32.mrf.mxu0
  %v5405 = vadd.f32 %v5100, %v5404
  %5406 = vmatmul.f32.gmra.mxu0 %v4493
  %v5407 = vpop.f32.mrf.mxu0
  %v5408 = vadd.f32 %v5103, %v5407
  %5409 = vmatmul.f32.gmra.mxu0 %v4496
  %v5410 = vpop.f32.mrf.mxu0
  %v5411 = vadd.f32 %v5106, %v5410
  %5412 = vmatmul.f32.gmra.mxu0 %v4499
  %v5413 = vpop.f32.mrf.mxu0
  %v5414 = vadd.f32 %v5109, %v5413
  %5415 = vmatmul.f32.gmra.mxu0 %v4502
  %v5416 = vpop.f32.mrf.mxu0
  %v5417 = vadd.f32 %v5112, %v5416
  %5418 = vmatmul.f32.gmra.mxu0 %v4505
  %v5419 = vpop.f32.mrf.mxu0
  %v5420 = vadd.f32 %v5115, %v5419
  %5421 = vmatmul.f32.gmra.mxu0 %v4508
  %v5422 = vpop.f32.mrf.mxu0
  %v5423 = vadd.f32 %v5118, %v5422
  %5424 = vmatmul.f32.gmra.mxu0 %v4511
  %v5425 = vpop.f32.mrf.mxu0
  %v5426 = vadd.f32 %v5121, %v5425
  %5427 = vmatmul.f32.gmra.mxu0 %v4514
  %v5428 = vpop.f32.mrf.mxu0
  %v5429 = vadd.f32 %v5124, %v5428
  %5430 = vmatmul.f32.gmra.mxu0 %v4517
  %v5431 = vpop.f32.mrf.mxu0
  %v5432 = vadd.f32 %v5127, %v5431
  %5433 = vmatmul.f32.gmra.mxu0 %v4520
  %v5434 = vpop.f32.mrf.mxu0
  %v5435 = vadd.f32 %v5130, %v5434
  %5436 = vmatmul.f32.gmra.mxu0 %v4523
  %v5437 = vpop.f32.mrf.mxu0
  %v5438 = vadd.f32 %v5133, %v5437
  %5439 = vmatmul.f32.gmra.mxu0 %v4526
  %v5440 = vpop.f32.mrf.mxu0
  %v5441 = vadd.f32 %v5136, %v5440
  %5442 = vmatmul.f32.gmra.mxu0 %v4529
  %v5443 = vpop.f32.mrf.mxu0
  %v5444 = vadd.f32 %v5139, %v5443
  %5445 = vmatmul.f32.gmra.mxu0 %v4532
  %v5446 = vpop.f32.mrf.mxu0
  %v5447 = vadd.f32 %v5142, %v5446
  %5448 = vmatmul.f32.gmra.mxu0 %v4535
  %v5449 = vpop.f32.mrf.mxu0
  %v5450 = vadd.f32 %v5145, %v5449
  %5451 = vmatmul.f32.gmra.mxu0 %v4538
  %v5452 = vpop.f32.mrf.mxu0
  %v5453 = vadd.f32 %v5148, %v5452
  %5454 = vmatmul.f32.gmra.mxu0 %v4541
  %v5455 = vpop.f32.mrf.mxu0
  %v5456 = vadd.f32 %v5151, %v5455
  %5457 = vmatmul.f32.gmra.mxu0 %v4544
  %v5458 = vpop.f32.mrf.mxu0
  %v5459 = vadd.f32 %v5154, %v5458
  %5460 = vmatmul.f32.gmra.mxu0 %v4547
  %v5461 = vpop.f32.mrf.mxu0
  %v5462 = vadd.f32 %v5157, %v5461
  %5463 = vmatmul.f32.gmra.mxu0 %v4550
  %v5464 = vpop.f32.mrf.mxu0
  %v5465 = vadd.f32 %v5160, %v5464
  %5466 = vmatmul.f32.gmra.mxu0 %v4553
  %v5467 = vpop.f32.mrf.mxu0
  %v5468 = vadd.f32 %v5163, %v5467
  %5469 = vmatmul.f32.gmra.mxu0 %v4556
  %v5470 = vpop.f32.mrf.mxu0
  %v5471 = vadd.f32 %v5166, %v5470
  %5472 = vmatmul.f32.gmra.mxu0 %v4559
  %v5473 = vpop.f32.mrf.mxu0
  %v5474 = vadd.f32 %v5169, %v5473
  %5475 = vmatmul.f32.gmra.mxu0 %v4562
  %v5476 = vpop.f32.mrf.mxu0
  %v5477 = vadd.f32 %v5172, %v5476
  %5478 = vmatmul.f32.gmra.mxu0 %v4565
  %v5479 = vpop.f32.mrf.mxu0
  %v5480 = vadd.f32 %v5175, %v5479
  %5481 = vmatmul.f32.gmra.mxu0 %v4568
  %v5482 = vpop.f32.mrf.mxu0
  %v5483 = vadd.f32 %v5178, %v5482
  %5484 = vmatmul.f32.gmra.mxu0 %v4571
  %v5485 = vpop.f32.mrf.mxu0
  %v5486 = vadd.f32 %v5181, %v5485
  %5487 = vmatmul.f32.gmra.mxu0 %v4574
  %v5488 = vpop.f32.mrf.mxu0
  %v5489 = vadd.f32 %v5184, %v5488
  %5490 = vmatmul.f32.gmra.mxu0 %v4577
  %v5491 = vpop.f32.mrf.mxu0
  %v5492 = vadd.f32 %v5187, %v5491
  %5493 = vmatmul.f32.gmra.mxu0 %v4580
  %v5494 = vpop.f32.mrf.mxu0
  %v5495 = vadd.f32 %v5190, %v5494
  %5496 = vmatmul.f32.gmra.mxu0 %v4583
  %v5497 = vpop.f32.mrf.mxu0
  %v5498 = vadd.f32 %v5193, %v5497
  %5499 = vmatmul.f32.gmra.mxu0 %v4586
  %v5500 = vpop.f32.mrf.mxu0
  %v5501 = vadd.f32 %v5196, %v5500
  %5502 = vmatmul.f32.gmra.mxu0 %v4589
  %v5503 = vpop.f32.mrf.mxu0
  %v5504 = vadd.f32 %v5199, %v5503
  %5505 = vmatmul.f32.gmra.mxu0 %v4592
  %v5506 = vpop.f32.mrf.mxu0
  %v5507 = vadd.f32 %v5202, %v5506
  %5508 = vmatmul.f32.gmra.mxu0 %v4595
  %v5509 = vpop.f32.mrf.mxu0
  %v5510 = vadd.f32 %v5205, %v5509
  %5511 = vmatmul.f32.gmra.mxu0 %v4598
  %v5512 = vpop.f32.mrf.mxu0
  %v5513 = vadd.f32 %v5208, %v5512
  %5514 = vmatmul.f32.gmra.mxu0 %v4601
  %v5515 = vpop.f32.mrf.mxu0
  %v5516 = vadd.f32 %v5211, %v5515
  %5517 = vmatmul.f32.gmra.mxu0 %v4604
  %v5518 = vpop.f32.mrf.mxu0
  %v5519 = vadd.f32 %v5214, %v5518
  %5520 = vmatmul.f32.gmra.mxu0 %v4607
  %v5521 = vpop.f32.mrf.mxu0
  %v5522 = vadd.f32 %v5217, %v5521
  %5523 = vmatmul.f32.gmra.mxu0 %v4610
  %v5524 = vpop.f32.mrf.mxu0
  %v5525 = vadd.f32 %v5220, %v5524
  %5526 = vdwg.mxu0
  %v5527 = vsel %vm1057, %v5240, -inf
  %5528 = vmax.xlane.f32.xlu0 %v5527
  %v5529 = vpop.xlane.xlu0 %5528
  %v5530 = vsel %vm1057, %v5243, -inf
  %5531 = vmax.xlane.f32.xlu0 %v5530
  %v5532 = vpop.xlane.xlu0 %5531
  %v5533 = vsel %vm1057, %v5246, -inf
  %5534 = vmax.xlane.f32.xlu0 %v5533
  %v5535 = vpop.xlane.xlu0 %5534
  %v5536 = vsel %vm1057, %v5249, -inf
  %5537 = vmax.xlane.f32.xlu0 %v5536
  %v5538 = vpop.xlane.xlu0 %5537
  %v5539 = vsel %vm1057, %v5252, -inf
  %5540 = vmax.xlane.f32.xlu0 %v5539
  %v5541 = vpop.xlane.xlu0 %5540
  %v5542 = vsel %vm1057, %v5255, -inf
  %5543 = vmax.xlane.f32.xlu0 %v5542
  %v5544 = vpop.xlane.xlu0 %5543
  %v5545 = vsel %vm1057, %v5258, -inf
  %5546 = vmax.xlane.f32.xlu0 %v5545
  %v5547 = vpop.xlane.xlu0 %5546
  %v5548 = vsel %vm1057, %v5261, -inf
  %5549 = vmax.xlane.f32.xlu0 %v5548
  %v5550 = vpop.xlane.xlu0 %5549
  %v5551 = vsel %vm1057, %v5264, -inf
  %5552 = vmax.xlane.f32.xlu0 %v5551
  %v5553 = vpop.xlane.xlu0 %5552
  %v5554 = vsel %vm1057, %v5267, -inf
  %5555 = vmax.xlane.f32.xlu0 %v5554
  %v5556 = vpop.xlane.xlu0 %5555
  %v5557 = vsel %vm1057, %v5270, -inf
  %5558 = vmax.xlane.f32.xlu0 %v5557
  %v5559 = vpop.xlane.xlu0 %5558
  %v5560 = vsel %vm1057, %v5273, -inf
  %5561 = vmax.xlane.f32.xlu0 %v5560
  %v5562 = vpop.xlane.xlu0 %5561
  %v5563 = vsel %vm1057, %v5276, -inf
  %5564 = vmax.xlane.f32.xlu0 %v5563
  %v5565 = vpop.xlane.xlu0 %5564
  %v5566 = vsel %vm1057, %v5279, -inf
  %5567 = vmax.xlane.f32.xlu0 %v5566
  %v5568 = vpop.xlane.xlu0 %5567
  %v5569 = vsel %vm1057, %v5282, -inf
  %5570 = vmax.xlane.f32.xlu0 %v5569
  %v5571 = vpop.xlane.xlu0 %5570
  %v5572 = vsel %vm1057, %v5285, -inf
  %5573 = vmax.xlane.f32.xlu0 %v5572
  %v5574 = vpop.xlane.xlu0 %5573
  %v5575 = vsel %vm1057, %v5288, -inf
  %5576 = vmax.xlane.f32.xlu0 %v5575
  %v5577 = vpop.xlane.xlu0 %5576
  %v5578 = vsel %vm1057, %v5291, -inf
  %5579 = vmax.xlane.f32.xlu0 %v5578
  %v5580 = vpop.xlane.xlu0 %5579
  %v5581 = vsel %vm1057, %v5294, -inf
  %5582 = vmax.xlane.f32.xlu0 %v5581
  %v5583 = vpop.xlane.xlu0 %5582
  %v5584 = vsel %vm1057, %v5297, -inf
  %5585 = vmax.xlane.f32.xlu0 %v5584
  %v5586 = vpop.xlane.xlu0 %5585
  %v5587 = vsel %vm1057, %v5300, -inf
  %5588 = vmax.xlane.f32.xlu0 %v5587
  %v5589 = vpop.xlane.xlu0 %5588
  %v5590 = vsel %vm1057, %v5303, -inf
  %5591 = vmax.xlane.f32.xlu0 %v5590
  %v5592 = vpop.xlane.xlu0 %5591
  %v5593 = vsel %vm1057, %v5306, -inf
  %5594 = vmax.xlane.f32.xlu0 %v5593
  %v5595 = vpop.xlane.xlu0 %5594
  %v5596 = vsel %vm1057, %v5309, -inf
  %5597 = vmax.xlane.f32.xlu0 %v5596
  %v5598 = vpop.xlane.xlu0 %5597
  %v5599 = vsel %vm1057, %v5312, -inf
  %5600 = vmax.xlane.f32.xlu0 %v5599
  %v5601 = vpop.xlane.xlu0 %5600
  %v5602 = vsel %vm1057, %v5315, -inf
  %5603 = vmax.xlane.f32.xlu0 %v5602
  %v5604 = vpop.xlane.xlu0 %5603
  %v5605 = vsel %vm1057, %v5318, -inf
  %5606 = vmax.xlane.f32.xlu0 %v5605
  %v5607 = vpop.xlane.xlu0 %5606
  %v5608 = vsel %vm1057, %v5321, -inf
  %5609 = vmax.xlane.f32.xlu0 %v5608
  %v5610 = vpop.xlane.xlu0 %5609
  %v5611 = vsel %vm1057, %v5324, -inf
  %5612 = vmax.xlane.f32.xlu0 %v5611
  %v5613 = vpop.xlane.xlu0 %5612
  %v5614 = vsel %vm1057, %v5327, -inf
  %5615 = vmax.xlane.f32.xlu0 %v5614
  %v5616 = vpop.xlane.xlu0 %5615
  %v5617 = vsel %vm1057, %v5330, -inf
  %5618 = vmax.xlane.f32.xlu0 %v5617
  %v5619 = vpop.xlane.xlu0 %5618
  %v5620 = vsel %vm1057, %v5333, -inf
  %5621 = vmax.xlane.f32.xlu0 %v5620
  %v5622 = vpop.xlane.xlu0 %5621
  %v5623 = vsel %vm1057, %v5336, -inf
  %5624 = vmax.xlane.f32.xlu0 %v5623
  %v5625 = vpop.xlane.xlu0 %5624
  %v5626 = vsel %vm1057, %v5339, -inf
  %5627 = vmax.xlane.f32.xlu0 %v5626
  %v5628 = vpop.xlane.xlu0 %5627
  %v5629 = vsel %vm1057, %v5342, -inf
  %5630 = vmax.xlane.f32.xlu0 %v5629
  %v5631 = vpop.xlane.xlu0 %5630
  %v5632 = vsel %vm1057, %v5345, -inf
  %5633 = vmax.xlane.f32.xlu0 %v5632
  %v5634 = vpop.xlane.xlu0 %5633
  %v5635 = vsel %vm1057, %v5348, -inf
  %5636 = vmax.xlane.f32.xlu0 %v5635
  %v5637 = vpop.xlane.xlu0 %5636
  %v5638 = vsel %vm1057, %v5351, -inf
  %5639 = vmax.xlane.f32.xlu0 %v5638
  %v5640 = vpop.xlane.xlu0 %5639
  %v5641 = vsel %vm1057, %v5354, -inf
  %5642 = vmax.xlane.f32.xlu0 %v5641
  %v5643 = vpop.xlane.xlu0 %5642
  %v5644 = vsel %vm1057, %v5357, -inf
  %5645 = vmax.xlane.f32.xlu0 %v5644
  %v5646 = vpop.xlane.xlu0 %5645
  %v5647 = vsel %vm1057, %v5360, -inf
  %5648 = vmax.xlane.f32.xlu0 %v5647
  %v5649 = vpop.xlane.xlu0 %5648
  %v5650 = vsel %vm1057, %v5363, -inf
  %5651 = vmax.xlane.f32.xlu0 %v5650
  %v5652 = vpop.xlane.xlu0 %5651
  %v5653 = vsel %vm1057, %v5366, -inf
  %5654 = vmax.xlane.f32.xlu0 %v5653
  %v5655 = vpop.xlane.xlu0 %5654
  %v5656 = vsel %vm1057, %v5369, -inf
  %5657 = vmax.xlane.f32.xlu0 %v5656
  %v5658 = vpop.xlane.xlu0 %5657
  %v5659 = vsel %vm1057, %v5372, -inf
  %5660 = vmax.xlane.f32.xlu0 %v5659
  %v5661 = vpop.xlane.xlu0 %5660
  %v5662 = vsel %vm1057, %v5375, -inf
  %5663 = vmax.xlane.f32.xlu0 %v5662
  %v5664 = vpop.xlane.xlu0 %5663
  %v5665 = vsel %vm1057, %v5378, -inf
  %5666 = vmax.xlane.f32.xlu0 %v5665
  %v5667 = vpop.xlane.xlu0 %5666
  %v5668 = vsel %vm1057, %v5381, -inf
  %5669 = vmax.xlane.f32.xlu0 %v5668
  %v5670 = vpop.xlane.xlu0 %5669
  %v5671 = vsel %vm1057, %v5384, -inf
  %5672 = vmax.xlane.f32.xlu0 %v5671
  %v5673 = vpop.xlane.xlu0 %5672
  %v5674 = vsel %vm1057, %v5387, -inf
  %5675 = vmax.xlane.f32.xlu0 %v5674
  %v5676 = vpop.xlane.xlu0 %5675
  %v5677 = vsel %vm1057, %v5390, -inf
  %5678 = vmax.xlane.f32.xlu0 %v5677
  %v5679 = vpop.xlane.xlu0 %5678
  %v5680 = vsel %vm1057, %v5393, -inf
  %5681 = vmax.xlane.f32.xlu0 %v5680
  %v5682 = vpop.xlane.xlu0 %5681
  %v5683 = vsel %vm1057, %v5396, -inf
  %5684 = vmax.xlane.f32.xlu0 %v5683
  %v5685 = vpop.xlane.xlu0 %5684
  %v5686 = vsel %vm1057, %v5399, -inf
  %5687 = vmax.xlane.f32.xlu0 %v5686
  %v5688 = vpop.xlane.xlu0 %5687
  %v5689 = vsel %vm1057, %v5402, -inf
  %5690 = vmax.xlane.f32.xlu0 %v5689
  %v5691 = vpop.xlane.xlu0 %5690
  %v5692 = vsel %vm1057, %v5405, -inf
  %5693 = vmax.xlane.f32.xlu0 %v5692
  %v5694 = vpop.xlane.xlu0 %5693
  %v5695 = vsel %vm1057, %v5408, -inf
  %5696 = vmax.xlane.f32.xlu0 %v5695
  %v5697 = vpop.xlane.xlu0 %5696
  %v5698 = vsel %vm1057, %v5411, -inf
  %5699 = vmax.xlane.f32.xlu0 %v5698
  %v5700 = vpop.xlane.xlu0 %5699
  %v5701 = vsel %vm1057, %v5414, -inf
  %5702 = vmax.xlane.f32.xlu0 %v5701
  %v5703 = vpop.xlane.xlu0 %5702
  %v5704 = vsel %vm1057, %v5417, -inf
  %5705 = vmax.xlane.f32.xlu0 %v5704
  %v5706 = vpop.xlane.xlu0 %5705
  %v5707 = vsel %vm1057, %v5420, -inf
  %5708 = vmax.xlane.f32.xlu0 %v5707
  %v5709 = vpop.xlane.xlu0 %5708
  %v5710 = vsel %vm1057, %v5423, -inf
  %5711 = vmax.xlane.f32.xlu0 %v5710
  %v5712 = vpop.xlane.xlu0 %5711
  %v5713 = vsel %vm1057, %v5426, -inf
  %5714 = vmax.xlane.f32.xlu0 %v5713
  %v5715 = vpop.xlane.xlu0 %5714
  %v5716 = vsel %vm1057, %v5429, -inf
  %5717 = vmax.xlane.f32.xlu0 %v5716
  %v5718 = vpop.xlane.xlu0 %5717
  %v5719 = vsel %vm1057, %v5432, -inf
  %5720 = vmax.xlane.f32.xlu0 %v5719
  %v5721 = vpop.xlane.xlu0 %5720
  %v5722 = vsel %vm1057, %v5435, -inf
  %5723 = vmax.xlane.f32.xlu0 %v5722
  %v5724 = vpop.xlane.xlu0 %5723
  %v5725 = vsel %vm1057, %v5438, -inf
  %5726 = vmax.xlane.f32.xlu0 %v5725
  %v5727 = vpop.xlane.xlu0 %5726
  %v5728 = vsel %vm1057, %v5441, -inf
  %5729 = vmax.xlane.f32.xlu0 %v5728
  %v5730 = vpop.xlane.xlu0 %5729
  %v5731 = vsel %vm1057, %v5444, -inf
  %5732 = vmax.xlane.f32.xlu0 %v5731
  %v5733 = vpop.xlane.xlu0 %5732
  %v5734 = vsel %vm1057, %v5447, -inf
  %5735 = vmax.xlane.f32.xlu0 %v5734
  %v5736 = vpop.xlane.xlu0 %5735
  %v5737 = vsel %vm1057, %v5450, -inf
  %5738 = vmax.xlane.f32.xlu0 %v5737
  %v5739 = vpop.xlane.xlu0 %5738
  %v5740 = vsel %vm1057, %v5453, -inf
  %5741 = vmax.xlane.f32.xlu0 %v5740
  %v5742 = vpop.xlane.xlu0 %5741
  %v5743 = vsel %vm1057, %v5456, -inf
  %5744 = vmax.xlane.f32.xlu0 %v5743
  %v5745 = vpop.xlane.xlu0 %5744
  %v5746 = vsel %vm1057, %v5459, -inf
  %5747 = vmax.xlane.f32.xlu0 %v5746
  %v5748 = vpop.xlane.xlu0 %5747
  %v5749 = vsel %vm1057, %v5462, -inf
  %5750 = vmax.xlane.f32.xlu0 %v5749
  %v5751 = vpop.xlane.xlu0 %5750
  %v5752 = vsel %vm1057, %v5465, -inf
  %5753 = vmax.xlane.f32.xlu0 %v5752
  %v5754 = vpop.xlane.xlu0 %5753
  %v5755 = vsel %vm1057, %v5468, -inf
  %5756 = vmax.xlane.f32.xlu0 %v5755
  %v5757 = vpop.xlane.xlu0 %5756
  %v5758 = vsel %vm1057, %v5471, -inf
  %5759 = vmax.xlane.f32.xlu0 %v5758
  %v5760 = vpop.xlane.xlu0 %5759
  %v5761 = vsel %vm1057, %v5474, -inf
  %5762 = vmax.xlane.f32.xlu0 %v5761
  %v5763 = vpop.xlane.xlu0 %5762
  %v5764 = vsel %vm1057, %v5477, -inf
  %5765 = vmax.xlane.f32.xlu0 %v5764
  %v5766 = vpop.xlane.xlu0 %5765
  %v5767 = vsel %vm1057, %v5480, -inf
  %5768 = vmax.xlane.f32.xlu0 %v5767
  %v5769 = vpop.xlane.xlu0 %5768
  %v5770 = vsel %vm1057, %v5483, -inf
  %5771 = vmax.xlane.f32.xlu0 %v5770
  %v5772 = vpop.xlane.xlu0 %5771
  %v5773 = vsel %vm1057, %v5486, -inf
  %5774 = vmax.xlane.f32.xlu0 %v5773
  %v5775 = vpop.xlane.xlu0 %5774
  %v5776 = vsel %vm1057, %v5489, -inf
  %5777 = vmax.xlane.f32.xlu0 %v5776
  %v5778 = vpop.xlane.xlu0 %5777
  %v5779 = vsel %vm1057, %v5492, -inf
  %5780 = vmax.xlane.f32.xlu0 %v5779
  %v5781 = vpop.xlane.xlu0 %5780
  %v5782 = vsel %vm1057, %v5495, -inf
  %5783 = vmax.xlane.f32.xlu0 %v5782
  %v5784 = vpop.xlane.xlu0 %5783
  %v5785 = vsel %vm1057, %v5498, -inf
  %5786 = vmax.xlane.f32.xlu0 %v5785
  %v5787 = vpop.xlane.xlu0 %5786
  %v5788 = vsel %vm1057, %v5501, -inf
  %5789 = vmax.xlane.f32.xlu0 %v5788
  %v5790 = vpop.xlane.xlu0 %5789
  %v5791 = vsel %vm1057, %v5504, -inf
  %5792 = vmax.xlane.f32.xlu0 %v5791
  %v5793 = vpop.xlane.xlu0 %5792
  %v5794 = vsel %vm1057, %v5507, -inf
  %5795 = vmax.xlane.f32.xlu0 %v5794
  %v5796 = vpop.xlane.xlu0 %5795
  %v5797 = vsel %vm1057, %v5510, -inf
  %5798 = vmax.xlane.f32.xlu0 %v5797
  %v5799 = vpop.xlane.xlu0 %5798
  %v5800 = vsel %vm1057, %v5513, -inf
  %5801 = vmax.xlane.f32.xlu0 %v5800
  %v5802 = vpop.xlane.xlu0 %5801
  %v5803 = vsel %vm1057, %v5516, -inf
  %5804 = vmax.xlane.f32.xlu0 %v5803
  %v5805 = vpop.xlane.xlu0 %5804
  %v5806 = vsel %vm1057, %v5519, -inf
  %5807 = vmax.xlane.f32.xlu0 %v5806
  %v5808 = vpop.xlane.xlu0 %5807
  %v5809 = vsel %vm1057, %v5522, -inf
  %5810 = vmax.xlane.f32.xlu0 %v5809
  %v5811 = vpop.xlane.xlu0 %5810
  %v5812 = vsel %vm1057, %v5525, -inf
  %5813 = vmax.xlane.f32.xlu0 %v5812
  %v5814 = vpop.xlane.xlu0 %5813
  %v5815 = vsub.f32 %v5240, %v5529
  %v5816 = vsub.f32 %v5243, %v5532
  %v5817 = vsub.f32 %v5246, %v5535
  %v5818 = vsub.f32 %v5249, %v5538
  %v5819 = vsub.f32 %v5252, %v5541
  %v5820 = vsub.f32 %v5255, %v5544
  %v5821 = vsub.f32 %v5258, %v5547
  %v5822 = vsub.f32 %v5261, %v5550
  %v5823 = vsub.f32 %v5264, %v5553
  %v5824 = vsub.f32 %v5267, %v5556
  %v5825 = vsub.f32 %v5270, %v5559
  %v5826 = vsub.f32 %v5273, %v5562
  %v5827 = vsub.f32 %v5276, %v5565
  %v5828 = vsub.f32 %v5279, %v5568
  %v5829 = vsub.f32 %v5282, %v5571
  %v5830 = vsub.f32 %v5285, %v5574
  %v5831 = vsub.f32 %v5288, %v5577
  %v5832 = vsub.f32 %v5291, %v5580
  %v5833 = vsub.f32 %v5294, %v5583
  %v5834 = vsub.f32 %v5297, %v5586
  %v5835 = vsub.f32 %v5300, %v5589
  %v5836 = vsub.f32 %v5303, %v5592
  %v5837 = vsub.f32 %v5306, %v5595
  %v5838 = vsub.f32 %v5309, %v5598
  %v5839 = vsub.f32 %v5312, %v5601
  %v5840 = vsub.f32 %v5315, %v5604
  %v5841 = vsub.f32 %v5318, %v5607
  %v5842 = vsub.f32 %v5321, %v5610
  %v5843 = vsub.f32 %v5324, %v5613
  %v5844 = vsub.f32 %v5327, %v5616
  %v5845 = vsub.f32 %v5330, %v5619
  %v5846 = vsub.f32 %v5333, %v5622
  %v5847 = vsub.f32 %v5336, %v5625
  %v5848 = vsub.f32 %v5339, %v5628
  %v5849 = vsub.f32 %v5342, %v5631
  %v5850 = vsub.f32 %v5345, %v5634
  %v5851 = vsub.f32 %v5348, %v5637
  %v5852 = vsub.f32 %v5351, %v5640
  %v5853 = vsub.f32 %v5354, %v5643
  %v5854 = vsub.f32 %v5357, %v5646
  %v5855 = vsub.f32 %v5360, %v5649
  %v5856 = vsub.f32 %v5363, %v5652
  %v5857 = vsub.f32 %v5366, %v5655
  %v5858 = vsub.f32 %v5369, %v5658
  %v5859 = vsub.f32 %v5372, %v5661
  %v5860 = vsub.f32 %v5375, %v5664
  %v5861 = vsub.f32 %v5378, %v5667
  %v5862 = vsub.f32 %v5381, %v5670
  %v5863 = vsub.f32 %v5384, %v5673
  %v5864 = vsub.f32 %v5387, %v5676
  %v5865 = vsub.f32 %v5390, %v5679
  %v5866 = vsub.f32 %v5393, %v5682
  %v5867 = vsub.f32 %v5396, %v5685
  %v5868 = vsub.f32 %v5399, %v5688
  %v5869 = vsub.f32 %v5402, %v5691
  %v5870 = vsub.f32 %v5405, %v5694
  %v5871 = vsub.f32 %v5408, %v5697
  %v5872 = vsub.f32 %v5411, %v5700
  %v5873 = vsub.f32 %v5414, %v5703
  %v5874 = vsub.f32 %v5417, %v5706
  %v5875 = vsub.f32 %v5420, %v5709
  %v5876 = vsub.f32 %v5423, %v5712
  %v5877 = vsub.f32 %v5426, %v5715
  %v5878 = vsub.f32 %v5429, %v5718
  %v5879 = vsub.f32 %v5432, %v5721
  %v5880 = vsub.f32 %v5435, %v5724
  %v5881 = vsub.f32 %v5438, %v5727
  %v5882 = vsub.f32 %v5441, %v5730
  %v5883 = vsub.f32 %v5444, %v5733
  %v5884 = vsub.f32 %v5447, %v5736
  %v5885 = vsub.f32 %v5450, %v5739
  %v5886 = vsub.f32 %v5453, %v5742
  %v5887 = vsub.f32 %v5456, %v5745
  %v5888 = vsub.f32 %v5459, %v5748
  %v5889 = vsub.f32 %v5462, %v5751
  %v5890 = vsub.f32 %v5465, %v5754
  %v5891 = vsub.f32 %v5468, %v5757
  %v5892 = vsub.f32 %v5471, %v5760
  %v5893 = vsub.f32 %v5474, %v5763
  %v5894 = vsub.f32 %v5477, %v5766
  %v5895 = vsub.f32 %v5480, %v5769
  %v5896 = vsub.f32 %v5483, %v5772
  %v5897 = vsub.f32 %v5486, %v5775
  %v5898 = vsub.f32 %v5489, %v5778
  %v5899 = vsub.f32 %v5492, %v5781
  %v5900 = vsub.f32 %v5495, %v5784
  %v5901 = vsub.f32 %v5498, %v5787
  %v5902 = vsub.f32 %v5501, %v5790
  %v5903 = vsub.f32 %v5504, %v5793
  %v5904 = vsub.f32 %v5507, %v5796
  %v5905 = vsub.f32 %v5510, %v5799
  %v5906 = vsub.f32 %v5513, %v5802
  %v5907 = vsub.f32 %v5516, %v5805
  %v5908 = vsub.f32 %v5519, %v5808
  %v5909 = vsub.f32 %v5522, %v5811
  %v5910 = vsub.f32 %v5525, %v5814
  %v5911 = vmul.f32 %v5815, 1.442695
  %v5912 = vpow.pop %v5911
  %v5913 = vmul.f32 %v5816, 1.442695
  %v5914 = vpow.pop %v5913
  %v5915 = vmul.f32 %v5817, 1.442695
  %v5916 = vpow.pop %v5915
  %v5917 = vmul.f32 %v5818, 1.442695
  %v5918 = vpow.pop %v5917
  %v5919 = vmul.f32 %v5819, 1.442695
  %v5920 = vpow.pop %v5919
  %v5921 = vmul.f32 %v5820, 1.442695
  %v5922 = vpow.pop %v5921
  %v5923 = vmul.f32 %v5821, 1.442695
  %v5924 = vpow.pop %v5923
  %v5925 = vmul.f32 %v5822, 1.442695
  %v5926 = vpow.pop %v5925
  %v5927 = vmul.f32 %v5823, 1.442695
  %v5928 = vpow.pop %v5927
  %v5929 = vmul.f32 %v5824, 1.442695
  %v5930 = vpow.pop %v5929
  %v5931 = vmul.f32 %v5825, 1.442695
  %v5932 = vpow.pop %v5931
  %v5933 = vmul.f32 %v5826, 1.442695
  %v5934 = vpow.pop %v5933
  %v5935 = vmul.f32 %v5827, 1.442695
  %v5936 = vpow.pop %v5935
  %v5937 = vmul.f32 %v5828, 1.442695
  %v5938 = vpow.pop %v5937
  %v5939 = vmul.f32 %v5829, 1.442695
  %v5940 = vpow.pop %v5939
  %v5941 = vmul.f32 %v5830, 1.442695
  %v5942 = vpow.pop %v5941
  %v5943 = vmul.f32 %v5831, 1.442695
  %v5944 = vpow.pop %v5943
  %v5945 = vmul.f32 %v5832, 1.442695
  %v5946 = vpow.pop %v5945
  %v5947 = vmul.f32 %v5833, 1.442695
  %v5948 = vpow.pop %v5947
  %v5949 = vmul.f32 %v5834, 1.442695
  %v5950 = vpow.pop %v5949
  %v5951 = vmul.f32 %v5835, 1.442695
  %v5952 = vpow.pop %v5951
  %v5953 = vmul.f32 %v5836, 1.442695
  %v5954 = vpow.pop %v5953
  %v5955 = vmul.f32 %v5837, 1.442695
  %v5956 = vpow.pop %v5955
  %v5957 = vmul.f32 %v5838, 1.442695
  %v5958 = vpow.pop %v5957
  %v5959 = vmul.f32 %v5839, 1.442695
  %v5960 = vpow.pop %v5959
  %v5961 = vmul.f32 %v5840, 1.442695
  %v5962 = vpow.pop %v5961
  %v5963 = vmul.f32 %v5841, 1.442695
  %v5964 = vpow.pop %v5963
  %v5965 = vmul.f32 %v5842, 1.442695
  %v5966 = vpow.pop %v5965
  %v5967 = vmul.f32 %v5843, 1.442695
  %v5968 = vpow.pop %v5967
  %v5969 = vmul.f32 %v5844, 1.442695
  %v5970 = vpow.pop %v5969
  %v5971 = vmul.f32 %v5845, 1.442695
  %v5972 = vpow.pop %v5971
  %v5973 = vmul.f32 %v5846, 1.442695
  %v5974 = vpow.pop %v5973
  %v5975 = vmul.f32 %v5847, 1.442695
  %v5976 = vpow.pop %v5975
  %v5977 = vmul.f32 %v5848, 1.442695
  %v5978 = vpow.pop %v5977
  %v5979 = vmul.f32 %v5849, 1.442695
  %v5980 = vpow.pop %v5979
  %v5981 = vmul.f32 %v5850, 1.442695
  %v5982 = vpow.pop %v5981
  %v5983 = vmul.f32 %v5851, 1.442695
  %v5984 = vpow.pop %v5983
  %v5985 = vmul.f32 %v5852, 1.442695
  %v5986 = vpow.pop %v5985
  %v5987 = vmul.f32 %v5853, 1.442695
  %v5988 = vpow.pop %v5987
  %v5989 = vmul.f32 %v5854, 1.442695
  %v5990 = vpow.pop %v5989
  %v5991 = vmul.f32 %v5855, 1.442695
  %v5992 = vpow.pop %v5991
  %v5993 = vmul.f32 %v5856, 1.442695
  %v5994 = vpow.pop %v5993
  %v5995 = vmul.f32 %v5857, 1.442695
  %v5996 = vpow.pop %v5995
  %v5997 = vmul.f32 %v5858, 1.442695
  %v5998 = vpow.pop %v5997
  %v5999 = vmul.f32 %v5859, 1.442695
  %v6000 = vpow.pop %v5999
  %v6001 = vmul.f32 %v5860, 1.442695
  %v6002 = vpow.pop %v6001
  %v6003 = vmul.f32 %v5861, 1.442695
  %v6004 = vpow.pop %v6003
  %v6005 = vmul.f32 %v5862, 1.442695
  %v6006 = vpow.pop %v6005
  %v6007 = vmul.f32 %v5863, 1.442695
  %v6008 = vpow.pop %v6007
  %v6009 = vmul.f32 %v5864, 1.442695
  %v6010 = vpow.pop %v6009
  %v6011 = vmul.f32 %v5865, 1.442695
  %v6012 = vpow.pop %v6011
  %v6013 = vmul.f32 %v5866, 1.442695
  %v6014 = vpow.pop %v6013
  %v6015 = vmul.f32 %v5867, 1.442695
  %v6016 = vpow.pop %v6015
  %v6017 = vmul.f32 %v5868, 1.442695
  %v6018 = vpow.pop %v6017
  %v6019 = vmul.f32 %v5869, 1.442695
  %v6020 = vpow.pop %v6019
  %v6021 = vmul.f32 %v5870, 1.442695
  %v6022 = vpow.pop %v6021
  %v6023 = vmul.f32 %v5871, 1.442695
  %v6024 = vpow.pop %v6023
  %v6025 = vmul.f32 %v5872, 1.442695
  %v6026 = vpow.pop %v6025
  %v6027 = vmul.f32 %v5873, 1.442695
  %v6028 = vpow.pop %v6027
  %v6029 = vmul.f32 %v5874, 1.442695
  %v6030 = vpow.pop %v6029
  %v6031 = vmul.f32 %v5875, 1.442695
  %v6032 = vpow.pop %v6031
  %v6033 = vmul.f32 %v5876, 1.442695
  %v6034 = vpow.pop %v6033
  %v6035 = vmul.f32 %v5877, 1.442695
  %v6036 = vpow.pop %v6035
  %v6037 = vmul.f32 %v5878, 1.442695
  %v6038 = vpow.pop %v6037
  %v6039 = vmul.f32 %v5879, 1.442695
  %v6040 = vpow.pop %v6039
  %v6041 = vmul.f32 %v5880, 1.442695
  %v6042 = vpow.pop %v6041
  %v6043 = vmul.f32 %v5881, 1.442695
  %v6044 = vpow.pop %v6043
  %v6045 = vmul.f32 %v5882, 1.442695
  %v6046 = vpow.pop %v6045
  %v6047 = vmul.f32 %v5883, 1.442695
  %v6048 = vpow.pop %v6047
  %v6049 = vmul.f32 %v5884, 1.442695
  %v6050 = vpow.pop %v6049
  %v6051 = vmul.f32 %v5885, 1.442695
  %v6052 = vpow.pop %v6051
  %v6053 = vmul.f32 %v5886, 1.442695
  %v6054 = vpow.pop %v6053
  %v6055 = vmul.f32 %v5887, 1.442695
  %v6056 = vpow.pop %v6055
  %v6057 = vmul.f32 %v5888, 1.442695
  %v6058 = vpow.pop %v6057
  %v6059 = vmul.f32 %v5889, 1.442695
  %v6060 = vpow.pop %v6059
  %v6061 = vmul.f32 %v5890, 1.442695
  %v6062 = vpow.pop %v6061
  %v6063 = vmul.f32 %v5891, 1.442695
  %v6064 = vpow.pop %v6063
  %v6065 = vmul.f32 %v5892, 1.442695
  %v6066 = vpow.pop %v6065
  %v6067 = vmul.f32 %v5893, 1.442695
  %v6068 = vpow.pop %v6067
  %v6069 = vmul.f32 %v5894, 1.442695
  %v6070 = vpow.pop %v6069
  %v6071 = vmul.f32 %v5895, 1.442695
  %v6072 = vpow.pop %v6071
  %v6073 = vmul.f32 %v5896, 1.442695
  %v6074 = vpow.pop %v6073
  %v6075 = vmul.f32 %v5897, 1.442695
  %v6076 = vpow.pop %v6075
  %v6077 = vmul.f32 %v5898, 1.442695
  %v6078 = vpow.pop %v6077
  %v6079 = vmul.f32 %v5899, 1.442695
  %v6080 = vpow.pop %v6079
  %v6081 = vmul.f32 %v5900, 1.442695
  %v6082 = vpow.pop %v6081
  %v6083 = vmul.f32 %v5901, 1.442695
  %v6084 = vpow.pop %v6083
  %v6085 = vmul.f32 %v5902, 1.442695
  %v6086 = vpow.pop %v6085
  %v6087 = vmul.f32 %v5903, 1.442695
  %v6088 = vpow.pop %v6087
  %v6089 = vmul.f32 %v5904, 1.442695
  %v6090 = vpow.pop %v6089
  %v6091 = vmul.f32 %v5905, 1.442695
  %v6092 = vpow.pop %v6091
  %v6093 = vmul.f32 %v5906, 1.442695
  %v6094 = vpow.pop %v6093
  %v6095 = vmul.f32 %v5907, 1.442695
  %v6096 = vpow.pop %v6095
  %v6097 = vmul.f32 %v5908, 1.442695
  %v6098 = vpow.pop %v6097
  %v6099 = vmul.f32 %v5909, 1.442695
  %v6100 = vpow.pop %v6099
  %v6101 = vmul.f32 %v5910, 1.442695
  %v6102 = vpow.pop %v6101
  %v6103 = vsel %vm1057, %v5912, 0.0
  %6104 = vadd.xlane.f32.xlu0 %v6103
  %v6105 = vpop.xlane.xlu0 %6104
  %v6106 = vsel %vm1057, %v5914, 0.0
  %6107 = vadd.xlane.f32.xlu0 %v6106
  %v6108 = vpop.xlane.xlu0 %6107
  %v6109 = vsel %vm1057, %v5916, 0.0
  %6110 = vadd.xlane.f32.xlu0 %v6109
  %v6111 = vpop.xlane.xlu0 %6110
  %v6112 = vsel %vm1057, %v5918, 0.0
  %6113 = vadd.xlane.f32.xlu0 %v6112
  %v6114 = vpop.xlane.xlu0 %6113
  %v6115 = vsel %vm1057, %v5920, 0.0
  %6116 = vadd.xlane.f32.xlu0 %v6115
  %v6117 = vpop.xlane.xlu0 %6116
  %v6118 = vsel %vm1057, %v5922, 0.0
  %6119 = vadd.xlane.f32.xlu0 %v6118
  %v6120 = vpop.xlane.xlu0 %6119
  %v6121 = vsel %vm1057, %v5924, 0.0
  %6122 = vadd.xlane.f32.xlu0 %v6121
  %v6123 = vpop.xlane.xlu0 %6122
  %v6124 = vsel %vm1057, %v5926, 0.0
  %6125 = vadd.xlane.f32.xlu0 %v6124
  %v6126 = vpop.xlane.xlu0 %6125
  %v6127 = vsel %vm1057, %v5928, 0.0
  %6128 = vadd.xlane.f32.xlu0 %v6127
  %v6129 = vpop.xlane.xlu0 %6128
  %v6130 = vsel %vm1057, %v5930, 0.0
  %6131 = vadd.xlane.f32.xlu0 %v6130
  %v6132 = vpop.xlane.xlu0 %6131
  %v6133 = vsel %vm1057, %v5932, 0.0
  %6134 = vadd.xlane.f32.xlu0 %v6133
  %v6135 = vpop.xlane.xlu0 %6134
  %v6136 = vsel %vm1057, %v5934, 0.0
  %6137 = vadd.xlane.f32.xlu0 %v6136
  %v6138 = vpop.xlane.xlu0 %6137
  %v6139 = vsel %vm1057, %v5936, 0.0
  %6140 = vadd.xlane.f32.xlu0 %v6139
  %v6141 = vpop.xlane.xlu0 %6140
  %v6142 = vsel %vm1057, %v5938, 0.0
  %6143 = vadd.xlane.f32.xlu0 %v6142
  %v6144 = vpop.xlane.xlu0 %6143
  %v6145 = vsel %vm1057, %v5940, 0.0
  %6146 = vadd.xlane.f32.xlu0 %v6145
  %v6147 = vpop.xlane.xlu0 %6146
  %v6148 = vsel %vm1057, %v5942, 0.0
  %6149 = vadd.xlane.f32.xlu0 %v6148
  %v6150 = vpop.xlane.xlu0 %6149
  %v6151 = vsel %vm1057, %v5944, 0.0
  %6152 = vadd.xlane.f32.xlu0 %v6151
  %v6153 = vpop.xlane.xlu0 %6152
  %v6154 = vsel %vm1057, %v5946, 0.0
  %6155 = vadd.xlane.f32.xlu0 %v6154
  %v6156 = vpop.xlane.xlu0 %6155
  %v6157 = vsel %vm1057, %v5948, 0.0
  %6158 = vadd.xlane.f32.xlu0 %v6157
  %v6159 = vpop.xlane.xlu0 %6158
  %v6160 = vsel %vm1057, %v5950, 0.0
  %6161 = vadd.xlane.f32.xlu0 %v6160
  %v6162 = vpop.xlane.xlu0 %6161
  %v6163 = vsel %vm1057, %v5952, 0.0
  %6164 = vadd.xlane.f32.xlu0 %v6163
  %v6165 = vpop.xlane.xlu0 %6164
  %v6166 = vsel %vm1057, %v5954, 0.0
  %6167 = vadd.xlane.f32.xlu0 %v6166
  %v6168 = vpop.xlane.xlu0 %6167
  %v6169 = vsel %vm1057, %v5956, 0.0
  %6170 = vadd.xlane.f32.xlu0 %v6169
  %v6171 = vpop.xlane.xlu0 %6170
  %v6172 = vsel %vm1057, %v5958, 0.0
  %6173 = vadd.xlane.f32.xlu0 %v6172
  %v6174 = vpop.xlane.xlu0 %6173
  %v6175 = vsel %vm1057, %v5960, 0.0
  %6176 = vadd.xlane.f32.xlu0 %v6175
  %v6177 = vpop.xlane.xlu0 %6176
  %v6178 = vsel %vm1057, %v5962, 0.0
  %6179 = vadd.xlane.f32.xlu0 %v6178
  %v6180 = vpop.xlane.xlu0 %6179
  %v6181 = vsel %vm1057, %v5964, 0.0
  %6182 = vadd.xlane.f32.xlu0 %v6181
  %v6183 = vpop.xlane.xlu0 %6182
  %v6184 = vsel %vm1057, %v5966, 0.0
  %6185 = vadd.xlane.f32.xlu0 %v6184
  %v6186 = vpop.xlane.xlu0 %6185
  %v6187 = vsel %vm1057, %v5968, 0.0
  %6188 = vadd.xlane.f32.xlu0 %v6187
  %v6189 = vpop.xlane.xlu0 %6188
  %v6190 = vsel %vm1057, %v5970, 0.0
  %6191 = vadd.xlane.f32.xlu0 %v6190
  %v6192 = vpop.xlane.xlu0 %6191
  %v6193 = vsel %vm1057, %v5972, 0.0
  %6194 = vadd.xlane.f32.xlu0 %v6193
  %v6195 = vpop.xlane.xlu0 %6194
  %v6196 = vsel %vm1057, %v5974, 0.0
  %6197 = vadd.xlane.f32.xlu0 %v6196
  %v6198 = vpop.xlane.xlu0 %6197
  %v6199 = vsel %vm1057, %v5976, 0.0
  %6200 = vadd.xlane.f32.xlu0 %v6199
  %v6201 = vpop.xlane.xlu0 %6200
  %v6202 = vsel %vm1057, %v5978, 0.0
  %6203 = vadd.xlane.f32.xlu0 %v6202
  %v6204 = vpop.xlane.xlu0 %6203
  %v6205 = vsel %vm1057, %v5980, 0.0
  %6206 = vadd.xlane.f32.xlu0 %v6205
  %v6207 = vpop.xlane.xlu0 %6206
  %v6208 = vsel %vm1057, %v5982, 0.0
  %6209 = vadd.xlane.f32.xlu0 %v6208
  %v6210 = vpop.xlane.xlu0 %6209
  %v6211 = vsel %vm1057, %v5984, 0.0
  %6212 = vadd.xlane.f32.xlu0 %v6211
  %v6213 = vpop.xlane.xlu0 %6212
  %v6214 = vsel %vm1057, %v5986, 0.0
  %6215 = vadd.xlane.f32.xlu0 %v6214
  %v6216 = vpop.xlane.xlu0 %6215
  %v6217 = vsel %vm1057, %v5988, 0.0
  %6218 = vadd.xlane.f32.xlu0 %v6217
  %v6219 = vpop.xlane.xlu0 %6218
  %v6220 = vsel %vm1057, %v5990, 0.0
  %6221 = vadd.xlane.f32.xlu0 %v6220
  %v6222 = vpop.xlane.xlu0 %6221
  %v6223 = vsel %vm1057, %v5992, 0.0
  %6224 = vadd.xlane.f32.xlu0 %v6223
  %v6225 = vpop.xlane.xlu0 %6224
  %v6226 = vsel %vm1057, %v5994, 0.0
  %6227 = vadd.xlane.f32.xlu0 %v6226
  %v6228 = vpop.xlane.xlu0 %6227
  %v6229 = vsel %vm1057, %v5996, 0.0
  %6230 = vadd.xlane.f32.xlu0 %v6229
  %v6231 = vpop.xlane.xlu0 %6230
  %v6232 = vsel %vm1057, %v5998, 0.0
  %6233 = vadd.xlane.f32.xlu0 %v6232
  %v6234 = vpop.xlane.xlu0 %6233
  %v6235 = vsel %vm1057, %v6000, 0.0
  %6236 = vadd.xlane.f32.xlu0 %v6235
  %v6237 = vpop.xlane.xlu0 %6236
  %v6238 = vsel %vm1057, %v6002, 0.0
  %6239 = vadd.xlane.f32.xlu0 %v6238
  %v6240 = vpop.xlane.xlu0 %6239
  %v6241 = vsel %vm1057, %v6004, 0.0
  %6242 = vadd.xlane.f32.xlu0 %v6241
  %v6243 = vpop.xlane.xlu0 %6242
  %v6244 = vsel %vm1057, %v6006, 0.0
  %6245 = vadd.xlane.f32.xlu0 %v6244
  %v6246 = vpop.xlane.xlu0 %6245
  %v6247 = vsel %vm1057, %v6008, 0.0
  %6248 = vadd.xlane.f32.xlu0 %v6247
  %v6249 = vpop.xlane.xlu0 %6248
  %v6250 = vsel %vm1057, %v6010, 0.0
  %6251 = vadd.xlane.f32.xlu0 %v6250
  %v6252 = vpop.xlane.xlu0 %6251
  %v6253 = vsel %vm1057, %v6012, 0.0
  %6254 = vadd.xlane.f32.xlu0 %v6253
  %v6255 = vpop.xlane.xlu0 %6254
  %v6256 = vsel %vm1057, %v6014, 0.0
  %6257 = vadd.xlane.f32.xlu0 %v6256
  %v6258 = vpop.xlane.xlu0 %6257
  %v6259 = vsel %vm1057, %v6016, 0.0
  %6260 = vadd.xlane.f32.xlu0 %v6259
  %v6261 = vpop.xlane.xlu0 %6260
  %v6262 = vsel %vm1057, %v6018, 0.0
  %6263 = vadd.xlane.f32.xlu0 %v6262
  %v6264 = vpop.xlane.xlu0 %6263
  %v6265 = vsel %vm1057, %v6020, 0.0
  %6266 = vadd.xlane.f32.xlu0 %v6265
  %v6267 = vpop.xlane.xlu0 %6266
  %v6268 = vsel %vm1057, %v6022, 0.0
  %6269 = vadd.xlane.f32.xlu0 %v6268
  %v6270 = vpop.xlane.xlu0 %6269
  %v6271 = vsel %vm1057, %v6024, 0.0
  %6272 = vadd.xlane.f32.xlu0 %v6271
  %v6273 = vpop.xlane.xlu0 %6272
  %v6274 = vsel %vm1057, %v6026, 0.0
  %6275 = vadd.xlane.f32.xlu0 %v6274
  %v6276 = vpop.xlane.xlu0 %6275
  %v6277 = vsel %vm1057, %v6028, 0.0
  %6278 = vadd.xlane.f32.xlu0 %v6277
  %v6279 = vpop.xlane.xlu0 %6278
  %v6280 = vsel %vm1057, %v6030, 0.0
  %6281 = vadd.xlane.f32.xlu0 %v6280
  %v6282 = vpop.xlane.xlu0 %6281
  %v6283 = vsel %vm1057, %v6032, 0.0
  %6284 = vadd.xlane.f32.xlu0 %v6283
  %v6285 = vpop.xlane.xlu0 %6284
  %v6286 = vsel %vm1057, %v6034, 0.0
  %6287 = vadd.xlane.f32.xlu0 %v6286
  %v6288 = vpop.xlane.xlu0 %6287
  %v6289 = vsel %vm1057, %v6036, 0.0
  %6290 = vadd.xlane.f32.xlu0 %v6289
  %v6291 = vpop.xlane.xlu0 %6290
  %v6292 = vsel %vm1057, %v6038, 0.0
  %6293 = vadd.xlane.f32.xlu0 %v6292
  %v6294 = vpop.xlane.xlu0 %6293
  %v6295 = vsel %vm1057, %v6040, 0.0
  %6296 = vadd.xlane.f32.xlu0 %v6295
  %v6297 = vpop.xlane.xlu0 %6296
  %v6298 = vsel %vm1057, %v6042, 0.0
  %6299 = vadd.xlane.f32.xlu0 %v6298
  %v6300 = vpop.xlane.xlu0 %6299
  %v6301 = vsel %vm1057, %v6044, 0.0
  %6302 = vadd.xlane.f32.xlu0 %v6301
  %v6303 = vpop.xlane.xlu0 %6302
  %v6304 = vsel %vm1057, %v6046, 0.0
  %6305 = vadd.xlane.f32.xlu0 %v6304
  %v6306 = vpop.xlane.xlu0 %6305
  %v6307 = vsel %vm1057, %v6048, 0.0
  %6308 = vadd.xlane.f32.xlu0 %v6307
  %v6309 = vpop.xlane.xlu0 %6308
  %v6310 = vsel %vm1057, %v6050, 0.0
  %6311 = vadd.xlane.f32.xlu0 %v6310
  %v6312 = vpop.xlane.xlu0 %6311
  %v6313 = vsel %vm1057, %v6052, 0.0
  %6314 = vadd.xlane.f32.xlu0 %v6313
  %v6315 = vpop.xlane.xlu0 %6314
  %v6316 = vsel %vm1057, %v6054, 0.0
  %6317 = vadd.xlane.f32.xlu0 %v6316
  %v6318 = vpop.xlane.xlu0 %6317
  %v6319 = vsel %vm1057, %v6056, 0.0
  %6320 = vadd.xlane.f32.xlu0 %v6319
  %v6321 = vpop.xlane.xlu0 %6320
  %v6322 = vsel %vm1057, %v6058, 0.0
  %6323 = vadd.xlane.f32.xlu0 %v6322
  %v6324 = vpop.xlane.xlu0 %6323
  %v6325 = vsel %vm1057, %v6060, 0.0
  %6326 = vadd.xlane.f32.xlu0 %v6325
  %v6327 = vpop.xlane.xlu0 %6326
  %v6328 = vsel %vm1057, %v6062, 0.0
  %6329 = vadd.xlane.f32.xlu0 %v6328
  %v6330 = vpop.xlane.xlu0 %6329
  %v6331 = vsel %vm1057, %v6064, 0.0
  %6332 = vadd.xlane.f32.xlu0 %v6331
  %v6333 = vpop.xlane.xlu0 %6332
  %v6334 = vsel %vm1057, %v6066, 0.0
  %6335 = vadd.xlane.f32.xlu0 %v6334
  %v6336 = vpop.xlane.xlu0 %6335
  %v6337 = vsel %vm1057, %v6068, 0.0
  %6338 = vadd.xlane.f32.xlu0 %v6337
  %v6339 = vpop.xlane.xlu0 %6338
  %v6340 = vsel %vm1057, %v6070, 0.0
  %6341 = vadd.xlane.f32.xlu0 %v6340
  %v6342 = vpop.xlane.xlu0 %6341
  %v6343 = vsel %vm1057, %v6072, 0.0
  %6344 = vadd.xlane.f32.xlu0 %v6343
  %v6345 = vpop.xlane.xlu0 %6344
  %v6346 = vsel %vm1057, %v6074, 0.0
  %6347 = vadd.xlane.f32.xlu0 %v6346
  %v6348 = vpop.xlane.xlu0 %6347
  %v6349 = vsel %vm1057, %v6076, 0.0
  %6350 = vadd.xlane.f32.xlu0 %v6349
  %v6351 = vpop.xlane.xlu0 %6350
  %v6352 = vsel %vm1057, %v6078, 0.0
  %6353 = vadd.xlane.f32.xlu0 %v6352
  %v6354 = vpop.xlane.xlu0 %6353
  %v6355 = vsel %vm1057, %v6080, 0.0
  %6356 = vadd.xlane.f32.xlu0 %v6355
  %v6357 = vpop.xlane.xlu0 %6356
  %v6358 = vsel %vm1057, %v6082, 0.0
  %6359 = vadd.xlane.f32.xlu0 %v6358
  %v6360 = vpop.xlane.xlu0 %6359
  %v6361 = vsel %vm1057, %v6084, 0.0
  %6362 = vadd.xlane.f32.xlu0 %v6361
  %v6363 = vpop.xlane.xlu0 %6362
  %v6364 = vsel %vm1057, %v6086, 0.0
  %6365 = vadd.xlane.f32.xlu0 %v6364
  %v6366 = vpop.xlane.xlu0 %6365
  %v6367 = vsel %vm1057, %v6088, 0.0
  %6368 = vadd.xlane.f32.xlu0 %v6367
  %v6369 = vpop.xlane.xlu0 %6368
  %v6370 = vsel %vm1057, %v6090, 0.0
  %6371 = vadd.xlane.f32.xlu0 %v6370
  %v6372 = vpop.xlane.xlu0 %6371
  %v6373 = vsel %vm1057, %v6092, 0.0
  %6374 = vadd.xlane.f32.xlu0 %v6373
  %v6375 = vpop.xlane.xlu0 %6374
  %v6376 = vsel %vm1057, %v6094, 0.0
  %6377 = vadd.xlane.f32.xlu0 %v6376
  %v6378 = vpop.xlane.xlu0 %6377
  %v6379 = vsel %vm1057, %v6096, 0.0
  %6380 = vadd.xlane.f32.xlu0 %v6379
  %v6381 = vpop.xlane.xlu0 %6380
  %v6382 = vsel %vm1057, %v6098, 0.0
  %6383 = vadd.xlane.f32.xlu0 %v6382
  %v6384 = vpop.xlane.xlu0 %6383
  %v6385 = vsel %vm1057, %v6100, 0.0
  %6386 = vadd.xlane.f32.xlu0 %v6385
  %v6387 = vpop.xlane.xlu0 %6386
  %v6388 = vsel %vm1057, %v6102, 0.0
  %6389 = vadd.xlane.f32.xlu0 %v6388
  %v6390 = vpop.xlane.xlu0 %6389
  %v6391 = vrcp.pop %v6105
  %v6392 = vmul.f32 %v6105, %v6391
  %v6393 = vsub.f32 1.0, %v6392
  %v6394 = vmul.f32 %v6391, %v6393
  %v6395 = vadd.f32 %v6391, %v6394
  %vm6396 = vweird.f32 %v6105
  %vm6397 = vweird.f32 %v6391
  %vm6398 = vmor %vm6396, %vm6397
  %v6399 = vsel %vm6398, %v6391, %v6395
  %v6400 = vand.u32 2147483647, %v6105
  %vm6401 = vcmp.eq.f32.partialorder %v6400, 8.507059e+37
  %v6402 = vand.u32 %v6105, 2147483648
  %v6403 = vor.u32 1.1754944e-38, %v6402
  %v6404 = vsel %vm6401, %v6403, %v6399
  %v6405 = vrcp.pop %v6108
  %v6406 = vmul.f32 %v6108, %v6405
  %v6407 = vsub.f32 1.0, %v6406
  %v6408 = vmul.f32 %v6405, %v6407
  %v6409 = vadd.f32 %v6405, %v6408
  %vm6410 = vweird.f32 %v6108
  %vm6411 = vweird.f32 %v6405
  %vm6412 = vmor %vm6410, %vm6411
  %v6413 = vsel %vm6412, %v6405, %v6409
  %v6414 = vand.u32 2147483647, %v6108
  %vm6415 = vcmp.eq.f32.partialorder %v6414, 8.507059e+37
  %v6416 = vand.u32 %v6108, 2147483648
  %v6417 = vor.u32 1.1754944e-38, %v6416
  %v6418 = vsel %vm6415, %v6417, %v6413
  %v6419 = vrcp.pop %v6111
  %v6420 = vmul.f32 %v6111, %v6419
  %v6421 = vsub.f32 1.0, %v6420
  %v6422 = vmul.f32 %v6419, %v6421
  %v6423 = vadd.f32 %v6419, %v6422
  %vm6424 = vweird.f32 %v6111
  %vm6425 = vweird.f32 %v6419
  %vm6426 = vmor %vm6424, %vm6425
  %v6427 = vsel %vm6426, %v6419, %v6423
  %v6428 = vand.u32 2147483647, %v6111
  %vm6429 = vcmp.eq.f32.partialorder %v6428, 8.507059e+37
  %v6430 = vand.u32 %v6111, 2147483648
  %v6431 = vor.u32 1.1754944e-38, %v6430
  %v6432 = vsel %vm6429, %v6431, %v6427
  %v6433 = vrcp.pop %v6114
  %v6434 = vmul.f32 %v6114, %v6433
  %v6435 = vsub.f32 1.0, %v6434
  %v6436 = vmul.f32 %v6433, %v6435
  %v6437 = vadd.f32 %v6433, %v6436
  %vm6438 = vweird.f32 %v6114
  %vm6439 = vweird.f32 %v6433
  %vm6440 = vmor %vm6438, %vm6439
  %v6441 = vsel %vm6440, %v6433, %v6437
  %v6442 = vand.u32 2147483647, %v6114
  %vm6443 = vcmp.eq.f32.partialorder %v6442, 8.507059e+37
  %v6444 = vand.u32 %v6114, 2147483648
  %v6445 = vor.u32 1.1754944e-38, %v6444
  %v6446 = vsel %vm6443, %v6445, %v6441
  %v6447 = vrcp.pop %v6117
  %v6448 = vmul.f32 %v6117, %v6447
  %v6449 = vsub.f32 1.0, %v6448
  %v6450 = vmul.f32 %v6447, %v6449
  %v6451 = vadd.f32 %v6447, %v6450
  %vm6452 = vweird.f32 %v6117
  %vm6453 = vweird.f32 %v6447
  %vm6454 = vmor %vm6452, %vm6453
  %v6455 = vsel %vm6454, %v6447, %v6451
  %v6456 = vand.u32 2147483647, %v6117
  %vm6457 = vcmp.eq.f32.partialorder %v6456, 8.507059e+37
  %v6458 = vand.u32 %v6117, 2147483648
  %v6459 = vor.u32 1.1754944e-38, %v6458
  %v6460 = vsel %vm6457, %v6459, %v6455
  %v6461 = vrcp.pop %v6120
  %v6462 = vmul.f32 %v6120, %v6461
  %v6463 = vsub.f32 1.0, %v6462
  %v6464 = vmul.f32 %v6461, %v6463
  %v6465 = vadd.f32 %v6461, %v6464
  %vm6466 = vweird.f32 %v6120
  %vm6467 = vweird.f32 %v6461
  %vm6468 = vmor %vm6466, %vm6467
  %v6469 = vsel %vm6468, %v6461, %v6465
  %v6470 = vand.u32 2147483647, %v6120
  %vm6471 = vcmp.eq.f32.partialorder %v6470, 8.507059e+37
  %v6472 = vand.u32 %v6120, 2147483648
  %v6473 = vor.u32 1.1754944e-38, %v6472
  %v6474 = vsel %vm6471, %v6473, %v6469
  %v6475 = vrcp.pop %v6123
  %v6476 = vmul.f32 %v6123, %v6475
  %v6477 = vsub.f32 1.0, %v6476
  %v6478 = vmul.f32 %v6475, %v6477
  %v6479 = vadd.f32 %v6475, %v6478
  %vm6480 = vweird.f32 %v6123
  %vm6481 = vweird.f32 %v6475
  %vm6482 = vmor %vm6480, %vm6481
  %v6483 = vsel %vm6482, %v6475, %v6479
  %v6484 = vand.u32 2147483647, %v6123
  %vm6485 = vcmp.eq.f32.partialorder %v6484, 8.507059e+37
  %v6486 = vand.u32 %v6123, 2147483648
  %v6487 = vor.u32 1.1754944e-38, %v6486
  %v6488 = vsel %vm6485, %v6487, %v6483
  %v6489 = vrcp.pop %v6126
  %v6490 = vmul.f32 %v6126, %v6489
  %v6491 = vsub.f32 1.0, %v6490
  %v6492 = vmul.f32 %v6489, %v6491
  %v6493 = vadd.f32 %v6489, %v6492
  %vm6494 = vweird.f32 %v6126
  %vm6495 = vweird.f32 %v6489
  %vm6496 = vmor %vm6494, %vm6495
  %v6497 = vsel %vm6496, %v6489, %v6493
  %v6498 = vand.u32 2147483647, %v6126
  %vm6499 = vcmp.eq.f32.partialorder %v6498, 8.507059e+37
  %v6500 = vand.u32 %v6126, 2147483648
  %v6501 = vor.u32 1.1754944e-38, %v6500
  %v6502 = vsel %vm6499, %v6501, %v6497
  %v6503 = vrcp.pop %v6129
  %v6504 = vmul.f32 %v6129, %v6503
  %v6505 = vsub.f32 1.0, %v6504
  %v6506 = vmul.f32 %v6503, %v6505
  %v6507 = vadd.f32 %v6503, %v6506
  %vm6508 = vweird.f32 %v6129
  %vm6509 = vweird.f32 %v6503
  %vm6510 = vmor %vm6508, %vm6509
  %v6511 = vsel %vm6510, %v6503, %v6507
  %v6512 = vand.u32 2147483647, %v6129
  %vm6513 = vcmp.eq.f32.partialorder %v6512, 8.507059e+37
  %v6514 = vand.u32 %v6129, 2147483648
  %v6515 = vor.u32 1.1754944e-38, %v6514
  %v6516 = vsel %vm6513, %v6515, %v6511
  %v6517 = vrcp.pop %v6132
  %v6518 = vmul.f32 %v6132, %v6517
  %v6519 = vsub.f32 1.0, %v6518
  %v6520 = vmul.f32 %v6517, %v6519
  %v6521 = vadd.f32 %v6517, %v6520
  %vm6522 = vweird.f32 %v6132
  %vm6523 = vweird.f32 %v6517
  %vm6524 = vmor %vm6522, %vm6523
  %v6525 = vsel %vm6524, %v6517, %v6521
  %v6526 = vand.u32 2147483647, %v6132
  %vm6527 = vcmp.eq.f32.partialorder %v6526, 8.507059e+37
  %v6528 = vand.u32 %v6132, 2147483648
  %v6529 = vor.u32 1.1754944e-38, %v6528
  %v6530 = vsel %vm6527, %v6529, %v6525
  %v6531 = vrcp.pop %v6135
  %v6532 = vmul.f32 %v6135, %v6531
  %v6533 = vsub.f32 1.0, %v6532
  %v6534 = vmul.f32 %v6531, %v6533
  %v6535 = vadd.f32 %v6531, %v6534
  %vm6536 = vweird.f32 %v6135
  %vm6537 = vweird.f32 %v6531
  %vm6538 = vmor %vm6536, %vm6537
  %v6539 = vsel %vm6538, %v6531, %v6535
  %v6540 = vand.u32 2147483647, %v6135
  %vm6541 = vcmp.eq.f32.partialorder %v6540, 8.507059e+37
  %v6542 = vand.u32 %v6135, 2147483648
  %v6543 = vor.u32 1.1754944e-38, %v6542
  %v6544 = vsel %vm6541, %v6543, %v6539
  %v6545 = vrcp.pop %v6138
  %v6546 = vmul.f32 %v6138, %v6545
  %v6547 = vsub.f32 1.0, %v6546
  %v6548 = vmul.f32 %v6545, %v6547
  %v6549 = vadd.f32 %v6545, %v6548
  %vm6550 = vweird.f32 %v6138
  %vm6551 = vweird.f32 %v6545
  %vm6552 = vmor %vm6550, %vm6551
  %v6553 = vsel %vm6552, %v6545, %v6549
  %v6554 = vand.u32 2147483647, %v6138
  %vm6555 = vcmp.eq.f32.partialorder %v6554, 8.507059e+37
  %v6556 = vand.u32 %v6138, 2147483648
  %v6557 = vor.u32 1.1754944e-38, %v6556
  %v6558 = vsel %vm6555, %v6557, %v6553
  %v6559 = vrcp.pop %v6141
  %v6560 = vmul.f32 %v6141, %v6559
  %v6561 = vsub.f32 1.0, %v6560
  %v6562 = vmul.f32 %v6559, %v6561
  %v6563 = vadd.f32 %v6559, %v6562
  %vm6564 = vweird.f32 %v6141
  %vm6565 = vweird.f32 %v6559
  %vm6566 = vmor %vm6564, %vm6565
  %v6567 = vsel %vm6566, %v6559, %v6563
  %v6568 = vand.u32 2147483647, %v6141
  %vm6569 = vcmp.eq.f32.partialorder %v6568, 8.507059e+37
  %v6570 = vand.u32 %v6141, 2147483648
  %v6571 = vor.u32 1.1754944e-38, %v6570
  %v6572 = vsel %vm6569, %v6571, %v6567
  %v6573 = vrcp.pop %v6144
  %v6574 = vmul.f32 %v6144, %v6573
  %v6575 = vsub.f32 1.0, %v6574
  %v6576 = vmul.f32 %v6573, %v6575
  %v6577 = vadd.f32 %v6573, %v6576
  %vm6578 = vweird.f32 %v6144
  %vm6579 = vweird.f32 %v6573
  %vm6580 = vmor %vm6578, %vm6579
  %v6581 = vsel %vm6580, %v6573, %v6577
  %v6582 = vand.u32 2147483647, %v6144
  %vm6583 = vcmp.eq.f32.partialorder %v6582, 8.507059e+37
  %v6584 = vand.u32 %v6144, 2147483648
  %v6585 = vor.u32 1.1754944e-38, %v6584
  %v6586 = vsel %vm6583, %v6585, %v6581
  %v6587 = vrcp.pop %v6147
  %v6588 = vmul.f32 %v6147, %v6587
  %v6589 = vsub.f32 1.0, %v6588
  %v6590 = vmul.f32 %v6587, %v6589
  %v6591 = vadd.f32 %v6587, %v6590
  %vm6592 = vweird.f32 %v6147
  %vm6593 = vweird.f32 %v6587
  %vm6594 = vmor %vm6592, %vm6593
  %v6595 = vsel %vm6594, %v6587, %v6591
  %v6596 = vand.u32 2147483647, %v6147
  %vm6597 = vcmp.eq.f32.partialorder %v6596, 8.507059e+37
  %v6598 = vand.u32 %v6147, 2147483648
  %v6599 = vor.u32 1.1754944e-38, %v6598
  %v6600 = vsel %vm6597, %v6599, %v6595
  %v6601 = vrcp.pop %v6150
  %v6602 = vmul.f32 %v6150, %v6601
  %v6603 = vsub.f32 1.0, %v6602
  %v6604 = vmul.f32 %v6601, %v6603
  %v6605 = vadd.f32 %v6601, %v6604
  %vm6606 = vweird.f32 %v6150
  %vm6607 = vweird.f32 %v6601
  %vm6608 = vmor %vm6606, %vm6607
  %v6609 = vsel %vm6608, %v6601, %v6605
  %v6610 = vand.u32 2147483647, %v6150
  %vm6611 = vcmp.eq.f32.partialorder %v6610, 8.507059e+37
  %v6612 = vand.u32 %v6150, 2147483648
  %v6613 = vor.u32 1.1754944e-38, %v6612
  %v6614 = vsel %vm6611, %v6613, %v6609
  %v6615 = vrcp.pop %v6153
  %v6616 = vmul.f32 %v6153, %v6615
  %v6617 = vsub.f32 1.0, %v6616
  %v6618 = vmul.f32 %v6615, %v6617
  %v6619 = vadd.f32 %v6615, %v6618
  %vm6620 = vweird.f32 %v6153
  %vm6621 = vweird.f32 %v6615
  %vm6622 = vmor %vm6620, %vm6621
  %v6623 = vsel %vm6622, %v6615, %v6619
  %v6624 = vand.u32 2147483647, %v6153
  %vm6625 = vcmp.eq.f32.partialorder %v6624, 8.507059e+37
  %v6626 = vand.u32 %v6153, 2147483648
  %v6627 = vor.u32 1.1754944e-38, %v6626
  %v6628 = vsel %vm6625, %v6627, %v6623
  %v6629 = vrcp.pop %v6156
  %v6630 = vmul.f32 %v6156, %v6629
  %v6631 = vsub.f32 1.0, %v6630
  %v6632 = vmul.f32 %v6629, %v6631
  %v6633 = vadd.f32 %v6629, %v6632
  %vm6634 = vweird.f32 %v6156
  %vm6635 = vweird.f32 %v6629
  %vm6636 = vmor %vm6634, %vm6635
  %v6637 = vsel %vm6636, %v6629, %v6633
  %v6638 = vand.u32 2147483647, %v6156
  %vm6639 = vcmp.eq.f32.partialorder %v6638, 8.507059e+37
  %v6640 = vand.u32 %v6156, 2147483648
  %v6641 = vor.u32 1.1754944e-38, %v6640
  %v6642 = vsel %vm6639, %v6641, %v6637
  %v6643 = vrcp.pop %v6159
  %v6644 = vmul.f32 %v6159, %v6643
  %v6645 = vsub.f32 1.0, %v6644
  %v6646 = vmul.f32 %v6643, %v6645
  %v6647 = vadd.f32 %v6643, %v6646
  %vm6648 = vweird.f32 %v6159
  %vm6649 = vweird.f32 %v6643
  %vm6650 = vmor %vm6648, %vm6649
  %v6651 = vsel %vm6650, %v6643, %v6647
  %v6652 = vand.u32 2147483647, %v6159
  %vm6653 = vcmp.eq.f32.partialorder %v6652, 8.507059e+37
  %v6654 = vand.u32 %v6159, 2147483648
  %v6655 = vor.u32 1.1754944e-38, %v6654
  %v6656 = vsel %vm6653, %v6655, %v6651
  %v6657 = vrcp.pop %v6162
  %v6658 = vmul.f32 %v6162, %v6657
  %v6659 = vsub.f32 1.0, %v6658
  %v6660 = vmul.f32 %v6657, %v6659
  %v6661 = vadd.f32 %v6657, %v6660
  %vm6662 = vweird.f32 %v6162
  %vm6663 = vweird.f32 %v6657
  %vm6664 = vmor %vm6662, %vm6663
  %v6665 = vsel %vm6664, %v6657, %v6661
  %v6666 = vand.u32 2147483647, %v6162
  %vm6667 = vcmp.eq.f32.partialorder %v6666, 8.507059e+37
  %v6668 = vand.u32 %v6162, 2147483648
  %v6669 = vor.u32 1.1754944e-38, %v6668
  %v6670 = vsel %vm6667, %v6669, %v6665
  %v6671 = vrcp.pop %v6165
  %v6672 = vmul.f32 %v6165, %v6671
  %v6673 = vsub.f32 1.0, %v6672
  %v6674 = vmul.f32 %v6671, %v6673
  %v6675 = vadd.f32 %v6671, %v6674
  %vm6676 = vweird.f32 %v6165
  %vm6677 = vweird.f32 %v6671
  %vm6678 = vmor %vm6676, %vm6677
  %v6679 = vsel %vm6678, %v6671, %v6675
  %v6680 = vand.u32 2147483647, %v6165
  %vm6681 = vcmp.eq.f32.partialorder %v6680, 8.507059e+37
  %v6682 = vand.u32 %v6165, 2147483648
  %v6683 = vor.u32 1.1754944e-38, %v6682
  %v6684 = vsel %vm6681, %v6683, %v6679
  %v6685 = vrcp.pop %v6168
  %v6686 = vmul.f32 %v6168, %v6685
  %v6687 = vsub.f32 1.0, %v6686
  %v6688 = vmul.f32 %v6685, %v6687
  %v6689 = vadd.f32 %v6685, %v6688
  %vm6690 = vweird.f32 %v6168
  %vm6691 = vweird.f32 %v6685
  %vm6692 = vmor %vm6690, %vm6691
  %v6693 = vsel %vm6692, %v6685, %v6689
  %v6694 = vand.u32 2147483647, %v6168
  %vm6695 = vcmp.eq.f32.partialorder %v6694, 8.507059e+37
  %v6696 = vand.u32 %v6168, 2147483648
  %v6697 = vor.u32 1.1754944e-38, %v6696
  %v6698 = vsel %vm6695, %v6697, %v6693
  %v6699 = vrcp.pop %v6171
  %v6700 = vmul.f32 %v6171, %v6699
  %v6701 = vsub.f32 1.0, %v6700
  %v6702 = vmul.f32 %v6699, %v6701
  %v6703 = vadd.f32 %v6699, %v6702
  %vm6704 = vweird.f32 %v6171
  %vm6705 = vweird.f32 %v6699
  %vm6706 = vmor %vm6704, %vm6705
  %v6707 = vsel %vm6706, %v6699, %v6703
  %v6708 = vand.u32 2147483647, %v6171
  %vm6709 = vcmp.eq.f32.partialorder %v6708, 8.507059e+37
  %v6710 = vand.u32 %v6171, 2147483648
  %v6711 = vor.u32 1.1754944e-38, %v6710
  %v6712 = vsel %vm6709, %v6711, %v6707
  %v6713 = vrcp.pop %v6174
  %v6714 = vmul.f32 %v6174, %v6713
  %v6715 = vsub.f32 1.0, %v6714
  %v6716 = vmul.f32 %v6713, %v6715
  %v6717 = vadd.f32 %v6713, %v6716
  %vm6718 = vweird.f32 %v6174
  %vm6719 = vweird.f32 %v6713
  %vm6720 = vmor %vm6718, %vm6719
  %v6721 = vsel %vm6720, %v6713, %v6717
  %v6722 = vand.u32 2147483647, %v6174
  %vm6723 = vcmp.eq.f32.partialorder %v6722, 8.507059e+37
  %v6724 = vand.u32 %v6174, 2147483648
  %v6725 = vor.u32 1.1754944e-38, %v6724
  %v6726 = vsel %vm6723, %v6725, %v6721
  %v6727 = vrcp.pop %v6177
  %v6728 = vmul.f32 %v6177, %v6727
  %v6729 = vsub.f32 1.0, %v6728
  %v6730 = vmul.f32 %v6727, %v6729
  %v6731 = vadd.f32 %v6727, %v6730
  %vm6732 = vweird.f32 %v6177
  %vm6733 = vweird.f32 %v6727
  %vm6734 = vmor %vm6732, %vm6733
  %v6735 = vsel %vm6734, %v6727, %v6731
  %v6736 = vand.u32 2147483647, %v6177
  %vm6737 = vcmp.eq.f32.partialorder %v6736, 8.507059e+37
  %v6738 = vand.u32 %v6177, 2147483648
  %v6739 = vor.u32 1.1754944e-38, %v6738
  %v6740 = vsel %vm6737, %v6739, %v6735
  %v6741 = vrcp.pop %v6180
  %v6742 = vmul.f32 %v6180, %v6741
  %v6743 = vsub.f32 1.0, %v6742
  %v6744 = vmul.f32 %v6741, %v6743
  %v6745 = vadd.f32 %v6741, %v6744
  %vm6746 = vweird.f32 %v6180
  %vm6747 = vweird.f32 %v6741
  %vm6748 = vmor %vm6746, %vm6747
  %v6749 = vsel %vm6748, %v6741, %v6745
  %v6750 = vand.u32 2147483647, %v6180
  %vm6751 = vcmp.eq.f32.partialorder %v6750, 8.507059e+37
  %v6752 = vand.u32 %v6180, 2147483648
  %v6753 = vor.u32 1.1754944e-38, %v6752
  %v6754 = vsel %vm6751, %v6753, %v6749
  %v6755 = vrcp.pop %v6183
  %v6756 = vmul.f32 %v6183, %v6755
  %v6757 = vsub.f32 1.0, %v6756
  %v6758 = vmul.f32 %v6755, %v6757
  %v6759 = vadd.f32 %v6755, %v6758
  %vm6760 = vweird.f32 %v6183
  %vm6761 = vweird.f32 %v6755
  %vm6762 = vmor %vm6760, %vm6761
  %v6763 = vsel %vm6762, %v6755, %v6759
  %v6764 = vand.u32 2147483647, %v6183
  %vm6765 = vcmp.eq.f32.partialorder %v6764, 8.507059e+37
  %v6766 = vand.u32 %v6183, 2147483648
  %v6767 = vor.u32 1.1754944e-38, %v6766
  %v6768 = vsel %vm6765, %v6767, %v6763
  %v6769 = vrcp.pop %v6186
  %v6770 = vmul.f32 %v6186, %v6769
  %v6771 = vsub.f32 1.0, %v6770
  %v6772 = vmul.f32 %v6769, %v6771
  %v6773 = vadd.f32 %v6769, %v6772
  %vm6774 = vweird.f32 %v6186
  %vm6775 = vweird.f32 %v6769
  %vm6776 = vmor %vm6774, %vm6775
  %v6777 = vsel %vm6776, %v6769, %v6773
  %v6778 = vand.u32 2147483647, %v6186
  %vm6779 = vcmp.eq.f32.partialorder %v6778, 8.507059e+37
  %v6780 = vand.u32 %v6186, 2147483648
  %v6781 = vor.u32 1.1754944e-38, %v6780
  %v6782 = vsel %vm6779, %v6781, %v6777
  %v6783 = vrcp.pop %v6189
  %v6784 = vmul.f32 %v6189, %v6783
  %v6785 = vsub.f32 1.0, %v6784
  %v6786 = vmul.f32 %v6783, %v6785
  %v6787 = vadd.f32 %v6783, %v6786
  %vm6788 = vweird.f32 %v6189
  %vm6789 = vweird.f32 %v6783
  %vm6790 = vmor %vm6788, %vm6789
  %v6791 = vsel %vm6790, %v6783, %v6787
  %v6792 = vand.u32 2147483647, %v6189
  %vm6793 = vcmp.eq.f32.partialorder %v6792, 8.507059e+37
  %v6794 = vand.u32 %v6189, 2147483648
  %v6795 = vor.u32 1.1754944e-38, %v6794
  %v6796 = vsel %vm6793, %v6795, %v6791
  %v6797 = vrcp.pop %v6192
  %v6798 = vmul.f32 %v6192, %v6797
  %v6799 = vsub.f32 1.0, %v6798
  %v6800 = vmul.f32 %v6797, %v6799
  %v6801 = vadd.f32 %v6797, %v6800
  %vm6802 = vweird.f32 %v6192
  %vm6803 = vweird.f32 %v6797
  %vm6804 = vmor %vm6802, %vm6803
  %v6805 = vsel %vm6804, %v6797, %v6801
  %v6806 = vand.u32 2147483647, %v6192
  %vm6807 = vcmp.eq.f32.partialorder %v6806, 8.507059e+37
  %v6808 = vand.u32 %v6192, 2147483648
  %v6809 = vor.u32 1.1754944e-38, %v6808
  %v6810 = vsel %vm6807, %v6809, %v6805
  %v6811 = vrcp.pop %v6195
  %v6812 = vmul.f32 %v6195, %v6811
  %v6813 = vsub.f32 1.0, %v6812
  %v6814 = vmul.f32 %v6811, %v6813
  %v6815 = vadd.f32 %v6811, %v6814
  %vm6816 = vweird.f32 %v6195
  %vm6817 = vweird.f32 %v6811
  %vm6818 = vmor %vm6816, %vm6817
  %v6819 = vsel %vm6818, %v6811, %v6815
  %v6820 = vand.u32 2147483647, %v6195
  %vm6821 = vcmp.eq.f32.partialorder %v6820, 8.507059e+37
  %v6822 = vand.u32 %v6195, 2147483648
  %v6823 = vor.u32 1.1754944e-38, %v6822
  %v6824 = vsel %vm6821, %v6823, %v6819
  %v6825 = vrcp.pop %v6198
  %v6826 = vmul.f32 %v6198, %v6825
  %v6827 = vsub.f32 1.0, %v6826
  %v6828 = vmul.f32 %v6825, %v6827
  %v6829 = vadd.f32 %v6825, %v6828
  %vm6830 = vweird.f32 %v6198
  %vm6831 = vweird.f32 %v6825
  %vm6832 = vmor %vm6830, %vm6831
  %v6833 = vsel %vm6832, %v6825, %v6829
  %v6834 = vand.u32 2147483647, %v6198
  %vm6835 = vcmp.eq.f32.partialorder %v6834, 8.507059e+37
  %v6836 = vand.u32 %v6198, 2147483648
  %v6837 = vor.u32 1.1754944e-38, %v6836
  %v6838 = vsel %vm6835, %v6837, %v6833
  %v6839 = vrcp.pop %v6201
  %v6840 = vmul.f32 %v6201, %v6839
  %v6841 = vsub.f32 1.0, %v6840
  %v6842 = vmul.f32 %v6839, %v6841
  %v6843 = vadd.f32 %v6839, %v6842
  %vm6844 = vweird.f32 %v6201
  %vm6845 = vweird.f32 %v6839
  %vm6846 = vmor %vm6844, %vm6845
  %v6847 = vsel %vm6846, %v6839, %v6843
  %v6848 = vand.u32 2147483647, %v6201
  %vm6849 = vcmp.eq.f32.partialorder %v6848, 8.507059e+37
  %v6850 = vand.u32 %v6201, 2147483648
  %v6851 = vor.u32 1.1754944e-38, %v6850
  %v6852 = vsel %vm6849, %v6851, %v6847
  %v6853 = vrcp.pop %v6204
  %v6854 = vmul.f32 %v6204, %v6853
  %v6855 = vsub.f32 1.0, %v6854
  %v6856 = vmul.f32 %v6853, %v6855
  %v6857 = vadd.f32 %v6853, %v6856
  %vm6858 = vweird.f32 %v6204
  %vm6859 = vweird.f32 %v6853
  %vm6860 = vmor %vm6858, %vm6859
  %v6861 = vsel %vm6860, %v6853, %v6857
  %v6862 = vand.u32 2147483647, %v6204
  %vm6863 = vcmp.eq.f32.partialorder %v6862, 8.507059e+37
  %v6864 = vand.u32 %v6204, 2147483648
  %v6865 = vor.u32 1.1754944e-38, %v6864
  %v6866 = vsel %vm6863, %v6865, %v6861
  %v6867 = vrcp.pop %v6207
  %v6868 = vmul.f32 %v6207, %v6867
  %v6869 = vsub.f32 1.0, %v6868
  %v6870 = vmul.f32 %v6867, %v6869
  %v6871 = vadd.f32 %v6867, %v6870
  %vm6872 = vweird.f32 %v6207
  %vm6873 = vweird.f32 %v6867
  %vm6874 = vmor %vm6872, %vm6873
  %v6875 = vsel %vm6874, %v6867, %v6871
  %v6876 = vand.u32 2147483647, %v6207
  %vm6877 = vcmp.eq.f32.partialorder %v6876, 8.507059e+37
  %v6878 = vand.u32 %v6207, 2147483648
  %v6879 = vor.u32 1.1754944e-38, %v6878
  %v6880 = vsel %vm6877, %v6879, %v6875
  %v6881 = vrcp.pop %v6210
  %v6882 = vmul.f32 %v6210, %v6881
  %v6883 = vsub.f32 1.0, %v6882
  %v6884 = vmul.f32 %v6881, %v6883
  %v6885 = vadd.f32 %v6881, %v6884
  %vm6886 = vweird.f32 %v6210
  %vm6887 = vweird.f32 %v6881
  %vm6888 = vmor %vm6886, %vm6887
  %v6889 = vsel %vm6888, %v6881, %v6885
  %v6890 = vand.u32 2147483647, %v6210
  %vm6891 = vcmp.eq.f32.partialorder %v6890, 8.507059e+37
  %v6892 = vand.u32 %v6210, 2147483648
  %v6893 = vor.u32 1.1754944e-38, %v6892
  %v6894 = vsel %vm6891, %v6893, %v6889
  %v6895 = vrcp.pop %v6213
  %v6896 = vmul.f32 %v6213, %v6895
  %v6897 = vsub.f32 1.0, %v6896
  %v6898 = vmul.f32 %v6895, %v6897
  %v6899 = vadd.f32 %v6895, %v6898
  %vm6900 = vweird.f32 %v6213
  %vm6901 = vweird.f32 %v6895
  %vm6902 = vmor %vm6900, %vm6901
  %v6903 = vsel %vm6902, %v6895, %v6899
  %v6904 = vand.u32 2147483647, %v6213
  %vm6905 = vcmp.eq.f32.partialorder %v6904, 8.507059e+37
  %v6906 = vand.u32 %v6213, 2147483648
  %v6907 = vor.u32 1.1754944e-38, %v6906
  %v6908 = vsel %vm6905, %v6907, %v6903
  %v6909 = vrcp.pop %v6216
  %v6910 = vmul.f32 %v6216, %v6909
  %v6911 = vsub.f32 1.0, %v6910
  %v6912 = vmul.f32 %v6909, %v6911
  %v6913 = vadd.f32 %v6909, %v6912
  %vm6914 = vweird.f32 %v6216
  %vm6915 = vweird.f32 %v6909
  %vm6916 = vmor %vm6914, %vm6915
  %v6917 = vsel %vm6916, %v6909, %v6913
  %v6918 = vand.u32 2147483647, %v6216
  %vm6919 = vcmp.eq.f32.partialorder %v6918, 8.507059e+37
  %v6920 = vand.u32 %v6216, 2147483648
  %v6921 = vor.u32 1.1754944e-38, %v6920
  %v6922 = vsel %vm6919, %v6921, %v6917
  %v6923 = vrcp.pop %v6219
  %v6924 = vmul.f32 %v6219, %v6923
  %v6925 = vsub.f32 1.0, %v6924
  %v6926 = vmul.f32 %v6923, %v6925
  %v6927 = vadd.f32 %v6923, %v6926
  %vm6928 = vweird.f32 %v6219
  %vm6929 = vweird.f32 %v6923
  %vm6930 = vmor %vm6928, %vm6929
  %v6931 = vsel %vm6930, %v6923, %v6927
  %v6932 = vand.u32 2147483647, %v6219
  %vm6933 = vcmp.eq.f32.partialorder %v6932, 8.507059e+37
  %v6934 = vand.u32 %v6219, 2147483648
  %v6935 = vor.u32 1.1754944e-38, %v6934
  %v6936 = vsel %vm6933, %v6935, %v6931
  %v6937 = vrcp.pop %v6222
  %v6938 = vmul.f32 %v6222, %v6937
  %v6939 = vsub.f32 1.0, %v6938
  %v6940 = vmul.f32 %v6937, %v6939
  %v6941 = vadd.f32 %v6937, %v6940
  %vm6942 = vweird.f32 %v6222
  %vm6943 = vweird.f32 %v6937
  %vm6944 = vmor %vm6942, %vm6943
  %v6945 = vsel %vm6944, %v6937, %v6941
  %v6946 = vand.u32 2147483647, %v6222
  %vm6947 = vcmp.eq.f32.partialorder %v6946, 8.507059e+37
  %v6948 = vand.u32 %v6222, 2147483648
  %v6949 = vor.u32 1.1754944e-38, %v6948
  %v6950 = vsel %vm6947, %v6949, %v6945
  %v6951 = vrcp.pop %v6225
  %v6952 = vmul.f32 %v6225, %v6951
  %v6953 = vsub.f32 1.0, %v6952
  %v6954 = vmul.f32 %v6951, %v6953
  %v6955 = vadd.f32 %v6951, %v6954
  %vm6956 = vweird.f32 %v6225
  %vm6957 = vweird.f32 %v6951
  %vm6958 = vmor %vm6956, %vm6957
  %v6959 = vsel %vm6958, %v6951, %v6955
  %v6960 = vand.u32 2147483647, %v6225
  %vm6961 = vcmp.eq.f32.partialorder %v6960, 8.507059e+37
  %v6962 = vand.u32 %v6225, 2147483648
  %v6963 = vor.u32 1.1754944e-38, %v6962
  %v6964 = vsel %vm6961, %v6963, %v6959
  %v6965 = vrcp.pop %v6228
  %v6966 = vmul.f32 %v6228, %v6965
  %v6967 = vsub.f32 1.0, %v6966
  %v6968 = vmul.f32 %v6965, %v6967
  %v6969 = vadd.f32 %v6965, %v6968
  %vm6970 = vweird.f32 %v6228
  %vm6971 = vweird.f32 %v6965
  %vm6972 = vmor %vm6970, %vm6971
  %v6973 = vsel %vm6972, %v6965, %v6969
  %v6974 = vand.u32 2147483647, %v6228
  %vm6975 = vcmp.eq.f32.partialorder %v6974, 8.507059e+37
  %v6976 = vand.u32 %v6228, 2147483648
  %v6977 = vor.u32 1.1754944e-38, %v6976
  %v6978 = vsel %vm6975, %v6977, %v6973
  %v6979 = vrcp.pop %v6231
  %v6980 = vmul.f32 %v6231, %v6979
  %v6981 = vsub.f32 1.0, %v6980
  %v6982 = vmul.f32 %v6979, %v6981
  %v6983 = vadd.f32 %v6979, %v6982
  %vm6984 = vweird.f32 %v6231
  %vm6985 = vweird.f32 %v6979
  %vm6986 = vmor %vm6984, %vm6985
  %v6987 = vsel %vm6986, %v6979, %v6983
  %v6988 = vand.u32 2147483647, %v6231
  %vm6989 = vcmp.eq.f32.partialorder %v6988, 8.507059e+37
  %v6990 = vand.u32 %v6231, 2147483648
  %v6991 = vor.u32 1.1754944e-38, %v6990
  %v6992 = vsel %vm6989, %v6991, %v6987
  %v6993 = vrcp.pop %v6234
  %v6994 = vmul.f32 %v6234, %v6993
  %v6995 = vsub.f32 1.0, %v6994
  %v6996 = vmul.f32 %v6993, %v6995
  %v6997 = vadd.f32 %v6993, %v6996
  %vm6998 = vweird.f32 %v6234
  %vm6999 = vweird.f32 %v6993
  %vm7000 = vmor %vm6998, %vm6999
  %v7001 = vsel %vm7000, %v6993, %v6997
  %v7002 = vand.u32 2147483647, %v6234
  %vm7003 = vcmp.eq.f32.partialorder %v7002, 8.507059e+37
  %v7004 = vand.u32 %v6234, 2147483648
  %v7005 = vor.u32 1.1754944e-38, %v7004
  %v7006 = vsel %vm7003, %v7005, %v7001
  %v7007 = vrcp.pop %v6237
  %v7008 = vmul.f32 %v6237, %v7007
  %v7009 = vsub.f32 1.0, %v7008
  %v7010 = vmul.f32 %v7007, %v7009
  %v7011 = vadd.f32 %v7007, %v7010
  %vm7012 = vweird.f32 %v6237
  %vm7013 = vweird.f32 %v7007
  %vm7014 = vmor %vm7012, %vm7013
  %v7015 = vsel %vm7014, %v7007, %v7011
  %v7016 = vand.u32 2147483647, %v6237
  %vm7017 = vcmp.eq.f32.partialorder %v7016, 8.507059e+37
  %v7018 = vand.u32 %v6237, 2147483648
  %v7019 = vor.u32 1.1754944e-38, %v7018
  %v7020 = vsel %vm7017, %v7019, %v7015
  %v7021 = vrcp.pop %v6240
  %v7022 = vmul.f32 %v6240, %v7021
  %v7023 = vsub.f32 1.0, %v7022
  %v7024 = vmul.f32 %v7021, %v7023
  %v7025 = vadd.f32 %v7021, %v7024
  %vm7026 = vweird.f32 %v6240
  %vm7027 = vweird.f32 %v7021
  %vm7028 = vmor %vm7026, %vm7027
  %v7029 = vsel %vm7028, %v7021, %v7025
  %v7030 = vand.u32 2147483647, %v6240
  %vm7031 = vcmp.eq.f32.partialorder %v7030, 8.507059e+37
  %v7032 = vand.u32 %v6240, 2147483648
  %v7033 = vor.u32 1.1754944e-38, %v7032
  %v7034 = vsel %vm7031, %v7033, %v7029
  %v7035 = vrcp.pop %v6243
  %v7036 = vmul.f32 %v6243, %v7035
  %v7037 = vsub.f32 1.0, %v7036
  %v7038 = vmul.f32 %v7035, %v7037
  %v7039 = vadd.f32 %v7035, %v7038
  %vm7040 = vweird.f32 %v6243
  %vm7041 = vweird.f32 %v7035
  %vm7042 = vmor %vm7040, %vm7041
  %v7043 = vsel %vm7042, %v7035, %v7039
  %v7044 = vand.u32 2147483647, %v6243
  %vm7045 = vcmp.eq.f32.partialorder %v7044, 8.507059e+37
  %v7046 = vand.u32 %v6243, 2147483648
  %v7047 = vor.u32 1.1754944e-38, %v7046
  %v7048 = vsel %vm7045, %v7047, %v7043
  %v7049 = vrcp.pop %v6246
  %v7050 = vmul.f32 %v6246, %v7049
  %v7051 = vsub.f32 1.0, %v7050
  %v7052 = vmul.f32 %v7049, %v7051
  %v7053 = vadd.f32 %v7049, %v7052
  %vm7054 = vweird.f32 %v6246
  %vm7055 = vweird.f32 %v7049
  %vm7056 = vmor %vm7054, %vm7055
  %v7057 = vsel %vm7056, %v7049, %v7053
  %v7058 = vand.u32 2147483647, %v6246
  %vm7059 = vcmp.eq.f32.partialorder %v7058, 8.507059e+37
  %v7060 = vand.u32 %v6246, 2147483648
  %v7061 = vor.u32 1.1754944e-38, %v7060
  %v7062 = vsel %vm7059, %v7061, %v7057
  %v7063 = vrcp.pop %v6249
  %v7064 = vmul.f32 %v6249, %v7063
  %v7065 = vsub.f32 1.0, %v7064
  %v7066 = vmul.f32 %v7063, %v7065
  %v7067 = vadd.f32 %v7063, %v7066
  %vm7068 = vweird.f32 %v6249
  %vm7069 = vweird.f32 %v7063
  %vm7070 = vmor %vm7068, %vm7069
  %v7071 = vsel %vm7070, %v7063, %v7067
  %v7072 = vand.u32 2147483647, %v6249
  %vm7073 = vcmp.eq.f32.partialorder %v7072, 8.507059e+37
  %v7074 = vand.u32 %v6249, 2147483648
  %v7075 = vor.u32 1.1754944e-38, %v7074
  %v7076 = vsel %vm7073, %v7075, %v7071
  %v7077 = vrcp.pop %v6252
  %v7078 = vmul.f32 %v6252, %v7077
  %v7079 = vsub.f32 1.0, %v7078
  %v7080 = vmul.f32 %v7077, %v7079
  %v7081 = vadd.f32 %v7077, %v7080
  %vm7082 = vweird.f32 %v6252
  %vm7083 = vweird.f32 %v7077
  %vm7084 = vmor %vm7082, %vm7083
  %v7085 = vsel %vm7084, %v7077, %v7081
  %v7086 = vand.u32 2147483647, %v6252
  %vm7087 = vcmp.eq.f32.partialorder %v7086, 8.507059e+37
  %v7088 = vand.u32 %v6252, 2147483648
  %v7089 = vor.u32 1.1754944e-38, %v7088
  %v7090 = vsel %vm7087, %v7089, %v7085
  %v7091 = vrcp.pop %v6255
  %v7092 = vmul.f32 %v6255, %v7091
  %v7093 = vsub.f32 1.0, %v7092
  %v7094 = vmul.f32 %v7091, %v7093
  %v7095 = vadd.f32 %v7091, %v7094
  %vm7096 = vweird.f32 %v6255
  %vm7097 = vweird.f32 %v7091
  %vm7098 = vmor %vm7096, %vm7097
  %v7099 = vsel %vm7098, %v7091, %v7095
  %v7100 = vand.u32 2147483647, %v6255
  %vm7101 = vcmp.eq.f32.partialorder %v7100, 8.507059e+37
  %v7102 = vand.u32 %v6255, 2147483648
  %v7103 = vor.u32 1.1754944e-38, %v7102
  %v7104 = vsel %vm7101, %v7103, %v7099
  %v7105 = vrcp.pop %v6258
  %v7106 = vmul.f32 %v6258, %v7105
  %v7107 = vsub.f32 1.0, %v7106
  %v7108 = vmul.f32 %v7105, %v7107
  %v7109 = vadd.f32 %v7105, %v7108
  %vm7110 = vweird.f32 %v6258
  %vm7111 = vweird.f32 %v7105
  %vm7112 = vmor %vm7110, %vm7111
  %v7113 = vsel %vm7112, %v7105, %v7109
  %v7114 = vand.u32 2147483647, %v6258
  %vm7115 = vcmp.eq.f32.partialorder %v7114, 8.507059e+37
  %v7116 = vand.u32 %v6258, 2147483648
  %v7117 = vor.u32 1.1754944e-38, %v7116
  %v7118 = vsel %vm7115, %v7117, %v7113
  %v7119 = vrcp.pop %v6261
  %v7120 = vmul.f32 %v6261, %v7119
  %v7121 = vsub.f32 1.0, %v7120
  %v7122 = vmul.f32 %v7119, %v7121
  %v7123 = vadd.f32 %v7119, %v7122
  %vm7124 = vweird.f32 %v6261
  %vm7125 = vweird.f32 %v7119
  %vm7126 = vmor %vm7124, %vm7125
  %v7127 = vsel %vm7126, %v7119, %v7123
  %v7128 = vand.u32 2147483647, %v6261
  %vm7129 = vcmp.eq.f32.partialorder %v7128, 8.507059e+37
  %v7130 = vand.u32 %v6261, 2147483648
  %v7131 = vor.u32 1.1754944e-38, %v7130
  %v7132 = vsel %vm7129, %v7131, %v7127
  %v7133 = vrcp.pop %v6264
  %v7134 = vmul.f32 %v6264, %v7133
  %v7135 = vsub.f32 1.0, %v7134
  %v7136 = vmul.f32 %v7133, %v7135
  %v7137 = vadd.f32 %v7133, %v7136
  %vm7138 = vweird.f32 %v6264
  %vm7139 = vweird.f32 %v7133
  %vm7140 = vmor %vm7138, %vm7139
  %v7141 = vsel %vm7140, %v7133, %v7137
  %v7142 = vand.u32 2147483647, %v6264
  %vm7143 = vcmp.eq.f32.partialorder %v7142, 8.507059e+37
  %v7144 = vand.u32 %v6264, 2147483648
  %v7145 = vor.u32 1.1754944e-38, %v7144
  %v7146 = vsel %vm7143, %v7145, %v7141
  %v7147 = vrcp.pop %v6267
  %v7148 = vmul.f32 %v6267, %v7147
  %v7149 = vsub.f32 1.0, %v7148
  %v7150 = vmul.f32 %v7147, %v7149
  %v7151 = vadd.f32 %v7147, %v7150
  %vm7152 = vweird.f32 %v6267
  %vm7153 = vweird.f32 %v7147
  %vm7154 = vmor %vm7152, %vm7153
  %v7155 = vsel %vm7154, %v7147, %v7151
  %v7156 = vand.u32 2147483647, %v6267
  %vm7157 = vcmp.eq.f32.partialorder %v7156, 8.507059e+37
  %v7158 = vand.u32 %v6267, 2147483648
  %v7159 = vor.u32 1.1754944e-38, %v7158
  %v7160 = vsel %vm7157, %v7159, %v7155
  %v7161 = vrcp.pop %v6270
  %v7162 = vmul.f32 %v6270, %v7161
  %v7163 = vsub.f32 1.0, %v7162
  %v7164 = vmul.f32 %v7161, %v7163
  %v7165 = vadd.f32 %v7161, %v7164
  %vm7166 = vweird.f32 %v6270
  %vm7167 = vweird.f32 %v7161
  %vm7168 = vmor %vm7166, %vm7167
  %v7169 = vsel %vm7168, %v7161, %v7165
  %v7170 = vand.u32 2147483647, %v6270
  %vm7171 = vcmp.eq.f32.partialorder %v7170, 8.507059e+37
  %v7172 = vand.u32 %v6270, 2147483648
  %v7173 = vor.u32 1.1754944e-38, %v7172
  %v7174 = vsel %vm7171, %v7173, %v7169
  %v7175 = vrcp.pop %v6273
  %v7176 = vmul.f32 %v6273, %v7175
  %v7177 = vsub.f32 1.0, %v7176
  %v7178 = vmul.f32 %v7175, %v7177
  %v7179 = vadd.f32 %v7175, %v7178
  %vm7180 = vweird.f32 %v6273
  %vm7181 = vweird.f32 %v7175
  %vm7182 = vmor %vm7180, %vm7181
  %v7183 = vsel %vm7182, %v7175, %v7179
  %v7184 = vand.u32 2147483647, %v6273
  %vm7185 = vcmp.eq.f32.partialorder %v7184, 8.507059e+37
  %v7186 = vand.u32 %v6273, 2147483648
  %v7187 = vor.u32 1.1754944e-38, %v7186
  %v7188 = vsel %vm7185, %v7187, %v7183
  %v7189 = vrcp.pop %v6276
  %v7190 = vmul.f32 %v6276, %v7189
  %v7191 = vsub.f32 1.0, %v7190
  %v7192 = vmul.f32 %v7189, %v7191
  %v7193 = vadd.f32 %v7189, %v7192
  %vm7194 = vweird.f32 %v6276
  %vm7195 = vweird.f32 %v7189
  %vm7196 = vmor %vm7194, %vm7195
  %v7197 = vsel %vm7196, %v7189, %v7193
  %v7198 = vand.u32 2147483647, %v6276
  %vm7199 = vcmp.eq.f32.partialorder %v7198, 8.507059e+37
  %v7200 = vand.u32 %v6276, 2147483648
  %v7201 = vor.u32 1.1754944e-38, %v7200
  %v7202 = vsel %vm7199, %v7201, %v7197
  %v7203 = vrcp.pop %v6279
  %v7204 = vmul.f32 %v6279, %v7203
  %v7205 = vsub.f32 1.0, %v7204
  %v7206 = vmul.f32 %v7203, %v7205
  %v7207 = vadd.f32 %v7203, %v7206
  %vm7208 = vweird.f32 %v6279
  %vm7209 = vweird.f32 %v7203
  %vm7210 = vmor %vm7208, %vm7209
  %v7211 = vsel %vm7210, %v7203, %v7207
  %v7212 = vand.u32 2147483647, %v6279
  %vm7213 = vcmp.eq.f32.partialorder %v7212, 8.507059e+37
  %v7214 = vand.u32 %v6279, 2147483648
  %v7215 = vor.u32 1.1754944e-38, %v7214
  %v7216 = vsel %vm7213, %v7215, %v7211
  %v7217 = vrcp.pop %v6282
  %v7218 = vmul.f32 %v6282, %v7217
  %v7219 = vsub.f32 1.0, %v7218
  %v7220 = vmul.f32 %v7217, %v7219
  %v7221 = vadd.f32 %v7217, %v7220
  %vm7222 = vweird.f32 %v6282
  %vm7223 = vweird.f32 %v7217
  %vm7224 = vmor %vm7222, %vm7223
  %v7225 = vsel %vm7224, %v7217, %v7221
  %v7226 = vand.u32 2147483647, %v6282
  %vm7227 = vcmp.eq.f32.partialorder %v7226, 8.507059e+37
  %v7228 = vand.u32 %v6282, 2147483648
  %v7229 = vor.u32 1.1754944e-38, %v7228
  %v7230 = vsel %vm7227, %v7229, %v7225
  %v7231 = vrcp.pop %v6285
  %v7232 = vmul.f32 %v6285, %v7231
  %v7233 = vsub.f32 1.0, %v7232
  %v7234 = vmul.f32 %v7231, %v7233
  %v7235 = vadd.f32 %v7231, %v7234
  %vm7236 = vweird.f32 %v6285
  %vm7237 = vweird.f32 %v7231
  %vm7238 = vmor %vm7236, %vm7237
  %v7239 = vsel %vm7238, %v7231, %v7235
  %v7240 = vand.u32 2147483647, %v6285
  %vm7241 = vcmp.eq.f32.partialorder %v7240, 8.507059e+37
  %v7242 = vand.u32 %v6285, 2147483648
  %v7243 = vor.u32 1.1754944e-38, %v7242
  %v7244 = vsel %vm7241, %v7243, %v7239
  %v7245 = vrcp.pop %v6288
  %v7246 = vmul.f32 %v6288, %v7245
  %v7247 = vsub.f32 1.0, %v7246
  %v7248 = vmul.f32 %v7245, %v7247
  %v7249 = vadd.f32 %v7245, %v7248
  %vm7250 = vweird.f32 %v6288
  %vm7251 = vweird.f32 %v7245
  %vm7252 = vmor %vm7250, %vm7251
  %v7253 = vsel %vm7252, %v7245, %v7249
  %v7254 = vand.u32 2147483647, %v6288
  %vm7255 = vcmp.eq.f32.partialorder %v7254, 8.507059e+37
  %v7256 = vand.u32 %v6288, 2147483648
  %v7257 = vor.u32 1.1754944e-38, %v7256
  %v7258 = vsel %vm7255, %v7257, %v7253
  %v7259 = vrcp.pop %v6291
  %v7260 = vmul.f32 %v6291, %v7259
  %v7261 = vsub.f32 1.0, %v7260
  %v7262 = vmul.f32 %v7259, %v7261
  %v7263 = vadd.f32 %v7259, %v7262
  %vm7264 = vweird.f32 %v6291
  %vm7265 = vweird.f32 %v7259
  %vm7266 = vmor %vm7264, %vm7265
  %v7267 = vsel %vm7266, %v7259, %v7263
  %v7268 = vand.u32 2147483647, %v6291
  %vm7269 = vcmp.eq.f32.partialorder %v7268, 8.507059e+37
  %v7270 = vand.u32 %v6291, 2147483648
  %v7271 = vor.u32 1.1754944e-38, %v7270
  %v7272 = vsel %vm7269, %v7271, %v7267
  %v7273 = vrcp.pop %v6294
  %v7274 = vmul.f32 %v6294, %v7273
  %v7275 = vsub.f32 1.0, %v7274
  %v7276 = vmul.f32 %v7273, %v7275
  %v7277 = vadd.f32 %v7273, %v7276
  %vm7278 = vweird.f32 %v6294
  %vm7279 = vweird.f32 %v7273
  %vm7280 = vmor %vm7278, %vm7279
  %v7281 = vsel %vm7280, %v7273, %v7277
  %v7282 = vand.u32 2147483647, %v6294
  %vm7283 = vcmp.eq.f32.partialorder %v7282, 8.507059e+37
  %v7284 = vand.u32 %v6294, 2147483648
  %v7285 = vor.u32 1.1754944e-38, %v7284
  %v7286 = vsel %vm7283, %v7285, %v7281
  %v7287 = vrcp.pop %v6297
  %v7288 = vmul.f32 %v6297, %v7287
  %v7289 = vsub.f32 1.0, %v7288
  %v7290 = vmul.f32 %v7287, %v7289
  %v7291 = vadd.f32 %v7287, %v7290
  %vm7292 = vweird.f32 %v6297
  %vm7293 = vweird.f32 %v7287
  %vm7294 = vmor %vm7292, %vm7293
  %v7295 = vsel %vm7294, %v7287, %v7291
  %v7296 = vand.u32 2147483647, %v6297
  %vm7297 = vcmp.eq.f32.partialorder %v7296, 8.507059e+37
  %v7298 = vand.u32 %v6297, 2147483648
  %v7299 = vor.u32 1.1754944e-38, %v7298
  %v7300 = vsel %vm7297, %v7299, %v7295
  %v7301 = vrcp.pop %v6300
  %v7302 = vmul.f32 %v6300, %v7301
  %v7303 = vsub.f32 1.0, %v7302
  %v7304 = vmul.f32 %v7301, %v7303
  %v7305 = vadd.f32 %v7301, %v7304
  %vm7306 = vweird.f32 %v6300
  %vm7307 = vweird.f32 %v7301
  %vm7308 = vmor %vm7306, %vm7307
  %v7309 = vsel %vm7308, %v7301, %v7305
  %v7310 = vand.u32 2147483647, %v6300
  %vm7311 = vcmp.eq.f32.partialorder %v7310, 8.507059e+37
  %v7312 = vand.u32 %v6300, 2147483648
  %v7313 = vor.u32 1.1754944e-38, %v7312
  %v7314 = vsel %vm7311, %v7313, %v7309
  %v7315 = vrcp.pop %v6303
  %v7316 = vmul.f32 %v6303, %v7315
  %v7317 = vsub.f32 1.0, %v7316
  %v7318 = vmul.f32 %v7315, %v7317
  %v7319 = vadd.f32 %v7315, %v7318
  %vm7320 = vweird.f32 %v6303
  %vm7321 = vweird.f32 %v7315
  %vm7322 = vmor %vm7320, %vm7321
  %v7323 = vsel %vm7322, %v7315, %v7319
  %v7324 = vand.u32 2147483647, %v6303
  %vm7325 = vcmp.eq.f32.partialorder %v7324, 8.507059e+37
  %v7326 = vand.u32 %v6303, 2147483648
  %v7327 = vor.u32 1.1754944e-38, %v7326
  %v7328 = vsel %vm7325, %v7327, %v7323
  %v7329 = vrcp.pop %v6306
  %v7330 = vmul.f32 %v6306, %v7329
  %v7331 = vsub.f32 1.0, %v7330
  %v7332 = vmul.f32 %v7329, %v7331
  %v7333 = vadd.f32 %v7329, %v7332
  %vm7334 = vweird.f32 %v6306
  %vm7335 = vweird.f32 %v7329
  %vm7336 = vmor %vm7334, %vm7335
  %v7337 = vsel %vm7336, %v7329, %v7333
  %v7338 = vand.u32 2147483647, %v6306
  %vm7339 = vcmp.eq.f32.partialorder %v7338, 8.507059e+37
  %v7340 = vand.u32 %v6306, 2147483648
  %v7341 = vor.u32 1.1754944e-38, %v7340
  %v7342 = vsel %vm7339, %v7341, %v7337
  %v7343 = vrcp.pop %v6309
  %v7344 = vmul.f32 %v6309, %v7343
  %v7345 = vsub.f32 1.0, %v7344
  %v7346 = vmul.f32 %v7343, %v7345
  %v7347 = vadd.f32 %v7343, %v7346
  %vm7348 = vweird.f32 %v6309
  %vm7349 = vweird.f32 %v7343
  %vm7350 = vmor %vm7348, %vm7349
  %v7351 = vsel %vm7350, %v7343, %v7347
  %v7352 = vand.u32 2147483647, %v6309
  %vm7353 = vcmp.eq.f32.partialorder %v7352, 8.507059e+37
  %v7354 = vand.u32 %v6309, 2147483648
  %v7355 = vor.u32 1.1754944e-38, %v7354
  %v7356 = vsel %vm7353, %v7355, %v7351
  %v7357 = vrcp.pop %v6312
  %v7358 = vmul.f32 %v6312, %v7357
  %v7359 = vsub.f32 1.0, %v7358
  %v7360 = vmul.f32 %v7357, %v7359
  %v7361 = vadd.f32 %v7357, %v7360
  %vm7362 = vweird.f32 %v6312
  %vm7363 = vweird.f32 %v7357
  %vm7364 = vmor %vm7362, %vm7363
  %v7365 = vsel %vm7364, %v7357, %v7361
  %v7366 = vand.u32 2147483647, %v6312
  %vm7367 = vcmp.eq.f32.partialorder %v7366, 8.507059e+37
  %v7368 = vand.u32 %v6312, 2147483648
  %v7369 = vor.u32 1.1754944e-38, %v7368
  %v7370 = vsel %vm7367, %v7369, %v7365
  %v7371 = vrcp.pop %v6315
  %v7372 = vmul.f32 %v6315, %v7371
  %v7373 = vsub.f32 1.0, %v7372
  %v7374 = vmul.f32 %v7371, %v7373
  %v7375 = vadd.f32 %v7371, %v7374
  %vm7376 = vweird.f32 %v6315
  %vm7377 = vweird.f32 %v7371
  %vm7378 = vmor %vm7376, %vm7377
  %v7379 = vsel %vm7378, %v7371, %v7375
  %v7380 = vand.u32 2147483647, %v6315
  %vm7381 = vcmp.eq.f32.partialorder %v7380, 8.507059e+37
  %v7382 = vand.u32 %v6315, 2147483648
  %v7383 = vor.u32 1.1754944e-38, %v7382
  %v7384 = vsel %vm7381, %v7383, %v7379
  %v7385 = vrcp.pop %v6318
  %v7386 = vmul.f32 %v6318, %v7385
  %v7387 = vsub.f32 1.0, %v7386
  %v7388 = vmul.f32 %v7385, %v7387
  %v7389 = vadd.f32 %v7385, %v7388
  %vm7390 = vweird.f32 %v6318
  %vm7391 = vweird.f32 %v7385
  %vm7392 = vmor %vm7390, %vm7391
  %v7393 = vsel %vm7392, %v7385, %v7389
  %v7394 = vand.u32 2147483647, %v6318
  %vm7395 = vcmp.eq.f32.partialorder %v7394, 8.507059e+37
  %v7396 = vand.u32 %v6318, 2147483648
  %v7397 = vor.u32 1.1754944e-38, %v7396
  %v7398 = vsel %vm7395, %v7397, %v7393
  %v7399 = vrcp.pop %v6321
  %v7400 = vmul.f32 %v6321, %v7399
  %v7401 = vsub.f32 1.0, %v7400
  %v7402 = vmul.f32 %v7399, %v7401
  %v7403 = vadd.f32 %v7399, %v7402
  %vm7404 = vweird.f32 %v6321
  %vm7405 = vweird.f32 %v7399
  %vm7406 = vmor %vm7404, %vm7405
  %v7407 = vsel %vm7406, %v7399, %v7403
  %v7408 = vand.u32 2147483647, %v6321
  %vm7409 = vcmp.eq.f32.partialorder %v7408, 8.507059e+37
  %v7410 = vand.u32 %v6321, 2147483648
  %v7411 = vor.u32 1.1754944e-38, %v7410
  %v7412 = vsel %vm7409, %v7411, %v7407
  %v7413 = vrcp.pop %v6324
  %v7414 = vmul.f32 %v6324, %v7413
  %v7415 = vsub.f32 1.0, %v7414
  %v7416 = vmul.f32 %v7413, %v7415
  %v7417 = vadd.f32 %v7413, %v7416
  %vm7418 = vweird.f32 %v6324
  %vm7419 = vweird.f32 %v7413
  %vm7420 = vmor %vm7418, %vm7419
  %v7421 = vsel %vm7420, %v7413, %v7417
  %v7422 = vand.u32 2147483647, %v6324
  %vm7423 = vcmp.eq.f32.partialorder %v7422, 8.507059e+37
  %v7424 = vand.u32 %v6324, 2147483648
  %v7425 = vor.u32 1.1754944e-38, %v7424
  %v7426 = vsel %vm7423, %v7425, %v7421
  %v7427 = vrcp.pop %v6327
  %v7428 = vmul.f32 %v6327, %v7427
  %v7429 = vsub.f32 1.0, %v7428
  %v7430 = vmul.f32 %v7427, %v7429
  %v7431 = vadd.f32 %v7427, %v7430
  %vm7432 = vweird.f32 %v6327
  %vm7433 = vweird.f32 %v7427
  %vm7434 = vmor %vm7432, %vm7433
  %v7435 = vsel %vm7434, %v7427, %v7431
  %v7436 = vand.u32 2147483647, %v6327
  %vm7437 = vcmp.eq.f32.partialorder %v7436, 8.507059e+37
  %v7438 = vand.u32 %v6327, 2147483648
  %v7439 = vor.u32 1.1754944e-38, %v7438
  %v7440 = vsel %vm7437, %v7439, %v7435
  %v7441 = vrcp.pop %v6330
  %v7442 = vmul.f32 %v6330, %v7441
  %v7443 = vsub.f32 1.0, %v7442
  %v7444 = vmul.f32 %v7441, %v7443
  %v7445 = vadd.f32 %v7441, %v7444
  %vm7446 = vweird.f32 %v6330
  %vm7447 = vweird.f32 %v7441
  %vm7448 = vmor %vm7446, %vm7447
  %v7449 = vsel %vm7448, %v7441, %v7445
  %v7450 = vand.u32 2147483647, %v6330
  %vm7451 = vcmp.eq.f32.partialorder %v7450, 8.507059e+37
  %v7452 = vand.u32 %v6330, 2147483648
  %v7453 = vor.u32 1.1754944e-38, %v7452
  %v7454 = vsel %vm7451, %v7453, %v7449
  %v7455 = vrcp.pop %v6333
  %v7456 = vmul.f32 %v6333, %v7455
  %v7457 = vsub.f32 1.0, %v7456
  %v7458 = vmul.f32 %v7455, %v7457
  %v7459 = vadd.f32 %v7455, %v7458
  %vm7460 = vweird.f32 %v6333
  %vm7461 = vweird.f32 %v7455
  %vm7462 = vmor %vm7460, %vm7461
  %v7463 = vsel %vm7462, %v7455, %v7459
  %v7464 = vand.u32 2147483647, %v6333
  %vm7465 = vcmp.eq.f32.partialorder %v7464, 8.507059e+37
  %v7466 = vand.u32 %v6333, 2147483648
  %v7467 = vor.u32 1.1754944e-38, %v7466
  %v7468 = vsel %vm7465, %v7467, %v7463
  %v7469 = vrcp.pop %v6336
  %v7470 = vmul.f32 %v6336, %v7469
  %v7471 = vsub.f32 1.0, %v7470
  %v7472 = vmul.f32 %v7469, %v7471
  %v7473 = vadd.f32 %v7469, %v7472
  %vm7474 = vweird.f32 %v6336
  %vm7475 = vweird.f32 %v7469
  %vm7476 = vmor %vm7474, %vm7475
  %v7477 = vsel %vm7476, %v7469, %v7473
  %v7478 = vand.u32 2147483647, %v6336
  %vm7479 = vcmp.eq.f32.partialorder %v7478, 8.507059e+37
  %v7480 = vand.u32 %v6336, 2147483648
  %v7481 = vor.u32 1.1754944e-38, %v7480
  %v7482 = vsel %vm7479, %v7481, %v7477
  %v7483 = vrcp.pop %v6339
  %v7484 = vmul.f32 %v6339, %v7483
  %v7485 = vsub.f32 1.0, %v7484
  %v7486 = vmul.f32 %v7483, %v7485
  %v7487 = vadd.f32 %v7483, %v7486
  %vm7488 = vweird.f32 %v6339
  %vm7489 = vweird.f32 %v7483
  %vm7490 = vmor %vm7488, %vm7489
  %v7491 = vsel %vm7490, %v7483, %v7487
  %v7492 = vand.u32 2147483647, %v6339
  %vm7493 = vcmp.eq.f32.partialorder %v7492, 8.507059e+37
  %v7494 = vand.u32 %v6339, 2147483648
  %v7495 = vor.u32 1.1754944e-38, %v7494
  %v7496 = vsel %vm7493, %v7495, %v7491
  %v7497 = vrcp.pop %v6342
  %v7498 = vmul.f32 %v6342, %v7497
  %v7499 = vsub.f32 1.0, %v7498
  %v7500 = vmul.f32 %v7497, %v7499
  %v7501 = vadd.f32 %v7497, %v7500
  %vm7502 = vweird.f32 %v6342
  %vm7503 = vweird.f32 %v7497
  %vm7504 = vmor %vm7502, %vm7503
  %v7505 = vsel %vm7504, %v7497, %v7501
  %v7506 = vand.u32 2147483647, %v6342
  %vm7507 = vcmp.eq.f32.partialorder %v7506, 8.507059e+37
  %v7508 = vand.u32 %v6342, 2147483648
  %v7509 = vor.u32 1.1754944e-38, %v7508
  %v7510 = vsel %vm7507, %v7509, %v7505
  %v7511 = vrcp.pop %v6345
  %v7512 = vmul.f32 %v6345, %v7511
  %v7513 = vsub.f32 1.0, %v7512
  %v7514 = vmul.f32 %v7511, %v7513
  %v7515 = vadd.f32 %v7511, %v7514
  %vm7516 = vweird.f32 %v6345
  %vm7517 = vweird.f32 %v7511
  %vm7518 = vmor %vm7516, %vm7517
  %v7519 = vsel %vm7518, %v7511, %v7515
  %v7520 = vand.u32 2147483647, %v6345
  %vm7521 = vcmp.eq.f32.partialorder %v7520, 8.507059e+37
  %v7522 = vand.u32 %v6345, 2147483648
  %v7523 = vor.u32 1.1754944e-38, %v7522
  %v7524 = vsel %vm7521, %v7523, %v7519
  %v7525 = vrcp.pop %v6348
  %v7526 = vmul.f32 %v6348, %v7525
  %v7527 = vsub.f32 1.0, %v7526
  %v7528 = vmul.f32 %v7525, %v7527
  %v7529 = vadd.f32 %v7525, %v7528
  %vm7530 = vweird.f32 %v6348
  %vm7531 = vweird.f32 %v7525
  %vm7532 = vmor %vm7530, %vm7531
  %v7533 = vsel %vm7532, %v7525, %v7529
  %v7534 = vand.u32 2147483647, %v6348
  %vm7535 = vcmp.eq.f32.partialorder %v7534, 8.507059e+37
  %v7536 = vand.u32 %v6348, 2147483648
  %v7537 = vor.u32 1.1754944e-38, %v7536
  %v7538 = vsel %vm7535, %v7537, %v7533
  %v7539 = vrcp.pop %v6351
  %v7540 = vmul.f32 %v6351, %v7539
  %v7541 = vsub.f32 1.0, %v7540
  %v7542 = vmul.f32 %v7539, %v7541
  %v7543 = vadd.f32 %v7539, %v7542
  %vm7544 = vweird.f32 %v6351
  %vm7545 = vweird.f32 %v7539
  %vm7546 = vmor %vm7544, %vm7545
  %v7547 = vsel %vm7546, %v7539, %v7543
  %v7548 = vand.u32 2147483647, %v6351
  %vm7549 = vcmp.eq.f32.partialorder %v7548, 8.507059e+37
  %v7550 = vand.u32 %v6351, 2147483648
  %v7551 = vor.u32 1.1754944e-38, %v7550
  %v7552 = vsel %vm7549, %v7551, %v7547
  %v7553 = vrcp.pop %v6354
  %v7554 = vmul.f32 %v6354, %v7553
  %v7555 = vsub.f32 1.0, %v7554
  %v7556 = vmul.f32 %v7553, %v7555
  %v7557 = vadd.f32 %v7553, %v7556
  %vm7558 = vweird.f32 %v6354
  %vm7559 = vweird.f32 %v7553
  %vm7560 = vmor %vm7558, %vm7559
  %v7561 = vsel %vm7560, %v7553, %v7557
  %v7562 = vand.u32 2147483647, %v6354
  %vm7563 = vcmp.eq.f32.partialorder %v7562, 8.507059e+37
  %v7564 = vand.u32 %v6354, 2147483648
  %v7565 = vor.u32 1.1754944e-38, %v7564
  %v7566 = vsel %vm7563, %v7565, %v7561
  %v7567 = vrcp.pop %v6357
  %v7568 = vmul.f32 %v6357, %v7567
  %v7569 = vsub.f32 1.0, %v7568
  %v7570 = vmul.f32 %v7567, %v7569
  %v7571 = vadd.f32 %v7567, %v7570
  %vm7572 = vweird.f32 %v6357
  %vm7573 = vweird.f32 %v7567
  %vm7574 = vmor %vm7572, %vm7573
  %v7575 = vsel %vm7574, %v7567, %v7571
  %v7576 = vand.u32 2147483647, %v6357
  %vm7577 = vcmp.eq.f32.partialorder %v7576, 8.507059e+37
  %v7578 = vand.u32 %v6357, 2147483648
  %v7579 = vor.u32 1.1754944e-38, %v7578
  %v7580 = vsel %vm7577, %v7579, %v7575
  %v7581 = vrcp.pop %v6360
  %v7582 = vmul.f32 %v6360, %v7581
  %v7583 = vsub.f32 1.0, %v7582
  %v7584 = vmul.f32 %v7581, %v7583
  %v7585 = vadd.f32 %v7581, %v7584
  %vm7586 = vweird.f32 %v6360
  %vm7587 = vweird.f32 %v7581
  %vm7588 = vmor %vm7586, %vm7587
  %v7589 = vsel %vm7588, %v7581, %v7585
  %v7590 = vand.u32 2147483647, %v6360
  %vm7591 = vcmp.eq.f32.partialorder %v7590, 8.507059e+37
  %v7592 = vand.u32 %v6360, 2147483648
  %v7593 = vor.u32 1.1754944e-38, %v7592
  %v7594 = vsel %vm7591, %v7593, %v7589
  %v7595 = vrcp.pop %v6363
  %v7596 = vmul.f32 %v6363, %v7595
  %v7597 = vsub.f32 1.0, %v7596
  %v7598 = vmul.f32 %v7595, %v7597
  %v7599 = vadd.f32 %v7595, %v7598
  %vm7600 = vweird.f32 %v6363
  %vm7601 = vweird.f32 %v7595
  %vm7602 = vmor %vm7600, %vm7601
  %v7603 = vsel %vm7602, %v7595, %v7599
  %v7604 = vand.u32 2147483647, %v6363
  %vm7605 = vcmp.eq.f32.partialorder %v7604, 8.507059e+37
  %v7606 = vand.u32 %v6363, 2147483648
  %v7607 = vor.u32 1.1754944e-38, %v7606
  %v7608 = vsel %vm7605, %v7607, %v7603
  %v7609 = vrcp.pop %v6366
  %v7610 = vmul.f32 %v6366, %v7609
  %v7611 = vsub.f32 1.0, %v7610
  %v7612 = vmul.f32 %v7609, %v7611
  %v7613 = vadd.f32 %v7609, %v7612
  %vm7614 = vweird.f32 %v6366
  %vm7615 = vweird.f32 %v7609
  %vm7616 = vmor %vm7614, %vm7615
  %v7617 = vsel %vm7616, %v7609, %v7613
  %v7618 = vand.u32 2147483647, %v6366
  %vm7619 = vcmp.eq.f32.partialorder %v7618, 8.507059e+37
  %v7620 = vand.u32 %v6366, 2147483648
  %v7621 = vor.u32 1.1754944e-38, %v7620
  %v7622 = vsel %vm7619, %v7621, %v7617
  %v7623 = vrcp.pop %v6369
  %v7624 = vmul.f32 %v6369, %v7623
  %v7625 = vsub.f32 1.0, %v7624
  %v7626 = vmul.f32 %v7623, %v7625
  %v7627 = vadd.f32 %v7623, %v7626
  %vm7628 = vweird.f32 %v6369
  %vm7629 = vweird.f32 %v7623
  %vm7630 = vmor %vm7628, %vm7629
  %v7631 = vsel %vm7630, %v7623, %v7627
  %v7632 = vand.u32 2147483647, %v6369
  %vm7633 = vcmp.eq.f32.partialorder %v7632, 8.507059e+37
  %v7634 = vand.u32 %v6369, 2147483648
  %v7635 = vor.u32 1.1754944e-38, %v7634
  %v7636 = vsel %vm7633, %v7635, %v7631
  %v7637 = vrcp.pop %v6372
  %v7638 = vmul.f32 %v6372, %v7637
  %v7639 = vsub.f32 1.0, %v7638
  %v7640 = vmul.f32 %v7637, %v7639
  %v7641 = vadd.f32 %v7637, %v7640
  %vm7642 = vweird.f32 %v6372
  %vm7643 = vweird.f32 %v7637
  %vm7644 = vmor %vm7642, %vm7643
  %v7645 = vsel %vm7644, %v7637, %v7641
  %v7646 = vand.u32 2147483647, %v6372
  %vm7647 = vcmp.eq.f32.partialorder %v7646, 8.507059e+37
  %v7648 = vand.u32 %v6372, 2147483648
  %v7649 = vor.u32 1.1754944e-38, %v7648
  %v7650 = vsel %vm7647, %v7649, %v7645
  %v7651 = vrcp.pop %v6375
  %v7652 = vmul.f32 %v6375, %v7651
  %v7653 = vsub.f32 1.0, %v7652
  %v7654 = vmul.f32 %v7651, %v7653
  %v7655 = vadd.f32 %v7651, %v7654
  %vm7656 = vweird.f32 %v6375
  %vm7657 = vweird.f32 %v7651
  %vm7658 = vmor %vm7656, %vm7657
  %v7659 = vsel %vm7658, %v7651, %v7655
  %v7660 = vand.u32 2147483647, %v6375
  %vm7661 = vcmp.eq.f32.partialorder %v7660, 8.507059e+37
  %v7662 = vand.u32 %v6375, 2147483648
  %v7663 = vor.u32 1.1754944e-38, %v7662
  %v7664 = vsel %vm7661, %v7663, %v7659
  %v7665 = vrcp.pop %v6378
  %v7666 = vmul.f32 %v6378, %v7665
  %v7667 = vsub.f32 1.0, %v7666
  %v7668 = vmul.f32 %v7665, %v7667
  %v7669 = vadd.f32 %v7665, %v7668
  %vm7670 = vweird.f32 %v6378
  %vm7671 = vweird.f32 %v7665
  %vm7672 = vmor %vm7670, %vm7671
  %v7673 = vsel %vm7672, %v7665, %v7669
  %v7674 = vand.u32 2147483647, %v6378
  %vm7675 = vcmp.eq.f32.partialorder %v7674, 8.507059e+37
  %v7676 = vand.u32 %v6378, 2147483648
  %v7677 = vor.u32 1.1754944e-38, %v7676
  %v7678 = vsel %vm7675, %v7677, %v7673
  %v7679 = vrcp.pop %v6381
  %v7680 = vmul.f32 %v6381, %v7679
  %v7681 = vsub.f32 1.0, %v7680
  %v7682 = vmul.f32 %v7679, %v7681
  %v7683 = vadd.f32 %v7679, %v7682
  %vm7684 = vweird.f32 %v6381
  %vm7685 = vweird.f32 %v7679
  %vm7686 = vmor %vm7684, %vm7685
  %v7687 = vsel %vm7686, %v7679, %v7683
  %v7688 = vand.u32 2147483647, %v6381
  %vm7689 = vcmp.eq.f32.partialorder %v7688, 8.507059e+37
  %v7690 = vand.u32 %v6381, 2147483648
  %v7691 = vor.u32 1.1754944e-38, %v7690
  %v7692 = vsel %vm7689, %v7691, %v7687
  %v7693 = vrcp.pop %v6384
  %v7694 = vmul.f32 %v6384, %v7693
  %v7695 = vsub.f32 1.0, %v7694
  %v7696 = vmul.f32 %v7693, %v7695
  %v7697 = vadd.f32 %v7693, %v7696
  %vm7698 = vweird.f32 %v6384
  %vm7699 = vweird.f32 %v7693
  %vm7700 = vmor %vm7698, %vm7699
  %v7701 = vsel %vm7700, %v7693, %v7697
  %v7702 = vand.u32 2147483647, %v6384
  %vm7703 = vcmp.eq.f32.partialorder %v7702, 8.507059e+37
  %v7704 = vand.u32 %v6384, 2147483648
  %v7705 = vor.u32 1.1754944e-38, %v7704
  %v7706 = vsel %vm7703, %v7705, %v7701
  %v7707 = vrcp.pop %v6387
  %v7708 = vmul.f32 %v6387, %v7707
  %v7709 = vsub.f32 1.0, %v7708
  %v7710 = vmul.f32 %v7707, %v7709
  %v7711 = vadd.f32 %v7707, %v7710
  %vm7712 = vweird.f32 %v6387
  %vm7713 = vweird.f32 %v7707
  %vm7714 = vmor %vm7712, %vm7713
  %v7715 = vsel %vm7714, %v7707, %v7711
  %v7716 = vand.u32 2147483647, %v6387
  %vm7717 = vcmp.eq.f32.partialorder %v7716, 8.507059e+37
  %v7718 = vand.u32 %v6387, 2147483648
  %v7719 = vor.u32 1.1754944e-38, %v7718
  %v7720 = vsel %vm7717, %v7719, %v7715
  %v7721 = vrcp.pop %v6390
  %v7722 = vmul.f32 %v6390, %v7721
  %v7723 = vsub.f32 1.0, %v7722
  %v7724 = vmul.f32 %v7721, %v7723
  %v7725 = vadd.f32 %v7721, %v7724
  %vm7726 = vweird.f32 %v6390
  %vm7727 = vweird.f32 %v7721
  %vm7728 = vmor %vm7726, %vm7727
  %v7729 = vsel %vm7728, %v7721, %v7725
  %v7730 = vand.u32 2147483647, %v6390
  %vm7731 = vcmp.eq.f32.partialorder %v7730, 8.507059e+37
  %v7732 = vand.u32 %v6390, 2147483648
  %v7733 = vor.u32 1.1754944e-38, %v7732
  %v7734 = vsel %vm7731, %v7733, %v7729
  %v7735 = vmul.f32 %v5912, %v6404
  %v7736 = vmul.f32 %v5914, %v6418
  %v7737 = vmul.f32 %v5916, %v6432
  %v7738 = vmul.f32 %v5918, %v6446
  %v7739 = vmul.f32 %v5920, %v6460
  %v7740 = vmul.f32 %v5922, %v6474
  %v7741 = vmul.f32 %v5924, %v6488
  %v7742 = vmul.f32 %v5926, %v6502
  %v7743 = vmul.f32 %v5928, %v6516
  %v7744 = vmul.f32 %v5930, %v6530
  %v7745 = vmul.f32 %v5932, %v6544
  %v7746 = vmul.f32 %v5934, %v6558
  %v7747 = vmul.f32 %v5936, %v6572
  %v7748 = vmul.f32 %v5938, %v6586
  %v7749 = vmul.f32 %v5940, %v6600
  %v7750 = vmul.f32 %v5942, %v6614
  %v7751 = vmul.f32 %v5944, %v6628
  %v7752 = vmul.f32 %v5946, %v6642
  %v7753 = vmul.f32 %v5948, %v6656
  %v7754 = vmul.f32 %v5950, %v6670
  %v7755 = vmul.f32 %v5952, %v6684
  %v7756 = vmul.f32 %v5954, %v6698
  %v7757 = vmul.f32 %v5956, %v6712
  %v7758 = vmul.f32 %v5958, %v6726
  %v7759 = vmul.f32 %v5960, %v6740
  %v7760 = vmul.f32 %v5962, %v6754
  %v7761 = vmul.f32 %v5964, %v6768
  %v7762 = vmul.f32 %v5966, %v6782
  %v7763 = vmul.f32 %v5968, %v6796
  %v7764 = vmul.f32 %v5970, %v6810
  %v7765 = vmul.f32 %v5972, %v6824
  %v7766 = vmul.f32 %v5974, %v6838
  %v7767 = vmul.f32 %v5976, %v6852
  %v7768 = vmul.f32 %v5978, %v6866
  %v7769 = vmul.f32 %v5980, %v6880
  %v7770 = vmul.f32 %v5982, %v6894
  %v7771 = vmul.f32 %v5984, %v6908
  %v7772 = vmul.f32 %v5986, %v6922
  %v7773 = vmul.f32 %v5988, %v6936
  %v7774 = vmul.f32 %v5990, %v6950
  %v7775 = vmul.f32 %v5992, %v6964
  %v7776 = vmul.f32 %v5994, %v6978
  %v7777 = vmul.f32 %v5996, %v6992
  %v7778 = vmul.f32 %v5998, %v7006
  %v7779 = vmul.f32 %v6000, %v7020
  %v7780 = vmul.f32 %v6002, %v7034
  %v7781 = vmul.f32 %v6004, %v7048
  %v7782 = vmul.f32 %v6006, %v7062
  %v7783 = vmul.f32 %v6008, %v7076
  %v7784 = vmul.f32 %v6010, %v7090
  %v7785 = vmul.f32 %v6012, %v7104
  %v7786 = vmul.f32 %v6014, %v7118
  %v7787 = vmul.f32 %v6016, %v7132
  %v7788 = vmul.f32 %v6018, %v7146
  %v7789 = vmul.f32 %v6020, %v7160
  %v7790 = vmul.f32 %v6022, %v7174
  %v7791 = vmul.f32 %v6024, %v7188
  %v7792 = vmul.f32 %v6026, %v7202
  %v7793 = vmul.f32 %v6028, %v7216
  %v7794 = vmul.f32 %v6030, %v7230
  %v7795 = vmul.f32 %v6032, %v7244
  %v7796 = vmul.f32 %v6034, %v7258
  %v7797 = vmul.f32 %v6036, %v7272
  %v7798 = vmul.f32 %v6038, %v7286
  %v7799 = vmul.f32 %v6040, %v7300
  %v7800 = vmul.f32 %v6042, %v7314
  %v7801 = vmul.f32 %v6044, %v7328
  %v7802 = vmul.f32 %v6046, %v7342
  %v7803 = vmul.f32 %v6048, %v7356
  %v7804 = vmul.f32 %v6050, %v7370
  %v7805 = vmul.f32 %v6052, %v7384
  %v7806 = vmul.f32 %v6054, %v7398
  %v7807 = vmul.f32 %v6056, %v7412
  %v7808 = vmul.f32 %v6058, %v7426
  %v7809 = vmul.f32 %v6060, %v7440
  %v7810 = vmul.f32 %v6062, %v7454
  %v7811 = vmul.f32 %v6064, %v7468
  %v7812 = vmul.f32 %v6066, %v7482
  %v7813 = vmul.f32 %v6068, %v7496
  %v7814 = vmul.f32 %v6070, %v7510
  %v7815 = vmul.f32 %v6072, %v7524
  %v7816 = vmul.f32 %v6074, %v7538
  %v7817 = vmul.f32 %v6076, %v7552
  %v7818 = vmul.f32 %v6078, %v7566
  %v7819 = vmul.f32 %v6080, %v7580
  %v7820 = vmul.f32 %v6082, %v7594
  %v7821 = vmul.f32 %v6084, %v7608
  %v7822 = vmul.f32 %v6086, %v7622
  %v7823 = vmul.f32 %v6088, %v7636
  %v7824 = vmul.f32 %v6090, %v7650
  %v7825 = vmul.f32 %v6092, %v7664
  %v7826 = vmul.f32 %v6094, %v7678
  %v7827 = vmul.f32 %v6096, %v7692
  %v7828 = vmul.f32 %v6098, %v7706
  %v7829 = vmul.f32 %v6100, %v7720
  %v7830 = vmul.f32 %v6102, %v7734
  %7864 = vrot.lane.b32.xlu0 %v1988, 64
  %v7865 = vpop.permute.xlu0 %7864
  %7866 = vrot.lane.b32.xlu0 %v1991, 64
  %v7867 = vpop.permute.xlu0 %7866
  %7868 = vrot.lane.b32.xlu0 %v1994, 64
  %v7869 = vpop.permute.xlu0 %7868
  %7870 = vrot.lane.b32.xlu0 %v1997, 64
  %v7871 = vpop.permute.xlu0 %7870
  %7872 = vrot.lane.b32.xlu0 %v2000, 64
  %v7873 = vpop.permute.xlu0 %7872
  %7874 = vrot.lane.b32.xlu0 %v2003, 64
  %v7875 = vpop.permute.xlu0 %7874
  %7876 = vrot.lane.b32.xlu0 %v2006, 64
  %v7877 = vpop.permute.xlu0 %7876
  %7878 = vrot.lane.b32.xlu0 %v2009, 64
  %v7879 = vpop.permute.xlu0 %7878
  %7880 = vrot.lane.b32.xlu0 %v2012, 64
  %v7881 = vpop.permute.xlu0 %7880
  %7882 = vrot.lane.b32.xlu0 %v2015, 64
  %v7883 = vpop.permute.xlu0 %7882
  %7884 = vrot.lane.b32.xlu0 %v2018, 64
  %v7885 = vpop.permute.xlu0 %7884
  %7886 = vrot.lane.b32.xlu0 %v2021, 64
  %v7887 = vpop.permute.xlu0 %7886
  %7888 = vrot.lane.b32.xlu0 %v2024, 64
  %v7889 = vpop.permute.xlu0 %7888
  %7890 = vrot.lane.b32.xlu0 %v2027, 64
  %v7891 = vpop.permute.xlu0 %7890
  %7892 = vrot.lane.b32.xlu0 %v2030, 64
  %v7893 = vpop.permute.xlu0 %7892
  %7894 = vrot.lane.b32.xlu0 %v2033, 64
  %v7895 = vpop.permute.xlu0 %7894
  %7896 = vrot.lane.b32.xlu0 %v2036, 64
  %v7897 = vpop.permute.xlu0 %7896
  %7898 = vrot.lane.b32.xlu0 %v2039, 64
  %v7899 = vpop.permute.xlu0 %7898
  %7900 = vrot.lane.b32.xlu0 %v2042, 64
  %v7901 = vpop.permute.xlu0 %7900
  %7902 = vrot.lane.b32.xlu0 %v2045, 64
  %v7903 = vpop.permute.xlu0 %7902
  %7904 = vrot.lane.b32.xlu0 %v2048, 64
  %v7905 = vpop.permute.xlu0 %7904
  %7906 = vrot.lane.b32.xlu0 %v2051, 64
  %v7907 = vpop.permute.xlu0 %7906
  %7908 = vrot.lane.b32.xlu0 %v2054, 64
  %v7909 = vpop.permute.xlu0 %7908
  %7910 = vrot.lane.b32.xlu0 %v2057, 64
  %v7911 = vpop.permute.xlu0 %7910
  %7912 = vrot.lane.b32.xlu0 %v2060, 64
  %v7913 = vpop.permute.xlu0 %7912
  %7914 = vrot.lane.b32.xlu0 %v2063, 64
  %v7915 = vpop.permute.xlu0 %7914
  %7916 = vrot.lane.b32.xlu0 %v2066, 64
  %v7917 = vpop.permute.xlu0 %7916
  %7918 = vrot.lane.b32.xlu0 %v2069, 64
  %v7919 = vpop.permute.xlu0 %7918
  %7920 = vrot.lane.b32.xlu0 %v2072, 64
  %v7921 = vpop.permute.xlu0 %7920
  %7922 = vrot.lane.b32.xlu0 %v2075, 64
  %v7923 = vpop.permute.xlu0 %7922
  %7924 = vrot.lane.b32.xlu0 %v2078, 64
  %v7925 = vpop.permute.xlu0 %7924
  %7926 = vrot.lane.b32.xlu0 %v2081, 64
  %v7927 = vpop.permute.xlu0 %7926
  %7928 = vrot.lane.b32.xlu0 %v2084, 64
  %v7929 = vpop.permute.xlu0 %7928
  %v7930 = vsel %vm1057, %v7865, 0
  %v7932 = vsel %vm1057, %v7867, 0
  %v7934 = vsel %vm1057, %v7869, 0
  %v7936 = vsel %vm1057, %v7871, 0
  %v7938 = vsel %vm1057, %v7873, 0
  %v7940 = vsel %vm1057, %v7875, 0
  %v7942 = vsel %vm1057, %v7877, 0
  %v7944 = vsel %vm1057, %v7879, 0
  %v7946 = vsel %vm1057, %v7881, 0
  %v7948 = vsel %vm1057, %v7883, 0
  %v7950 = vsel %vm1057, %v7885, 0
  %v7952 = vsel %vm1057, %v7887, 0
  %v7954 = vsel %vm1057, %v7889, 0
  %v7956 = vsel %vm1057, %v7891, 0
  %v7958 = vsel %vm1057, %v7893, 0
  %v7960 = vsel %vm1057, %v7895, 0
  %v7962 = vsel %vm1057, %v7897, 0
  %v7964 = vsel %vm1057, %v7899, 0
  %v7966 = vsel %vm1057, %v7901, 0
  %v7968 = vsel %vm1057, %v7903, 0
  %v7970 = vsel %vm1057, %v7905, 0
  %v7972 = vsel %vm1057, %v7907, 0
  %v7974 = vsel %vm1057, %v7909, 0
  %v7976 = vsel %vm1057, %v7911, 0
  %v7978 = vsel %vm1057, %v7913, 0
  %v7980 = vsel %vm1057, %v7915, 0
  %v7982 = vsel %vm1057, %v7917, 0
  %v7984 = vsel %vm1057, %v7919, 0
  %v7986 = vsel %vm1057, %v7921, 0
  %v7988 = vsel %vm1057, %v7923, 0
  %v7990 = vsel %vm1057, %v7925, 0
  %v7992 = vsel %vm1057, %v7927, 0
  %v7994 = vsel %vm1057, %v7929, 0
  %v7997 = vsel %vm1057, %v7735, 0
  %v8000 = vsel %vm1057, %v7736, 0
  %v8003 = vsel %vm1057, %v7737, 0
  %v8006 = vsel %vm1057, %v7738, 0
  %v8009 = vsel %vm1057, %v7739, 0
  %v8012 = vsel %vm1057, %v7740, 0
  %v8015 = vsel %vm1057, %v7741, 0
  %v8018 = vsel %vm1057, %v7742, 0
  %v8021 = vsel %vm1057, %v7743, 0
  %v8024 = vsel %vm1057, %v7744, 0
  %v8027 = vsel %vm1057, %v7745, 0
  %v8030 = vsel %vm1057, %v7746, 0
  %v8033 = vsel %vm1057, %v7747, 0
  %v8036 = vsel %vm1057, %v7748, 0
  %v8039 = vsel %vm1057, %v7749, 0
  %v8042 = vsel %vm1057, %v7750, 0
  %v8045 = vsel %vm1057, %v7751, 0
  %v8048 = vsel %vm1057, %v7752, 0
  %v8051 = vsel %vm1057, %v7753, 0
  %v8054 = vsel %vm1057, %v7754, 0
  %v8057 = vsel %vm1057, %v7755, 0
  %v8060 = vsel %vm1057, %v7756, 0
  %v8063 = vsel %vm1057, %v7757, 0
  %v8066 = vsel %vm1057, %v7758, 0
  %v8069 = vsel %vm1057, %v7759, 0
  %v8072 = vsel %vm1057, %v7760, 0
  %v8075 = vsel %vm1057, %v7761, 0
  %v8078 = vsel %vm1057, %v7762, 0
  %v8081 = vsel %vm1057, %v7763, 0
  %v8084 = vsel %vm1057, %v7764, 0
  %v8087 = vsel %vm1057, %v7765, 0
  %v8090 = vsel %vm1057, %v7766, 0
  %v8093 = vsel %vm1057, %v7767, 0
  %v8096 = vsel %vm1057, %v7768, 0
  %v8099 = vsel %vm1057, %v7769, 0
  %v8102 = vsel %vm1057, %v7770, 0
  %v8105 = vsel %vm1057, %v7771, 0
  %v8108 = vsel %vm1057, %v7772, 0
  %v8111 = vsel %vm1057, %v7773, 0
  %v8114 = vsel %vm1057, %v7774, 0
  %v8117 = vsel %vm1057, %v7775, 0
  %v8120 = vsel %vm1057, %v7776, 0
  %v8123 = vsel %vm1057, %v7777, 0
  %v8126 = vsel %vm1057, %v7778, 0
  %v8129 = vsel %vm1057, %v7779, 0
  %v8132 = vsel %vm1057, %v7780, 0
  %v8135 = vsel %vm1057, %v7781, 0
  %v8138 = vsel %vm1057, %v7782, 0
  %v8141 = vsel %vm1057, %v7783, 0
  %v8144 = vsel %vm1057, %v7784, 0
  %v8147 = vsel %vm1057, %v7785, 0
  %v8150 = vsel %vm1057, %v7786, 0
  %v8153 = vsel %vm1057, %v7787, 0
  %v8156 = vsel %vm1057, %v7788, 0
  %v8159 = vsel %vm1057, %v7789, 0
  %v8162 = vsel %vm1057, %v7790, 0
  %v8165 = vsel %vm1057, %v7791, 0
  %v8168 = vsel %vm1057, %v7792, 0
  %v8171 = vsel %vm1057, %v7793, 0
  %v8174 = vsel %vm1057, %v7794, 0
  %v8177 = vsel %vm1057, %v7795, 0
  %v8180 = vsel %vm1057, %v7796, 0
  %v8183 = vsel %vm1057, %v7797, 0
  %v8186 = vsel %vm1057, %v7798, 0
  %v8189 = vsel %vm1057, %v7799, 0
  %v8192 = vsel %vm1057, %v7800, 0
  %v8195 = vsel %vm1057, %v7801, 0
  %v8198 = vsel %vm1057, %v7802, 0
  %v8201 = vsel %vm1057, %v7803, 0
  %v8204 = vsel %vm1057, %v7804, 0
  %v8207 = vsel %vm1057, %v7805, 0
  %v8210 = vsel %vm1057, %v7806, 0
  %v8213 = vsel %vm1057, %v7807, 0
  %v8216 = vsel %vm1057, %v7808, 0
  %v8219 = vsel %vm1057, %v7809, 0
  %v8222 = vsel %vm1057, %v7810, 0
  %v8225 = vsel %vm1057, %v7811, 0
  %v8228 = vsel %vm1057, %v7812, 0
  %v8231 = vsel %vm1057, %v7813, 0
  %v8234 = vsel %vm1057, %v7814, 0
  %v8237 = vsel %vm1057, %v7815, 0
  %v8240 = vsel %vm1057, %v7816, 0
  %v8243 = vsel %vm1057, %v7817, 0
  %v8246 = vsel %vm1057, %v7818, 0
  %v8249 = vsel %vm1057, %v7819, 0
  %v8252 = vsel %vm1057, %v7820, 0
  %v8255 = vsel %vm1057, %v7821, 0
  %v8258 = vsel %vm1057, %v7822, 0
  %v8261 = vsel %vm1057, %v7823, 0
  %v8264 = vsel %vm1057, %v7824, 0
  %v8267 = vsel %vm1057, %v7825, 0
  %v8270 = vsel %vm1057, %v7826, 0
  %v8273 = vsel %vm1057, %v7827, 0
  %v8276 = vsel %vm1057, %v7828, 0
  %v8279 = vsel %vm1057, %v7829, 0
  %v8282 = vsel %vm1057, %v7830, 0
  %8284 = vmatpush.xpose.msra.mxu0 %v8042
  %8285 = vmatpush.xpose.msra.mxu0 %v8039
  %8286 = vmatpush.xpose.msra.mxu0 %v8036
  %8287 = vmatpush.xpose.msra.mxu0 %v8033
  %8288 = vmatpush.xpose.msra.mxu0 %v8030
  %8289 = vmatpush.xpose.msra.mxu0 %v8027
  %8290 = vmatpush.xpose.msra.mxu0 %v8024
  %8291 = vmatpush.xpose.msra.mxu0 %v8021
  %8292 = vmatpush.xpose.msra.mxu0 %v8018
  %8293 = vmatpush.xpose.msra.mxu0 %v8015
  %8294 = vmatpush.xpose.msra.mxu0 %v8012
  %8295 = vmatpush.xpose.msra.mxu0 %v8009
  %8296 = vmatpush.xpose.msra.mxu0 %v8006
  %8297 = vmatpush.xpose.msra.mxu0 %v8003
  %8298 = vmatpush.xpose.msra.mxu0 %v8000
  %8299 = vmatpush.xpose.msra.mxu0 %v7997
  %8300 = vmatmul.f32.gmra.mxu0 %v7930
  %v8301 = vpop.f32.mrf.mxu0
  %v8302 = vadd.f32 0.0, %v8301
  %8303 = vmatmul.f32.gmra.mxu0 %v7932
  %v8304 = vpop.f32.mrf.mxu0
  %v8305 = vadd.f32 0.0, %v8304
  %8306 = vmatmul.f32.gmra.mxu0 %v7934
  %v8307 = vpop.f32.mrf.mxu0
  %v8308 = vadd.f32 0.0, %v8307
  %8309 = vmatmul.f32.gmra.mxu0 %v7936
  %v8310 = vpop.f32.mrf.mxu0
  %v8311 = vadd.f32 0.0, %v8310
  %8312 = vmatmul.f32.gmra.mxu0 %v7938
  %v8313 = vpop.f32.mrf.mxu0
  %v8314 = vadd.f32 0.0, %v8313
  %8315 = vmatmul.f32.gmra.mxu0 %v7940
  %v8316 = vpop.f32.mrf.mxu0
  %v8317 = vadd.f32 0.0, %v8316
  %8318 = vmatmul.f32.gmra.mxu0 %v7942
  %v8319 = vpop.f32.mrf.mxu0
  %v8320 = vadd.f32 0.0, %v8319
  %8321 = vmatmul.f32.gmra.mxu0 %v7944
  %v8322 = vpop.f32.mrf.mxu0
  %v8323 = vadd.f32 0.0, %v8322
  %8324 = vmatmul.f32.gmra.mxu0 %v7946
  %v8325 = vpop.f32.mrf.mxu0
  %v8326 = vadd.f32 0.0, %v8325
  %8327 = vmatmul.f32.gmra.mxu0 %v7948
  %v8328 = vpop.f32.mrf.mxu0
  %v8329 = vadd.f32 0.0, %v8328
  %8330 = vmatmul.f32.gmra.mxu0 %v7950
  %v8331 = vpop.f32.mrf.mxu0
  %v8332 = vadd.f32 0.0, %v8331
  %8333 = vmatmul.f32.gmra.mxu0 %v7952
  %v8334 = vpop.f32.mrf.mxu0
  %v8335 = vadd.f32 0.0, %v8334
  %8336 = vmatmul.f32.gmra.mxu0 %v7954
  %v8337 = vpop.f32.mrf.mxu0
  %v8338 = vadd.f32 0.0, %v8337
  %8339 = vmatmul.f32.gmra.mxu0 %v7956
  %v8340 = vpop.f32.mrf.mxu0
  %v8341 = vadd.f32 0.0, %v8340
  %8342 = vmatmul.f32.gmra.mxu0 %v7958
  %v8343 = vpop.f32.mrf.mxu0
  %v8344 = vadd.f32 0.0, %v8343
  %8345 = vmatmul.f32.gmra.mxu0 %v7960
  %v8346 = vpop.f32.mrf.mxu0
  %v8347 = vadd.f32 0.0, %v8346
  %8348 = vmatmul.f32.gmra.mxu0 %v7962
  %v8349 = vpop.f32.mrf.mxu0
  %v8350 = vadd.f32 0.0, %v8349
  %8351 = vmatmul.f32.gmra.mxu0 %v7964
  %v8352 = vpop.f32.mrf.mxu0
  %v8353 = vadd.f32 0.0, %v8352
  %8354 = vmatmul.f32.gmra.mxu0 %v7966
  %v8355 = vpop.f32.mrf.mxu0
  %v8356 = vadd.f32 0.0, %v8355
  %8357 = vmatmul.f32.gmra.mxu0 %v7968
  %v8358 = vpop.f32.mrf.mxu0
  %v8359 = vadd.f32 0.0, %v8358
  %8360 = vmatmul.f32.gmra.mxu0 %v7970
  %v8361 = vpop.f32.mrf.mxu0
  %v8362 = vadd.f32 0.0, %v8361
  %8363 = vmatmul.f32.gmra.mxu0 %v7972
  %v8364 = vpop.f32.mrf.mxu0
  %v8365 = vadd.f32 0.0, %v8364
  %8366 = vmatmul.f32.gmra.mxu0 %v7974
  %v8367 = vpop.f32.mrf.mxu0
  %v8368 = vadd.f32 0.0, %v8367
  %8369 = vmatmul.f32.gmra.mxu0 %v7976
  %v8370 = vpop.f32.mrf.mxu0
  %v8371 = vadd.f32 0.0, %v8370
  %8372 = vmatmul.f32.gmra.mxu0 %v7978
  %v8373 = vpop.f32.mrf.mxu0
  %v8374 = vadd.f32 0.0, %v8373
  %8375 = vmatmul.f32.gmra.mxu0 %v7980
  %v8376 = vpop.f32.mrf.mxu0
  %v8377 = vadd.f32 0.0, %v8376
  %8378 = vmatmul.f32.gmra.mxu0 %v7982
  %v8379 = vpop.f32.mrf.mxu0
  %v8380 = vadd.f32 0.0, %v8379
  %8381 = vmatmul.f32.gmra.mxu0 %v7984
  %v8382 = vpop.f32.mrf.mxu0
  %v8383 = vadd.f32 0.0, %v8382
  %8384 = vmatmul.f32.gmra.mxu0 %v7986
  %v8385 = vpop.f32.mrf.mxu0
  %v8386 = vadd.f32 0.0, %v8385
  %8387 = vmatmul.f32.gmra.mxu0 %v7988
  %v8388 = vpop.f32.mrf.mxu0
  %v8389 = vadd.f32 0.0, %v8388
  %8390 = vmatmul.f32.gmra.mxu0 %v7990
  %v8391 = vpop.f32.mrf.mxu0
  %v8392 = vadd.f32 0.0, %v8391
  %8393 = vmatmul.f32.gmra.mxu0 %v7992
  %v8394 = vpop.f32.mrf.mxu0
  %v8395 = vadd.f32 0.0, %v8394
  %8396 = vmatmul.f32.gmra.mxu0 %v7994
  %v8397 = vpop.f32.mrf.mxu0
  %v8398 = vadd.f32 0.0, %v8397
  %8399 = vdwg.mxu0
  %8400 = vmatpush.xpose.msra.mxu0 %v8090
  %8401 = vmatpush.xpose.msra.mxu0 %v8087
  %8402 = vmatpush.xpose.msra.mxu0 %v8084
  %8403 = vmatpush.xpose.msra.mxu0 %v8081
  %8404 = vmatpush.xpose.msra.mxu0 %v8078
  %8405 = vmatpush.xpose.msra.mxu0 %v8075
  %8406 = vmatpush.xpose.msra.mxu0 %v8072
  %8407 = vmatpush.xpose.msra.mxu0 %v8069
  %8408 = vmatpush.xpose.msra.mxu0 %v8066
  %8409 = vmatpush.xpose.msra.mxu0 %v8063
  %8410 = vmatpush.xpose.msra.mxu0 %v8060
  %8411 = vmatpush.xpose.msra.mxu0 %v8057
  %8412 = vmatpush.xpose.msra.mxu0 %v8054
  %8413 = vmatpush.xpose.msra.mxu0 %v8051
  %8414 = vmatpush.xpose.msra.mxu0 %v8048
  %8415 = vmatpush.xpose.msra.mxu0 %v8045
  %8416 = vmatmul.f32.gmra.mxu0 %v7930
  %v8417 = vpop.f32.mrf.mxu0
  %v8418 = vadd.f32 0.0, %v8417
  %8419 = vmatmul.f32.gmra.mxu0 %v7932
  %v8420 = vpop.f32.mrf.mxu0
  %v8421 = vadd.f32 0.0, %v8420
  %8422 = vmatmul.f32.gmra.mxu0 %v7934
  %v8423 = vpop.f32.mrf.mxu0
  %v8424 = vadd.f32 0.0, %v8423
  %8425 = vmatmul.f32.gmra.mxu0 %v7936
  %v8426 = vpop.f32.mrf.mxu0
  %v8427 = vadd.f32 0.0, %v8426
  %8428 = vmatmul.f32.gmra.mxu0 %v7938
  %v8429 = vpop.f32.mrf.mxu0
  %v8430 = vadd.f32 0.0, %v8429
  %8431 = vmatmul.f32.gmra.mxu0 %v7940
  %v8432 = vpop.f32.mrf.mxu0
  %v8433 = vadd.f32 0.0, %v8432
  %8434 = vmatmul.f32.gmra.mxu0 %v7942
  %v8435 = vpop.f32.mrf.mxu0
  %v8436 = vadd.f32 0.0, %v8435
  %8437 = vmatmul.f32.gmra.mxu0 %v7944
  %v8438 = vpop.f32.mrf.mxu0
  %v8439 = vadd.f32 0.0, %v8438
  %8440 = vmatmul.f32.gmra.mxu0 %v7946
  %v8441 = vpop.f32.mrf.mxu0
  %v8442 = vadd.f32 0.0, %v8441
  %8443 = vmatmul.f32.gmra.mxu0 %v7948
  %v8444 = vpop.f32.mrf.mxu0
  %v8445 = vadd.f32 0.0, %v8444
  %8446 = vmatmul.f32.gmra.mxu0 %v7950
  %v8447 = vpop.f32.mrf.mxu0
  %v8448 = vadd.f32 0.0, %v8447
  %8449 = vmatmul.f32.gmra.mxu0 %v7952
  %v8450 = vpop.f32.mrf.mxu0
  %v8451 = vadd.f32 0.0, %v8450
  %8452 = vmatmul.f32.gmra.mxu0 %v7954
  %v8453 = vpop.f32.mrf.mxu0
  %v8454 = vadd.f32 0.0, %v8453
  %8455 = vmatmul.f32.gmra.mxu0 %v7956
  %v8456 = vpop.f32.mrf.mxu0
  %v8457 = vadd.f32 0.0, %v8456
  %8458 = vmatmul.f32.gmra.mxu0 %v7958
  %v8459 = vpop.f32.mrf.mxu0
  %v8460 = vadd.f32 0.0, %v8459
  %8461 = vmatmul.f32.gmra.mxu0 %v7960
  %v8462 = vpop.f32.mrf.mxu0
  %v8463 = vadd.f32 0.0, %v8462
  %8464 = vmatmul.f32.gmra.mxu0 %v7962
  %v8465 = vpop.f32.mrf.mxu0
  %v8466 = vadd.f32 0.0, %v8465
  %8467 = vmatmul.f32.gmra.mxu0 %v7964
  %v8468 = vpop.f32.mrf.mxu0
  %v8469 = vadd.f32 0.0, %v8468
  %8470 = vmatmul.f32.gmra.mxu0 %v7966
  %v8471 = vpop.f32.mrf.mxu0
  %v8472 = vadd.f32 0.0, %v8471
  %8473 = vmatmul.f32.gmra.mxu0 %v7968
  %v8474 = vpop.f32.mrf.mxu0
  %v8475 = vadd.f32 0.0, %v8474
  %8476 = vmatmul.f32.gmra.mxu0 %v7970
  %v8477 = vpop.f32.mrf.mxu0
  %v8478 = vadd.f32 0.0, %v8477
  %8479 = vmatmul.f32.gmra.mxu0 %v7972
  %v8480 = vpop.f32.mrf.mxu0
  %v8481 = vadd.f32 0.0, %v8480
  %8482 = vmatmul.f32.gmra.mxu0 %v7974
  %v8483 = vpop.f32.mrf.mxu0
  %v8484 = vadd.f32 0.0, %v8483
  %8485 = vmatmul.f32.gmra.mxu0 %v7976
  %v8486 = vpop.f32.mrf.mxu0
  %v8487 = vadd.f32 0.0, %v8486
  %8488 = vmatmul.f32.gmra.mxu0 %v7978
  %v8489 = vpop.f32.mrf.mxu0
  %v8490 = vadd.f32 0.0, %v8489
  %8491 = vmatmul.f32.gmra.mxu0 %v7980
  %v8492 = vpop.f32.mrf.mxu0
  %v8493 = vadd.f32 0.0, %v8492
  %8494 = vmatmul.f32.gmra.mxu0 %v7982
  %v8495 = vpop.f32.mrf.mxu0
  %v8496 = vadd.f32 0.0, %v8495
  %8497 = vmatmul.f32.gmra.mxu0 %v7984
  %v8498 = vpop.f32.mrf.mxu0
  %v8499 = vadd.f32 0.0, %v8498
  %8500 = vmatmul.f32.gmra.mxu0 %v7986
  %v8501 = vpop.f32.mrf.mxu0
  %v8502 = vadd.f32 0.0, %v8501
  %8503 = vmatmul.f32.gmra.mxu0 %v7988
  %v8504 = vpop.f32.mrf.mxu0
  %v8505 = vadd.f32 0.0, %v8504
  %8506 = vmatmul.f32.gmra.mxu0 %v7990
  %v8507 = vpop.f32.mrf.mxu0
  %v8508 = vadd.f32 0.0, %v8507
  %8509 = vmatmul.f32.gmra.mxu0 %v7992
  %v8510 = vpop.f32.mrf.mxu0
  %v8511 = vadd.f32 0.0, %v8510
  %8512 = vmatmul.f32.gmra.mxu0 %v7994
  %v8513 = vpop.f32.mrf.mxu0
  %v8514 = vadd.f32 0.0, %v8513
  %8515 = vdwg.mxu0
  %8516 = vmatpush.xpose.msra.mxu0 %v8138
  %8517 = vmatpush.xpose.msra.mxu0 %v8135
  %8518 = vmatpush.xpose.msra.mxu0 %v8132
  %8519 = vmatpush.xpose.msra.mxu0 %v8129
  %8520 = vmatpush.xpose.msra.mxu0 %v8126
  %8521 = vmatpush.xpose.msra.mxu0 %v8123
  %8522 = vmatpush.xpose.msra.mxu0 %v8120
  %8523 = vmatpush.xpose.msra.mxu0 %v8117
  %8524 = vmatpush.xpose.msra.mxu0 %v8114
  %8525 = vmatpush.xpose.msra.mxu0 %v8111
  %8526 = vmatpush.xpose.msra.mxu0 %v8108
  %8527 = vmatpush.xpose.msra.mxu0 %v8105
  %8528 = vmatpush.xpose.msra.mxu0 %v8102
  %8529 = vmatpush.xpose.msra.mxu0 %v8099
  %8530 = vmatpush.xpose.msra.mxu0 %v8096
  %8531 = vmatpush.xpose.msra.mxu0 %v8093
  %8532 = vmatmul.f32.gmra.mxu0 %v7930
  %v8533 = vpop.f32.mrf.mxu0
  %v8534 = vadd.f32 0.0, %v8533
  %8535 = vmatmul.f32.gmra.mxu0 %v7932
  %v8536 = vpop.f32.mrf.mxu0
  %v8537 = vadd.f32 0.0, %v8536
  %8538 = vmatmul.f32.gmra.mxu0 %v7934
  %v8539 = vpop.f32.mrf.mxu0
  %v8540 = vadd.f32 0.0, %v8539
  %8541 = vmatmul.f32.gmra.mxu0 %v7936
  %v8542 = vpop.f32.mrf.mxu0
  %v8543 = vadd.f32 0.0, %v8542
  %8544 = vmatmul.f32.gmra.mxu0 %v7938
  %v8545 = vpop.f32.mrf.mxu0
  %v8546 = vadd.f32 0.0, %v8545
  %8547 = vmatmul.f32.gmra.mxu0 %v7940
  %v8548 = vpop.f32.mrf.mxu0
  %v8549 = vadd.f32 0.0, %v8548
  %8550 = vmatmul.f32.gmra.mxu0 %v7942
  %v8551 = vpop.f32.mrf.mxu0
  %v8552 = vadd.f32 0.0, %v8551
  %8553 = vmatmul.f32.gmra.mxu0 %v7944
  %v8554 = vpop.f32.mrf.mxu0
  %v8555 = vadd.f32 0.0, %v8554
  %8556 = vmatmul.f32.gmra.mxu0 %v7946
  %v8557 = vpop.f32.mrf.mxu0
  %v8558 = vadd.f32 0.0, %v8557
  %8559 = vmatmul.f32.gmra.mxu0 %v7948
  %v8560 = vpop.f32.mrf.mxu0
  %v8561 = vadd.f32 0.0, %v8560
  %8562 = vmatmul.f32.gmra.mxu0 %v7950
  %v8563 = vpop.f32.mrf.mxu0
  %v8564 = vadd.f32 0.0, %v8563
  %8565 = vmatmul.f32.gmra.mxu0 %v7952
  %v8566 = vpop.f32.mrf.mxu0
  %v8567 = vadd.f32 0.0, %v8566
  %8568 = vmatmul.f32.gmra.mxu0 %v7954
  %v8569 = vpop.f32.mrf.mxu0
  %v8570 = vadd.f32 0.0, %v8569
  %8571 = vmatmul.f32.gmra.mxu0 %v7956
  %v8572 = vpop.f32.mrf.mxu0
  %v8573 = vadd.f32 0.0, %v8572
  %8574 = vmatmul.f32.gmra.mxu0 %v7958
  %v8575 = vpop.f32.mrf.mxu0
  %v8576 = vadd.f32 0.0, %v8575
  %8577 = vmatmul.f32.gmra.mxu0 %v7960
  %v8578 = vpop.f32.mrf.mxu0
  %v8579 = vadd.f32 0.0, %v8578
  %8580 = vmatmul.f32.gmra.mxu0 %v7962
  %v8581 = vpop.f32.mrf.mxu0
  %v8582 = vadd.f32 0.0, %v8581
  %8583 = vmatmul.f32.gmra.mxu0 %v7964
  %v8584 = vpop.f32.mrf.mxu0
  %v8585 = vadd.f32 0.0, %v8584
  %8586 = vmatmul.f32.gmra.mxu0 %v7966
  %v8587 = vpop.f32.mrf.mxu0
  %v8588 = vadd.f32 0.0, %v8587
  %8589 = vmatmul.f32.gmra.mxu0 %v7968
  %v8590 = vpop.f32.mrf.mxu0
  %v8591 = vadd.f32 0.0, %v8590
  %8592 = vmatmul.f32.gmra.mxu0 %v7970
  %v8593 = vpop.f32.mrf.mxu0
  %v8594 = vadd.f32 0.0, %v8593
  %8595 = vmatmul.f32.gmra.mxu0 %v7972
  %v8596 = vpop.f32.mrf.mxu0
  %v8597 = vadd.f32 0.0, %v8596
  %8598 = vmatmul.f32.gmra.mxu0 %v7974
  %v8599 = vpop.f32.mrf.mxu0
  %v8600 = vadd.f32 0.0, %v8599
  %8601 = vmatmul.f32.gmra.mxu0 %v7976
  %v8602 = vpop.f32.mrf.mxu0
  %v8603 = vadd.f32 0.0, %v8602
  %8604 = vmatmul.f32.gmra.mxu0 %v7978
  %v8605 = vpop.f32.mrf.mxu0
  %v8606 = vadd.f32 0.0, %v8605
  %8607 = vmatmul.f32.gmra.mxu0 %v7980
  %v8608 = vpop.f32.mrf.mxu0
  %v8609 = vadd.f32 0.0, %v8608
  %8610 = vmatmul.f32.gmra.mxu0 %v7982
  %v8611 = vpop.f32.mrf.mxu0
  %v8612 = vadd.f32 0.0, %v8611
  %8613 = vmatmul.f32.gmra.mxu0 %v7984
  %v8614 = vpop.f32.mrf.mxu0
  %v8615 = vadd.f32 0.0, %v8614
  %8616 = vmatmul.f32.gmra.mxu0 %v7986
  %v8617 = vpop.f32.mrf.mxu0
  %v8618 = vadd.f32 0.0, %v8617
  %8619 = vmatmul.f32.gmra.mxu0 %v7988
  %v8620 = vpop.f32.mrf.mxu0
  %v8621 = vadd.f32 0.0, %v8620
  %8622 = vmatmul.f32.gmra.mxu0 %v7990
  %v8623 = vpop.f32.mrf.mxu0
  %v8624 = vadd.f32 0.0, %v8623
  %8625 = vmatmul.f32.gmra.mxu0 %v7992
  %v8626 = vpop.f32.mrf.mxu0
  %v8627 = vadd.f32 0.0, %v8626
  %8628 = vmatmul.f32.gmra.mxu0 %v7994
  %v8629 = vpop.f32.mrf.mxu0
  %v8630 = vadd.f32 0.0, %v8629
  %8631 = vdwg.mxu0
  %8632 = vmatpush.xpose.msra.mxu0 %v8186
  %8633 = vmatpush.xpose.msra.mxu0 %v8183
  %8634 = vmatpush.xpose.msra.mxu0 %v8180
  %8635 = vmatpush.xpose.msra.mxu0 %v8177
  %8636 = vmatpush.xpose.msra.mxu0 %v8174
  %8637 = vmatpush.xpose.msra.mxu0 %v8171
  %8638 = vmatpush.xpose.msra.mxu0 %v8168
  %8639 = vmatpush.xpose.msra.mxu0 %v8165
  %8640 = vmatpush.xpose.msra.mxu0 %v8162
  %8641 = vmatpush.xpose.msra.mxu0 %v8159
  %8642 = vmatpush.xpose.msra.mxu0 %v8156
  %8643 = vmatpush.xpose.msra.mxu0 %v8153
  %8644 = vmatpush.xpose.msra.mxu0 %v8150
  %8645 = vmatpush.xpose.msra.mxu0 %v8147
  %8646 = vmatpush.xpose.msra.mxu0 %v8144
  %8647 = vmatpush.xpose.msra.mxu0 %v8141
  %8648 = vmatmul.f32.gmra.mxu0 %v7930
  %v8649 = vpop.f32.mrf.mxu0
  %v8650 = vadd.f32 0.0, %v8649
  %8651 = vmatmul.f32.gmra.mxu0 %v7932
  %v8652 = vpop.f32.mrf.mxu0
  %v8653 = vadd.f32 0.0, %v8652
  %8654 = vmatmul.f32.gmra.mxu0 %v7934
  %v8655 = vpop.f32.mrf.mxu0
  %v8656 = vadd.f32 0.0, %v8655
  %8657 = vmatmul.f32.gmra.mxu0 %v7936
  %v8658 = vpop.f32.mrf.mxu0
  %v8659 = vadd.f32 0.0, %v8658
  %8660 = vmatmul.f32.gmra.mxu0 %v7938
  %v8661 = vpop.f32.mrf.mxu0
  %v8662 = vadd.f32 0.0, %v8661
  %8663 = vmatmul.f32.gmra.mxu0 %v7940
  %v8664 = vpop.f32.mrf.mxu0
  %v8665 = vadd.f32 0.0, %v8664
  %8666 = vmatmul.f32.gmra.mxu0 %v7942
  %v8667 = vpop.f32.mrf.mxu0
  %v8668 = vadd.f32 0.0, %v8667
  %8669 = vmatmul.f32.gmra.mxu0 %v7944
  %v8670 = vpop.f32.mrf.mxu0
  %v8671 = vadd.f32 0.0, %v8670
  %8672 = vmatmul.f32.gmra.mxu0 %v7946
  %v8673 = vpop.f32.mrf.mxu0
  %v8674 = vadd.f32 0.0, %v8673
  %8675 = vmatmul.f32.gmra.mxu0 %v7948
  %v8676 = vpop.f32.mrf.mxu0
  %v8677 = vadd.f32 0.0, %v8676
  %8678 = vmatmul.f32.gmra.mxu0 %v7950
  %v8679 = vpop.f32.mrf.mxu0
  %v8680 = vadd.f32 0.0, %v8679
  %8681 = vmatmul.f32.gmra.mxu0 %v7952
  %v8682 = vpop.f32.mrf.mxu0
  %v8683 = vadd.f32 0.0, %v8682
  %8684 = vmatmul.f32.gmra.mxu0 %v7954
  %v8685 = vpop.f32.mrf.mxu0
  %v8686 = vadd.f32 0.0, %v8685
  %8687 = vmatmul.f32.gmra.mxu0 %v7956
  %v8688 = vpop.f32.mrf.mxu0
  %v8689 = vadd.f32 0.0, %v8688
  %8690 = vmatmul.f32.gmra.mxu0 %v7958
  %v8691 = vpop.f32.mrf.mxu0
  %v8692 = vadd.f32 0.0, %v8691
  %8693 = vmatmul.f32.gmra.mxu0 %v7960
  %v8694 = vpop.f32.mrf.mxu0
  %v8695 = vadd.f32 0.0, %v8694
  %8696 = vmatmul.f32.gmra.mxu0 %v7962
  %v8697 = vpop.f32.mrf.mxu0
  %v8698 = vadd.f32 0.0, %v8697
  %8699 = vmatmul.f32.gmra.mxu0 %v7964
  %v8700 = vpop.f32.mrf.mxu0
  %v8701 = vadd.f32 0.0, %v8700
  %8702 = vmatmul.f32.gmra.mxu0 %v7966
  %v8703 = vpop.f32.mrf.mxu0
  %v8704 = vadd.f32 0.0, %v8703
  %8705 = vmatmul.f32.gmra.mxu0 %v7968
  %v8706 = vpop.f32.mrf.mxu0
  %v8707 = vadd.f32 0.0, %v8706
  %8708 = vmatmul.f32.gmra.mxu0 %v7970
  %v8709 = vpop.f32.mrf.mxu0
  %v8710 = vadd.f32 0.0, %v8709
  %8711 = vmatmul.f32.gmra.mxu0 %v7972
  %v8712 = vpop.f32.mrf.mxu0
  %v8713 = vadd.f32 0.0, %v8712
  %8714 = vmatmul.f32.gmra.mxu0 %v7974
  %v8715 = vpop.f32.mrf.mxu0
  %v8716 = vadd.f32 0.0, %v8715
  %8717 = vmatmul.f32.gmra.mxu0 %v7976
  %v8718 = vpop.f32.mrf.mxu0
  %v8719 = vadd.f32 0.0, %v8718
  %8720 = vmatmul.f32.gmra.mxu0 %v7978
  %v8721 = vpop.f32.mrf.mxu0
  %v8722 = vadd.f32 0.0, %v8721
  %8723 = vmatmul.f32.gmra.mxu0 %v7980
  %v8724 = vpop.f32.mrf.mxu0
  %v8725 = vadd.f32 0.0, %v8724
  %8726 = vmatmul.f32.gmra.mxu0 %v7982
  %v8727 = vpop.f32.mrf.mxu0
  %v8728 = vadd.f32 0.0, %v8727
  %8729 = vmatmul.f32.gmra.mxu0 %v7984
  %v8730 = vpop.f32.mrf.mxu0
  %v8731 = vadd.f32 0.0, %v8730
  %8732 = vmatmul.f32.gmra.mxu0 %v7986
  %v8733 = vpop.f32.mrf.mxu0
  %v8734 = vadd.f32 0.0, %v8733
  %8735 = vmatmul.f32.gmra.mxu0 %v7988
  %v8736 = vpop.f32.mrf.mxu0
  %v8737 = vadd.f32 0.0, %v8736
  %8738 = vmatmul.f32.gmra.mxu0 %v7990
  %v8739 = vpop.f32.mrf.mxu0
  %v8740 = vadd.f32 0.0, %v8739
  %8741 = vmatmul.f32.gmra.mxu0 %v7992
  %v8742 = vpop.f32.mrf.mxu0
  %v8743 = vadd.f32 0.0, %v8742
  %8744 = vmatmul.f32.gmra.mxu0 %v7994
  %v8745 = vpop.f32.mrf.mxu0
  %v8746 = vadd.f32 0.0, %v8745
  %8747 = vdwg.mxu0
  %8748 = vmatpush.xpose.msra.mxu0 %v8234
  %8749 = vmatpush.xpose.msra.mxu0 %v8231
  %8750 = vmatpush.xpose.msra.mxu0 %v8228
  %8751 = vmatpush.xpose.msra.mxu0 %v8225
  %8752 = vmatpush.xpose.msra.mxu0 %v8222
  %8753 = vmatpush.xpose.msra.mxu0 %v8219
  %8754 = vmatpush.xpose.msra.mxu0 %v8216
  %8755 = vmatpush.xpose.msra.mxu0 %v8213
  %8756 = vmatpush.xpose.msra.mxu0 %v8210
  %8757 = vmatpush.xpose.msra.mxu0 %v8207
  %8758 = vmatpush.xpose.msra.mxu0 %v8204
  %8759 = vmatpush.xpose.msra.mxu0 %v8201
  %8760 = vmatpush.xpose.msra.mxu0 %v8198
  %8761 = vmatpush.xpose.msra.mxu0 %v8195
  %8762 = vmatpush.xpose.msra.mxu0 %v8192
  %8763 = vmatpush.xpose.msra.mxu0 %v8189
  %8764 = vmatmul.f32.gmra.mxu0 %v7930
  %v8765 = vpop.f32.mrf.mxu0
  %v8766 = vadd.f32 0.0, %v8765
  %8767 = vmatmul.f32.gmra.mxu0 %v7932
  %v8768 = vpop.f32.mrf.mxu0
  %v8769 = vadd.f32 0.0, %v8768
  %8770 = vmatmul.f32.gmra.mxu0 %v7934
  %v8771 = vpop.f32.mrf.mxu0
  %v8772 = vadd.f32 0.0, %v8771
  %8773 = vmatmul.f32.gmra.mxu0 %v7936
  %v8774 = vpop.f32.mrf.mxu0
  %v8775 = vadd.f32 0.0, %v8774
  %8776 = vmatmul.f32.gmra.mxu0 %v7938
  %v8777 = vpop.f32.mrf.mxu0
  %v8778 = vadd.f32 0.0, %v8777
  %8779 = vmatmul.f32.gmra.mxu0 %v7940
  %v8780 = vpop.f32.mrf.mxu0
  %v8781 = vadd.f32 0.0, %v8780
  %8782 = vmatmul.f32.gmra.mxu0 %v7942
  %v8783 = vpop.f32.mrf.mxu0
  %v8784 = vadd.f32 0.0, %v8783
  %8785 = vmatmul.f32.gmra.mxu0 %v7944
  %v8786 = vpop.f32.mrf.mxu0
  %v8787 = vadd.f32 0.0, %v8786
  %8788 = vmatmul.f32.gmra.mxu0 %v7946
  %v8789 = vpop.f32.mrf.mxu0
  %v8790 = vadd.f32 0.0, %v8789
  %8791 = vmatmul.f32.gmra.mxu0 %v7948
  %v8792 = vpop.f32.mrf.mxu0
  %v8793 = vadd.f32 0.0, %v8792
  %8794 = vmatmul.f32.gmra.mxu0 %v7950
  %v8795 = vpop.f32.mrf.mxu0
  %v8796 = vadd.f32 0.0, %v8795
  %8797 = vmatmul.f32.gmra.mxu0 %v7952
  %v8798 = vpop.f32.mrf.mxu0
  %v8799 = vadd.f32 0.0, %v8798
  %8800 = vmatmul.f32.gmra.mxu0 %v7954
  %v8801 = vpop.f32.mrf.mxu0
  %v8802 = vadd.f32 0.0, %v8801
  %8803 = vmatmul.f32.gmra.mxu0 %v7956
  %v8804 = vpop.f32.mrf.mxu0
  %v8805 = vadd.f32 0.0, %v8804
  %8806 = vmatmul.f32.gmra.mxu0 %v7958
  %v8807 = vpop.f32.mrf.mxu0
  %v8808 = vadd.f32 0.0, %v8807
  %8809 = vmatmul.f32.gmra.mxu0 %v7960
  %v8810 = vpop.f32.mrf.mxu0
  %v8811 = vadd.f32 0.0, %v8810
  %8812 = vmatmul.f32.gmra.mxu0 %v7962
  %v8813 = vpop.f32.mrf.mxu0
  %v8814 = vadd.f32 0.0, %v8813
  %8815 = vmatmul.f32.gmra.mxu0 %v7964
  %v8816 = vpop.f32.mrf.mxu0
  %v8817 = vadd.f32 0.0, %v8816
  %8818 = vmatmul.f32.gmra.mxu0 %v7966
  %v8819 = vpop.f32.mrf.mxu0
  %v8820 = vadd.f32 0.0, %v8819
  %8821 = vmatmul.f32.gmra.mxu0 %v7968
  %v8822 = vpop.f32.mrf.mxu0
  %v8823 = vadd.f32 0.0, %v8822
  %8824 = vmatmul.f32.gmra.mxu0 %v7970
  %v8825 = vpop.f32.mrf.mxu0
  %v8826 = vadd.f32 0.0, %v8825
  %8827 = vmatmul.f32.gmra.mxu0 %v7972
  %v8828 = vpop.f32.mrf.mxu0
  %v8829 = vadd.f32 0.0, %v8828
  %8830 = vmatmul.f32.gmra.mxu0 %v7974
  %v8831 = vpop.f32.mrf.mxu0
  %v8832 = vadd.f32 0.0, %v8831
  %8833 = vmatmul.f32.gmra.mxu0 %v7976
  %v8834 = vpop.f32.mrf.mxu0
  %v8835 = vadd.f32 0.0, %v8834
  %8836 = vmatmul.f32.gmra.mxu0 %v7978
  %v8837 = vpop.f32.mrf.mxu0
  %v8838 = vadd.f32 0.0, %v8837
  %8839 = vmatmul.f32.gmra.mxu0 %v7980
  %v8840 = vpop.f32.mrf.mxu0
  %v8841 = vadd.f32 0.0, %v8840
  %8842 = vmatmul.f32.gmra.mxu0 %v7982
  %v8843 = vpop.f32.mrf.mxu0
  %v8844 = vadd.f32 0.0, %v8843
  %8845 = vmatmul.f32.gmra.mxu0 %v7984
  %v8846 = vpop.f32.mrf.mxu0
  %v8847 = vadd.f32 0.0, %v8846
  %8848 = vmatmul.f32.gmra.mxu0 %v7986
  %v8849 = vpop.f32.mrf.mxu0
  %v8850 = vadd.f32 0.0, %v8849
  %8851 = vmatmul.f32.gmra.mxu0 %v7988
  %v8852 = vpop.f32.mrf.mxu0
  %v8853 = vadd.f32 0.0, %v8852
  %8854 = vmatmul.f32.gmra.mxu0 %v7990
  %v8855 = vpop.f32.mrf.mxu0
  %v8856 = vadd.f32 0.0, %v8855
  %8857 = vmatmul.f32.gmra.mxu0 %v7992
  %v8858 = vpop.f32.mrf.mxu0
  %v8859 = vadd.f32 0.0, %v8858
  %8860 = vmatmul.f32.gmra.mxu0 %v7994
  %v8861 = vpop.f32.mrf.mxu0
  %v8862 = vadd.f32 0.0, %v8861
  %8863 = vdwg.mxu0
  %8864 = vmatpush.xpose.msra.mxu0 %v8282
  %8865 = vmatpush.xpose.msra.mxu0 %v8279
  %8866 = vmatpush.xpose.msra.mxu0 %v8276
  %8867 = vmatpush.xpose.msra.mxu0 %v8273
  %8868 = vmatpush.xpose.msra.mxu0 %v8270
  %8869 = vmatpush.xpose.msra.mxu0 %v8267
  %8870 = vmatpush.xpose.msra.mxu0 %v8264
  %8871 = vmatpush.xpose.msra.mxu0 %v8261
  %8872 = vmatpush.xpose.msra.mxu0 %v8258
  %8873 = vmatpush.xpose.msra.mxu0 %v8255
  %8874 = vmatpush.xpose.msra.mxu0 %v8252
  %8875 = vmatpush.xpose.msra.mxu0 %v8249
  %8876 = vmatpush.xpose.msra.mxu0 %v8246
  %8877 = vmatpush.xpose.msra.mxu0 %v8243
  %8878 = vmatpush.xpose.msra.mxu0 %v8240
  %8879 = vmatpush.xpose.msra.mxu0 %v8237
  %8880 = vmatmul.f32.gmra.mxu0 %v7930
  %v8881 = vpop.f32.mrf.mxu0
  %v8882 = vadd.f32 0.0, %v8881
  %8883 = vmatmul.f32.gmra.mxu0 %v7932
  %v8884 = vpop.f32.mrf.mxu0
  %v8885 = vadd.f32 0.0, %v8884
  %8886 = vmatmul.f32.gmra.mxu0 %v7934
  %v8887 = vpop.f32.mrf.mxu0
  %v8888 = vadd.f32 0.0, %v8887
  %8889 = vmatmul.f32.gmra.mxu0 %v7936
  %v8890 = vpop.f32.mrf.mxu0
  %v8891 = vadd.f32 0.0, %v8890
  %8892 = vmatmul.f32.gmra.mxu0 %v7938
  %v8893 = vpop.f32.mrf.mxu0
  %v8894 = vadd.f32 0.0, %v8893
  %8895 = vmatmul.f32.gmra.mxu0 %v7940
  %v8896 = vpop.f32.mrf.mxu0
  %v8897 = vadd.f32 0.0, %v8896
  %8898 = vmatmul.f32.gmra.mxu0 %v7942
  %v8899 = vpop.f32.mrf.mxu0
  %v8900 = vadd.f32 0.0, %v8899
  %8901 = vmatmul.f32.gmra.mxu0 %v7944
  %v8902 = vpop.f32.mrf.mxu0
  %v8903 = vadd.f32 0.0, %v8902
  %8904 = vmatmul.f32.gmra.mxu0 %v7946
  %v8905 = vpop.f32.mrf.mxu0
  %v8906 = vadd.f32 0.0, %v8905
  %8907 = vmatmul.f32.gmra.mxu0 %v7948
  %v8908 = vpop.f32.mrf.mxu0
  %v8909 = vadd.f32 0.0, %v8908
  %8910 = vmatmul.f32.gmra.mxu0 %v7950
  %v8911 = vpop.f32.mrf.mxu0
  %v8912 = vadd.f32 0.0, %v8911
  %8913 = vmatmul.f32.gmra.mxu0 %v7952
  %v8914 = vpop.f32.mrf.mxu0
  %v8915 = vadd.f32 0.0, %v8914
  %8916 = vmatmul.f32.gmra.mxu0 %v7954
  %v8917 = vpop.f32.mrf.mxu0
  %v8918 = vadd.f32 0.0, %v8917
  %8919 = vmatmul.f32.gmra.mxu0 %v7956
  %v8920 = vpop.f32.mrf.mxu0
  %v8921 = vadd.f32 0.0, %v8920
  %8922 = vmatmul.f32.gmra.mxu0 %v7958
  %v8923 = vpop.f32.mrf.mxu0
  %v8924 = vadd.f32 0.0, %v8923
  %8925 = vmatmul.f32.gmra.mxu0 %v7960
  %v8926 = vpop.f32.mrf.mxu0
  %v8927 = vadd.f32 0.0, %v8926
  %8928 = vmatmul.f32.gmra.mxu0 %v7962
  %v8929 = vpop.f32.mrf.mxu0
  %v8930 = vadd.f32 0.0, %v8929
  %8931 = vmatmul.f32.gmra.mxu0 %v7964
  %v8932 = vpop.f32.mrf.mxu0
  %v8933 = vadd.f32 0.0, %v8932
  %8934 = vmatmul.f32.gmra.mxu0 %v7966
  %v8935 = vpop.f32.mrf.mxu0
  %v8936 = vadd.f32 0.0, %v8935
  %8937 = vmatmul.f32.gmra.mxu0 %v7968
  %v8938 = vpop.f32.mrf.mxu0
  %v8939 = vadd.f32 0.0, %v8938
  %8940 = vmatmul.f32.gmra.mxu0 %v7970
  %v8941 = vpop.f32.mrf.mxu0
  %v8942 = vadd.f32 0.0, %v8941
  %8943 = vmatmul.f32.gmra.mxu0 %v7972
  %v8944 = vpop.f32.mrf.mxu0
  %v8945 = vadd.f32 0.0, %v8944
  %8946 = vmatmul.f32.gmra.mxu0 %v7974
  %v8947 = vpop.f32.mrf.mxu0
  %v8948 = vadd.f32 0.0, %v8947
  %8949 = vmatmul.f32.gmra.mxu0 %v7976
  %v8950 = vpop.f32.mrf.mxu0
  %v8951 = vadd.f32 0.0, %v8950
  %8952 = vmatmul.f32.gmra.mxu0 %v7978
  %v8953 = vpop.f32.mrf.mxu0
  %v8954 = vadd.f32 0.0, %v8953
  %8955 = vmatmul.f32.gmra.mxu0 %v7980
  %v8956 = vpop.f32.mrf.mxu0
  %v8957 = vadd.f32 0.0, %v8956
  %8958 = vmatmul.f32.gmra.mxu0 %v7982
  %v8959 = vpop.f32.mrf.mxu0
  %v8960 = vadd.f32 0.0, %v8959
  %8961 = vmatmul.f32.gmra.mxu0 %v7984
  %v8962 = vpop.f32.mrf.mxu0
  %v8963 = vadd.f32 0.0, %v8962
  %8964 = vmatmul.f32.gmra.mxu0 %v7986
  %v8965 = vpop.f32.mrf.mxu0
  %v8966 = vadd.f32 0.0, %v8965
  %8967 = vmatmul.f32.gmra.mxu0 %v7988
  %v8968 = vpop.f32.mrf.mxu0
  %v8969 = vadd.f32 0.0, %v8968
  %8970 = vmatmul.f32.gmra.mxu0 %v7990
  %v8971 = vpop.f32.mrf.mxu0
  %v8972 = vadd.f32 0.0, %v8971
  %8973 = vmatmul.f32.gmra.mxu0 %v7992
  %v8974 = vpop.f32.mrf.mxu0
  %v8975 = vadd.f32 0.0, %v8974
  %8976 = vmatmul.f32.gmra.mxu0 %v7994
  %v8977 = vpop.f32.mrf.mxu0
  %v8978 = vadd.f32 0.0, %v8977
  %8979 = vdwg.mxu0
  %v8980 = vmul.f32 %v8302, %v647
  %v8981 = vmul.f32 %v8418, %v648
  %v8982 = vmul.f32 %v8534, %v649
  %v8983 = vmul.f32 %v8650, %v650
  %v8984 = vmul.f32 %v8766, %v651
  %v8985 = vmul.f32 %v8882, %v652
  %v8986 = vmul.f32 %v8305, %v653
  %v8987 = vmul.f32 %v8421, %v654
  %v8988 = vmul.f32 %v8537, %v655
  %v8989 = vmul.f32 %v8653, %v656
  %v8990 = vmul.f32 %v8769, %v657
  %v8991 = vmul.f32 %v8885, %v658
  %v8992 = vmul.f32 %v8308, %v659
  %v8993 = vmul.f32 %v8424, %v660
  %v8994 = vmul.f32 %v8540, %v661
  %v8995 = vmul.f32 %v8656, %v662
  %v8996 = vmul.f32 %v8772, %v663
  %v8997 = vmul.f32 %v8888, %v664
  %v8998 = vmul.f32 %v8311, %v665
  %v8999 = vmul.f32 %v8427, %v666
  %v9000 = vmul.f32 %v8543, %v667
  %v9001 = vmul.f32 %v8659, %v668
  %v9002 = vmul.f32 %v8775, %v669
  %v9003 = vmul.f32 %v8891, %v670
  %v9004 = vmul.f32 %v8314, %v671
  %v9005 = vmul.f32 %v8430, %v672
  %v9006 = vmul.f32 %v8546, %v673
  %v9007 = vmul.f32 %v8662, %v674
  %v9008 = vmul.f32 %v8778, %v675
  %v9009 = vmul.f32 %v8894, %v676
  %v9010 = vmul.f32 %v8317, %v677
  %v9011 = vmul.f32 %v8433, %v678
  %v9012 = vmul.f32 %v8549, %v679
  %v9013 = vmul.f32 %v8665, %v680
  %v9014 = vmul.f32 %v8781, %v681
  %v9015 = vmul.f32 %v8897, %v682
  %v9016 = vmul.f32 %v8320, %v683
  %v9017 = vmul.f32 %v8436, %v684
  %v9018 = vmul.f32 %v8552, %v685
  %v9019 = vmul.f32 %v8668, %v686
  %v9020 = vmul.f32 %v8784, %v687
  %v9021 = vmul.f32 %v8900, %v688
  %v9022 = vmul.f32 %v8323, %v689
  %v9023 = vmul.f32 %v8439, %v690
  %v9024 = vmul.f32 %v8555, %v691
  %v9025 = vmul.f32 %v8671, %v692
  %v9026 = vmul.f32 %v8787, %v693
  %v9027 = vmul.f32 %v8903, %v694
  %v9028 = vmul.f32 %v8326, %v695
  %v9029 = vmul.f32 %v8442, %v696
  %v9030 = vmul.f32 %v8558, %v697
  %v9031 = vmul.f32 %v8674, %v698
  %v9032 = vmul.f32 %v8790, %v699
  %v9033 = vmul.f32 %v8906, %v700
  %v9034 = vmul.f32 %v8329, %v701
  %v9035 = vmul.f32 %v8445, %v702
  %v9036 = vmul.f32 %v8561, %v703
  %v9037 = vmul.f32 %v8677, %v704
  %v9038 = vmul.f32 %v8793, %v705
  %v9039 = vmul.f32 %v8909, %v706
  %v9040 = vmul.f32 %v8332, %v707
  %v9041 = vmul.f32 %v8448, %v708
  %v9042 = vmul.f32 %v8564, %v709
  %v9043 = vmul.f32 %v8680, %v710
  %v9044 = vmul.f32 %v8796, %v711
  %v9045 = vmul.f32 %v8912, %v712
  %v9046 = vmul.f32 %v8335, %v713
  %v9047 = vmul.f32 %v8451, %v714
  %v9048 = vmul.f32 %v8567, %v715
  %v9049 = vmul.f32 %v8683, %v716
  %v9050 = vmul.f32 %v8799, %v717
  %v9051 = vmul.f32 %v8915, %v718
  %v9052 = vmul.f32 %v8338, %v719
  %v9053 = vmul.f32 %v8454, %v720
  %v9054 = vmul.f32 %v8570, %v721
  %v9055 = vmul.f32 %v8686, %v722
  %v9056 = vmul.f32 %v8802, %v723
  %v9057 = vmul.f32 %v8918, %v724
  %v9058 = vmul.f32 %v8341, %v725
  %v9059 = vmul.f32 %v8457, %v726
  %v9060 = vmul.f32 %v8573, %v727
  %v9061 = vmul.f32 %v8689, %v728
  %v9062 = vmul.f32 %v8805, %v729
  %v9063 = vmul.f32 %v8921, %v730
  %v9064 = vmul.f32 %v8344, %v731
  %v9065 = vmul.f32 %v8460, %v732
  %v9066 = vmul.f32 %v8576, %v733
  %v9067 = vmul.f32 %v8692, %v734
  %v9068 = vmul.f32 %v8808, %v735
  %v9069 = vmul.f32 %v8924, %v736
  %v9070 = vmul.f32 %v8347, %v737
  %v9071 = vmul.f32 %v8463, %v738
  %v9072 = vmul.f32 %v8579, %v739
  %v9073 = vmul.f32 %v8695, %v740
  %v9074 = vmul.f32 %v8811, %v741
  %v9075 = vmul.f32 %v8927, %v742
  %v9076 = vmul.f32 %v8350, %v743
  %v9077 = vmul.f32 %v8466, %v744
  %v9078 = vmul.f32 %v8582, %v745
  %v9079 = vmul.f32 %v8698, %v746
  %v9080 = vmul.f32 %v8814, %v747
  %v9081 = vmul.f32 %v8930, %v748
  %v9082 = vmul.f32 %v8353, %v749
  %v9083 = vmul.f32 %v8469, %v750
  %v9084 = vmul.f32 %v8585, %v751
  %v9085 = vmul.f32 %v8701, %v752
  %v9086 = vmul.f32 %v8817, %v753
  %v9087 = vmul.f32 %v8933, %v754
  %v9088 = vmul.f32 %v8356, %v755
  %v9089 = vmul.f32 %v8472, %v756
  %v9090 = vmul.f32 %v8588, %v757
  %v9091 = vmul.f32 %v8704, %v758
  %v9092 = vmul.f32 %v8820, %v759
  %v9093 = vmul.f32 %v8936, %v760
  %v9094 = vmul.f32 %v8359, %v761
  %v9095 = vmul.f32 %v8475, %v762
  %v9096 = vmul.f32 %v8591, %v763
  %v9097 = vmul.f32 %v8707, %v764
  %v9098 = vmul.f32 %v8823, %v765
  %v9099 = vmul.f32 %v8939, %v766
  %v9100 = vmul.f32 %v8362, %v767
  %v9101 = vmul.f32 %v8478, %v768
  %v9102 = vmul.f32 %v8594, %v769
  %v9103 = vmul.f32 %v8710, %v770
  %v9104 = vmul.f32 %v8826, %v771
  %v9105 = vmul.f32 %v8942, %v772
  %v9106 = vmul.f32 %v8365, %v773
  %v9107 = vmul.f32 %v8481, %v774
  %v9108 = vmul.f32 %v8597, %v775
  %v9109 = vmul.f32 %v8713, %v776
  %v9110 = vmul.f32 %v8829, %v777
  %v9111 = vmul.f32 %v8945, %v778
  %v9112 = vmul.f32 %v8368, %v779
  %v9113 = vmul.f32 %v8484, %v780
  %v9114 = vmul.f32 %v8600, %v781
  %v9115 = vmul.f32 %v8716, %v782
  %v9116 = vmul.f32 %v8832, %v783
  %v9117 = vmul.f32 %v8948, %v784
  %v9118 = vmul.f32 %v8371, %v785
  %v9119 = vmul.f32 %v8487, %v786
  %v9120 = vmul.f32 %v8603, %v787
  %v9121 = vmul.f32 %v8719, %v788
  %v9122 = vmul.f32 %v8835, %v789
  %v9123 = vmul.f32 %v8951, %v790
  %v9124 = vmul.f32 %v8374, %v791
  %v9125 = vmul.f32 %v8490, %v792
  %v9126 = vmul.f32 %v8606, %v793
  %v9127 = vmul.f32 %v8722, %v794
  %v9128 = vmul.f32 %v8838, %v795
  %v9129 = vmul.f32 %v8954, %v796
  %v9130 = vmul.f32 %v8377, %v797
  %v9131 = vmul.f32 %v8493, %v798
  %v9132 = vmul.f32 %v8609, %v799
  %v9133 = vmul.f32 %v8725, %v800
  %v9134 = vmul.f32 %v8841, %v801
  %v9135 = vmul.f32 %v8957, %v802
  %v9136 = vmul.f32 %v8380, %v803
  %v9137 = vmul.f32 %v8496, %v804
  %v9138 = vmul.f32 %v8612, %v805
  %v9139 = vmul.f32 %v8728, %v806
  %v9140 = vmul.f32 %v8844, %v807
  %v9141 = vmul.f32 %v8960, %v808
  %v9142 = vmul.f32 %v8383, %v809
  %v9143 = vmul.f32 %v8499, %v810
  %v9144 = vmul.f32 %v8615, %v811
  %v9145 = vmul.f32 %v8731, %v812
  %v9146 = vmul.f32 %v8847, %v813
  %v9147 = vmul.f32 %v8963, %v814
  %v9148 = vmul.f32 %v8386, %v815
  %v9149 = vmul.f32 %v8502, %v816
  %v9150 = vmul.f32 %v8618, %v817
  %v9151 = vmul.f32 %v8734, %v818
  %v9152 = vmul.f32 %v8850, %v819
  %v9153 = vmul.f32 %v8966, %v820
  %v9154 = vmul.f32 %v8389, %v821
  %v9155 = vmul.f32 %v8505, %v822
  %v9156 = vmul.f32 %v8621, %v823
  %v9157 = vmul.f32 %v8737, %v824
  %v9158 = vmul.f32 %v8853, %v825
  %v9159 = vmul.f32 %v8969, %v826
  %v9160 = vmul.f32 %v8392, %v827
  %v9161 = vmul.f32 %v8508, %v828
  %v9162 = vmul.f32 %v8624, %v829
  %v9163 = vmul.f32 %v8740, %v830
  %v9164 = vmul.f32 %v8856, %v831
  %v9165 = vmul.f32 %v8972, %v832
  %v9166 = vmul.f32 %v8395, %v833
  %v9167 = vmul.f32 %v8511, %v834
  %v9168 = vmul.f32 %v8627, %v835
  %v9169 = vmul.f32 %v8743, %v836
  %v9170 = vmul.f32 %v8859, %v837
  %v9171 = vmul.f32 %v8975, %v838
  %v9172 = vmul.f32 %v8398, %v839
  %v9173 = vmul.f32 %v8514, %v840
  %v9174 = vmul.f32 %v8630, %v841
  %v9175 = vmul.f32 %v8746, %v842
  %v9176 = vmul.f32 %v8862, %v843
  %v9177 = vmul.f32 %v8978, %v844
  %9178 = vmatpush.xpose.msra.mxu0 0.0
  %9179 = vmatpush.xpose.msra.mxu0 0.0
  %9180 = vmatpush.xpose.msra.mxu0 0.0
  %9181 = vmatpush.xpose.msra.mxu0 0.0
  %9182 = vmatpush.xpose.msra.mxu0 0.0
  %9183 = vmatpush.xpose.msra.mxu0 0.0
  %9184 = vmatpush.xpose.msra.mxu0 0.0
  %9185 = vmatpush.xpose.msra.mxu0 0.0
  %9186 = vmatpush.xpose.msra.mxu0 0.0
  %9187 = vmatpush.xpose.msra.mxu0 0.0
  %9188 = vmatpush.xpose.msra.mxu0 0.0
  %9189 = vmatpush.xpose.msra.mxu0 0.0
  %9190 = vmatpush.xpose.msra.mxu0 %v922
  %9191 = vmatpush.xpose.msra.mxu0 %v916
  %9192 = vmatpush.xpose.msra.mxu0 %v910
  %9193 = vmatpush.xpose.msra.mxu0 %v904
  %9194 = vmatmul.f32.gmra.mxu0 %v8980
  %v9195 = vpop.f32.mrf.mxu0
  %v9196 = vadd.f32 0.0, %v9195
  %9197 = vmatmul.f32.gmra.mxu0 %v8986
  %v9198 = vpop.f32.mrf.mxu0
  %v9199 = vadd.f32 0.0, %v9198
  %9200 = vmatmul.f32.gmra.mxu0 %v8992
  %v9201 = vpop.f32.mrf.mxu0
  %v9202 = vadd.f32 0.0, %v9201
  %9203 = vmatmul.f32.gmra.mxu0 %v8998
  %v9204 = vpop.f32.mrf.mxu0
  %v9205 = vadd.f32 0.0, %v9204
  %9206 = vmatmul.f32.gmra.mxu0 %v9004
  %v9207 = vpop.f32.mrf.mxu0
  %v9208 = vadd.f32 0.0, %v9207
  %9209 = vmatmul.f32.gmra.mxu0 %v9010
  %v9210 = vpop.f32.mrf.mxu0
  %v9211 = vadd.f32 0.0, %v9210
  %9212 = vmatmul.f32.gmra.mxu0 %v9016
  %v9213 = vpop.f32.mrf.mxu0
  %v9214 = vadd.f32 0.0, %v9213
  %9215 = vmatmul.f32.gmra.mxu0 %v9022
  %v9216 = vpop.f32.mrf.mxu0
  %v9217 = vadd.f32 0.0, %v9216
  %9218 = vmatmul.f32.gmra.mxu0 %v9028
  %v9219 = vpop.f32.mrf.mxu0
  %v9220 = vadd.f32 0.0, %v9219
  %9221 = vmatmul.f32.gmra.mxu0 %v9034
  %v9222 = vpop.f32.mrf.mxu0
  %v9223 = vadd.f32 0.0, %v9222
  %9224 = vmatmul.f32.gmra.mxu0 %v9040
  %v9225 = vpop.f32.mrf.mxu0
  %v9226 = vadd.f32 0.0, %v9225
  %9227 = vmatmul.f32.gmra.mxu0 %v9046
  %v9228 = vpop.f32.mrf.mxu0
  %v9229 = vadd.f32 0.0, %v9228
  %9230 = vmatmul.f32.gmra.mxu0 %v9052
  %v9231 = vpop.f32.mrf.mxu0
  %v9232 = vadd.f32 0.0, %v9231
  %9233 = vmatmul.f32.gmra.mxu0 %v9058
  %v9234 = vpop.f32.mrf.mxu0
  %v9235 = vadd.f32 0.0, %v9234
  %9236 = vmatmul.f32.gmra.mxu0 %v9064
  %v9237 = vpop.f32.mrf.mxu0
  %v9238 = vadd.f32 0.0, %v9237
  %9239 = vmatmul.f32.gmra.mxu0 %v9070
  %v9240 = vpop.f32.mrf.mxu0
  %v9241 = vadd.f32 0.0, %v9240
  %9242 = vmatmul.f32.gmra.mxu0 %v9076
  %v9243 = vpop.f32.mrf.mxu0
  %v9244 = vadd.f32 0.0, %v9243
  %9245 = vmatmul.f32.gmra.mxu0 %v9082
  %v9246 = vpop.f32.mrf.mxu0
  %v9247 = vadd.f32 0.0, %v9246
  %9248 = vmatmul.f32.gmra.mxu0 %v9088
  %v9249 = vpop.f32.mrf.mxu0
  %v9250 = vadd.f32 0.0, %v9249
  %9251 = vmatmul.f32.gmra.mxu0 %v9094
  %v9252 = vpop.f32.mrf.mxu0
  %v9253 = vadd.f32 0.0, %v9252
  %9254 = vmatmul.f32.gmra.mxu0 %v9100
  %v9255 = vpop.f32.mrf.mxu0
  %v9256 = vadd.f32 0.0, %v9255
  %9257 = vmatmul.f32.gmra.mxu0 %v9106
  %v9258 = vpop.f32.mrf.mxu0
  %v9259 = vadd.f32 0.0, %v9258
  %9260 = vmatmul.f32.gmra.mxu0 %v9112
  %v9261 = vpop.f32.mrf.mxu0
  %v9262 = vadd.f32 0.0, %v9261
  %9263 = vmatmul.f32.gmra.mxu0 %v9118
  %v9264 = vpop.f32.mrf.mxu0
  %v9265 = vadd.f32 0.0, %v9264
  %9266 = vmatmul.f32.gmra.mxu0 %v9124
  %v9267 = vpop.f32.mrf.mxu0
  %v9268 = vadd.f32 0.0, %v9267
  %9269 = vmatmul.f32.gmra.mxu0 %v9130
  %v9270 = vpop.f32.mrf.mxu0
  %v9271 = vadd.f32 0.0, %v9270
  %9272 = vmatmul.f32.gmra.mxu0 %v9136
  %v9273 = vpop.f32.mrf.mxu0
  %v9274 = vadd.f32 0.0, %v9273
  %9275 = vmatmul.f32.gmra.mxu0 %v9142
  %v9276 = vpop.f32.mrf.mxu0
  %v9277 = vadd.f32 0.0, %v9276
  %9278 = vmatmul.f32.gmra.mxu0 %v9148
  %v9279 = vpop.f32.mrf.mxu0
  %v9280 = vadd.f32 0.0, %v9279
  %9281 = vmatmul.f32.gmra.mxu0 %v9154
  %v9282 = vpop.f32.mrf.mxu0
  %v9283 = vadd.f32 0.0, %v9282
  %9284 = vmatmul.f32.gmra.mxu0 %v9160
  %v9285 = vpop.f32.mrf.mxu0
  %v9286 = vadd.f32 0.0, %v9285
  %9287 = vmatmul.f32.gmra.mxu0 %v9166
  %v9288 = vpop.f32.mrf.mxu0
  %v9289 = vadd.f32 0.0, %v9288
  %9290 = vmatmul.f32.gmra.mxu0 %v9172
  %v9291 = vpop.f32.mrf.mxu0
  %v9292 = vadd.f32 0.0, %v9291
  %9293 = vdwg.mxu0
  %9294 = vmatpush.xpose.msra.mxu0 0.0
  %9295 = vmatpush.xpose.msra.mxu0 0.0
  %9296 = vmatpush.xpose.msra.mxu0 0.0
  %9297 = vmatpush.xpose.msra.mxu0 0.0
  %9298 = vmatpush.xpose.msra.mxu0 0.0
  %9299 = vmatpush.xpose.msra.mxu0 0.0
  %9300 = vmatpush.xpose.msra.mxu0 0.0
  %9301 = vmatpush.xpose.msra.mxu0 0.0
  %9302 = vmatpush.xpose.msra.mxu0 0.0
  %9303 = vmatpush.xpose.msra.mxu0 0.0
  %9304 = vmatpush.xpose.msra.mxu0 0.0
  %9305 = vmatpush.xpose.msra.mxu0 0.0
  %9306 = vmatpush.xpose.msra.mxu0 %v923
  %9307 = vmatpush.xpose.msra.mxu0 %v917
  %9308 = vmatpush.xpose.msra.mxu0 %v911
  %9309 = vmatpush.xpose.msra.mxu0 %v905
  %9310 = vmatmul.f32.gmra.mxu0 %v8981
  %v9311 = vpop.f32.mrf.mxu0
  %v9312 = vadd.f32 %v9196, %v9311
  %9313 = vmatmul.f32.gmra.mxu0 %v8987
  %v9314 = vpop.f32.mrf.mxu0
  %v9315 = vadd.f32 %v9199, %v9314
  %9316 = vmatmul.f32.gmra.mxu0 %v8993
  %v9317 = vpop.f32.mrf.mxu0
  %v9318 = vadd.f32 %v9202, %v9317
  %9319 = vmatmul.f32.gmra.mxu0 %v8999
  %v9320 = vpop.f32.mrf.mxu0
  %v9321 = vadd.f32 %v9205, %v9320
  %9322 = vmatmul.f32.gmra.mxu0 %v9005
  %v9323 = vpop.f32.mrf.mxu0
  %v9324 = vadd.f32 %v9208, %v9323
  %9325 = vmatmul.f32.gmra.mxu0 %v9011
  %v9326 = vpop.f32.mrf.mxu0
  %v9327 = vadd.f32 %v9211, %v9326
  %9328 = vmatmul.f32.gmra.mxu0 %v9017
  %v9329 = vpop.f32.mrf.mxu0
  %v9330 = vadd.f32 %v9214, %v9329
  %9331 = vmatmul.f32.gmra.mxu0 %v9023
  %v9332 = vpop.f32.mrf.mxu0
  %v9333 = vadd.f32 %v9217, %v9332
  %9334 = vmatmul.f32.gmra.mxu0 %v9029
  %v9335 = vpop.f32.mrf.mxu0
  %v9336 = vadd.f32 %v9220, %v9335
  %9337 = vmatmul.f32.gmra.mxu0 %v9035
  %v9338 = vpop.f32.mrf.mxu0
  %v9339 = vadd.f32 %v9223, %v9338
  %9340 = vmatmul.f32.gmra.mxu0 %v9041
  %v9341 = vpop.f32.mrf.mxu0
  %v9342 = vadd.f32 %v9226, %v9341
  %9343 = vmatmul.f32.gmra.mxu0 %v9047
  %v9344 = vpop.f32.mrf.mxu0
  %v9345 = vadd.f32 %v9229, %v9344
  %9346 = vmatmul.f32.gmra.mxu0 %v9053
  %v9347 = vpop.f32.mrf.mxu0
  %v9348 = vadd.f32 %v9232, %v9347
  %9349 = vmatmul.f32.gmra.mxu0 %v9059
  %v9350 = vpop.f32.mrf.mxu0
  %v9351 = vadd.f32 %v9235, %v9350
  %9352 = vmatmul.f32.gmra.mxu0 %v9065
  %v9353 = vpop.f32.mrf.mxu0
  %v9354 = vadd.f32 %v9238, %v9353
  %9355 = vmatmul.f32.gmra.mxu0 %v9071
  %v9356 = vpop.f32.mrf.mxu0
  %v9357 = vadd.f32 %v9241, %v9356
  %9358 = vmatmul.f32.gmra.mxu0 %v9077
  %v9359 = vpop.f32.mrf.mxu0
  %v9360 = vadd.f32 %v9244, %v9359
  %9361 = vmatmul.f32.gmra.mxu0 %v9083
  %v9362 = vpop.f32.mrf.mxu0
  %v9363 = vadd.f32 %v9247, %v9362
  %9364 = vmatmul.f32.gmra.mxu0 %v9089
  %v9365 = vpop.f32.mrf.mxu0
  %v9366 = vadd.f32 %v9250, %v9365
  %9367 = vmatmul.f32.gmra.mxu0 %v9095
  %v9368 = vpop.f32.mrf.mxu0
  %v9369 = vadd.f32 %v9253, %v9368
  %9370 = vmatmul.f32.gmra.mxu0 %v9101
  %v9371 = vpop.f32.mrf.mxu0
  %v9372 = vadd.f32 %v9256, %v9371
  %9373 = vmatmul.f32.gmra.mxu0 %v9107
  %v9374 = vpop.f32.mrf.mxu0
  %v9375 = vadd.f32 %v9259, %v9374
  %9376 = vmatmul.f32.gmra.mxu0 %v9113
  %v9377 = vpop.f32.mrf.mxu0
  %v9378 = vadd.f32 %v9262, %v9377
  %9379 = vmatmul.f32.gmra.mxu0 %v9119
  %v9380 = vpop.f32.mrf.mxu0
  %v9381 = vadd.f32 %v9265, %v9380
  %9382 = vmatmul.f32.gmra.mxu0 %v9125
  %v9383 = vpop.f32.mrf.mxu0
  %v9384 = vadd.f32 %v9268, %v9383
  %9385 = vmatmul.f32.gmra.mxu0 %v9131
  %v9386 = vpop.f32.mrf.mxu0
  %v9387 = vadd.f32 %v9271, %v9386
  %9388 = vmatmul.f32.gmra.mxu0 %v9137
  %v9389 = vpop.f32.mrf.mxu0
  %v9390 = vadd.f32 %v9274, %v9389
  %9391 = vmatmul.f32.gmra.mxu0 %v9143
  %v9392 = vpop.f32.mrf.mxu0
  %v9393 = vadd.f32 %v9277, %v9392
  %9394 = vmatmul.f32.gmra.mxu0 %v9149
  %v9395 = vpop.f32.mrf.mxu0
  %v9396 = vadd.f32 %v9280, %v9395
  %9397 = vmatmul.f32.gmra.mxu0 %v9155
  %v9398 = vpop.f32.mrf.mxu0
  %v9399 = vadd.f32 %v9283, %v9398
  %9400 = vmatmul.f32.gmra.mxu0 %v9161
  %v9401 = vpop.f32.mrf.mxu0
  %v9402 = vadd.f32 %v9286, %v9401
  %9403 = vmatmul.f32.gmra.mxu0 %v9167
  %v9404 = vpop.f32.mrf.mxu0
  %v9405 = vadd.f32 %v9289, %v9404
  %9406 = vmatmul.f32.gmra.mxu0 %v9173
  %v9407 = vpop.f32.mrf.mxu0
  %v9408 = vadd.f32 %v9292, %v9407
  %9409 = vdwg.mxu0
  %9410 = vmatpush.xpose.msra.mxu0 0.0
  %9411 = vmatpush.xpose.msra.mxu0 0.0
  %9412 = vmatpush.xpose.msra.mxu0 0.0
  %9413 = vmatpush.xpose.msra.mxu0 0.0
  %9414 = vmatpush.xpose.msra.mxu0 0.0
  %9415 = vmatpush.xpose.msra.mxu0 0.0
  %9416 = vmatpush.xpose.msra.mxu0 0.0
  %9417 = vmatpush.xpose.msra.mxu0 0.0
  %9418 = vmatpush.xpose.msra.mxu0 0.0
  %9419 = vmatpush.xpose.msra.mxu0 0.0
  %9420 = vmatpush.xpose.msra.mxu0 0.0
  %9421 = vmatpush.xpose.msra.mxu0 0.0
  %9422 = vmatpush.xpose.msra.mxu0 %v924
  %9423 = vmatpush.xpose.msra.mxu0 %v918
  %9424 = vmatpush.xpose.msra.mxu0 %v912
  %9425 = vmatpush.xpose.msra.mxu0 %v906
  %9426 = vmatmul.f32.gmra.mxu0 %v8982
  %v9427 = vpop.f32.mrf.mxu0
  %v9428 = vadd.f32 %v9312, %v9427
  %9429 = vmatmul.f32.gmra.mxu0 %v8988
  %v9430 = vpop.f32.mrf.mxu0
  %v9431 = vadd.f32 %v9315, %v9430
  %9432 = vmatmul.f32.gmra.mxu0 %v8994
  %v9433 = vpop.f32.mrf.mxu0
  %v9434 = vadd.f32 %v9318, %v9433
  %9435 = vmatmul.f32.gmra.mxu0 %v9000
  %v9436 = vpop.f32.mrf.mxu0
  %v9437 = vadd.f32 %v9321, %v9436
  %9438 = vmatmul.f32.gmra.mxu0 %v9006
  %v9439 = vpop.f32.mrf.mxu0
  %v9440 = vadd.f32 %v9324, %v9439
  %9441 = vmatmul.f32.gmra.mxu0 %v9012
  %v9442 = vpop.f32.mrf.mxu0
  %v9443 = vadd.f32 %v9327, %v9442
  %9444 = vmatmul.f32.gmra.mxu0 %v9018
  %v9445 = vpop.f32.mrf.mxu0
  %v9446 = vadd.f32 %v9330, %v9445
  %9447 = vmatmul.f32.gmra.mxu0 %v9024
  %v9448 = vpop.f32.mrf.mxu0
  %v9449 = vadd.f32 %v9333, %v9448
  %9450 = vmatmul.f32.gmra.mxu0 %v9030
  %v9451 = vpop.f32.mrf.mxu0
  %v9452 = vadd.f32 %v9336, %v9451
  %9453 = vmatmul.f32.gmra.mxu0 %v9036
  %v9454 = vpop.f32.mrf.mxu0
  %v9455 = vadd.f32 %v9339, %v9454
  %9456 = vmatmul.f32.gmra.mxu0 %v9042
  %v9457 = vpop.f32.mrf.mxu0
  %v9458 = vadd.f32 %v9342, %v9457
  %9459 = vmatmul.f32.gmra.mxu0 %v9048
  %v9460 = vpop.f32.mrf.mxu0
  %v9461 = vadd.f32 %v9345, %v9460
  %9462 = vmatmul.f32.gmra.mxu0 %v9054
  %v9463 = vpop.f32.mrf.mxu0
  %v9464 = vadd.f32 %v9348, %v9463
  %9465 = vmatmul.f32.gmra.mxu0 %v9060
  %v9466 = vpop.f32.mrf.mxu0
  %v9467 = vadd.f32 %v9351, %v9466
  %9468 = vmatmul.f32.gmra.mxu0 %v9066
  %v9469 = vpop.f32.mrf.mxu0
  %v9470 = vadd.f32 %v9354, %v9469
  %9471 = vmatmul.f32.gmra.mxu0 %v9072
  %v9472 = vpop.f32.mrf.mxu0
  %v9473 = vadd.f32 %v9357, %v9472
  %9474 = vmatmul.f32.gmra.mxu0 %v9078
  %v9475 = vpop.f32.mrf.mxu0
  %v9476 = vadd.f32 %v9360, %v9475
  %9477 = vmatmul.f32.gmra.mxu0 %v9084
  %v9478 = vpop.f32.mrf.mxu0
  %v9479 = vadd.f32 %v9363, %v9478
  %9480 = vmatmul.f32.gmra.mxu0 %v9090
  %v9481 = vpop.f32.mrf.mxu0
  %v9482 = vadd.f32 %v9366, %v9481
  %9483 = vmatmul.f32.gmra.mxu0 %v9096
  %v9484 = vpop.f32.mrf.mxu0
  %v9485 = vadd.f32 %v9369, %v9484
  %9486 = vmatmul.f32.gmra.mxu0 %v9102
  %v9487 = vpop.f32.mrf.mxu0
  %v9488 = vadd.f32 %v9372, %v9487
  %9489 = vmatmul.f32.gmra.mxu0 %v9108
  %v9490 = vpop.f32.mrf.mxu0
  %v9491 = vadd.f32 %v9375, %v9490
  %9492 = vmatmul.f32.gmra.mxu0 %v9114
  %v9493 = vpop.f32.mrf.mxu0
  %v9494 = vadd.f32 %v9378, %v9493
  %9495 = vmatmul.f32.gmra.mxu0 %v9120
  %v9496 = vpop.f32.mrf.mxu0
  %v9497 = vadd.f32 %v9381, %v9496
  %9498 = vmatmul.f32.gmra.mxu0 %v9126
  %v9499 = vpop.f32.mrf.mxu0
  %v9500 = vadd.f32 %v9384, %v9499
  %9501 = vmatmul.f32.gmra.mxu0 %v9132
  %v9502 = vpop.f32.mrf.mxu0
  %v9503 = vadd.f32 %v9387, %v9502
  %9504 = vmatmul.f32.gmra.mxu0 %v9138
  %v9505 = vpop.f32.mrf.mxu0
  %v9506 = vadd.f32 %v9390, %v9505
  %9507 = vmatmul.f32.gmra.mxu0 %v9144
  %v9508 = vpop.f32.mrf.mxu0
  %v9509 = vadd.f32 %v9393, %v9508
  %9510 = vmatmul.f32.gmra.mxu0 %v9150
  %v9511 = vpop.f32.mrf.mxu0
  %v9512 = vadd.f32 %v9396, %v9511
  %9513 = vmatmul.f32.gmra.mxu0 %v9156
  %v9514 = vpop.f32.mrf.mxu0
  %v9515 = vadd.f32 %v9399, %v9514
  %9516 = vmatmul.f32.gmra.mxu0 %v9162
  %v9517 = vpop.f32.mrf.mxu0
  %v9518 = vadd.f32 %v9402, %v9517
  %9519 = vmatmul.f32.gmra.mxu0 %v9168
  %v9520 = vpop.f32.mrf.mxu0
  %v9521 = vadd.f32 %v9405, %v9520
  %9522 = vmatmul.f32.gmra.mxu0 %v9174
  %v9523 = vpop.f32.mrf.mxu0
  %v9524 = vadd.f32 %v9408, %v9523
  %9525 = vdwg.mxu0
  %9526 = vmatpush.xpose.msra.mxu0 0.0
  %9527 = vmatpush.xpose.msra.mxu0 0.0
  %9528 = vmatpush.xpose.msra.mxu0 0.0
  %9529 = vmatpush.xpose.msra.mxu0 0.0
  %9530 = vmatpush.xpose.msra.mxu0 0.0
  %9531 = vmatpush.xpose.msra.mxu0 0.0
  %9532 = vmatpush.xpose.msra.mxu0 0.0
  %9533 = vmatpush.xpose.msra.mxu0 0.0
  %9534 = vmatpush.xpose.msra.mxu0 0.0
  %9535 = vmatpush.xpose.msra.mxu0 0.0
  %9536 = vmatpush.xpose.msra.mxu0 0.0
  %9537 = vmatpush.xpose.msra.mxu0 0.0
  %9538 = vmatpush.xpose.msra.mxu0 %v925
  %9539 = vmatpush.xpose.msra.mxu0 %v919
  %9540 = vmatpush.xpose.msra.mxu0 %v913
  %9541 = vmatpush.xpose.msra.mxu0 %v907
  %9542 = vmatmul.f32.gmra.mxu0 %v8983
  %v9543 = vpop.f32.mrf.mxu0
  %v9544 = vadd.f32 %v9428, %v9543
  %9545 = vmatmul.f32.gmra.mxu0 %v8989
  %v9546 = vpop.f32.mrf.mxu0
  %v9547 = vadd.f32 %v9431, %v9546
  %9548 = vmatmul.f32.gmra.mxu0 %v8995
  %v9549 = vpop.f32.mrf.mxu0
  %v9550 = vadd.f32 %v9434, %v9549
  %9551 = vmatmul.f32.gmra.mxu0 %v9001
  %v9552 = vpop.f32.mrf.mxu0
  %v9553 = vadd.f32 %v9437, %v9552
  %9554 = vmatmul.f32.gmra.mxu0 %v9007
  %v9555 = vpop.f32.mrf.mxu0
  %v9556 = vadd.f32 %v9440, %v9555
  %9557 = vmatmul.f32.gmra.mxu0 %v9013
  %v9558 = vpop.f32.mrf.mxu0
  %v9559 = vadd.f32 %v9443, %v9558
  %9560 = vmatmul.f32.gmra.mxu0 %v9019
  %v9561 = vpop.f32.mrf.mxu0
  %v9562 = vadd.f32 %v9446, %v9561
  %9563 = vmatmul.f32.gmra.mxu0 %v9025
  %v9564 = vpop.f32.mrf.mxu0
  %v9565 = vadd.f32 %v9449, %v9564
  %9566 = vmatmul.f32.gmra.mxu0 %v9031
  %v9567 = vpop.f32.mrf.mxu0
  %v9568 = vadd.f32 %v9452, %v9567
  %9569 = vmatmul.f32.gmra.mxu0 %v9037
  %v9570 = vpop.f32.mrf.mxu0
  %v9571 = vadd.f32 %v9455, %v9570
  %9572 = vmatmul.f32.gmra.mxu0 %v9043
  %v9573 = vpop.f32.mrf.mxu0
  %v9574 = vadd.f32 %v9458, %v9573
  %9575 = vmatmul.f32.gmra.mxu0 %v9049
  %v9576 = vpop.f32.mrf.mxu0
  %v9577 = vadd.f32 %v9461, %v9576
  %9578 = vmatmul.f32.gmra.mxu0 %v9055
  %v9579 = vpop.f32.mrf.mxu0
  %v9580 = vadd.f32 %v9464, %v9579
  %9581 = vmatmul.f32.gmra.mxu0 %v9061
  %v9582 = vpop.f32.mrf.mxu0
  %v9583 = vadd.f32 %v9467, %v9582
  %9584 = vmatmul.f32.gmra.mxu0 %v9067
  %v9585 = vpop.f32.mrf.mxu0
  %v9586 = vadd.f32 %v9470, %v9585
  %9587 = vmatmul.f32.gmra.mxu0 %v9073
  %v9588 = vpop.f32.mrf.mxu0
  %v9589 = vadd.f32 %v9473, %v9588
  %9590 = vmatmul.f32.gmra.mxu0 %v9079
  %v9591 = vpop.f32.mrf.mxu0
  %v9592 = vadd.f32 %v9476, %v9591
  %9593 = vmatmul.f32.gmra.mxu0 %v9085
  %v9594 = vpop.f32.mrf.mxu0
  %v9595 = vadd.f32 %v9479, %v9594
  %9596 = vmatmul.f32.gmra.mxu0 %v9091
  %v9597 = vpop.f32.mrf.mxu0
  %v9598 = vadd.f32 %v9482, %v9597
  %9599 = vmatmul.f32.gmra.mxu0 %v9097
  %v9600 = vpop.f32.mrf.mxu0
  %v9601 = vadd.f32 %v9485, %v9600
  %9602 = vmatmul.f32.gmra.mxu0 %v9103
  %v9603 = vpop.f32.mrf.mxu0
  %v9604 = vadd.f32 %v9488, %v9603
  %9605 = vmatmul.f32.gmra.mxu0 %v9109
  %v9606 = vpop.f32.mrf.mxu0
  %v9607 = vadd.f32 %v9491, %v9606
  %9608 = vmatmul.f32.gmra.mxu0 %v9115
  %v9609 = vpop.f32.mrf.mxu0
  %v9610 = vadd.f32 %v9494, %v9609
  %9611 = vmatmul.f32.gmra.mxu0 %v9121
  %v9612 = vpop.f32.mrf.mxu0
  %v9613 = vadd.f32 %v9497, %v9612
  %9614 = vmatmul.f32.gmra.mxu0 %v9127
  %v9615 = vpop.f32.mrf.mxu0
  %v9616 = vadd.f32 %v9500, %v9615
  %9617 = vmatmul.f32.gmra.mxu0 %v9133
  %v9618 = vpop.f32.mrf.mxu0
  %v9619 = vadd.f32 %v9503, %v9618
  %9620 = vmatmul.f32.gmra.mxu0 %v9139
  %v9621 = vpop.f32.mrf.mxu0
  %v9622 = vadd.f32 %v9506, %v9621
  %9623 = vmatmul.f32.gmra.mxu0 %v9145
  %v9624 = vpop.f32.mrf.mxu0
  %v9625 = vadd.f32 %v9509, %v9624
  %9626 = vmatmul.f32.gmra.mxu0 %v9151
  %v9627 = vpop.f32.mrf.mxu0
  %v9628 = vadd.f32 %v9512, %v9627
  %9629 = vmatmul.f32.gmra.mxu0 %v9157
  %v9630 = vpop.f32.mrf.mxu0
  %v9631 = vadd.f32 %v9515, %v9630
  %9632 = vmatmul.f32.gmra.mxu0 %v9163
  %v9633 = vpop.f32.mrf.mxu0
  %v9634 = vadd.f32 %v9518, %v9633
  %9635 = vmatmul.f32.gmra.mxu0 %v9169
  %v9636 = vpop.f32.mrf.mxu0
  %v9637 = vadd.f32 %v9521, %v9636
  %9638 = vmatmul.f32.gmra.mxu0 %v9175
  %v9639 = vpop.f32.mrf.mxu0
  %v9640 = vadd.f32 %v9524, %v9639
  %9641 = vdwg.mxu0
  %9642 = vmatpush.xpose.msra.mxu0 0.0
  %9643 = vmatpush.xpose.msra.mxu0 0.0
  %9644 = vmatpush.xpose.msra.mxu0 0.0
  %9645 = vmatpush.xpose.msra.mxu0 0.0
  %9646 = vmatpush.xpose.msra.mxu0 0.0
  %9647 = vmatpush.xpose.msra.mxu0 0.0
  %9648 = vmatpush.xpose.msra.mxu0 0.0
  %9649 = vmatpush.xpose.msra.mxu0 0.0
  %9650 = vmatpush.xpose.msra.mxu0 0.0
  %9651 = vmatpush.xpose.msra.mxu0 0.0
  %9652 = vmatpush.xpose.msra.mxu0 0.0
  %9653 = vmatpush.xpose.msra.mxu0 0.0
  %9654 = vmatpush.xpose.msra.mxu0 %v926
  %9655 = vmatpush.xpose.msra.mxu0 %v920
  %9656 = vmatpush.xpose.msra.mxu0 %v914
  %9657 = vmatpush.xpose.msra.mxu0 %v908
  %9658 = vmatmul.f32.gmra.mxu0 %v8984
  %v9659 = vpop.f32.mrf.mxu0
  %v9660 = vadd.f32 %v9544, %v9659
  %9661 = vmatmul.f32.gmra.mxu0 %v8990
  %v9662 = vpop.f32.mrf.mxu0
  %v9663 = vadd.f32 %v9547, %v9662
  %9664 = vmatmul.f32.gmra.mxu0 %v8996
  %v9665 = vpop.f32.mrf.mxu0
  %v9666 = vadd.f32 %v9550, %v9665
  %9667 = vmatmul.f32.gmra.mxu0 %v9002
  %v9668 = vpop.f32.mrf.mxu0
  %v9669 = vadd.f32 %v9553, %v9668
  %9670 = vmatmul.f32.gmra.mxu0 %v9008
  %v9671 = vpop.f32.mrf.mxu0
  %v9672 = vadd.f32 %v9556, %v9671
  %9673 = vmatmul.f32.gmra.mxu0 %v9014
  %v9674 = vpop.f32.mrf.mxu0
  %v9675 = vadd.f32 %v9559, %v9674
  %9676 = vmatmul.f32.gmra.mxu0 %v9020
  %v9677 = vpop.f32.mrf.mxu0
  %v9678 = vadd.f32 %v9562, %v9677
  %9679 = vmatmul.f32.gmra.mxu0 %v9026
  %v9680 = vpop.f32.mrf.mxu0
  %v9681 = vadd.f32 %v9565, %v9680
  %9682 = vmatmul.f32.gmra.mxu0 %v9032
  %v9683 = vpop.f32.mrf.mxu0
  %v9684 = vadd.f32 %v9568, %v9683
  %9685 = vmatmul.f32.gmra.mxu0 %v9038
  %v9686 = vpop.f32.mrf.mxu0
  %v9687 = vadd.f32 %v9571, %v9686
  %9688 = vmatmul.f32.gmra.mxu0 %v9044
  %v9689 = vpop.f32.mrf.mxu0
  %v9690 = vadd.f32 %v9574, %v9689
  %9691 = vmatmul.f32.gmra.mxu0 %v9050
  %v9692 = vpop.f32.mrf.mxu0
  %v9693 = vadd.f32 %v9577, %v9692
  %9694 = vmatmul.f32.gmra.mxu0 %v9056
  %v9695 = vpop.f32.mrf.mxu0
  %v9696 = vadd.f32 %v9580, %v9695
  %9697 = vmatmul.f32.gmra.mxu0 %v9062
  %v9698 = vpop.f32.mrf.mxu0
  %v9699 = vadd.f32 %v9583, %v9698
  %9700 = vmatmul.f32.gmra.mxu0 %v9068
  %v9701 = vpop.f32.mrf.mxu0
  %v9702 = vadd.f32 %v9586, %v9701
  %9703 = vmatmul.f32.gmra.mxu0 %v9074
  %v9704 = vpop.f32.mrf.mxu0
  %v9705 = vadd.f32 %v9589, %v9704
  %9706 = vmatmul.f32.gmra.mxu0 %v9080
  %v9707 = vpop.f32.mrf.mxu0
  %v9708 = vadd.f32 %v9592, %v9707
  %9709 = vmatmul.f32.gmra.mxu0 %v9086
  %v9710 = vpop.f32.mrf.mxu0
  %v9711 = vadd.f32 %v9595, %v9710
  %9712 = vmatmul.f32.gmra.mxu0 %v9092
  %v9713 = vpop.f32.mrf.mxu0
  %v9714 = vadd.f32 %v9598, %v9713
  %9715 = vmatmul.f32.gmra.mxu0 %v9098
  %v9716 = vpop.f32.mrf.mxu0
  %v9717 = vadd.f32 %v9601, %v9716
  %9718 = vmatmul.f32.gmra.mxu0 %v9104
  %v9719 = vpop.f32.mrf.mxu0
  %v9720 = vadd.f32 %v9604, %v9719
  %9721 = vmatmul.f32.gmra.mxu0 %v9110
  %v9722 = vpop.f32.mrf.mxu0
  %v9723 = vadd.f32 %v9607, %v9722
  %9724 = vmatmul.f32.gmra.mxu0 %v9116
  %v9725 = vpop.f32.mrf.mxu0
  %v9726 = vadd.f32 %v9610, %v9725
  %9727 = vmatmul.f32.gmra.mxu0 %v9122
  %v9728 = vpop.f32.mrf.mxu0
  %v9729 = vadd.f32 %v9613, %v9728
  %9730 = vmatmul.f32.gmra.mxu0 %v9128
  %v9731 = vpop.f32.mrf.mxu0
  %v9732 = vadd.f32 %v9616, %v9731
  %9733 = vmatmul.f32.gmra.mxu0 %v9134
  %v9734 = vpop.f32.mrf.mxu0
  %v9735 = vadd.f32 %v9619, %v9734
  %9736 = vmatmul.f32.gmra.mxu0 %v9140
  %v9737 = vpop.f32.mrf.mxu0
  %v9738 = vadd.f32 %v9622, %v9737
  %9739 = vmatmul.f32.gmra.mxu0 %v9146
  %v9740 = vpop.f32.mrf.mxu0
  %v9741 = vadd.f32 %v9625, %v9740
  %9742 = vmatmul.f32.gmra.mxu0 %v9152
  %v9743 = vpop.f32.mrf.mxu0
  %v9744 = vadd.f32 %v9628, %v9743
  %9745 = vmatmul.f32.gmra.mxu0 %v9158
  %v9746 = vpop.f32.mrf.mxu0
  %v9747 = vadd.f32 %v9631, %v9746
  %9748 = vmatmul.f32.gmra.mxu0 %v9164
  %v9749 = vpop.f32.mrf.mxu0
  %v9750 = vadd.f32 %v9634, %v9749
  %9751 = vmatmul.f32.gmra.mxu0 %v9170
  %v9752 = vpop.f32.mrf.mxu0
  %v9753 = vadd.f32 %v9637, %v9752
  %9754 = vmatmul.f32.gmra.mxu0 %v9176
  %v9755 = vpop.f32.mrf.mxu0
  %v9756 = vadd.f32 %v9640, %v9755
  %9757 = vdwg.mxu0
  %9758 = vmatpush.xpose.msra.mxu0 0.0
  %9759 = vmatpush.xpose.msra.mxu0 0.0
  %9760 = vmatpush.xpose.msra.mxu0 0.0
  %9761 = vmatpush.xpose.msra.mxu0 0.0
  %9762 = vmatpush.xpose.msra.mxu0 0.0
  %9763 = vmatpush.xpose.msra.mxu0 0.0
  %9764 = vmatpush.xpose.msra.mxu0 0.0
  %9765 = vmatpush.xpose.msra.mxu0 0.0
  %9766 = vmatpush.xpose.msra.mxu0 0.0
  %9767 = vmatpush.xpose.msra.mxu0 0.0
  %9768 = vmatpush.xpose.msra.mxu0 0.0
  %9769 = vmatpush.xpose.msra.mxu0 0.0
  %9770 = vmatpush.xpose.msra.mxu0 %v927
  %9771 = vmatpush.xpose.msra.mxu0 %v921
  %9772 = vmatpush.xpose.msra.mxu0 %v915
  %9773 = vmatpush.xpose.msra.mxu0 %v909
  %9774 = vmatmul.f32.gmra.mxu0 %v8985
  %v9775 = vpop.f32.mrf.mxu0
  %v9776 = vadd.f32 %v9660, %v9775
  %9777 = vmatmul.f32.gmra.mxu0 %v8991
  %v9778 = vpop.f32.mrf.mxu0
  %v9779 = vadd.f32 %v9663, %v9778
  %9780 = vmatmul.f32.gmra.mxu0 %v8997
  %v9781 = vpop.f32.mrf.mxu0
  %v9782 = vadd.f32 %v9666, %v9781
  %9783 = vmatmul.f32.gmra.mxu0 %v9003
  %v9784 = vpop.f32.mrf.mxu0
  %v9785 = vadd.f32 %v9669, %v9784
  %9786 = vmatmul.f32.gmra.mxu0 %v9009
  %v9787 = vpop.f32.mrf.mxu0
  %v9788 = vadd.f32 %v9672, %v9787
  %9789 = vmatmul.f32.gmra.mxu0 %v9015
  %v9790 = vpop.f32.mrf.mxu0
  %v9791 = vadd.f32 %v9675, %v9790
  %9792 = vmatmul.f32.gmra.mxu0 %v9021
  %v9793 = vpop.f32.mrf.mxu0
  %v9794 = vadd.f32 %v9678, %v9793
  %9795 = vmatmul.f32.gmra.mxu0 %v9027
  %v9796 = vpop.f32.mrf.mxu0
  %v9797 = vadd.f32 %v9681, %v9796
  %9798 = vmatmul.f32.gmra.mxu0 %v9033
  %v9799 = vpop.f32.mrf.mxu0
  %v9800 = vadd.f32 %v9684, %v9799
  %9801 = vmatmul.f32.gmra.mxu0 %v9039
  %v9802 = vpop.f32.mrf.mxu0
  %v9803 = vadd.f32 %v9687, %v9802
  %9804 = vmatmul.f32.gmra.mxu0 %v9045
  %v9805 = vpop.f32.mrf.mxu0
  %v9806 = vadd.f32 %v9690, %v9805
  %9807 = vmatmul.f32.gmra.mxu0 %v9051
  %v9808 = vpop.f32.mrf.mxu0
  %v9809 = vadd.f32 %v9693, %v9808
  %9810 = vmatmul.f32.gmra.mxu0 %v9057
  %v9811 = vpop.f32.mrf.mxu0
  %v9812 = vadd.f32 %v9696, %v9811
  %9813 = vmatmul.f32.gmra.mxu0 %v9063
  %v9814 = vpop.f32.mrf.mxu0
  %v9815 = vadd.f32 %v9699, %v9814
  %9816 = vmatmul.f32.gmra.mxu0 %v9069
  %v9817 = vpop.f32.mrf.mxu0
  %v9818 = vadd.f32 %v9702, %v9817
  %9819 = vmatmul.f32.gmra.mxu0 %v9075
  %v9820 = vpop.f32.mrf.mxu0
  %v9821 = vadd.f32 %v9705, %v9820
  %9822 = vmatmul.f32.gmra.mxu0 %v9081
  %v9823 = vpop.f32.mrf.mxu0
  %v9824 = vadd.f32 %v9708, %v9823
  %9825 = vmatmul.f32.gmra.mxu0 %v9087
  %v9826 = vpop.f32.mrf.mxu0
  %v9827 = vadd.f32 %v9711, %v9826
  %9828 = vmatmul.f32.gmra.mxu0 %v9093
  %v9829 = vpop.f32.mrf.mxu0
  %v9830 = vadd.f32 %v9714, %v9829
  %9831 = vmatmul.f32.gmra.mxu0 %v9099
  %v9832 = vpop.f32.mrf.mxu0
  %v9833 = vadd.f32 %v9717, %v9832
  %9834 = vmatmul.f32.gmra.mxu0 %v9105
  %v9835 = vpop.f32.mrf.mxu0
  %v9836 = vadd.f32 %v9720, %v9835
  %9837 = vmatmul.f32.gmra.mxu0 %v9111
  %v9838 = vpop.f32.mrf.mxu0
  %v9839 = vadd.f32 %v9723, %v9838
  %9840 = vmatmul.f32.gmra.mxu0 %v9117
  %v9841 = vpop.f32.mrf.mxu0
  %v9842 = vadd.f32 %v9726, %v9841
  %9843 = vmatmul.f32.gmra.mxu0 %v9123
  %v9844 = vpop.f32.mrf.mxu0
  %v9845 = vadd.f32 %v9729, %v9844
  %9846 = vmatmul.f32.gmra.mxu0 %v9129
  %v9847 = vpop.f32.mrf.mxu0
  %v9848 = vadd.f32 %v9732, %v9847
  %9849 = vmatmul.f32.gmra.mxu0 %v9135
  %v9850 = vpop.f32.mrf.mxu0
  %v9851 = vadd.f32 %v9735, %v9850
  %9852 = vmatmul.f32.gmra.mxu0 %v9141
  %v9853 = vpop.f32.mrf.mxu0
  %v9854 = vadd.f32 %v9738, %v9853
  %9855 = vmatmul.f32.gmra.mxu0 %v9147
  %v9856 = vpop.f32.mrf.mxu0
  %v9857 = vadd.f32 %v9741, %v9856
  %9858 = vmatmul.f32.gmra.mxu0 %v9153
  %v9859 = vpop.f32.mrf.mxu0
  %v9860 = vadd.f32 %v9744, %v9859
  %9861 = vmatmul.f32.gmra.mxu0 %v9159
  %v9862 = vpop.f32.mrf.mxu0
  %v9863 = vadd.f32 %v9747, %v9862
  %9864 = vmatmul.f32.gmra.mxu0 %v9165
  %v9865 = vpop.f32.mrf.mxu0
  %v9866 = vadd.f32 %v9750, %v9865
  %9867 = vmatmul.f32.gmra.mxu0 %v9171
  %v9868 = vpop.f32.mrf.mxu0
  %v9869 = vadd.f32 %v9753, %v9868
  %9870 = vmatmul.f32.gmra.mxu0 %v9177
  %v9871 = vpop.f32.mrf.mxu0
  %v9872 = vadd.f32 %v9756, %v9871
  %9873 = vdwg.mxu0
  %v9874 = vperm.slane %v72, 0
  %9879 = vrot.lane.b32.xlu0 %v1863, 32
  %v9880 = vpop.permute.xlu0 %9879
  %9881 = vrot.lane.b32.xlu0 %v1864, 32
  %v9882 = vpop.permute.xlu0 %9881
  %9883 = vrot.lane.b32.xlu0 %v1865, 32
  %v9884 = vpop.permute.xlu0 %9883
  %9885 = vrot.lane.b32.xlu0 %v1866, 32
  %v9886 = vpop.permute.xlu0 %9885
  %v9892 = vsel %vm1057, %v9776, 0
  %v9895 = vsel %vm1057, %v9779, 0
  %v9898 = vsel %vm1057, %v9782, 0
  %v9901 = vsel %vm1057, %v9785, 0
  %v9904 = vsel %vm1057, %v9788, 0
  %v9907 = vsel %vm1057, %v9791, 0
  %v9910 = vsel %vm1057, %v9794, 0
  %v9913 = vsel %vm1057, %v9797, 0
  %v9916 = vsel %vm1057, %v9800, 0
  %v9919 = vsel %vm1057, %v9803, 0
  %v9922 = vsel %vm1057, %v9806, 0
  %v9925 = vsel %vm1057, %v9809, 0
  %v9928 = vsel %vm1057, %v9812, 0
  %v9931 = vsel %vm1057, %v9815, 0
  %v9934 = vsel %vm1057, %v9818, 0
  %v9937 = vsel %vm1057, %v9821, 0
  %v9940 = vsel %vm1057, %v9824, 0
  %v9943 = vsel %vm1057, %v9827, 0
  %v9946 = vsel %vm1057, %v9830, 0
  %v9949 = vsel %vm1057, %v9833, 0
  %v9952 = vsel %vm1057, %v9836, 0
  %v9955 = vsel %vm1057, %v9839, 0
  %v9958 = vsel %vm1057, %v9842, 0
  %v9961 = vsel %vm1057, %v9845, 0
  %v9964 = vsel %vm1057, %v9848, 0
  %v9967 = vsel %vm1057, %v9851, 0
  %v9970 = vsel %vm1057, %v9854, 0
  %v9973 = vsel %vm1057, %v9857, 0
  %v9976 = vsel %vm1057, %v9860, 0
  %v9979 = vsel %vm1057, %v9863, 0
  %v9982 = vsel %vm1057, %v9866, 0
  %v9985 = vsel %vm1057, %v9869, 0
  %v9988 = vsel %vm1057, %v9872, 0
  %9990 = vmatpush.msra.mxu0 0.0
  %9991 = vmatpush.msra.mxu0 0.0
  %9992 = vmatpush.msra.mxu0 0.0
  %9993 = vmatpush.msra.mxu0 0.0
  %9994 = vmatpush.msra.mxu0 0.0
  %9995 = vmatpush.msra.mxu0 0.0
  %9996 = vmatpush.msra.mxu0 0.0
  %9997 = vmatpush.msra.mxu0 0.0
  %9998 = vmatpush.msra.mxu0 0.0
  %9999 = vmatpush.msra.mxu0 0.0
  %10000 = vmatpush.msra.mxu0 0.0
  %10001 = vmatpush.msra.mxu0 0.0
  %10002 = vmatpush.msra.mxu0 %v9886
  %10003 = vmatpush.msra.mxu0 %v9884
  %10004 = vmatpush.msra.mxu0 %v9882
  %10005 = vmatpush.msra.mxu0 %v9880
  %10006 = vmatmul.f32.gmra.mxu0 %v9892
  %v10007 = vpop.f32.mrf.mxu0
  %v10008 = vadd.f32 %v9874, %v10007
  %10009 = vmatmul.f32.gmra.mxu0 %v9895
  %v10010 = vpop.f32.mrf.mxu0
  %v10011 = vadd.f32 %v9874, %v10010
  %10012 = vmatmul.f32.gmra.mxu0 %v9898
  %v10013 = vpop.f32.mrf.mxu0
  %v10014 = vadd.f32 %v9874, %v10013
  %10015 = vmatmul.f32.gmra.mxu0 %v9901
  %v10016 = vpop.f32.mrf.mxu0
  %v10017 = vadd.f32 %v9874, %v10016
  %10018 = vmatmul.f32.gmra.mxu0 %v9904
  %v10019 = vpop.f32.mrf.mxu0
  %v10020 = vadd.f32 %v9874, %v10019
  %10021 = vmatmul.f32.gmra.mxu0 %v9907
  %v10022 = vpop.f32.mrf.mxu0
  %v10023 = vadd.f32 %v9874, %v10022
  %10024 = vmatmul.f32.gmra.mxu0 %v9910
  %v10025 = vpop.f32.mrf.mxu0
  %v10026 = vadd.f32 %v9874, %v10025
  %10027 = vmatmul.f32.gmra.mxu0 %v9913
  %v10028 = vpop.f32.mrf.mxu0
  %v10029 = vadd.f32 %v9874, %v10028
  %10030 = vmatmul.f32.gmra.mxu0 %v9916
  %v10031 = vpop.f32.mrf.mxu0
  %v10032 = vadd.f32 %v9874, %v10031
  %10033 = vmatmul.f32.gmra.mxu0 %v9919
  %v10034 = vpop.f32.mrf.mxu0
  %v10035 = vadd.f32 %v9874, %v10034
  %10036 = vmatmul.f32.gmra.mxu0 %v9922
  %v10037 = vpop.f32.mrf.mxu0
  %v10038 = vadd.f32 %v9874, %v10037
  %10039 = vmatmul.f32.gmra.mxu0 %v9925
  %v10040 = vpop.f32.mrf.mxu0
  %v10041 = vadd.f32 %v9874, %v10040
  %10042 = vmatmul.f32.gmra.mxu0 %v9928
  %v10043 = vpop.f32.mrf.mxu0
  %v10044 = vadd.f32 %v9874, %v10043
  %10045 = vmatmul.f32.gmra.mxu0 %v9931
  %v10046 = vpop.f32.mrf.mxu0
  %v10047 = vadd.f32 %v9874, %v10046
  %10048 = vmatmul.f32.gmra.mxu0 %v9934
  %v10049 = vpop.f32.mrf.mxu0
  %v10050 = vadd.f32 %v9874, %v10049
  %10051 = vmatmul.f32.gmra.mxu0 %v9937
  %v10052 = vpop.f32.mrf.mxu0
  %v10053 = vadd.f32 %v9874, %v10052
  %10054 = vmatmul.f32.gmra.mxu0 %v9940
  %v10055 = vpop.f32.mrf.mxu0
  %v10056 = vadd.f32 %v9874, %v10055
  %10057 = vmatmul.f32.gmra.mxu0 %v9943
  %v10058 = vpop.f32.mrf.mxu0
  %v10059 = vadd.f32 %v9874, %v10058
  %10060 = vmatmul.f32.gmra.mxu0 %v9946
  %v10061 = vpop.f32.mrf.mxu0
  %v10062 = vadd.f32 %v9874, %v10061
  %10063 = vmatmul.f32.gmra.mxu0 %v9949
  %v10064 = vpop.f32.mrf.mxu0
  %v10065 = vadd.f32 %v9874, %v10064
  %10066 = vmatmul.f32.gmra.mxu0 %v9952
  %v10067 = vpop.f32.mrf.mxu0
  %v10068 = vadd.f32 %v9874, %v10067
  %10069 = vmatmul.f32.gmra.mxu0 %v9955
  %v10070 = vpop.f32.mrf.mxu0
  %v10071 = vadd.f32 %v9874, %v10070
  %10072 = vmatmul.f32.gmra.mxu0 %v9958
  %v10073 = vpop.f32.mrf.mxu0
  %v10074 = vadd.f32 %v9874, %v10073
  %10075 = vmatmul.f32.gmra.mxu0 %v9961
  %v10076 = vpop.f32.mrf.mxu0
  %v10077 = vadd.f32 %v9874, %v10076
  %10078 = vmatmul.f32.gmra.mxu0 %v9964
  %v10079 = vpop.f32.mrf.mxu0
  %v10080 = vadd.f32 %v9874, %v10079
  %10081 = vmatmul.f32.gmra.mxu0 %v9967
  %v10082 = vpop.f32.mrf.mxu0
  %v10083 = vadd.f32 %v9874, %v10082
  %10084 = vmatmul.f32.gmra.mxu0 %v9970
  %v10085 = vpop.f32.mrf.mxu0
  %v10086 = vadd.f32 %v9874, %v10085
  %10087 = vmatmul.f32.gmra.mxu0 %v9973
  %v10088 = vpop.f32.mrf.mxu0
  %v10089 = vadd.f32 %v9874, %v10088
  %10090 = vmatmul.f32.gmra.mxu0 %v9976
  %v10091 = vpop.f32.mrf.mxu0
  %v10092 = vadd.f32 %v9874, %v10091
  %10093 = vmatmul.f32.gmra.mxu0 %v9979
  %v10094 = vpop.f32.mrf.mxu0
  %v10095 = vadd.f32 %v9874, %v10094
  %10096 = vmatmul.f32.gmra.mxu0 %v9982
  %v10097 = vpop.f32.mrf.mxu0
  %v10098 = vadd.f32 %v9874, %v10097
  %10099 = vmatmul.f32.gmra.mxu0 %v9985
  %v10100 = vpop.f32.mrf.mxu0
  %v10101 = vadd.f32 %v9874, %v10100
  %10102 = vmatmul.f32.gmra.mxu0 %v9988
  %v10103 = vpop.f32.mrf.mxu0
  %v10104 = vadd.f32 %v9874, %v10103
  %10105 = vdwg.mxu0
  %v10106 = vperm.slane %v70, 0
  %v10107 = vmul.f32 %v10106, %v10008
  %v10108 = vmul.f32 %v10106, %v10011
  %v10109 = vmul.f32 %v10106, %v10014
  %v10110 = vmul.f32 %v10106, %v10017
  %v10111 = vmul.f32 %v10106, %v10020
  %v10112 = vmul.f32 %v10106, %v10023
  %v10113 = vmul.f32 %v10106, %v10026
  %v10114 = vmul.f32 %v10106, %v10029
  %v10115 = vmul.f32 %v10106, %v10032
  %v10116 = vmul.f32 %v10106, %v10035
  %v10117 = vmul.f32 %v10106, %v10038
  %v10118 = vmul.f32 %v10106, %v10041
  %v10119 = vmul.f32 %v10106, %v10044
  %v10120 = vmul.f32 %v10106, %v10047
  %v10121 = vmul.f32 %v10106, %v10050
  %v10122 = vmul.f32 %v10106, %v10053
  %v10123 = vmul.f32 %v10106, %v10056
  %v10124 = vmul.f32 %v10106, %v10059
  %v10125 = vmul.f32 %v10106, %v10062
  %v10126 = vmul.f32 %v10106, %v10065
  %v10127 = vmul.f32 %v10106, %v10068
  %v10128 = vmul.f32 %v10106, %v10071
  %v10129 = vmul.f32 %v10106, %v10074
  %v10130 = vmul.f32 %v10106, %v10077
  %v10131 = vmul.f32 %v10106, %v10080
  %v10132 = vmul.f32 %v10106, %v10083
  %v10133 = vmul.f32 %v10106, %v10086
  %v10134 = vmul.f32 %v10106, %v10089
  %v10135 = vmul.f32 %v10106, %v10092
  %v10136 = vmul.f32 %v10106, %v10095
  %v10137 = vmul.f32 %v10106, %v10098
  %v10138 = vmul.f32 %v10106, %v10101
  %v10139 = vmul.f32 %v10106, %v10104
  %v10140 = vadd.f32 %v1024, %v10107
  %v10141 = vadd.f32 %v1025, %v10108
  %v10142 = vadd.f32 %v1026, %v10109
  %v10143 = vadd.f32 %v1027, %v10110
  %v10144 = vadd.f32 %v1028, %v10111
  %v10145 = vadd.f32 %v1029, %v10112
  %v10146 = vadd.f32 %v1030, %v10113
  %v10147 = vadd.f32 %v1031, %v10114
  %v10148 = vadd.f32 %v1032, %v10115
  %v10149 = vadd.f32 %v1033, %v10116
  %v10150 = vadd.f32 %v1034, %v10117
  %v10151 = vadd.f32 %v1035, %v10118
  %v10152 = vadd.f32 %v1036, %v10119
  %v10153 = vadd.f32 %v1037, %v10120
  %v10154 = vadd.f32 %v1038, %v10121
  %v10155 = vadd.f32 %v1039, %v10122
  %v10156 = vadd.f32 %v1040, %v10123
  %v10157 = vadd.f32 %v1041, %v10124
  %v10158 = vadd.f32 %v1042, %v10125
  %v10159 = vadd.f32 %v1043, %v10126
  %v10160 = vadd.f32 %v1044, %v10127
  %v10161 = vadd.f32 %v1045, %v10128
  %v10162 = vadd.f32 %v1046, %v10129
  %v10163 = vadd.f32 %v1047, %v10130
  %v10164 = vadd.f32 %v1048, %v10131
  %v10165 = vadd.f32 %v1049, %v10132
  %v10166 = vadd.f32 %v1050, %v10133
  %v10167 = vadd.f32 %v1051, %v10134
  %v10168 = vadd.f32 %v1052, %v10135
  %v10169 = vadd.f32 %v1053, %v10136
  %v10170 = vadd.f32 %v1054, %v10137
  %v10171 = vadd.f32 %v1055, %v10138
  %v10172 = vadd.f32 %v1056, %v10139
  %v10173 = vld [vmem:[%s5] sm:$0xf]
  %v10174 = vld [vmem:[%s5 + $0x4] sm:$0xf]
  %v10175 = vld [vmem:[%s5 + $0x8] sm:$0xf]
  %v10176 = vld [vmem:[%s5 + $0xc] sm:$0xf]
  %v10177 = vunpack.c.l.bf16 %v10173
  %v10178 = vunpack.c.l.bf16 %v10174
  %v10179 = vunpack.c.l.bf16 %v10175
  %v10180 = vunpack.c.l.bf16 %v10176
  %v10182 = vsel %vm1057, %v10140, 0
  %v10185 = vsel %vm1057, %v10141, 0
  %v10188 = vsel %vm1057, %v10142, 0
  %v10191 = vsel %vm1057, %v10143, 0
  %v10194 = vsel %vm1057, %v10144, 0
  %v10197 = vsel %vm1057, %v10145, 0
  %v10200 = vsel %vm1057, %v10146, 0
  %v10203 = vsel %vm1057, %v10147, 0
  %v10206 = vsel %vm1057, %v10148, 0
  %v10209 = vsel %vm1057, %v10149, 0
  %v10212 = vsel %vm1057, %v10150, 0
  %v10215 = vsel %vm1057, %v10151, 0
  %v10218 = vsel %vm1057, %v10152, 0
  %v10221 = vsel %vm1057, %v10153, 0
  %v10224 = vsel %vm1057, %v10154, 0
  %v10227 = vsel %vm1057, %v10155, 0
  %v10230 = vsel %vm1057, %v10156, 0
  %v10233 = vsel %vm1057, %v10157, 0
  %v10236 = vsel %vm1057, %v10158, 0
  %v10239 = vsel %vm1057, %v10159, 0
  %v10242 = vsel %vm1057, %v10160, 0
  %v10245 = vsel %vm1057, %v10161, 0
  %v10248 = vsel %vm1057, %v10162, 0
  %v10251 = vsel %vm1057, %v10163, 0
  %v10254 = vsel %vm1057, %v10164, 0
  %v10257 = vsel %vm1057, %v10165, 0
  %v10260 = vsel %vm1057, %v10166, 0
  %v10263 = vsel %vm1057, %v10167, 0
  %v10266 = vsel %vm1057, %v10168, 0
  %v10269 = vsel %vm1057, %v10169, 0
  %v10272 = vsel %vm1057, %v10170, 0
  %v10275 = vsel %vm1057, %v10171, 0
  %v10278 = vsel %vm1057, %v10172, 0
  %10280 = vmatpush.msra.mxu0 0.0
  %10281 = vmatpush.msra.mxu0 0.0
  %10282 = vmatpush.msra.mxu0 0.0
  %10283 = vmatpush.msra.mxu0 0.0
  %10284 = vmatpush.msra.mxu0 0.0
  %10285 = vmatpush.msra.mxu0 0.0
  %10286 = vmatpush.msra.mxu0 0.0
  %10287 = vmatpush.msra.mxu0 0.0
  %10288 = vmatpush.msra.mxu0 0.0
  %10289 = vmatpush.msra.mxu0 0.0
  %10290 = vmatpush.msra.mxu0 0.0
  %10291 = vmatpush.msra.mxu0 0.0
  %10292 = vmatpush.msra.mxu0 %v10180
  %10293 = vmatpush.msra.mxu0 %v10179
  %10294 = vmatpush.msra.mxu0 %v10178
  %10295 = vmatpush.msra.mxu0 %v10177
  %10296 = vmatmul.f32.gmra.mxu0 %v10182
  %v10297 = vpop.f32.mrf.mxu0
  %v10298 = vadd.f32 0.0, %v10297
  %10299 = vmatmul.f32.gmra.mxu0 %v10185
  %v10300 = vpop.f32.mrf.mxu0
  %v10301 = vadd.f32 0.0, %v10300
  %10302 = vmatmul.f32.gmra.mxu0 %v10188
  %v10303 = vpop.f32.mrf.mxu0
  %v10304 = vadd.f32 0.0, %v10303
  %10305 = vmatmul.f32.gmra.mxu0 %v10191
  %v10306 = vpop.f32.mrf.mxu0
  %v10307 = vadd.f32 0.0, %v10306
  %10308 = vmatmul.f32.gmra.mxu0 %v10194
  %v10309 = vpop.f32.mrf.mxu0
  %v10310 = vadd.f32 0.0, %v10309
  %10311 = vmatmul.f32.gmra.mxu0 %v10197
  %v10312 = vpop.f32.mrf.mxu0
  %v10313 = vadd.f32 0.0, %v10312
  %10314 = vmatmul.f32.gmra.mxu0 %v10200
  %v10315 = vpop.f32.mrf.mxu0
  %v10316 = vadd.f32 0.0, %v10315
  %10317 = vmatmul.f32.gmra.mxu0 %v10203
  %v10318 = vpop.f32.mrf.mxu0
  %v10319 = vadd.f32 0.0, %v10318
  %10320 = vmatmul.f32.gmra.mxu0 %v10206
  %v10321 = vpop.f32.mrf.mxu0
  %v10322 = vadd.f32 0.0, %v10321
  %10323 = vmatmul.f32.gmra.mxu0 %v10209
  %v10324 = vpop.f32.mrf.mxu0
  %v10325 = vadd.f32 0.0, %v10324
  %10326 = vmatmul.f32.gmra.mxu0 %v10212
  %v10327 = vpop.f32.mrf.mxu0
  %v10328 = vadd.f32 0.0, %v10327
  %10329 = vmatmul.f32.gmra.mxu0 %v10215
  %v10330 = vpop.f32.mrf.mxu0
  %v10331 = vadd.f32 0.0, %v10330
  %10332 = vmatmul.f32.gmra.mxu0 %v10218
  %v10333 = vpop.f32.mrf.mxu0
  %v10334 = vadd.f32 0.0, %v10333
  %10335 = vmatmul.f32.gmra.mxu0 %v10221
  %v10336 = vpop.f32.mrf.mxu0
  %v10337 = vadd.f32 0.0, %v10336
  %10338 = vmatmul.f32.gmra.mxu0 %v10224
  %v10339 = vpop.f32.mrf.mxu0
  %v10340 = vadd.f32 0.0, %v10339
  %10341 = vmatmul.f32.gmra.mxu0 %v10227
  %v10342 = vpop.f32.mrf.mxu0
  %v10343 = vadd.f32 0.0, %v10342
  %10344 = vmatmul.f32.gmra.mxu0 %v10230
  %v10345 = vpop.f32.mrf.mxu0
  %v10346 = vadd.f32 0.0, %v10345
  %10347 = vmatmul.f32.gmra.mxu0 %v10233
  %v10348 = vpop.f32.mrf.mxu0
  %v10349 = vadd.f32 0.0, %v10348
  %10350 = vmatmul.f32.gmra.mxu0 %v10236
  %v10351 = vpop.f32.mrf.mxu0
  %v10352 = vadd.f32 0.0, %v10351
  %10353 = vmatmul.f32.gmra.mxu0 %v10239
  %v10354 = vpop.f32.mrf.mxu0
  %v10355 = vadd.f32 0.0, %v10354
  %10356 = vmatmul.f32.gmra.mxu0 %v10242
  %v10357 = vpop.f32.mrf.mxu0
  %v10358 = vadd.f32 0.0, %v10357
  %10359 = vmatmul.f32.gmra.mxu0 %v10245
  %v10360 = vpop.f32.mrf.mxu0
  %v10361 = vadd.f32 0.0, %v10360
  %10362 = vmatmul.f32.gmra.mxu0 %v10248
  %v10363 = vpop.f32.mrf.mxu0
  %v10364 = vadd.f32 0.0, %v10363
  %10365 = vmatmul.f32.gmra.mxu0 %v10251
  %v10366 = vpop.f32.mrf.mxu0
  %v10367 = vadd.f32 0.0, %v10366
  %10368 = vmatmul.f32.gmra.mxu0 %v10254
  %v10369 = vpop.f32.mrf.mxu0
  %v10370 = vadd.f32 0.0, %v10369
  %10371 = vmatmul.f32.gmra.mxu0 %v10257
  %v10372 = vpop.f32.mrf.mxu0
  %v10373 = vadd.f32 0.0, %v10372
  %10374 = vmatmul.f32.gmra.mxu0 %v10260
  %v10375 = vpop.f32.mrf.mxu0
  %v10376 = vadd.f32 0.0, %v10375
  %10377 = vmatmul.f32.gmra.mxu0 %v10263
  %v10378 = vpop.f32.mrf.mxu0
  %v10379 = vadd.f32 0.0, %v10378
  %10380 = vmatmul.f32.gmra.mxu0 %v10266
  %v10381 = vpop.f32.mrf.mxu0
  %v10382 = vadd.f32 0.0, %v10381
  %10383 = vmatmul.f32.gmra.mxu0 %v10269
  %v10384 = vpop.f32.mrf.mxu0
  %v10385 = vadd.f32 0.0, %v10384
  %10386 = vmatmul.f32.gmra.mxu0 %v10272
  %v10387 = vpop.f32.mrf.mxu0
  %v10388 = vadd.f32 0.0, %v10387
  %10389 = vmatmul.f32.gmra.mxu0 %v10275
  %v10390 = vpop.f32.mrf.mxu0
  %v10391 = vadd.f32 0.0, %v10390
  %10392 = vmatmul.f32.gmra.mxu0 %v10278
  %v10393 = vpop.f32.mrf.mxu0
  %v10394 = vadd.f32 0.0, %v10393
  %10395 = vdwg.mxu0
  %v10396 = vrot.slane %v10298, 7
  %v10397 = vrot.slane %v10301, 7
  %v10398 = vrot.slane %v10304, 7
  %v10399 = vrot.slane %v10307, 7
  %v10400 = vrot.slane %v10310, 7
  %v10401 = vrot.slane %v10313, 7
  %v10402 = vrot.slane %v10316, 7
  %v10403 = vrot.slane %v10319, 7
  %v10404 = vrot.slane %v10322, 7
  %v10405 = vrot.slane %v10325, 7
  %v10406 = vrot.slane %v10328, 7
  %v10407 = vrot.slane %v10331, 7
  %v10408 = vrot.slane %v10334, 7
  %v10409 = vrot.slane %v10337, 7
  %v10410 = vrot.slane %v10340, 7
  %v10411 = vrot.slane %v10343, 7
  %v10412 = vrot.slane %v10346, 7
  %v10413 = vrot.slane %v10349, 7
  %v10414 = vrot.slane %v10352, 7
  %v10415 = vrot.slane %v10355, 7
  %v10416 = vrot.slane %v10358, 7
  %v10417 = vrot.slane %v10361, 7
  %v10418 = vrot.slane %v10364, 7
  %v10419 = vrot.slane %v10367, 7
  %v10420 = vrot.slane %v10370, 7
  %v10421 = vrot.slane %v10373, 7
  %v10422 = vrot.slane %v10376, 7
  %v10423 = vrot.slane %v10379, 7
  %v10424 = vrot.slane %v10382, 7
  %v10425 = vrot.slane %v10385, 7
  %v10426 = vrot.slane %v10388, 7
  %v10427 = vrot.slane %v10391, 7
  %v10428 = vrot.slane %v10394, 7
  %vm10429 = vcmp.lt.s32.totalorder %v846, 1
  %v10430 = vsel %vm10429, %v10427, %v10428
  %v10431 = vsel %vm10429, %v10426, %v10427
  %v10432 = vsel %vm10429, %v10425, %v10426
  %v10433 = vsel %vm10429, %v10424, %v10425
  %v10434 = vsel %vm10429, %v10423, %v10424
  %v10435 = vsel %vm10429, %v10422, %v10423
  %v10436 = vsel %vm10429, %v10421, %v10422
  %v10437 = vsel %vm10429, %v10420, %v10421
  %v10438 = vsel %vm10429, %v10419, %v10420
  %v10439 = vsel %vm10429, %v10418, %v10419
  %v10440 = vsel %vm10429, %v10417, %v10418
  %v10441 = vsel %vm10429, %v10416, %v10417
  %v10442 = vsel %vm10429, %v10415, %v10416
  %v10443 = vsel %vm10429, %v10414, %v10415
  %v10444 = vsel %vm10429, %v10413, %v10414
  %v10445 = vsel %vm10429, %v10412, %v10413
  %v10446 = vsel %vm10429, %v10411, %v10412
  %v10447 = vsel %vm10429, %v10410, %v10411
  %v10448 = vsel %vm10429, %v10409, %v10410
  %v10449 = vsel %vm10429, %v10408, %v10409
  %v10450 = vsel %vm10429, %v10407, %v10408
  %v10451 = vsel %vm10429, %v10406, %v10407
  %v10452 = vsel %vm10429, %v10405, %v10406
  %v10453 = vsel %vm10429, %v10404, %v10405
  %v10454 = vsel %vm10429, %v10403, %v10404
  %v10455 = vsel %vm10429, %v10402, %v10403
  %v10456 = vsel %vm10429, %v10401, %v10402
  %v10457 = vsel %vm10429, %v10400, %v10401
  %v10458 = vsel %vm10429, %v10399, %v10400
  %v10459 = vsel %vm10429, %v10398, %v10399
  %v10460 = vsel %vm10429, %v10397, %v10398
  %v10461 = vsel %vm10429, %v10396, %v10397
  %v10462 = vsel %vm10429, %v10428, %v10396
  %10464 = vset.pattern.permute.xlu0 1
  %10465 = vperm.xlu0 %10464, %v109
  %v10466 = vpop.permute.xlu0 %10465
  %10469 = vset.pattern.permute.xlu0 1
  %10470 = vperm.xlu0 %10469, %v110
  %v10471 = vpop.permute.xlu0 %10470
  %10474 = vset.pattern.permute.xlu0 1
  %10475 = vperm.xlu0 %10474, %v111
  %v10476 = vpop.permute.xlu0 %10475
  %10479 = vset.pattern.permute.xlu0 1
  %10480 = vperm.xlu0 %10479, %v112
  %v10481 = vpop.permute.xlu0 %10480
  %10484 = vset.pattern.permute.xlu0 1
  %10485 = vperm.xlu0 %10484, %v113
  %v10486 = vpop.permute.xlu0 %10485
  %10489 = vset.pattern.permute.xlu0 1
  %10490 = vperm.xlu0 %10489, %v114
  %v10491 = vpop.permute.xlu0 %10490
  %10494 = vset.pattern.permute.xlu0 1
  %10495 = vperm.xlu0 %10494, %v115
  %v10496 = vpop.permute.xlu0 %10495
  %10499 = vset.pattern.permute.xlu0 1
  %10500 = vperm.xlu0 %10499, %v116
  %v10501 = vpop.permute.xlu0 %10500
  %10504 = vset.pattern.permute.xlu0 1
  %10505 = vperm.xlu0 %10504, %v117
  %v10506 = vpop.permute.xlu0 %10505
  %10509 = vset.pattern.permute.xlu0 1
  %10510 = vperm.xlu0 %10509, %v118
  %v10511 = vpop.permute.xlu0 %10510
  %10514 = vset.pattern.permute.xlu0 1
  %10515 = vperm.xlu0 %10514, %v119
  %v10516 = vpop.permute.xlu0 %10515
  %10519 = vset.pattern.permute.xlu0 1
  %10520 = vperm.xlu0 %10519, %v120
  %v10521 = vpop.permute.xlu0 %10520
  %10524 = vset.pattern.permute.xlu0 1
  %10525 = vperm.xlu0 %10524, %v121
  %v10526 = vpop.permute.xlu0 %10525
  %10529 = vset.pattern.permute.xlu0 1
  %10530 = vperm.xlu0 %10529, %v122
  %v10531 = vpop.permute.xlu0 %10530
  %10534 = vset.pattern.permute.xlu0 1
  %10535 = vperm.xlu0 %10534, %v123
  %v10536 = vpop.permute.xlu0 %10535
  %10539 = vset.pattern.permute.xlu0 1
  %10540 = vperm.xlu0 %10539, %v124
  %v10541 = vpop.permute.xlu0 %10540
  %10544 = vset.pattern.permute.xlu0 1
  %10545 = vperm.xlu0 %10544, %v125
  %v10546 = vpop.permute.xlu0 %10545
  %10549 = vset.pattern.permute.xlu0 1
  %10550 = vperm.xlu0 %10549, %v126
  %v10551 = vpop.permute.xlu0 %10550
  %10554 = vset.pattern.permute.xlu0 1
  %10555 = vperm.xlu0 %10554, %v127
  %v10556 = vpop.permute.xlu0 %10555
  %10559 = vset.pattern.permute.xlu0 1
  %10560 = vperm.xlu0 %10559, %v128
  %v10561 = vpop.permute.xlu0 %10560
  %10564 = vset.pattern.permute.xlu0 1
  %10565 = vperm.xlu0 %10564, %v129
  %v10566 = vpop.permute.xlu0 %10565
  %10569 = vset.pattern.permute.xlu0 1
  %10570 = vperm.xlu0 %10569, %v130
  %v10571 = vpop.permute.xlu0 %10570
  %10574 = vset.pattern.permute.xlu0 1
  %10575 = vperm.xlu0 %10574, %v131
  %v10576 = vpop.permute.xlu0 %10575
  %10579 = vset.pattern.permute.xlu0 1
  %10580 = vperm.xlu0 %10579, %v132
  %v10581 = vpop.permute.xlu0 %10580
  %10584 = vset.pattern.permute.xlu0 1
  %10585 = vperm.xlu0 %10584, %v133
  %v10586 = vpop.permute.xlu0 %10585
  %10589 = vset.pattern.permute.xlu0 1
  %10590 = vperm.xlu0 %10589, %v134
  %v10591 = vpop.permute.xlu0 %10590
  %10594 = vset.pattern.permute.xlu0 1
  %10595 = vperm.xlu0 %10594, %v135
  %v10596 = vpop.permute.xlu0 %10595
  %10599 = vset.pattern.permute.xlu0 1
  %10600 = vperm.xlu0 %10599, %v136
  %v10601 = vpop.permute.xlu0 %10600
  %10604 = vset.pattern.permute.xlu0 1
  %10605 = vperm.xlu0 %10604, %v137
  %v10606 = vpop.permute.xlu0 %10605
  %10609 = vset.pattern.permute.xlu0 1
  %10610 = vperm.xlu0 %10609, %v138
  %v10611 = vpop.permute.xlu0 %10610
  %10614 = vset.pattern.permute.xlu0 1
  %10615 = vperm.xlu0 %10614, %v139
  %v10616 = vpop.permute.xlu0 %10615
  %10619 = vset.pattern.permute.xlu0 1
  %10620 = vperm.xlu0 %10619, %v140
  %v10621 = vpop.permute.xlu0 %10620
  %10624 = vset.pattern.permute.xlu0 1
  %10625 = vperm.xlu0 %10624, %v141
  %v10626 = vpop.permute.xlu0 %10625
  %v10628 = vmul.f32 %v10462, %v10466
  %v10629 = vmul.f32 %v10461, %v10471
  %v10630 = vmul.f32 %v10460, %v10476
  %v10631 = vmul.f32 %v10459, %v10481
  %v10632 = vmul.f32 %v10458, %v10486
  %v10633 = vmul.f32 %v10457, %v10491
  %v10634 = vmul.f32 %v10456, %v10496
  %v10635 = vmul.f32 %v10455, %v10501
  %v10636 = vmul.f32 %v10454, %v10506
  %v10637 = vmul.f32 %v10453, %v10511
  %v10638 = vmul.f32 %v10452, %v10516
  %v10639 = vmul.f32 %v10451, %v10521
  %v10640 = vmul.f32 %v10450, %v10526
  %v10641 = vmul.f32 %v10449, %v10531
  %v10642 = vmul.f32 %v10448, %v10536
  %v10643 = vmul.f32 %v10447, %v10541
  %v10644 = vmul.f32 %v10446, %v10546
  %v10645 = vmul.f32 %v10445, %v10551
  %v10646 = vmul.f32 %v10444, %v10556
  %v10647 = vmul.f32 %v10443, %v10561
  %v10648 = vmul.f32 %v10442, %v10566
  %v10649 = vmul.f32 %v10441, %v10571
  %v10650 = vmul.f32 %v10440, %v10576
  %v10651 = vmul.f32 %v10439, %v10581
  %v10652 = vmul.f32 %v10438, %v10586
  %v10653 = vmul.f32 %v10437, %v10591
  %v10654 = vmul.f32 %v10436, %v10596
  %v10655 = vmul.f32 %v10435, %v10601
  %v10656 = vmul.f32 %v10434, %v10606
  %v10657 = vmul.f32 %v10433, %v10611
  %v10658 = vmul.f32 %v10432, %v10616
  %v10659 = vmul.f32 %v10431, %v10621
  %v10660 = vmul.f32 %v10430, %v10626
  %10694 = vrot.lane.b32.xlu0 %v10298, 96
  %v10695 = vpop.permute.xlu0 %10694
  %10696 = vrot.lane.b32.xlu0 %v10301, 96
  %v10697 = vpop.permute.xlu0 %10696
  %10698 = vrot.lane.b32.xlu0 %v10304, 96
  %v10699 = vpop.permute.xlu0 %10698
  %10700 = vrot.lane.b32.xlu0 %v10307, 96
  %v10701 = vpop.permute.xlu0 %10700
  %10702 = vrot.lane.b32.xlu0 %v10310, 96
  %v10703 = vpop.permute.xlu0 %10702
  %10704 = vrot.lane.b32.xlu0 %v10313, 96
  %v10705 = vpop.permute.xlu0 %10704
  %10706 = vrot.lane.b32.xlu0 %v10316, 96
  %v10707 = vpop.permute.xlu0 %10706
  %10708 = vrot.lane.b32.xlu0 %v10319, 96
  %v10709 = vpop.permute.xlu0 %10708
  %10710 = vrot.lane.b32.xlu0 %v10322, 96
  %v10711 = vpop.permute.xlu0 %10710
  %10712 = vrot.lane.b32.xlu0 %v10325, 96
  %v10713 = vpop.permute.xlu0 %10712
  %10714 = vrot.lane.b32.xlu0 %v10328, 96
  %v10715 = vpop.permute.xlu0 %10714
  %10716 = vrot.lane.b32.xlu0 %v10331, 96
  %v10717 = vpop.permute.xlu0 %10716
  %10718 = vrot.lane.b32.xlu0 %v10334, 96
  %v10719 = vpop.permute.xlu0 %10718
  %10720 = vrot.lane.b32.xlu0 %v10337, 96
  %v10721 = vpop.permute.xlu0 %10720
  %10722 = vrot.lane.b32.xlu0 %v10340, 96
  %v10723 = vpop.permute.xlu0 %10722
  %10724 = vrot.lane.b32.xlu0 %v10343, 96
  %v10725 = vpop.permute.xlu0 %10724
  %10726 = vrot.lane.b32.xlu0 %v10346, 96
  %v10727 = vpop.permute.xlu0 %10726
  %10728 = vrot.lane.b32.xlu0 %v10349, 96
  %v10729 = vpop.permute.xlu0 %10728
  %10730 = vrot.lane.b32.xlu0 %v10352, 96
  %v10731 = vpop.permute.xlu0 %10730
  %10732 = vrot.lane.b32.xlu0 %v10355, 96
  %v10733 = vpop.permute.xlu0 %10732
  %10734 = vrot.lane.b32.xlu0 %v10358, 96
  %v10735 = vpop.permute.xlu0 %10734
  %10736 = vrot.lane.b32.xlu0 %v10361, 96
  %v10737 = vpop.permute.xlu0 %10736
  %10738 = vrot.lane.b32.xlu0 %v10364, 96
  %v10739 = vpop.permute.xlu0 %10738
  %10740 = vrot.lane.b32.xlu0 %v10367, 96
  %v10741 = vpop.permute.xlu0 %10740
  %10742 = vrot.lane.b32.xlu0 %v10370, 96
  %v10743 = vpop.permute.xlu0 %10742
  %10744 = vrot.lane.b32.xlu0 %v10373, 96
  %v10745 = vpop.permute.xlu0 %10744
  %10746 = vrot.lane.b32.xlu0 %v10376, 96
  %v10747 = vpop.permute.xlu0 %10746
  %10748 = vrot.lane.b32.xlu0 %v10379, 96
  %v10749 = vpop.permute.xlu0 %10748
  %10750 = vrot.lane.b32.xlu0 %v10382, 96
  %v10751 = vpop.permute.xlu0 %10750
  %10752 = vrot.lane.b32.xlu0 %v10385, 96
  %v10753 = vpop.permute.xlu0 %10752
  %10754 = vrot.lane.b32.xlu0 %v10388, 96
  %v10755 = vpop.permute.xlu0 %10754
  %10756 = vrot.lane.b32.xlu0 %v10391, 96
  %v10757 = vpop.permute.xlu0 %10756
  %10758 = vrot.lane.b32.xlu0 %v10394, 96
  %v10759 = vpop.permute.xlu0 %10758
  %v10793 = vadd.f32 %v10628, %v10695
  %v10794 = vadd.f32 %v10629, %v10697
  %v10795 = vadd.f32 %v10630, %v10699
  %v10796 = vadd.f32 %v10631, %v10701
  %v10797 = vadd.f32 %v10632, %v10703
  %v10798 = vadd.f32 %v10633, %v10705
  %v10799 = vadd.f32 %v10634, %v10707
  %v10800 = vadd.f32 %v10635, %v10709
  %v10801 = vadd.f32 %v10636, %v10711
  %v10802 = vadd.f32 %v10637, %v10713
  %v10803 = vadd.f32 %v10638, %v10715
  %v10804 = vadd.f32 %v10639, %v10717
  %v10805 = vadd.f32 %v10640, %v10719
  %v10806 = vadd.f32 %v10641, %v10721
  %v10807 = vadd.f32 %v10642, %v10723
  %v10808 = vadd.f32 %v10643, %v10725
  %v10809 = vadd.f32 %v10644, %v10727
  %v10810 = vadd.f32 %v10645, %v10729
  %v10811 = vadd.f32 %v10646, %v10731
  %v10812 = vadd.f32 %v10647, %v10733
  %v10813 = vadd.f32 %v10648, %v10735
  %v10814 = vadd.f32 %v10649, %v10737
  %v10815 = vadd.f32 %v10650, %v10739
  %v10816 = vadd.f32 %v10651, %v10741
  %v10817 = vadd.f32 %v10652, %v10743
  %v10818 = vadd.f32 %v10653, %v10745
  %v10819 = vadd.f32 %v10654, %v10747
  %v10820 = vadd.f32 %v10655, %v10749
  %v10821 = vadd.f32 %v10656, %v10751
  %v10822 = vadd.f32 %v10657, %v10753
  %v10823 = vadd.f32 %v10658, %v10755
  %v10824 = vadd.f32 %v10659, %v10757
  %v10825 = vadd.f32 %v10660, %v10759
  %10826 = vrot.lane.b32.xlu0 %v10298, 64
  %v10827 = vpop.permute.xlu0 %10826
  %10828 = vrot.lane.b32.xlu0 %v10301, 64
  %v10829 = vpop.permute.xlu0 %10828
  %10830 = vrot.lane.b32.xlu0 %v10304, 64
  %v10831 = vpop.permute.xlu0 %10830
  %10832 = vrot.lane.b32.xlu0 %v10307, 64
  %v10833 = vpop.permute.xlu0 %10832
  %10834 = vrot.lane.b32.xlu0 %v10310, 64
  %v10835 = vpop.permute.xlu0 %10834
  %10836 = vrot.lane.b32.xlu0 %v10313, 64
  %v10837 = vpop.permute.xlu0 %10836
  %10838 = vrot.lane.b32.xlu0 %v10316, 64
  %v10839 = vpop.permute.xlu0 %10838
  %10840 = vrot.lane.b32.xlu0 %v10319, 64
  %v10841 = vpop.permute.xlu0 %10840
  %10842 = vrot.lane.b32.xlu0 %v10322, 64
  %v10843 = vpop.permute.xlu0 %10842
  %10844 = vrot.lane.b32.xlu0 %v10325, 64
  %v10845 = vpop.permute.xlu0 %10844
  %10846 = vrot.lane.b32.xlu0 %v10328, 64
  %v10847 = vpop.permute.xlu0 %10846
  %10848 = vrot.lane.b32.xlu0 %v10331, 64
  %v10849 = vpop.permute.xlu0 %10848
  %10850 = vrot.lane.b32.xlu0 %v10334, 64
  %v10851 = vpop.permute.xlu0 %10850
  %10852 = vrot.lane.b32.xlu0 %v10337, 64
  %v10853 = vpop.permute.xlu0 %10852
  %10854 = vrot.lane.b32.xlu0 %v10340, 64
  %v10855 = vpop.permute.xlu0 %10854
  %10856 = vrot.lane.b32.xlu0 %v10343, 64
  %v10857 = vpop.permute.xlu0 %10856
  %10858 = vrot.lane.b32.xlu0 %v10346, 64
  %v10859 = vpop.permute.xlu0 %10858
  %10860 = vrot.lane.b32.xlu0 %v10349, 64
  %v10861 = vpop.permute.xlu0 %10860
  %10862 = vrot.lane.b32.xlu0 %v10352, 64
  %v10863 = vpop.permute.xlu0 %10862
  %10864 = vrot.lane.b32.xlu0 %v10355, 64
  %v10865 = vpop.permute.xlu0 %10864
  %10866 = vrot.lane.b32.xlu0 %v10358, 64
  %v10867 = vpop.permute.xlu0 %10866
  %10868 = vrot.lane.b32.xlu0 %v10361, 64
  %v10869 = vpop.permute.xlu0 %10868
  %10870 = vrot.lane.b32.xlu0 %v10364, 64
  %v10871 = vpop.permute.xlu0 %10870
  %10872 = vrot.lane.b32.xlu0 %v10367, 64
  %v10873 = vpop.permute.xlu0 %10872
  %10874 = vrot.lane.b32.xlu0 %v10370, 64
  %v10875 = vpop.permute.xlu0 %10874
  %10876 = vrot.lane.b32.xlu0 %v10373, 64
  %v10877 = vpop.permute.xlu0 %10876
  %10878 = vrot.lane.b32.xlu0 %v10376, 64
  %v10879 = vpop.permute.xlu0 %10878
  %10880 = vrot.lane.b32.xlu0 %v10379, 64
  %v10881 = vpop.permute.xlu0 %10880
  %10882 = vrot.lane.b32.xlu0 %v10382, 64
  %v10883 = vpop.permute.xlu0 %10882
  %10884 = vrot.lane.b32.xlu0 %v10385, 64
  %v10885 = vpop.permute.xlu0 %10884
  %10886 = vrot.lane.b32.xlu0 %v10388, 64
  %v10887 = vpop.permute.xlu0 %10886
  %10888 = vrot.lane.b32.xlu0 %v10391, 64
  %v10889 = vpop.permute.xlu0 %10888
  %10890 = vrot.lane.b32.xlu0 %v10394, 64
  %v10891 = vpop.permute.xlu0 %10890
  %v10925 = vrot.slane %v10827, 1
  %v10926 = vrot.slane %v10829, 1
  %v10927 = vrot.slane %v10831, 1
  %v10928 = vrot.slane %v10833, 1
  %v10929 = vrot.slane %v10835, 1
  %v10930 = vrot.slane %v10837, 1
  %v10931 = vrot.slane %v10839, 1
  %v10932 = vrot.slane %v10841, 1
  %v10933 = vrot.slane %v10843, 1
  %v10934 = vrot.slane %v10845, 1
  %v10935 = vrot.slane %v10847, 1
  %v10936 = vrot.slane %v10849, 1
  %v10937 = vrot.slane %v10851, 1
  %v10938 = vrot.slane %v10853, 1
  %v10939 = vrot.slane %v10855, 1
  %v10940 = vrot.slane %v10857, 1
  %v10941 = vrot.slane %v10859, 1
  %v10942 = vrot.slane %v10861, 1
  %v10943 = vrot.slane %v10863, 1
  %v10944 = vrot.slane %v10865, 1
  %v10945 = vrot.slane %v10867, 1
  %v10946 = vrot.slane %v10869, 1
  %v10947 = vrot.slane %v10871, 1
  %v10948 = vrot.slane %v10873, 1
  %v10949 = vrot.slane %v10875, 1
  %v10950 = vrot.slane %v10877, 1
  %v10951 = vrot.slane %v10879, 1
  %v10952 = vrot.slane %v10881, 1
  %v10953 = vrot.slane %v10883, 1
  %v10954 = vrot.slane %v10885, 1
  %v10955 = vrot.slane %v10887, 1
  %v10956 = vrot.slane %v10889, 1
  %v10957 = vrot.slane %v10891, 1
  %vm10958 = vcmp.lt.s32.totalorder %v846, 7
  %v10959 = vsel %vm10958, %v10956, %v10957
  %v10960 = vsel %vm10958, %v10955, %v10956
  %v10961 = vsel %vm10958, %v10954, %v10955
  %v10962 = vsel %vm10958, %v10953, %v10954
  %v10963 = vsel %vm10958, %v10952, %v10953
  %v10964 = vsel %vm10958, %v10951, %v10952
  %v10965 = vsel %vm10958, %v10950, %v10951
  %v10966 = vsel %vm10958, %v10949, %v10950
  %v10967 = vsel %vm10958, %v10948, %v10949
  %v10968 = vsel %vm10958, %v10947, %v10948
  %v10969 = vsel %vm10958, %v10946, %v10947
  %v10970 = vsel %vm10958, %v10945, %v10946
  %v10971 = vsel %vm10958, %v10944, %v10945
  %v10972 = vsel %vm10958, %v10943, %v10944
  %v10973 = vsel %vm10958, %v10942, %v10943
  %v10974 = vsel %vm10958, %v10941, %v10942
  %v10975 = vsel %vm10958, %v10940, %v10941
  %v10976 = vsel %vm10958, %v10939, %v10940
  %v10977 = vsel %vm10958, %v10938, %v10939
  %v10978 = vsel %vm10958, %v10937, %v10938
  %v10979 = vsel %vm10958, %v10936, %v10937
  %v10980 = vsel %vm10958, %v10935, %v10936
  %v10981 = vsel %vm10958, %v10934, %v10935
  %v10982 = vsel %vm10958, %v10933, %v10934
  %v10983 = vsel %vm10958, %v10932, %v10933
  %v10984 = vsel %vm10958, %v10931, %v10932
  %v10985 = vsel %vm10958, %v10930, %v10931
  %v10986 = vsel %vm10958, %v10929, %v10930
  %v10987 = vsel %vm10958, %v10928, %v10929
  %v10988 = vsel %vm10958, %v10927, %v10928
  %v10989 = vsel %vm10958, %v10926, %v10927
  %v10990 = vsel %vm10958, %v10925, %v10926
  %v10991 = vsel %vm10958, %v10957, %v10925
  %10992 = vset.pattern.permute.xlu0 2
  %10993 = vperm.xlu0 %10992, %v109
  %v10994 = vpop.permute.xlu0 %10993
  %10996 = vset.pattern.permute.xlu0 2
  %10997 = vperm.xlu0 %10996, %v110
  %v10998 = vpop.permute.xlu0 %10997
  %11000 = vset.pattern.permute.xlu0 2
  %11001 = vperm.xlu0 %11000, %v111
  %v11002 = vpop.permute.xlu0 %11001
  %11004 = vset.pattern.permute.xlu0 2
  %11005 = vperm.xlu0 %11004, %v112
  %v11006 = vpop.permute.xlu0 %11005
  %11008 = vset.pattern.permute.xlu0 2
  %11009 = vperm.xlu0 %11008, %v113
  %v11010 = vpop.permute.xlu0 %11009
  %11012 = vset.pattern.permute.xlu0 2
  %11013 = vperm.xlu0 %11012, %v114
  %v11014 = vpop.permute.xlu0 %11013
  %11016 = vset.pattern.permute.xlu0 2
  %11017 = vperm.xlu0 %11016, %v115
  %v11018 = vpop.permute.xlu0 %11017
  %11020 = vset.pattern.permute.xlu0 2
  %11021 = vperm.xlu0 %11020, %v116
  %v11022 = vpop.permute.xlu0 %11021
  %11024 = vset.pattern.permute.xlu0 2
  %11025 = vperm.xlu0 %11024, %v117
  %v11026 = vpop.permute.xlu0 %11025
  %11028 = vset.pattern.permute.xlu0 2
  %11029 = vperm.xlu0 %11028, %v118
  %v11030 = vpop.permute.xlu0 %11029
  %11032 = vset.pattern.permute.xlu0 2
  %11033 = vperm.xlu0 %11032, %v119
  %v11034 = vpop.permute.xlu0 %11033
  %11036 = vset.pattern.permute.xlu0 2
  %11037 = vperm.xlu0 %11036, %v120
  %v11038 = vpop.permute.xlu0 %11037
  %11040 = vset.pattern.permute.xlu0 2
  %11041 = vperm.xlu0 %11040, %v121
  %v11042 = vpop.permute.xlu0 %11041
  %11044 = vset.pattern.permute.xlu0 2
  %11045 = vperm.xlu0 %11044, %v122
  %v11046 = vpop.permute.xlu0 %11045
  %11048 = vset.pattern.permute.xlu0 2
  %11049 = vperm.xlu0 %11048, %v123
  %v11050 = vpop.permute.xlu0 %11049
  %11052 = vset.pattern.permute.xlu0 2
  %11053 = vperm.xlu0 %11052, %v124
  %v11054 = vpop.permute.xlu0 %11053
  %11056 = vset.pattern.permute.xlu0 2
  %11057 = vperm.xlu0 %11056, %v125
  %v11058 = vpop.permute.xlu0 %11057
  %11060 = vset.pattern.permute.xlu0 2
  %11061 = vperm.xlu0 %11060, %v126
  %v11062 = vpop.permute.xlu0 %11061
  %11064 = vset.pattern.permute.xlu0 2
  %11065 = vperm.xlu0 %11064, %v127
  %v11066 = vpop.permute.xlu0 %11065
  %11068 = vset.pattern.permute.xlu0 2
  %11069 = vperm.xlu0 %11068, %v128
  %v11070 = vpop.permute.xlu0 %11069
  %11072 = vset.pattern.permute.xlu0 2
  %11073 = vperm.xlu0 %11072, %v129
  %v11074 = vpop.permute.xlu0 %11073
  %11076 = vset.pattern.permute.xlu0 2
  %11077 = vperm.xlu0 %11076, %v130
  %v11078 = vpop.permute.xlu0 %11077
  %11080 = vset.pattern.permute.xlu0 2
  %11081 = vperm.xlu0 %11080, %v131
  %v11082 = vpop.permute.xlu0 %11081
  %11084 = vset.pattern.permute.xlu0 2
  %11085 = vperm.xlu0 %11084, %v132
  %v11086 = vpop.permute.xlu0 %11085
  %11088 = vset.pattern.permute.xlu0 2
  %11089 = vperm.xlu0 %11088, %v133
  %v11090 = vpop.permute.xlu0 %11089
  %11092 = vset.pattern.permute.xlu0 2
  %11093 = vperm.xlu0 %11092, %v134
  %v11094 = vpop.permute.xlu0 %11093
  %11096 = vset.pattern.permute.xlu0 2
  %11097 = vperm.xlu0 %11096, %v135
  %v11098 = vpop.permute.xlu0 %11097
  %11100 = vset.pattern.permute.xlu0 2
  %11101 = vperm.xlu0 %11100, %v136
  %v11102 = vpop.permute.xlu0 %11101
  %11104 = vset.pattern.permute.xlu0 2
  %11105 = vperm.xlu0 %11104, %v137
  %v11106 = vpop.permute.xlu0 %11105
  %11108 = vset.pattern.permute.xlu0 2
  %11109 = vperm.xlu0 %11108, %v138
  %v11110 = vpop.permute.xlu0 %11109
  %11112 = vset.pattern.permute.xlu0 2
  %11113 = vperm.xlu0 %11112, %v139
  %v11114 = vpop.permute.xlu0 %11113
  %11116 = vset.pattern.permute.xlu0 2
  %11117 = vperm.xlu0 %11116, %v140
  %v11118 = vpop.permute.xlu0 %11117
  %11120 = vset.pattern.permute.xlu0 2
  %11121 = vperm.xlu0 %11120, %v141
  %v11122 = vpop.permute.xlu0 %11121
  %v11124 = vmul.f32 %v10990, %v10994
  %v11125 = vmul.f32 %v10989, %v10998
  %v11126 = vmul.f32 %v10988, %v11002
  %v11127 = vmul.f32 %v10987, %v11006
  %v11128 = vmul.f32 %v10986, %v11010
  %v11129 = vmul.f32 %v10985, %v11014
  %v11130 = vmul.f32 %v10984, %v11018
  %v11131 = vmul.f32 %v10983, %v11022
  %v11132 = vmul.f32 %v10982, %v11026
  %v11133 = vmul.f32 %v10981, %v11030
  %v11134 = vmul.f32 %v10980, %v11034
  %v11135 = vmul.f32 %v10979, %v11038
  %v11136 = vmul.f32 %v10978, %v11042
  %v11137 = vmul.f32 %v10977, %v11046
  %v11138 = vmul.f32 %v10976, %v11050
  %v11139 = vmul.f32 %v10975, %v11054
  %v11140 = vmul.f32 %v10974, %v11058
  %v11141 = vmul.f32 %v10973, %v11062
  %v11142 = vmul.f32 %v10972, %v11066
  %v11143 = vmul.f32 %v10971, %v11070
  %v11144 = vmul.f32 %v10970, %v11074
  %v11145 = vmul.f32 %v10969, %v11078
  %v11146 = vmul.f32 %v10968, %v11082
  %v11147 = vmul.f32 %v10967, %v11086
  %v11148 = vmul.f32 %v10966, %v11090
  %v11149 = vmul.f32 %v10965, %v11094
  %v11150 = vmul.f32 %v10964, %v11098
  %v11151 = vmul.f32 %v10963, %v11102
  %v11152 = vmul.f32 %v10962, %v11106
  %v11153 = vmul.f32 %v10961, %v11110
  %v11154 = vmul.f32 %v10960, %v11114
  %v11155 = vmul.f32 %v10959, %v11118
  %v11156 = vmul.f32 %v10991, %v11122
  %v11157 = vadd.f32 %v10793, %v11124
  %v11158 = vadd.f32 %v10794, %v11125
  %v11159 = vadd.f32 %v10795, %v11126
  %v11160 = vadd.f32 %v10796, %v11127
  %v11161 = vadd.f32 %v10797, %v11128
  %v11162 = vadd.f32 %v10798, %v11129
  %v11163 = vadd.f32 %v10799, %v11130
  %v11164 = vadd.f32 %v10800, %v11131
  %v11165 = vadd.f32 %v10801, %v11132
  %v11166 = vadd.f32 %v10802, %v11133
  %v11167 = vadd.f32 %v10803, %v11134
  %v11168 = vadd.f32 %v10804, %v11135
  %v11169 = vadd.f32 %v10805, %v11136
  %v11170 = vadd.f32 %v10806, %v11137
  %v11171 = vadd.f32 %v10807, %v11138
  %v11172 = vadd.f32 %v10808, %v11139
  %v11173 = vadd.f32 %v10809, %v11140
  %v11174 = vadd.f32 %v10810, %v11141
  %v11175 = vadd.f32 %v10811, %v11142
  %v11176 = vadd.f32 %v10812, %v11143
  %v11177 = vadd.f32 %v10813, %v11144
  %v11178 = vadd.f32 %v10814, %v11145
  %v11179 = vadd.f32 %v10815, %v11146
  %v11180 = vadd.f32 %v10816, %v11147
  %v11181 = vadd.f32 %v10817, %v11148
  %v11182 = vadd.f32 %v10818, %v11149
  %v11183 = vadd.f32 %v10819, %v11150
  %v11184 = vadd.f32 %v10820, %v11151
  %v11185 = vadd.f32 %v10821, %v11152
  %v11186 = vadd.f32 %v10822, %v11153
  %v11187 = vadd.f32 %v10823, %v11154
  %v11188 = vadd.f32 %v10824, %v11155
  %v11189 = vadd.f32 %v10825, %v11156
  %v11190 = vperm.slane %v73, 0
  %v11191 = vmul.f32 %v11157, %v11190
  %v11192 = vmul.f32 %v11158, %v11190
  %v11193 = vmul.f32 %v11159, %v11190
  %v11194 = vmul.f32 %v11160, %v11190
  %v11195 = vmul.f32 %v11161, %v11190
  %v11196 = vmul.f32 %v11162, %v11190
  %v11197 = vmul.f32 %v11163, %v11190
  %v11198 = vmul.f32 %v11164, %v11190
  %v11199 = vmul.f32 %v11165, %v11190
  %v11200 = vmul.f32 %v11166, %v11190
  %v11201 = vmul.f32 %v11167, %v11190
  %v11202 = vmul.f32 %v11168, %v11190
  %v11203 = vmul.f32 %v11169, %v11190
  %v11204 = vmul.f32 %v11170, %v11190
  %v11205 = vmul.f32 %v11171, %v11190
  %v11206 = vmul.f32 %v11172, %v11190
  %v11207 = vmul.f32 %v11173, %v11190
  %v11208 = vmul.f32 %v11174, %v11190
  %v11209 = vmul.f32 %v11175, %v11190
  %v11210 = vmul.f32 %v11176, %v11190
  %v11211 = vmul.f32 %v11177, %v11190
  %v11212 = vmul.f32 %v11178, %v11190
  %v11213 = vmul.f32 %v11179, %v11190
  %v11214 = vmul.f32 %v11180, %v11190
  %v11215 = vmul.f32 %v11181, %v11190
  %v11216 = vmul.f32 %v11182, %v11190
  %v11217 = vmul.f32 %v11183, %v11190
  %v11218 = vmul.f32 %v11184, %v11190
  %v11219 = vmul.f32 %v11185, %v11190
  %v11220 = vmul.f32 %v11186, %v11190
  %v11221 = vmul.f32 %v11187, %v11190
  %v11222 = vmul.f32 %v11188, %v11190
  %v11223 = vmul.f32 %v11189, %v11190
  %v11224 = vperm.slane %v74, 0
  %v11225 = vadd.f32 %v11191, %v11224
  %v11226 = vadd.f32 %v11192, %v11224
  %v11227 = vadd.f32 %v11193, %v11224
  %v11228 = vadd.f32 %v11194, %v11224
  %v11229 = vadd.f32 %v11195, %v11224
  %v11230 = vadd.f32 %v11196, %v11224
  %v11231 = vadd.f32 %v11197, %v11224
  %v11232 = vadd.f32 %v11198, %v11224
  %v11233 = vadd.f32 %v11199, %v11224
  %v11234 = vadd.f32 %v11200, %v11224
  %v11235 = vadd.f32 %v11201, %v11224
  %v11236 = vadd.f32 %v11202, %v11224
  %v11237 = vadd.f32 %v11203, %v11224
  %v11238 = vadd.f32 %v11204, %v11224
  %v11239 = vadd.f32 %v11205, %v11224
  %v11240 = vadd.f32 %v11206, %v11224
  %v11241 = vadd.f32 %v11207, %v11224
  %v11242 = vadd.f32 %v11208, %v11224
  %v11243 = vadd.f32 %v11209, %v11224
  %v11244 = vadd.f32 %v11210, %v11224
  %v11245 = vadd.f32 %v11211, %v11224
  %v11246 = vadd.f32 %v11212, %v11224
  %v11247 = vadd.f32 %v11213, %v11224
  %v11248 = vadd.f32 %v11214, %v11224
  %v11249 = vadd.f32 %v11215, %v11224
  %v11250 = vadd.f32 %v11216, %v11224
  %v11251 = vadd.f32 %v11217, %v11224
  %v11252 = vadd.f32 %v11218, %v11224
  %v11253 = vadd.f32 %v11219, %v11224
  %v11254 = vadd.f32 %v11220, %v11224
  %v11255 = vadd.f32 %v11221, %v11224
  %v11256 = vadd.f32 %v11222, %v11224
  %v11257 = vadd.f32 %v11223, %v11224
  %v11258 = vxor.u32 %v11225, 2147483648
  %v11259 = vxor.u32 %v11226, 2147483648
  %v11260 = vxor.u32 %v11227, 2147483648
  %v11261 = vxor.u32 %v11228, 2147483648
  %v11262 = vxor.u32 %v11229, 2147483648
  %v11263 = vxor.u32 %v11230, 2147483648
  %v11264 = vxor.u32 %v11231, 2147483648
  %v11265 = vxor.u32 %v11232, 2147483648
  %v11266 = vxor.u32 %v11233, 2147483648
  %v11267 = vxor.u32 %v11234, 2147483648
  %v11268 = vxor.u32 %v11235, 2147483648
  %v11269 = vxor.u32 %v11236, 2147483648
  %v11270 = vxor.u32 %v11237, 2147483648
  %v11271 = vxor.u32 %v11238, 2147483648
  %v11272 = vxor.u32 %v11239, 2147483648
  %v11273 = vxor.u32 %v11240, 2147483648
  %v11274 = vxor.u32 %v11241, 2147483648
  %v11275 = vxor.u32 %v11242, 2147483648
  %v11276 = vxor.u32 %v11243, 2147483648
  %v11277 = vxor.u32 %v11244, 2147483648
  %v11278 = vxor.u32 %v11245, 2147483648
  %v11279 = vxor.u32 %v11246, 2147483648
  %v11280 = vxor.u32 %v11247, 2147483648
  %v11281 = vxor.u32 %v11248, 2147483648
  %v11282 = vxor.u32 %v11249, 2147483648
  %v11283 = vxor.u32 %v11250, 2147483648
  %v11284 = vxor.u32 %v11251, 2147483648
  %v11285 = vxor.u32 %v11252, 2147483648
  %v11286 = vxor.u32 %v11253, 2147483648
  %v11287 = vxor.u32 %v11254, 2147483648
  %v11288 = vxor.u32 %v11255, 2147483648
  %v11289 = vxor.u32 %v11256, 2147483648
  %v11290 = vxor.u32 %v11257, 2147483648
  %v11291 = vmul.f32 %v11258, 1.442695
  %v11292 = vpow.pop %v11291
  %v11293 = vmul.f32 %v11259, 1.442695
  %v11294 = vpow.pop %v11293
  %v11295 = vmul.f32 %v11260, 1.442695
  %v11296 = vpow.pop %v11295
  %v11297 = vmul.f32 %v11261, 1.442695
  %v11298 = vpow.pop %v11297
  %v11299 = vmul.f32 %v11262, 1.442695
  %v11300 = vpow.pop %v11299
  %v11301 = vmul.f32 %v11263, 1.442695
  %v11302 = vpow.pop %v11301
  %v11303 = vmul.f32 %v11264, 1.442695
  %v11304 = vpow.pop %v11303
  %v11305 = vmul.f32 %v11265, 1.442695
  %v11306 = vpow.pop %v11305
  %v11307 = vmul.f32 %v11266, 1.442695
  %v11308 = vpow.pop %v11307
  %v11309 = vmul.f32 %v11267, 1.442695
  %v11310 = vpow.pop %v11309
  %v11311 = vmul.f32 %v11268, 1.442695
  %v11312 = vpow.pop %v11311
  %v11313 = vmul.f32 %v11269, 1.442695
  %v11314 = vpow.pop %v11313
  %v11315 = vmul.f32 %v11270, 1.442695
  %v11316 = vpow.pop %v11315
  %v11317 = vmul.f32 %v11271, 1.442695
  %v11318 = vpow.pop %v11317
  %v11319 = vmul.f32 %v11272, 1.442695
  %v11320 = vpow.pop %v11319
  %v11321 = vmul.f32 %v11273, 1.442695
  %v11322 = vpow.pop %v11321
  %v11323 = vmul.f32 %v11274, 1.442695
  %v11324 = vpow.pop %v11323
  %v11325 = vmul.f32 %v11275, 1.442695
  %v11326 = vpow.pop %v11325
  %v11327 = vmul.f32 %v11276, 1.442695
  %v11328 = vpow.pop %v11327
  %v11329 = vmul.f32 %v11277, 1.442695
  %v11330 = vpow.pop %v11329
  %v11331 = vmul.f32 %v11278, 1.442695
  %v11332 = vpow.pop %v11331
  %v11333 = vmul.f32 %v11279, 1.442695
  %v11334 = vpow.pop %v11333
  %v11335 = vmul.f32 %v11280, 1.442695
  %v11336 = vpow.pop %v11335
  %v11337 = vmul.f32 %v11281, 1.442695
  %v11338 = vpow.pop %v11337
  %v11339 = vmul.f32 %v11282, 1.442695
  %v11340 = vpow.pop %v11339
  %v11341 = vmul.f32 %v11283, 1.442695
  %v11342 = vpow.pop %v11341
  %v11343 = vmul.f32 %v11284, 1.442695
  %v11344 = vpow.pop %v11343
  %v11345 = vmul.f32 %v11285, 1.442695
  %v11346 = vpow.pop %v11345
  %v11347 = vmul.f32 %v11286, 1.442695
  %v11348 = vpow.pop %v11347
  %v11349 = vmul.f32 %v11287, 1.442695
  %v11350 = vpow.pop %v11349
  %v11351 = vmul.f32 %v11288, 1.442695
  %v11352 = vpow.pop %v11351
  %v11353 = vmul.f32 %v11289, 1.442695
  %v11354 = vpow.pop %v11353
  %v11355 = vmul.f32 %v11290, 1.442695
  %v11356 = vpow.pop %v11355
  %v11357 = vadd.f32 %v11292, 1.0
  %v11358 = vadd.f32 %v11294, 1.0
  %v11359 = vadd.f32 %v11296, 1.0
  %v11360 = vadd.f32 %v11298, 1.0
  %v11361 = vadd.f32 %v11300, 1.0
  %v11362 = vadd.f32 %v11302, 1.0
  %v11363 = vadd.f32 %v11304, 1.0
  %v11364 = vadd.f32 %v11306, 1.0
  %v11365 = vadd.f32 %v11308, 1.0
  %v11366 = vadd.f32 %v11310, 1.0
  %v11367 = vadd.f32 %v11312, 1.0
  %v11368 = vadd.f32 %v11314, 1.0
  %v11369 = vadd.f32 %v11316, 1.0
  %v11370 = vadd.f32 %v11318, 1.0
  %v11371 = vadd.f32 %v11320, 1.0
  %v11372 = vadd.f32 %v11322, 1.0
  %v11373 = vadd.f32 %v11324, 1.0
  %v11374 = vadd.f32 %v11326, 1.0
  %v11375 = vadd.f32 %v11328, 1.0
  %v11376 = vadd.f32 %v11330, 1.0
  %v11377 = vadd.f32 %v11332, 1.0
  %v11378 = vadd.f32 %v11334, 1.0
  %v11379 = vadd.f32 %v11336, 1.0
  %v11380 = vadd.f32 %v11338, 1.0
  %v11381 = vadd.f32 %v11340, 1.0
  %v11382 = vadd.f32 %v11342, 1.0
  %v11383 = vadd.f32 %v11344, 1.0
  %v11384 = vadd.f32 %v11346, 1.0
  %v11385 = vadd.f32 %v11348, 1.0
  %v11386 = vadd.f32 %v11350, 1.0
  %v11387 = vadd.f32 %v11352, 1.0
  %v11388 = vadd.f32 %v11354, 1.0
  %v11389 = vadd.f32 %v11356, 1.0
  %v11390 = vrcp.pop %v11357
  %v11391 = vmul.f32 %v11357, %v11390
  %v11392 = vsub.f32 1.0, %v11391
  %v11393 = vmul.f32 %v11390, %v11392
  %v11394 = vadd.f32 %v11390, %v11393
  %vm11395 = vweird.f32 %v11357
  %vm11396 = vweird.f32 %v11390
  %vm11397 = vmor %vm11395, %vm11396
  %v11398 = vsel %vm11397, %v11390, %v11394
  %v11399 = vand.u32 2147483647, %v11357
  %vm11400 = vcmp.eq.f32.partialorder %v11399, 8.507059e+37
  %v11401 = vand.u32 %v11357, 2147483648
  %v11402 = vor.u32 1.1754944e-38, %v11401
  %v11403 = vsel %vm11400, %v11402, %v11398
  %v11404 = vmul.f32 1.0, %v11403
  %v11405 = vrcp.pop %v11358
  %v11406 = vmul.f32 %v11358, %v11405
  %v11407 = vsub.f32 1.0, %v11406
  %v11408 = vmul.f32 %v11405, %v11407
  %v11409 = vadd.f32 %v11405, %v11408
  %vm11410 = vweird.f32 %v11358
  %vm11411 = vweird.f32 %v11405
  %vm11412 = vmor %vm11410, %vm11411
  %v11413 = vsel %vm11412, %v11405, %v11409
  %v11414 = vand.u32 2147483647, %v11358
  %vm11415 = vcmp.eq.f32.partialorder %v11414, 8.507059e+37
  %v11416 = vand.u32 %v11358, 2147483648
  %v11417 = vor.u32 1.1754944e-38, %v11416
  %v11418 = vsel %vm11415, %v11417, %v11413
  %v11419 = vmul.f32 1.0, %v11418
  %v11420 = vrcp.pop %v11359
  %v11421 = vmul.f32 %v11359, %v11420
  %v11422 = vsub.f32 1.0, %v11421
  %v11423 = vmul.f32 %v11420, %v11422
  %v11424 = vadd.f32 %v11420, %v11423
  %vm11425 = vweird.f32 %v11359
  %vm11426 = vweird.f32 %v11420
  %vm11427 = vmor %vm11425, %vm11426
  %v11428 = vsel %vm11427, %v11420, %v11424
  %v11429 = vand.u32 2147483647, %v11359
  %vm11430 = vcmp.eq.f32.partialorder %v11429, 8.507059e+37
  %v11431 = vand.u32 %v11359, 2147483648
  %v11432 = vor.u32 1.1754944e-38, %v11431
  %v11433 = vsel %vm11430, %v11432, %v11428
  %v11434 = vmul.f32 1.0, %v11433
  %v11435 = vrcp.pop %v11360
  %v11436 = vmul.f32 %v11360, %v11435
  %v11437 = vsub.f32 1.0, %v11436
  %v11438 = vmul.f32 %v11435, %v11437
  %v11439 = vadd.f32 %v11435, %v11438
  %vm11440 = vweird.f32 %v11360
  %vm11441 = vweird.f32 %v11435
  %vm11442 = vmor %vm11440, %vm11441
  %v11443 = vsel %vm11442, %v11435, %v11439
  %v11444 = vand.u32 2147483647, %v11360
  %vm11445 = vcmp.eq.f32.partialorder %v11444, 8.507059e+37
  %v11446 = vand.u32 %v11360, 2147483648
  %v11447 = vor.u32 1.1754944e-38, %v11446
  %v11448 = vsel %vm11445, %v11447, %v11443
  %v11449 = vmul.f32 1.0, %v11448
  %v11450 = vrcp.pop %v11361
  %v11451 = vmul.f32 %v11361, %v11450
  %v11452 = vsub.f32 1.0, %v11451
  %v11453 = vmul.f32 %v11450, %v11452
  %v11454 = vadd.f32 %v11450, %v11453
  %vm11455 = vweird.f32 %v11361
  %vm11456 = vweird.f32 %v11450
  %vm11457 = vmor %vm11455, %vm11456
  %v11458 = vsel %vm11457, %v11450, %v11454
  %v11459 = vand.u32 2147483647, %v11361
  %vm11460 = vcmp.eq.f32.partialorder %v11459, 8.507059e+37
  %v11461 = vand.u32 %v11361, 2147483648
  %v11462 = vor.u32 1.1754944e-38, %v11461
  %v11463 = vsel %vm11460, %v11462, %v11458
  %v11464 = vmul.f32 1.0, %v11463
  %v11465 = vrcp.pop %v11362
  %v11466 = vmul.f32 %v11362, %v11465
  %v11467 = vsub.f32 1.0, %v11466
  %v11468 = vmul.f32 %v11465, %v11467
  %v11469 = vadd.f32 %v11465, %v11468
  %vm11470 = vweird.f32 %v11362
  %vm11471 = vweird.f32 %v11465
  %vm11472 = vmor %vm11470, %vm11471
  %v11473 = vsel %vm11472, %v11465, %v11469
  %v11474 = vand.u32 2147483647, %v11362
  %vm11475 = vcmp.eq.f32.partialorder %v11474, 8.507059e+37
  %v11476 = vand.u32 %v11362, 2147483648
  %v11477 = vor.u32 1.1754944e-38, %v11476
  %v11478 = vsel %vm11475, %v11477, %v11473
  %v11479 = vmul.f32 1.0, %v11478
  %v11480 = vrcp.pop %v11363
  %v11481 = vmul.f32 %v11363, %v11480
  %v11482 = vsub.f32 1.0, %v11481
  %v11483 = vmul.f32 %v11480, %v11482
  %v11484 = vadd.f32 %v11480, %v11483
  %vm11485 = vweird.f32 %v11363
  %vm11486 = vweird.f32 %v11480
  %vm11487 = vmor %vm11485, %vm11486
  %v11488 = vsel %vm11487, %v11480, %v11484
  %v11489 = vand.u32 2147483647, %v11363
  %vm11490 = vcmp.eq.f32.partialorder %v11489, 8.507059e+37
  %v11491 = vand.u32 %v11363, 2147483648
  %v11492 = vor.u32 1.1754944e-38, %v11491
  %v11493 = vsel %vm11490, %v11492, %v11488
  %v11494 = vmul.f32 1.0, %v11493
  %v11495 = vrcp.pop %v11364
  %v11496 = vmul.f32 %v11364, %v11495
  %v11497 = vsub.f32 1.0, %v11496
  %v11498 = vmul.f32 %v11495, %v11497
  %v11499 = vadd.f32 %v11495, %v11498
  %vm11500 = vweird.f32 %v11364
  %vm11501 = vweird.f32 %v11495
  %vm11502 = vmor %vm11500, %vm11501
  %v11503 = vsel %vm11502, %v11495, %v11499
  %v11504 = vand.u32 2147483647, %v11364
  %vm11505 = vcmp.eq.f32.partialorder %v11504, 8.507059e+37
  %v11506 = vand.u32 %v11364, 2147483648
  %v11507 = vor.u32 1.1754944e-38, %v11506
  %v11508 = vsel %vm11505, %v11507, %v11503
  %v11509 = vmul.f32 1.0, %v11508
  %v11510 = vrcp.pop %v11365
  %v11511 = vmul.f32 %v11365, %v11510
  %v11512 = vsub.f32 1.0, %v11511
  %v11513 = vmul.f32 %v11510, %v11512
  %v11514 = vadd.f32 %v11510, %v11513
  %vm11515 = vweird.f32 %v11365
  %vm11516 = vweird.f32 %v11510
  %vm11517 = vmor %vm11515, %vm11516
  %v11518 = vsel %vm11517, %v11510, %v11514
  %v11519 = vand.u32 2147483647, %v11365
  %vm11520 = vcmp.eq.f32.partialorder %v11519, 8.507059e+37
  %v11521 = vand.u32 %v11365, 2147483648
  %v11522 = vor.u32 1.1754944e-38, %v11521
  %v11523 = vsel %vm11520, %v11522, %v11518
  %v11524 = vmul.f32 1.0, %v11523
  %v11525 = vrcp.pop %v11366
  %v11526 = vmul.f32 %v11366, %v11525
  %v11527 = vsub.f32 1.0, %v11526
  %v11528 = vmul.f32 %v11525, %v11527
  %v11529 = vadd.f32 %v11525, %v11528
  %vm11530 = vweird.f32 %v11366
  %vm11531 = vweird.f32 %v11525
  %vm11532 = vmor %vm11530, %vm11531
  %v11533 = vsel %vm11532, %v11525, %v11529
  %v11534 = vand.u32 2147483647, %v11366
  %vm11535 = vcmp.eq.f32.partialorder %v11534, 8.507059e+37
  %v11536 = vand.u32 %v11366, 2147483648
  %v11537 = vor.u32 1.1754944e-38, %v11536
  %v11538 = vsel %vm11535, %v11537, %v11533
  %v11539 = vmul.f32 1.0, %v11538
  %v11540 = vrcp.pop %v11367
  %v11541 = vmul.f32 %v11367, %v11540
  %v11542 = vsub.f32 1.0, %v11541
  %v11543 = vmul.f32 %v11540, %v11542
  %v11544 = vadd.f32 %v11540, %v11543
  %vm11545 = vweird.f32 %v11367
  %vm11546 = vweird.f32 %v11540
  %vm11547 = vmor %vm11545, %vm11546
  %v11548 = vsel %vm11547, %v11540, %v11544
  %v11549 = vand.u32 2147483647, %v11367
  %vm11550 = vcmp.eq.f32.partialorder %v11549, 8.507059e+37
  %v11551 = vand.u32 %v11367, 2147483648
  %v11552 = vor.u32 1.1754944e-38, %v11551
  %v11553 = vsel %vm11550, %v11552, %v11548
  %v11554 = vmul.f32 1.0, %v11553
  %v11555 = vrcp.pop %v11368
  %v11556 = vmul.f32 %v11368, %v11555
  %v11557 = vsub.f32 1.0, %v11556
  %v11558 = vmul.f32 %v11555, %v11557
  %v11559 = vadd.f32 %v11555, %v11558
  %vm11560 = vweird.f32 %v11368
  %vm11561 = vweird.f32 %v11555
  %vm11562 = vmor %vm11560, %vm11561
  %v11563 = vsel %vm11562, %v11555, %v11559
  %v11564 = vand.u32 2147483647, %v11368
  %vm11565 = vcmp.eq.f32.partialorder %v11564, 8.507059e+37
  %v11566 = vand.u32 %v11368, 2147483648
  %v11567 = vor.u32 1.1754944e-38, %v11566
  %v11568 = vsel %vm11565, %v11567, %v11563
  %v11569 = vmul.f32 1.0, %v11568
  %v11570 = vrcp.pop %v11369
  %v11571 = vmul.f32 %v11369, %v11570
  %v11572 = vsub.f32 1.0, %v11571
  %v11573 = vmul.f32 %v11570, %v11572
  %v11574 = vadd.f32 %v11570, %v11573
  %vm11575 = vweird.f32 %v11369
  %vm11576 = vweird.f32 %v11570
  %vm11577 = vmor %vm11575, %vm11576
  %v11578 = vsel %vm11577, %v11570, %v11574
  %v11579 = vand.u32 2147483647, %v11369
  %vm11580 = vcmp.eq.f32.partialorder %v11579, 8.507059e+37
  %v11581 = vand.u32 %v11369, 2147483648
  %v11582 = vor.u32 1.1754944e-38, %v11581
  %v11583 = vsel %vm11580, %v11582, %v11578
  %v11584 = vmul.f32 1.0, %v11583
  %v11585 = vrcp.pop %v11370
  %v11586 = vmul.f32 %v11370, %v11585
  %v11587 = vsub.f32 1.0, %v11586
  %v11588 = vmul.f32 %v11585, %v11587
  %v11589 = vadd.f32 %v11585, %v11588
  %vm11590 = vweird.f32 %v11370
  %vm11591 = vweird.f32 %v11585
  %vm11592 = vmor %vm11590, %vm11591
  %v11593 = vsel %vm11592, %v11585, %v11589
  %v11594 = vand.u32 2147483647, %v11370
  %vm11595 = vcmp.eq.f32.partialorder %v11594, 8.507059e+37
  %v11596 = vand.u32 %v11370, 2147483648
  %v11597 = vor.u32 1.1754944e-38, %v11596
  %v11598 = vsel %vm11595, %v11597, %v11593
  %v11599 = vmul.f32 1.0, %v11598
  %v11600 = vrcp.pop %v11371
  %v11601 = vmul.f32 %v11371, %v11600
  %v11602 = vsub.f32 1.0, %v11601
  %v11603 = vmul.f32 %v11600, %v11602
  %v11604 = vadd.f32 %v11600, %v11603
  %vm11605 = vweird.f32 %v11371
  %vm11606 = vweird.f32 %v11600
  %vm11607 = vmor %vm11605, %vm11606
  %v11608 = vsel %vm11607, %v11600, %v11604
  %v11609 = vand.u32 2147483647, %v11371
  %vm11610 = vcmp.eq.f32.partialorder %v11609, 8.507059e+37
  %v11611 = vand.u32 %v11371, 2147483648
  %v11612 = vor.u32 1.1754944e-38, %v11611
  %v11613 = vsel %vm11610, %v11612, %v11608
  %v11614 = vmul.f32 1.0, %v11613
  %v11615 = vrcp.pop %v11372
  %v11616 = vmul.f32 %v11372, %v11615
  %v11617 = vsub.f32 1.0, %v11616
  %v11618 = vmul.f32 %v11615, %v11617
  %v11619 = vadd.f32 %v11615, %v11618
  %vm11620 = vweird.f32 %v11372
  %vm11621 = vweird.f32 %v11615
  %vm11622 = vmor %vm11620, %vm11621
  %v11623 = vsel %vm11622, %v11615, %v11619
  %v11624 = vand.u32 2147483647, %v11372
  %vm11625 = vcmp.eq.f32.partialorder %v11624, 8.507059e+37
  %v11626 = vand.u32 %v11372, 2147483648
  %v11627 = vor.u32 1.1754944e-38, %v11626
  %v11628 = vsel %vm11625, %v11627, %v11623
  %v11629 = vmul.f32 1.0, %v11628
  %v11630 = vrcp.pop %v11373
  %v11631 = vmul.f32 %v11373, %v11630
  %v11632 = vsub.f32 1.0, %v11631
  %v11633 = vmul.f32 %v11630, %v11632
  %v11634 = vadd.f32 %v11630, %v11633
  %vm11635 = vweird.f32 %v11373
  %vm11636 = vweird.f32 %v11630
  %vm11637 = vmor %vm11635, %vm11636
  %v11638 = vsel %vm11637, %v11630, %v11634
  %v11639 = vand.u32 2147483647, %v11373
  %vm11640 = vcmp.eq.f32.partialorder %v11639, 8.507059e+37
  %v11641 = vand.u32 %v11373, 2147483648
  %v11642 = vor.u32 1.1754944e-38, %v11641
  %v11643 = vsel %vm11640, %v11642, %v11638
  %v11644 = vmul.f32 1.0, %v11643
  %v11645 = vrcp.pop %v11374
  %v11646 = vmul.f32 %v11374, %v11645
  %v11647 = vsub.f32 1.0, %v11646
  %v11648 = vmul.f32 %v11645, %v11647
  %v11649 = vadd.f32 %v11645, %v11648
  %vm11650 = vweird.f32 %v11374
  %vm11651 = vweird.f32 %v11645
  %vm11652 = vmor %vm11650, %vm11651
  %v11653 = vsel %vm11652, %v11645, %v11649
  %v11654 = vand.u32 2147483647, %v11374
  %vm11655 = vcmp.eq.f32.partialorder %v11654, 8.507059e+37
  %v11656 = vand.u32 %v11374, 2147483648
  %v11657 = vor.u32 1.1754944e-38, %v11656
  %v11658 = vsel %vm11655, %v11657, %v11653
  %v11659 = vmul.f32 1.0, %v11658
  %v11660 = vrcp.pop %v11375
  %v11661 = vmul.f32 %v11375, %v11660
  %v11662 = vsub.f32 1.0, %v11661
  %v11663 = vmul.f32 %v11660, %v11662
  %v11664 = vadd.f32 %v11660, %v11663
  %vm11665 = vweird.f32 %v11375
  %vm11666 = vweird.f32 %v11660
  %vm11667 = vmor %vm11665, %vm11666
  %v11668 = vsel %vm11667, %v11660, %v11664
  %v11669 = vand.u32 2147483647, %v11375
  %vm11670 = vcmp.eq.f32.partialorder %v11669, 8.507059e+37
  %v11671 = vand.u32 %v11375, 2147483648
  %v11672 = vor.u32 1.1754944e-38, %v11671
  %v11673 = vsel %vm11670, %v11672, %v11668
  %v11674 = vmul.f32 1.0, %v11673
  %v11675 = vrcp.pop %v11376
  %v11676 = vmul.f32 %v11376, %v11675
  %v11677 = vsub.f32 1.0, %v11676
  %v11678 = vmul.f32 %v11675, %v11677
  %v11679 = vadd.f32 %v11675, %v11678
  %vm11680 = vweird.f32 %v11376
  %vm11681 = vweird.f32 %v11675
  %vm11682 = vmor %vm11680, %vm11681
  %v11683 = vsel %vm11682, %v11675, %v11679
  %v11684 = vand.u32 2147483647, %v11376
  %vm11685 = vcmp.eq.f32.partialorder %v11684, 8.507059e+37
  %v11686 = vand.u32 %v11376, 2147483648
  %v11687 = vor.u32 1.1754944e-38, %v11686
  %v11688 = vsel %vm11685, %v11687, %v11683
  %v11689 = vmul.f32 1.0, %v11688
  %v11690 = vrcp.pop %v11377
  %v11691 = vmul.f32 %v11377, %v11690
  %v11692 = vsub.f32 1.0, %v11691
  %v11693 = vmul.f32 %v11690, %v11692
  %v11694 = vadd.f32 %v11690, %v11693
  %vm11695 = vweird.f32 %v11377
  %vm11696 = vweird.f32 %v11690
  %vm11697 = vmor %vm11695, %vm11696
  %v11698 = vsel %vm11697, %v11690, %v11694
  %v11699 = vand.u32 2147483647, %v11377
  %vm11700 = vcmp.eq.f32.partialorder %v11699, 8.507059e+37
  %v11701 = vand.u32 %v11377, 2147483648
  %v11702 = vor.u32 1.1754944e-38, %v11701
  %v11703 = vsel %vm11700, %v11702, %v11698
  %v11704 = vmul.f32 1.0, %v11703
  %v11705 = vrcp.pop %v11378
  %v11706 = vmul.f32 %v11378, %v11705
  %v11707 = vsub.f32 1.0, %v11706
  %v11708 = vmul.f32 %v11705, %v11707
  %v11709 = vadd.f32 %v11705, %v11708
  %vm11710 = vweird.f32 %v11378
  %vm11711 = vweird.f32 %v11705
  %vm11712 = vmor %vm11710, %vm11711
  %v11713 = vsel %vm11712, %v11705, %v11709
  %v11714 = vand.u32 2147483647, %v11378
  %vm11715 = vcmp.eq.f32.partialorder %v11714, 8.507059e+37
  %v11716 = vand.u32 %v11378, 2147483648
  %v11717 = vor.u32 1.1754944e-38, %v11716
  %v11718 = vsel %vm11715, %v11717, %v11713
  %v11719 = vmul.f32 1.0, %v11718
  %v11720 = vrcp.pop %v11379
  %v11721 = vmul.f32 %v11379, %v11720
  %v11722 = vsub.f32 1.0, %v11721
  %v11723 = vmul.f32 %v11720, %v11722
  %v11724 = vadd.f32 %v11720, %v11723
  %vm11725 = vweird.f32 %v11379
  %vm11726 = vweird.f32 %v11720
  %vm11727 = vmor %vm11725, %vm11726
  %v11728 = vsel %vm11727, %v11720, %v11724
  %v11729 = vand.u32 2147483647, %v11379
  %vm11730 = vcmp.eq.f32.partialorder %v11729, 8.507059e+37
  %v11731 = vand.u32 %v11379, 2147483648
  %v11732 = vor.u32 1.1754944e-38, %v11731
  %v11733 = vsel %vm11730, %v11732, %v11728
  %v11734 = vmul.f32 1.0, %v11733
  %v11735 = vrcp.pop %v11380
  %v11736 = vmul.f32 %v11380, %v11735
  %v11737 = vsub.f32 1.0, %v11736
  %v11738 = vmul.f32 %v11735, %v11737
  %v11739 = vadd.f32 %v11735, %v11738
  %vm11740 = vweird.f32 %v11380
  %vm11741 = vweird.f32 %v11735
  %vm11742 = vmor %vm11740, %vm11741
  %v11743 = vsel %vm11742, %v11735, %v11739
  %v11744 = vand.u32 2147483647, %v11380
  %vm11745 = vcmp.eq.f32.partialorder %v11744, 8.507059e+37
  %v11746 = vand.u32 %v11380, 2147483648
  %v11747 = vor.u32 1.1754944e-38, %v11746
  %v11748 = vsel %vm11745, %v11747, %v11743
  %v11749 = vmul.f32 1.0, %v11748
  %v11750 = vrcp.pop %v11381
  %v11751 = vmul.f32 %v11381, %v11750
  %v11752 = vsub.f32 1.0, %v11751
  %v11753 = vmul.f32 %v11750, %v11752
  %v11754 = vadd.f32 %v11750, %v11753
  %vm11755 = vweird.f32 %v11381
  %vm11756 = vweird.f32 %v11750
  %vm11757 = vmor %vm11755, %vm11756
  %v11758 = vsel %vm11757, %v11750, %v11754
  %v11759 = vand.u32 2147483647, %v11381
  %vm11760 = vcmp.eq.f32.partialorder %v11759, 8.507059e+37
  %v11761 = vand.u32 %v11381, 2147483648
  %v11762 = vor.u32 1.1754944e-38, %v11761
  %v11763 = vsel %vm11760, %v11762, %v11758
  %v11764 = vmul.f32 1.0, %v11763
  %v11765 = vrcp.pop %v11382
  %v11766 = vmul.f32 %v11382, %v11765
  %v11767 = vsub.f32 1.0, %v11766
  %v11768 = vmul.f32 %v11765, %v11767
  %v11769 = vadd.f32 %v11765, %v11768
  %vm11770 = vweird.f32 %v11382
  %vm11771 = vweird.f32 %v11765
  %vm11772 = vmor %vm11770, %vm11771
  %v11773 = vsel %vm11772, %v11765, %v11769
  %v11774 = vand.u32 2147483647, %v11382
  %vm11775 = vcmp.eq.f32.partialorder %v11774, 8.507059e+37
  %v11776 = vand.u32 %v11382, 2147483648
  %v11777 = vor.u32 1.1754944e-38, %v11776
  %v11778 = vsel %vm11775, %v11777, %v11773
  %v11779 = vmul.f32 1.0, %v11778
  %v11780 = vrcp.pop %v11383
  %v11781 = vmul.f32 %v11383, %v11780
  %v11782 = vsub.f32 1.0, %v11781
  %v11783 = vmul.f32 %v11780, %v11782
  %v11784 = vadd.f32 %v11780, %v11783
  %vm11785 = vweird.f32 %v11383
  %vm11786 = vweird.f32 %v11780
  %vm11787 = vmor %vm11785, %vm11786
  %v11788 = vsel %vm11787, %v11780, %v11784
  %v11789 = vand.u32 2147483647, %v11383
  %vm11790 = vcmp.eq.f32.partialorder %v11789, 8.507059e+37
  %v11791 = vand.u32 %v11383, 2147483648
  %v11792 = vor.u32 1.1754944e-38, %v11791
  %v11793 = vsel %vm11790, %v11792, %v11788
  %v11794 = vmul.f32 1.0, %v11793
  %v11795 = vrcp.pop %v11384
  %v11796 = vmul.f32 %v11384, %v11795
  %v11797 = vsub.f32 1.0, %v11796
  %v11798 = vmul.f32 %v11795, %v11797
  %v11799 = vadd.f32 %v11795, %v11798
  %vm11800 = vweird.f32 %v11384
  %vm11801 = vweird.f32 %v11795
  %vm11802 = vmor %vm11800, %vm11801
  %v11803 = vsel %vm11802, %v11795, %v11799
  %v11804 = vand.u32 2147483647, %v11384
  %vm11805 = vcmp.eq.f32.partialorder %v11804, 8.507059e+37
  %v11806 = vand.u32 %v11384, 2147483648
  %v11807 = vor.u32 1.1754944e-38, %v11806
  %v11808 = vsel %vm11805, %v11807, %v11803
  %v11809 = vmul.f32 1.0, %v11808
  %v11810 = vrcp.pop %v11385
  %v11811 = vmul.f32 %v11385, %v11810
  %v11812 = vsub.f32 1.0, %v11811
  %v11813 = vmul.f32 %v11810, %v11812
  %v11814 = vadd.f32 %v11810, %v11813
  %vm11815 = vweird.f32 %v11385
  %vm11816 = vweird.f32 %v11810
  %vm11817 = vmor %vm11815, %vm11816
  %v11818 = vsel %vm11817, %v11810, %v11814
  %v11819 = vand.u32 2147483647, %v11385
  %vm11820 = vcmp.eq.f32.partialorder %v11819, 8.507059e+37
  %v11821 = vand.u32 %v11385, 2147483648
  %v11822 = vor.u32 1.1754944e-38, %v11821
  %v11823 = vsel %vm11820, %v11822, %v11818
  %v11824 = vmul.f32 1.0, %v11823
  %v11825 = vrcp.pop %v11386
  %v11826 = vmul.f32 %v11386, %v11825
  %v11827 = vsub.f32 1.0, %v11826
  %v11828 = vmul.f32 %v11825, %v11827
  %v11829 = vadd.f32 %v11825, %v11828
  %vm11830 = vweird.f32 %v11386
  %vm11831 = vweird.f32 %v11825
  %vm11832 = vmor %vm11830, %vm11831
  %v11833 = vsel %vm11832, %v11825, %v11829
  %v11834 = vand.u32 2147483647, %v11386
  %vm11835 = vcmp.eq.f32.partialorder %v11834, 8.507059e+37
  %v11836 = vand.u32 %v11386, 2147483648
  %v11837 = vor.u32 1.1754944e-38, %v11836
  %v11838 = vsel %vm11835, %v11837, %v11833
  %v11839 = vmul.f32 1.0, %v11838
  %v11840 = vrcp.pop %v11387
  %v11841 = vmul.f32 %v11387, %v11840
  %v11842 = vsub.f32 1.0, %v11841
  %v11843 = vmul.f32 %v11840, %v11842
  %v11844 = vadd.f32 %v11840, %v11843
  %vm11845 = vweird.f32 %v11387
  %vm11846 = vweird.f32 %v11840
  %vm11847 = vmor %vm11845, %vm11846
  %v11848 = vsel %vm11847, %v11840, %v11844
  %v11849 = vand.u32 2147483647, %v11387
  %vm11850 = vcmp.eq.f32.partialorder %v11849, 8.507059e+37
  %v11851 = vand.u32 %v11387, 2147483648
  %v11852 = vor.u32 1.1754944e-38, %v11851
  %v11853 = vsel %vm11850, %v11852, %v11848
  %v11854 = vmul.f32 1.0, %v11853
  %v11855 = vrcp.pop %v11388
  %v11856 = vmul.f32 %v11388, %v11855
  %v11857 = vsub.f32 1.0, %v11856
  %v11858 = vmul.f32 %v11855, %v11857
  %v11859 = vadd.f32 %v11855, %v11858
  %vm11860 = vweird.f32 %v11388
  %vm11861 = vweird.f32 %v11855
  %vm11862 = vmor %vm11860, %vm11861
  %v11863 = vsel %vm11862, %v11855, %v11859
  %v11864 = vand.u32 2147483647, %v11388
  %vm11865 = vcmp.eq.f32.partialorder %v11864, 8.507059e+37
  %v11866 = vand.u32 %v11388, 2147483648
  %v11867 = vor.u32 1.1754944e-38, %v11866
  %v11868 = vsel %vm11865, %v11867, %v11863
  %v11869 = vmul.f32 1.0, %v11868
  %v11870 = vrcp.pop %v11389
  %v11871 = vmul.f32 %v11389, %v11870
  %v11872 = vsub.f32 1.0, %v11871
  %v11873 = vmul.f32 %v11870, %v11872
  %v11874 = vadd.f32 %v11870, %v11873
  %vm11875 = vweird.f32 %v11389
  %vm11876 = vweird.f32 %v11870
  %vm11877 = vmor %vm11875, %vm11876
  %v11878 = vsel %vm11877, %v11870, %v11874
  %v11879 = vand.u32 2147483647, %v11389
  %vm11880 = vcmp.eq.f32.partialorder %v11879, 8.507059e+37
  %v11881 = vand.u32 %v11389, 2147483648
  %v11882 = vor.u32 1.1754944e-38, %v11881
  %v11883 = vsel %vm11880, %v11882, %v11878
  %v11884 = vmul.f32 1.0, %v11883
  %v11885 = vmul.f32 %v11225, %v11404
  %v11886 = vmul.f32 %v11226, %v11419
  %v11887 = vmul.f32 %v11227, %v11434
  %v11888 = vmul.f32 %v11228, %v11449
  %v11889 = vmul.f32 %v11229, %v11464
  %v11890 = vmul.f32 %v11230, %v11479
  %v11891 = vmul.f32 %v11231, %v11494
  %v11892 = vmul.f32 %v11232, %v11509
  %v11893 = vmul.f32 %v11233, %v11524
  %v11894 = vmul.f32 %v11234, %v11539
  %v11895 = vmul.f32 %v11235, %v11554
  %v11896 = vmul.f32 %v11236, %v11569
  %v11897 = vmul.f32 %v11237, %v11584
  %v11898 = vmul.f32 %v11238, %v11599
  %v11899 = vmul.f32 %v11239, %v11614
  %v11900 = vmul.f32 %v11240, %v11629
  %v11901 = vmul.f32 %v11241, %v11644
  %v11902 = vmul.f32 %v11242, %v11659
  %v11903 = vmul.f32 %v11243, %v11674
  %v11904 = vmul.f32 %v11244, %v11689
  %v11905 = vmul.f32 %v11245, %v11704
  %v11906 = vmul.f32 %v11246, %v11719
  %v11907 = vmul.f32 %v11247, %v11734
  %v11908 = vmul.f32 %v11248, %v11749
  %v11909 = vmul.f32 %v11249, %v11764
  %v11910 = vmul.f32 %v11250, %v11779
  %v11911 = vmul.f32 %v11251, %v11794
  %v11912 = vmul.f32 %v11252, %v11809
  %v11913 = vmul.f32 %v11253, %v11824
  %v11914 = vmul.f32 %v11254, %v11839
  %v11915 = vmul.f32 %v11255, %v11854
  %v11916 = vmul.f32 %v11256, %v11869
  %v11917 = vmul.f32 %v11257, %v11884
  %v11918 = vadd.f32 %v10140, %v11885
  %v11919 = vadd.f32 %v10141, %v11886
  %v11920 = vadd.f32 %v10142, %v11887
  %v11921 = vadd.f32 %v10143, %v11888
  %v11922 = vadd.f32 %v10144, %v11889
  %v11923 = vadd.f32 %v10145, %v11890
  %v11924 = vadd.f32 %v10146, %v11891
  %v11925 = vadd.f32 %v10147, %v11892
  %v11926 = vadd.f32 %v10148, %v11893
  %v11927 = vadd.f32 %v10149, %v11894
  %v11928 = vadd.f32 %v10150, %v11895
  %v11929 = vadd.f32 %v10151, %v11896
  %v11930 = vadd.f32 %v10152, %v11897
  %v11931 = vadd.f32 %v10153, %v11898
  %v11932 = vadd.f32 %v10154, %v11899
  %v11933 = vadd.f32 %v10155, %v11900
  %v11934 = vadd.f32 %v10156, %v11901
  %v11935 = vadd.f32 %v10157, %v11902
  %v11936 = vadd.f32 %v10158, %v11903
  %v11937 = vadd.f32 %v10159, %v11904
  %v11938 = vadd.f32 %v10160, %v11905
  %v11939 = vadd.f32 %v10161, %v11906
  %v11940 = vadd.f32 %v10162, %v11907
  %v11941 = vadd.f32 %v10163, %v11908
  %v11942 = vadd.f32 %v10164, %v11909
  %v11943 = vadd.f32 %v10165, %v11910
  %v11944 = vadd.f32 %v10166, %v11911
  %v11945 = vadd.f32 %v10167, %v11912
  %v11946 = vadd.f32 %v10168, %v11913
  %v11947 = vadd.f32 %v10169, %v11914
  %v11948 = vadd.f32 %v10170, %v11915
  %v11949 = vadd.f32 %v10171, %v11916
  %v11950 = vadd.f32 %v10172, %v11917
  %v11951 = vperm.slane %v75, 0
  %v11952 = vmul.f32 %v11918, %v11951
  %v11953 = vmul.f32 %v11919, %v11951
  %v11954 = vmul.f32 %v11920, %v11951
  %v11955 = vmul.f32 %v11921, %v11951
  %v11956 = vmul.f32 %v11922, %v11951
  %v11957 = vmul.f32 %v11923, %v11951
  %v11958 = vmul.f32 %v11924, %v11951
  %v11959 = vmul.f32 %v11925, %v11951
  %v11960 = vmul.f32 %v11926, %v11951
  %v11961 = vmul.f32 %v11927, %v11951
  %v11962 = vmul.f32 %v11928, %v11951
  %v11963 = vmul.f32 %v11929, %v11951
  %v11964 = vmul.f32 %v11930, %v11951
  %v11965 = vmul.f32 %v11931, %v11951
  %v11966 = vmul.f32 %v11932, %v11951
  %v11967 = vmul.f32 %v11933, %v11951
  %v11968 = vmul.f32 %v11934, %v11951
  %v11969 = vmul.f32 %v11935, %v11951
  %v11970 = vmul.f32 %v11936, %v11951
  %v11971 = vmul.f32 %v11937, %v11951
  %v11972 = vmul.f32 %v11938, %v11951
  %v11973 = vmul.f32 %v11939, %v11951
  %v11974 = vmul.f32 %v11940, %v11951
  %v11975 = vmul.f32 %v11941, %v11951
  %v11976 = vmul.f32 %v11942, %v11951
  %v11977 = vmul.f32 %v11943, %v11951
  %v11978 = vmul.f32 %v11944, %v11951
  %v11979 = vmul.f32 %v11945, %v11951
  %v11980 = vmul.f32 %v11946, %v11951
  %v11981 = vmul.f32 %v11947, %v11951
  %v11982 = vmul.f32 %v11948, %v11951
  %v11983 = vmul.f32 %v11949, %v11951
  %v11984 = vmul.f32 %v11950, %v11951
  %v11985 = vadd.f32 %v35, %v11952
  %v11986 = vadd.f32 %v36, %v11953
  %v11987 = vadd.f32 %v37, %v11954
  %v11988 = vadd.f32 %v38, %v11955
  %v11989 = vadd.f32 %v39, %v11956
  %v11990 = vadd.f32 %v40, %v11957
  %v11991 = vadd.f32 %v41, %v11958
  %v11992 = vadd.f32 %v42, %v11959
  %v11993 = vadd.f32 %v43, %v11960
  %v11994 = vadd.f32 %v44, %v11961
  %v11995 = vadd.f32 %v45, %v11962
  %v11996 = vadd.f32 %v46, %v11963
  %v11997 = vadd.f32 %v47, %v11964
  %v11998 = vadd.f32 %v48, %v11965
  %v11999 = vadd.f32 %v49, %v11966
  %v12000 = vadd.f32 %v50, %v11967
  %v12001 = vadd.f32 %v51, %v11968
  %v12002 = vadd.f32 %v52, %v11969
  %v12003 = vadd.f32 %v53, %v11970
  %v12004 = vadd.f32 %v54, %v11971
  %v12005 = vadd.f32 %v55, %v11972
  %v12006 = vadd.f32 %v56, %v11973
  %v12007 = vadd.f32 %v57, %v11974
  %v12008 = vadd.f32 %v58, %v11975
  %v12009 = vadd.f32 %v59, %v11976
  %v12010 = vadd.f32 %v60, %v11977
  %v12011 = vadd.f32 %v61, %v11978
  %v12012 = vadd.f32 %v62, %v11979
  %v12013 = vadd.f32 %v63, %v11980
  %v12014 = vadd.f32 %v64, %v11981
  %v12015 = vadd.f32 %v65, %v11982
  %v12016 = vadd.f32 %v66, %v11983
  %v12017 = vadd.f32 %v67, %v11984
  %12018 = vst.msk [vmem:[%s10] sm:$0xff] %vm1057, %v11985
  %12019 = vst.msk [vmem:[%s10 + $0x8] sm:$0xff] %vm1057, %v11986
  %12020 = vst.msk [vmem:[%s10 + $0x10] sm:$0xff] %vm1057, %v11987
  %12021 = vst.msk [vmem:[%s10 + $0x18] sm:$0xff] %vm1057, %v11988
  %12022 = vst.msk [vmem:[%s10 + $0x20] sm:$0xff] %vm1057, %v11989
  %12023 = vst.msk [vmem:[%s10 + $0x28] sm:$0xff] %vm1057, %v11990
  %12024 = vst.msk [vmem:[%s10 + $0x30] sm:$0xff] %vm1057, %v11991
  %12025 = vst.msk [vmem:[%s10 + $0x38] sm:$0xff] %vm1057, %v11992
  %12026 = vst.msk [vmem:[%s10 + $0x40] sm:$0xff] %vm1057, %v11993
  %12027 = vst.msk [vmem:[%s10 + $0x48] sm:$0xff] %vm1057, %v11994
  %12028 = vst.msk [vmem:[%s10 + $0x50] sm:$0xff] %vm1057, %v11995
  %12029 = vst.msk [vmem:[%s10 + $0x58] sm:$0xff] %vm1057, %v11996
  %12030 = vst.msk [vmem:[%s10 + $0x60] sm:$0xff] %vm1057, %v11997
  %12031 = vst.msk [vmem:[%s10 + $0x68] sm:$0xff] %vm1057, %v11998
  %12032 = vst.msk [vmem:[%s10 + $0x70] sm:$0xff] %vm1057, %v11999
  %12033 = vst.msk [vmem:[%s10 + $0x78] sm:$0xff] %vm1057, %v12000
  %12034 = vst.msk [vmem:[%s10 + $0x80] sm:$0xff] %vm1057, %v12001
  %12035 = vst.msk [vmem:[%s10 + $0x88] sm:$0xff] %vm1057, %v12002
  %12036 = vst.msk [vmem:[%s10 + $0x90] sm:$0xff] %vm1057, %v12003
  %12037 = vst.msk [vmem:[%s10 + $0x98] sm:$0xff] %vm1057, %v12004
  %12038 = vst.msk [vmem:[%s10 + $0xa0] sm:$0xff] %vm1057, %v12005
  %12039 = vst.msk [vmem:[%s10 + $0xa8] sm:$0xff] %vm1057, %v12006
  %12040 = vst.msk [vmem:[%s10 + $0xb0] sm:$0xff] %vm1057, %v12007
  %12041 = vst.msk [vmem:[%s10 + $0xb8] sm:$0xff] %vm1057, %v12008
  %12042 = vst.msk [vmem:[%s10 + $0xc0] sm:$0xff] %vm1057, %v12009
  %12043 = vst.msk [vmem:[%s10 + $0xc8] sm:$0xff] %vm1057, %v12010
  %12044 = vst.msk [vmem:[%s10 + $0xd0] sm:$0xff] %vm1057, %v12011
  %12045 = vst.msk [vmem:[%s10 + $0xd8] sm:$0xff] %vm1057, %v12012
  %12046 = vst.msk [vmem:[%s10 + $0xe0] sm:$0xff] %vm1057, %v12013
  %12047 = vst.msk [vmem:[%s10 + $0xe8] sm:$0xff] %vm1057, %v12014
  %12048 = vst.msk [vmem:[%s10 + $0xf0] sm:$0xff] %vm1057, %v12015
  %12049 = vst.msk [vmem:[%s10 + $0xf8] sm:$0xff] %vm1057, %v12016
  %12050 = vst.msk [vmem:[%s10 + $0x100] sm:$0xff] %vm1057, %v12017
  // Predicated region
  $region42: #{tpu_custom_call.1} parent=0 // pred_check
    _
  $region43: #{tpu_custom_call.1} parent=0 // pred_check_branch
    %12052 = sbr.rel (0) target = $region45
  $region44: #{tpu_custom_call.1} parent=0 // pred_region
    _
  $region45: #{tpu_custom_call.1} parent=0 // pred_fallthru
    _
  // Predicated region
  $region46: #{tpu_custom_call.1} parent=0 // pred_check
    _
  $region47: #{tpu_custom_call.1} parent=0 // pred_check_branch
    %12054 = sbr.rel (0) target = $region49
  $region48: #{tpu_custom_call.1} parent=0 // pred_region
    _
  $region49: #{tpu_custom_call.1} parent=0 // pred_fallthru
    _

</llo_original>
